<compile_context>
chip_gen: v5e
topology: v5e:2x2
jax: 0.10.0
libtpu: 0.0.40
codegen_flags: <defaults>
</compile_context>

<pallas_src>
import functools
import math

import jax
import jax.numpy as jnp
from jax.experimental import pallas as pl
from jax.experimental.pallas import tpu as pltpu

_BN_EPS = 1e-5


def _bf16(x):
    return x.astype(jnp.bfloat16)


# --------------------------- in-kernel building blocks -----------------------

def _im2col_k3(x):
    """x: [B, L, C] -> [B*L, 3*C] im2col for a k=3, pad=1 conv (zero halo per sample)."""
    B, L, C = x.shape
    z = jnp.zeros((B, 1, C), x.dtype)
    xm1 = jnp.concatenate([z, x[:, :L - 1, :]], axis=1)   # tap l-1
    xp1 = jnp.concatenate([x[:, 1:, :], z], axis=1)       # tap l+1
    return jnp.concatenate([xm1, x, xp1], axis=-1).reshape(B * L, 3 * C)


def _maxpool2_from_ref(ref):
    """MaxPool1d(2, 2) via strided even/odd row reads of a VMEM ref."""
    B, L, C = ref.shape
    L2 = L // 2
    return jnp.maximum(ref[:, pl.ds(0, L2, stride=2), :],
                       ref[:, pl.ds(1, L2, stride=2), :])


def _res_block(x, w1, b1, w2, b2, wsc, bsc):
    """ResidualConvBlock1D (eval-mode BN folded into w/b)."""
    B, L, Cin = x.shape
    Cout = w1.shape[-1]
    h = jnp.dot(_bf16(_im2col_k3(x)), w1, preferred_element_type=jnp.float32) + b1
    h = jnp.maximum(h, 0.0)
    h2 = jnp.dot(_bf16(_im2col_k3(h.reshape(B, L, Cout))), w2,
                 preferred_element_type=jnp.float32) + b2
    h2 = jnp.maximum(h2, 0.0)
    xf = x.reshape(B * L, Cin)
    if wsc is not None:
        sc = jnp.dot(_bf16(xf), wsc, preferred_element_type=jnp.float32) + bsc
    else:
        sc = xf                                            # identity shortcut
    return jnp.maximum(h2 + sc, 0.0).reshape(B, L, Cout)


def _mhsa(x, pe, win, b_in, wo, bo, H):
    """MultiheadAttention(E, H) with additive sinusoidal positional encoding."""
    B, L, E = x.shape
    Dh = E // H
    scale = 1.0 / math.sqrt(Dh)

    xf = (x + pe).reshape(B * L, E)                        # pe broadcasts over B
    qkv = jnp.dot(_bf16(xf), win, preferred_element_type=jnp.float32) + b_in
    q = (qkv[:, 0:E] * scale).reshape(B, L, E)
    k = qkv[:, E:2 * E].reshape(B, L, E)
    v = qkv[:, 2 * E:3 * E].reshape(B, L, E)

    # Per-head attention batched over B; head outputs accumulated directly into
    # the output projection (no lane concat of head outputs).
    acc = jnp.zeros((B * L, E), jnp.float32)
    for h in range(H):
        lo = h * Dh
        qh = _bf16(q[:, :, lo:lo + Dh])
        kh = _bf16(k[:, :, lo:lo + Dh])
        vh = _bf16(v[:, :, lo:lo + Dh])
        s = jnp.einsum('bqd,bkd->bqk', qh, kh, preferred_element_type=jnp.float32)
        p = jnp.exp(s - jnp.max(s, axis=-1, keepdims=True))
        p = p * pl.reciprocal(jnp.sum(p, axis=-1, keepdims=True), approx=True)
        oh = jnp.einsum('bqk,bkd->bqd', _bf16(p), vh,
                        preferred_element_type=jnp.float32)          # [B, L, Dh]
        acc = acc + jnp.dot(_bf16(oh.reshape(B * L, Dh)), wo[lo:lo + Dh, :],
                            preferred_element_type=jnp.float32)
    return (acc + bo).reshape(B, L, E)


def _dec_block(d, skip, wup, bup, w1u, w1s, b1, w2, b2, wscu, wscs, bsc, u_scr):
    """ConvTranspose1d(k2,s2) + (virtual) crop_and_concat + ResidualConvBlock1D."""
    B, Lp, Cu = d.shape
    L = 2 * Lp
    Cs = skip.shape[-1]
    Cout = w2.shape[-1]

    # ConvTranspose1d: u[:, 2l+k, :] = d[:, l, :] @ Wup[k] + b; interleave in VMEM.
    df = _bf16(d.reshape(B * Lp, Cu))
    y0 = jnp.dot(df, wup[0], preferred_element_type=jnp.float32) + bup
    y1 = jnp.dot(df, wup[1], preferred_element_type=jnp.float32) + bup
    u_scr[:, :, 0, :] = y0.reshape(B, Lp, Cu)
    u_scr[:, :, 1, :] = y1.reshape(B, Lp, Cu)
    u = u_scr[...].reshape(B, L, Cu)                       # [B, 2*Lp, Cu]

    # conv1: split-K over (up path, skip) — concat never materialized.
    h = (jnp.dot(_bf16(_im2col_k3(u)), w1u, preferred_element_type=jnp.float32)
         + jnp.dot(_bf16(_im2col_k3(skip)), w1s, preferred_element_type=jnp.float32)
         + b1)
    h = jnp.maximum(h, 0.0)

    h2 = jnp.dot(_bf16(_im2col_k3(h.reshape(B, L, Cout))), w2,
                 preferred_element_type=jnp.float32) + b2
    h2 = jnp.maximum(h2, 0.0)

    sc = (jnp.dot(_bf16(u.reshape(B * L, Cu)), wscu, preferred_element_type=jnp.float32)
          + jnp.dot(_bf16(skip.reshape(B * L, Cs)), wscs, preferred_element_type=jnp.float32)
          + bsc)
    return jnp.maximum(h2 + sc, 0.0).reshape(B, L, Cout)   # [B*? -> B, L, Cout]


# ------------------------------ single fused kernel --------------------------

def _ex_kernel(*refs, has_sc, H):
    it = iter(refs)
    nxt = lambda: next(it)

    x_ref = nxt()
    enc = []
    for i in range(4):
        w1, b1, w2, b2 = nxt(), nxt(), nxt(), nxt()
        wsc, bsc = (nxt(), nxt()) if has_sc[i] else (None, None)
        enc.append((w1, b1, w2, b2, wsc, bsc))
    pe_ref, win_ref, bin_ref, wo_ref, bo_ref = nxt(), nxt(), nxt(), nxt(), nxt()
    ups, decs = [], []
    for _ in range(3):
        ups.append((nxt(), nxt()))
        decs.append(tuple(nxt() for _ in range(8)))
    wf_ref, bf_ref = nxt(), nxt()
    o_ref = nxt()
    e1_buf, e2_buf, e3_buf, u4_scr, u3_scr, u2_scr = (nxt(), nxt(), nxt(),
                                                      nxt(), nxt(), nxt())

    def enc_args(i):
        w1, b1, w2, b2, wsc, bsc = enc[i]
        return (w1[...], b1[...], w2[...], b2[...],
                None if wsc is None else wsc[...],
                None if bsc is None else bsc[...])

    def dec_args(i):
        wup, bup = ups[i]
        w1u, w1s, b1, w2, b2, wscu, wscs, bsc = decs[i]
        return (wup[...], bup[...], w1u[...], w1s[...], b1[...], w2[...],
                b2[...], wscu[...], wscs[...], bsc[...])

    # ----- encoder path (skips stay resident in VMEM scratch) -----
    e1_buf[...] = _res_block(x_ref[...], *enc_args(0))
    e2_buf[...] = _res_block(_maxpool2_from_ref(e1_buf), *enc_args(1))
    e3_buf[...] = _res_block(_maxpool2_from_ref(e2_buf), *enc_args(2))
    e4 = _res_block(_maxpool2_from_ref(e3_buf), *enc_args(3))

    # ----- MHSA bottleneck -----
    a4 = _mhsa(e4, pe_ref[...], win_ref[...], bin_ref[...],
               wo_ref[...], bo_ref[...], H)

    # ----- decoder path (crop_and_concat via split-K) -----
    d4 = _dec_block(a4, e3_buf[...], *dec_args(0), u4_scr)
    d3 = _dec_block(d4, e2_buf[...], *dec_args(1), u3_scr)
    d2 = _dec_block(d3, e1_buf[...], *dec_args(2), u2_scr)

    # ----- final 1x1 projection -----
    B, L, E = d2.shape
    out = (jnp.dot(_bf16(d2.reshape(B * L, E)), wf_ref[...],
                   preferred_element_type=jnp.float32) + bf_ref[...])
    o_ref[...] = out.reshape(B, L, o_ref.shape[-1])


# ------------------------------- glue (host JAX) -----------------------------

def positional_encoding(length, dim):
    position = jnp.arange(length, dtype=jnp.float32)[:, None]
    div_term = jnp.exp(jnp.arange(0, dim, 2, dtype=jnp.float32)
                       * (-math.log(10000.0) / dim))
    pe = jnp.zeros((length, dim), jnp.float32)
    pe = pe.at[:, 0::2].set(jnp.sin(position * div_term))
    pe = pe.at[:, 1::2].set(jnp.cos(position * div_term))
    return pe


def ex_forward(params, x, num_heads):
    # x: [B, L, in_channels], channels-last (channels map to TPU lanes).
    B, L, _ = x.shape
    E = params["enc1"]["w1"].shape[-1]
    out_c = params["dec1_w"].shape[-1]
    has_sc = tuple("wsc" in params[f"enc{i}"] for i in (1, 2, 3, 4))
    pe = positional_encoding(L // 8, E)

    args = [x]
    for i in (1, 2, 3, 4):
        p = params[f"enc{i}"]
        args += [p["w1"], p["b1"], p["w2"], p["b2"]]
        if "wsc" in p:
            args += [p["wsc"], p["bsc"]]
    m = params["mhsa"]
    args += [pe, m["win"], m["bin"], m["wo"], m["bo"]]
    for up_k, dec_k in (("up4", "dec4"), ("up3", "dec3"), ("up2", "dec2")):
        u, d = params[up_k], params[dec_k]
        args += [u["w"], u["b"],
                 d["w1u"], d["w1s"], d["b1"], d["w2"], d["b2"],
                 d["wscu"], d["wscs"], d["bsc"]]
    args += [params["dec1_w"], params["dec1_b"]]

    scratch = [
        pltpu.VMEM((B, L, E), jnp.float32),                # e1 skip
        pltpu.VMEM((B, L // 2, 2 * E), jnp.float32),       # e2 skip
        pltpu.VMEM((B, L // 4, 4 * E), jnp.float32),       # e3 skip
        pltpu.VMEM((B, L // 8, 2, E), jnp.float32),        # upconv4 interleave
        pltpu.VMEM((B, L // 4, 2, 4 * E), jnp.float32),    # upconv3 interleave
        pltpu.VMEM((B, L // 2, 2, 2 * E), jnp.float32),    # upconv2 interleave
    ]
    kernel = functools.partial(_ex_kernel, has_sc=has_sc, H=num_heads)
    return pl.pallas_call(
        kernel,
        out_shape=jax.ShapeDtypeStruct((B, L, out_c), jnp.float32),
        scratch_shapes=scratch,
        compiler_params=pltpu.CompilerParams(vmem_limit_bytes=32 << 20),
    )(*args)


# --------------------------- parameter construction --------------------------

def _conv_k3_bnfold(kw, kb, cin3, cout):
    """Conv(k3) weight [3*Cin, Cout] (bf16) with eval-mode BN folded in."""
    bn = 1.0 / math.sqrt(1.0 + _BN_EPS)     # gamma=1, beta=0, mean=0, var=1
    w = jax.random.normal(kw, (cin3, cout), jnp.float32) / math.sqrt(cin3)
    b = jax.random.normal(kb, (cout,), jnp.float32) * 0.01
    return _bf16(w * bn), (b * bn).reshape(1, cout)


def init_enc_block(key, cin, cout):
    k1, k2, k3, k4, k5, k6 = jax.random.split(key, 6)
    w1, b1 = _conv_k3_bnfold(k1, k2, 3 * cin, cout)
    w2, b2 = _conv_k3_bnfold(k3, k4, 3 * cout, cout)
    p = dict(w1=w1, b1=b1, w2=w2, b2=b2)
    if cin != cout:
        p["wsc"] = _bf16(jax.random.normal(k5, (cin, cout), jnp.float32)
                         / math.sqrt(cin))
        p["bsc"] = (jax.random.normal(k6, (cout,), jnp.float32) * 0.01).reshape(1, cout)
    return p


def init_dec_block(key, cu, cs, cout):
    ks = jax.random.split(key, 8)
    bn = 1.0 / math.sqrt(1.0 + _BN_EPS)
    fan1 = math.sqrt(3 * (cu + cs))
    w1u = _bf16(jax.random.normal(ks[0], (3 * cu, cout), jnp.float32) / fan1 * bn)
    w1s = _bf16(jax.random.normal(ks[1], (3 * cs, cout), jnp.float32) / fan1 * bn)
    b1 = (jax.random.normal(ks[2], (cout,), jnp.float32) * 0.01 * bn).reshape(1, cout)
    w2, b2 = _conv_k3_bnfold(ks[3], ks[4], 3 * cout, cout)
    fansc = math.sqrt(cu + cs)
    wscu = _bf16(jax.random.normal(ks[5], (cu, cout), jnp.float32) / fansc)
    wscs = _bf16(jax.random.normal(ks[6], (cs, cout), jnp.float32) / fansc)
    bsc = (jax.random.normal(ks[7], (cout,), jnp.float32) * 0.01).reshape(1, cout)
    return dict(w1u=w1u, w1s=w1s, b1=b1, w2=w2, b2=b2,
                wscu=wscu, wscs=wscs, bsc=bsc)


def init_upconv(key, c):
    k1, k2 = jax.random.split(key)
    return dict(
        w=_bf16(jax.random.normal(k1, (2, c, c), jnp.float32) / math.sqrt(2 * c)),
        b=(jax.random.normal(k2, (c,), jnp.float32) * 0.01).reshape(1, c),
    )


def init_mha(key, E):
    k1, k2, k3, k4 = jax.random.split(key, 4)
    return dict(
        win=_bf16(jax.random.normal(k1, (E, 3 * E), jnp.float32) / math.sqrt(E)),
        bin=(jax.random.normal(k2, (3 * E,), jnp.float32) * 0.01).reshape(1, 3 * E),
        wo=_bf16(jax.random.normal(k3, (E, E), jnp.float32) / math.sqrt(E)),
        bo=(jax.random.normal(k4, (E,), jnp.float32) * 0.01).reshape(1, E),
    )


def init_ex_params(key, in_channels, out_channels, embed_dim):
    E = embed_dim
    ks = jax.random.split(key, 12)
    return dict(
        enc1=init_enc_block(ks[0], in_channels, E),
        enc2=init_enc_block(ks[1], E, 2 * E),
        enc3=init_enc_block(ks[2], 2 * E, 4 * E),
        enc4=init_enc_block(ks[3], 4 * E, E),
        mhsa=init_mha(ks[4], E),
        up4=init_upconv(ks[5], E),
        dec4=init_dec_block(ks[6], E, 4 * E, 4 * E),
        up3=init_upconv(ks[7], 4 * E),
        dec3=init_dec_block(ks[8], 4 * E, 2 * E, 2 * E),
        up2=init_upconv(ks[9], 2 * E),
        dec2=init_dec_block(ks[10], 2 * E, E, E),
        dec1_w=_bf16(jax.random.normal(ks[11], (E, out_channels), jnp.float32)
                     / math.sqrt(E)),
        dec1_b=jnp.zeros((1, out_channels), jnp.float32),
    )


if __name__ == "__main__":
    B, L = 2, 32            # L divisible by 8 (three pools of stride 2)
    in_channels, out_channels = 4, 4
    embed_dim, num_heads = 32, 4

    key = jax.random.PRNGKey(0)
    kx, kp = jax.random.split(key)
    x = jax.random.normal(kx, (B, L, in_channels), jnp.float32)
    params = init_ex_params(kp, in_channels, out_channels, embed_dim)

    fwd = jax.jit(functools.partial(ex_forward, num_heads=num_heads))
    out = fwd(params, x)
    jax.block_until_ready(out)
    assert out.shape == (B, L, out_channels), out.shape
    assert out.dtype == jnp.float32
    assert bool(jnp.all(jnp.isfinite(out)))
    print("KERNEL_OK")
</pallas_src>

<mosaic_0001>
module attributes {stable_mosaic.version = 11 : i64} {
  func.func @_ex_kernel(%arg0: memref<2x32x4xf32, #tpu.memory_space<vmem>>, %arg1: memref<12x32xbf16, #tpu.memory_space<vmem>>, %arg2: memref<1x32xf32, #tpu.memory_space<vmem>>, %arg3: memref<96x32xbf16, #tpu.memory_space<vmem>>, %arg4: memref<1x32xf32, #tpu.memory_space<vmem>>, %arg5: memref<4x32xbf16, #tpu.memory_space<vmem>>, %arg6: memref<1x32xf32, #tpu.memory_space<vmem>>, %arg7: memref<96x64xbf16, #tpu.memory_space<vmem>>, %arg8: memref<1x64xf32, #tpu.memory_space<vmem>>, %arg9: memref<192x64xbf16, #tpu.memory_space<vmem>>, %arg10: memref<1x64xf32, #tpu.memory_space<vmem>>, %arg11: memref<32x64xbf16, #tpu.memory_space<vmem>>, %arg12: memref<1x64xf32, #tpu.memory_space<vmem>>, %arg13: memref<192x128xbf16, #tpu.memory_space<vmem>>, %arg14: memref<1x128xf32, #tpu.memory_space<vmem>>, %arg15: memref<384x128xbf16, #tpu.memory_space<vmem>>, %arg16: memref<1x128xf32, #tpu.memory_space<vmem>>, %arg17: memref<64x128xbf16, #tpu.memory_space<vmem>>, %arg18: memref<1x128xf32, #tpu.memory_space<vmem>>, %arg19: memref<384x32xbf16, #tpu.memory_space<vmem>>, %arg20: memref<1x32xf32, #tpu.memory_space<vmem>>, %arg21: memref<96x32xbf16, #tpu.memory_space<vmem>>, %arg22: memref<1x32xf32, #tpu.memory_space<vmem>>, %arg23: memref<128x32xbf16, #tpu.memory_space<vmem>>, %arg24: memref<1x32xf32, #tpu.memory_space<vmem>>, %arg25: memref<4x32xf32, #tpu.memory_space<vmem>>, %arg26: memref<32x96xbf16, #tpu.memory_space<vmem>>, %arg27: memref<1x96xf32, #tpu.memory_space<vmem>>, %arg28: memref<32x32xbf16, #tpu.memory_space<vmem>>, %arg29: memref<1x32xf32, #tpu.memory_space<vmem>>, %arg30: memref<2x32x32xbf16, #tpu.memory_space<vmem>>, %arg31: memref<1x32xf32, #tpu.memory_space<vmem>>, %arg32: memref<96x128xbf16, #tpu.memory_space<vmem>>, %arg33: memref<384x128xbf16, #tpu.memory_space<vmem>>, %arg34: memref<1x128xf32, #tpu.memory_space<vmem>>, %arg35: memref<384x128xbf16, #tpu.memory_space<vmem>>, %arg36: memref<1x128xf32, #tpu.memory_space<vmem>>, %arg37: memref<32x128xbf16, #tpu.memory_space<vmem>>, %arg38: memref<128x128xbf16, #tpu.memory_space<vmem>>, %arg39: memref<1x128xf32, #tpu.memory_space<vmem>>, %arg40: memref<2x128x128xbf16, #tpu.memory_space<vmem>>, %arg41: memref<1x128xf32, #tpu.memory_space<vmem>>, %arg42: memref<384x64xbf16, #tpu.memory_space<vmem>>, %arg43: memref<192x64xbf16, #tpu.memory_space<vmem>>, %arg44: memref<1x64xf32, #tpu.memory_space<vmem>>, %arg45: memref<192x64xbf16, #tpu.memory_space<vmem>>, %arg46: memref<1x64xf32, #tpu.memory_space<vmem>>, %arg47: memref<128x64xbf16, #tpu.memory_space<vmem>>, %arg48: memref<64x64xbf16, #tpu.memory_space<vmem>>, %arg49: memref<1x64xf32, #tpu.memory_space<vmem>>, %arg50: memref<2x64x64xbf16, #tpu.memory_space<vmem>>, %arg51: memref<1x64xf32, #tpu.memory_space<vmem>>, %arg52: memref<192x32xbf16, #tpu.memory_space<vmem>>, %arg53: memref<96x32xbf16, #tpu.memory_space<vmem>>, %arg54: memref<1x32xf32, #tpu.memory_space<vmem>>, %arg55: memref<96x32xbf16, #tpu.memory_space<vmem>>, %arg56: memref<1x32xf32, #tpu.memory_space<vmem>>, %arg57: memref<64x32xbf16, #tpu.memory_space<vmem>>, %arg58: memref<32x32xbf16, #tpu.memory_space<vmem>>, %arg59: memref<1x32xf32, #tpu.memory_space<vmem>>, %arg60: memref<32x4xbf16, #tpu.memory_space<vmem>>, %arg61: memref<1x4xf32, #tpu.memory_space<vmem>>, %arg62: memref<2x32x4xf32, #tpu.memory_space<vmem>>, %arg63: memref<2x32x32xf32, #tpu.memory_space<vmem>>, %arg64: memref<2x16x64xf32, #tpu.memory_space<vmem>>, %arg65: memref<2x8x128xf32, #tpu.memory_space<vmem>>, %arg66: memref<2x4x2x32xf32, #tpu.memory_space<vmem>>, %arg67: memref<2x8x2x128xf32, #tpu.memory_space<vmem>>, %arg68: memref<2x16x2x64xf32, #tpu.memory_space<vmem>>) attributes {dimension_semantics = [], scalar_prefetch = 0 : i64, scratch_operands = 6 : i64, tpu.core_type = #tpu.core_type<tc>} {
    %c0 = arith.constant 0 : index
    %c0_0 = arith.constant 0 : index
    %c0_1 = arith.constant 0 : index
    %0 = vector.load %arg0[%c0, %c0_0, %c0_1] : memref<2x32x4xf32, #tpu.memory_space<vmem>>, vector<2x32x4xf32>
    %c0_2 = arith.constant 0 : index
    %c0_3 = arith.constant 0 : index
    %1 = vector.load %arg1[%c0_2, %c0_3] : memref<12x32xbf16, #tpu.memory_space<vmem>>, vector<12x32xbf16>
    %c0_4 = arith.constant 0 : index
    %c0_5 = arith.constant 0 : index
    %2 = vector.load %arg2[%c0_4, %c0_5] : memref<1x32xf32, #tpu.memory_space<vmem>>, vector<1x32xf32>
    %c0_6 = arith.constant 0 : index
    %c0_7 = arith.constant 0 : index
    %3 = vector.load %arg3[%c0_6, %c0_7] : memref<96x32xbf16, #tpu.memory_space<vmem>>, vector<96x32xbf16>
    %c0_8 = arith.constant 0 : index
    %c0_9 = arith.constant 0 : index
    %4 = vector.load %arg4[%c0_8, %c0_9] : memref<1x32xf32, #tpu.memory_space<vmem>>, vector<1x32xf32>
    %c0_10 = arith.constant 0 : index
    %c0_11 = arith.constant 0 : index
    %5 = vector.load %arg5[%c0_10, %c0_11] : memref<4x32xbf16, #tpu.memory_space<vmem>>, vector<4x32xbf16>
    %c0_12 = arith.constant 0 : index
    %c0_13 = arith.constant 0 : index
    %6 = vector.load %arg6[%c0_12, %c0_13] : memref<1x32xf32, #tpu.memory_space<vmem>>, vector<1x32xf32>
    %cst = arith.constant 0.000000e+00 : f32
    %7 = vector.broadcast %cst : f32 to vector<2x1x4xf32>
    %8 = vector.extract_strided_slice %0 {offsets = [0, 0, 0], sizes = [2, 31, 4], strides = [1, 1, 1]} : vector<2x32x4xf32> to vector<2x31x4xf32>
    %9 = tpu.concatenate %7, %8 in 1 : vector<2x1x4xf32>, vector<2x31x4xf32> -> vector<2x32x4xf32>
    %10 = vector.extract_strided_slice %0 {offsets = [0, 1, 0], sizes = [2, 31, 4], strides = [1, 1, 1]} : vector<2x32x4xf32> to vector<2x31x4xf32>
    %11 = tpu.concatenate %10, %7 in 1 : vector<2x31x4xf32>, vector<2x1x4xf32> -> vector<2x32x4xf32>
    %12 = tpu.concatenate %9, %0, %11 in 2 : vector<2x32x4xf32>, vector<2x32x4xf32>, vector<2x32x4xf32> -> vector<2x32x12xf32>
    %13 = vector.shape_cast %12 : vector<2x32x12xf32> to vector<64x12xf32>
    %14 = arith.truncf %13 : vector<64x12xf32> to vector<64x12xbf16>
    %cst_14 = arith.constant dense<0.000000e+00> : vector<64x32xf32>
    %15 = tpu.matmul %14, %1, %cst_14 {dimension_numbers = #tpu.dot_dimension_numbers<[1], [0], [0], [1], [0, 0, 1, 1], [], []>} : vector<64x12xbf16>, vector<12x32xbf16>, vector<64x32xf32> -> vector<64x32xf32>
    %16 = vector.broadcast %2 : vector<1x32xf32> to vector<64x32xf32>
    %17 = arith.addf %15, %16 : vector<64x32xf32>
    %cst_15 = arith.constant 0.000000e+00 : f32
    %18 = vector.broadcast %cst_15 : f32 to vector<64x32xf32>
    %19 = arith.maximumf %17, %18 : vector<64x32xf32>
    %20 = vector.shape_cast %19 : vector<64x32xf32> to vector<2x32x32xf32>
    %cst_16 = arith.constant 0.000000e+00 : f32
    %21 = vector.broadcast %cst_16 : f32 to vector<2x1x32xf32>
    %22 = vector.extract_strided_slice %20 {offsets = [0, 0, 0], sizes = [2, 31, 32], strides = [1, 1, 1]} : vector<2x32x32xf32> to vector<2x31x32xf32>
    %23 = tpu.concatenate %21, %22 in 1 : vector<2x1x32xf32>, vector<2x31x32xf32> -> vector<2x32x32xf32>
    %24 = vector.extract_strided_slice %20 {offsets = [0, 1, 0], sizes = [2, 31, 32], strides = [1, 1, 1]} : vector<2x32x32xf32> to vector<2x31x32xf32>
    %25 = tpu.concatenate %24, %21 in 1 : vector<2x31x32xf32>, vector<2x1x32xf32> -> vector<2x32x32xf32>
    %26 = tpu.concatenate %23, %20, %25 in 2 : vector<2x32x32xf32>, vector<2x32x32xf32>, vector<2x32x32xf32> -> vector<2x32x96xf32>
    %27 = vector.shape_cast %26 : vector<2x32x96xf32> to vector<64x96xf32>
    %28 = arith.truncf %27 : vector<64x96xf32> to vector<64x96xbf16>
    %cst_17 = arith.constant dense<0.000000e+00> : vector<64x32xf32>
    %29 = tpu.matmul %28, %3, %cst_17 {dimension_numbers = #tpu.dot_dimension_numbers<[1], [0], [0], [1], [0, 0, 1, 1], [], []>} : vector<64x96xbf16>, vector<96x32xbf16>, vector<64x32xf32> -> vector<64x32xf32>
    %30 = vector.broadcast %4 : vector<1x32xf32> to vector<64x32xf32>
    %31 = arith.addf %29, %30 : vector<64x32xf32>
    %cst_18 = arith.constant 0.000000e+00 : f32
    %32 = vector.broadcast %cst_18 : f32 to vector<64x32xf32>
    %33 = arith.maximumf %31, %32 : vector<64x32xf32>
    %34 = vector.shape_cast %0 : vector<2x32x4xf32> to vector<64x4xf32>
    %35 = arith.truncf %34 : vector<64x4xf32> to vector<64x4xbf16>
    %cst_19 = arith.constant dense<0.000000e+00> : vector<64x32xf32>
    %36 = tpu.matmul %35, %5, %cst_19 {dimension_numbers = #tpu.dot_dimension_numbers<[1], [0], [0], [1], [0, 0, 1, 1], [], []>} : vector<64x4xbf16>, vector<4x32xbf16>, vector<64x32xf32> -> vector<64x32xf32>
    %37 = vector.broadcast %6 : vector<1x32xf32> to vector<64x32xf32>
    %38 = arith.addf %36, %37 : vector<64x32xf32>
    %39 = arith.addf %33, %38 : vector<64x32xf32>
    %cst_20 = arith.constant 0.000000e+00 : f32
    %40 = vector.broadcast %cst_20 : f32 to vector<64x32xf32>
    %41 = arith.maximumf %39, %40 : vector<64x32xf32>
    %42 = vector.shape_cast %41 : vector<64x32xf32> to vector<2x32x32xf32>
    %c0_21 = arith.constant 0 : index
    %c0_22 = arith.constant 0 : index
    %c0_23 = arith.constant 0 : index
    %43 = vector.load %arg63[%c0_21, %c0_22, %c0_23] : memref<2x32x32xf32, #tpu.memory_space<vmem>>, vector<2x32x32xf32>
    tpu.vector_store %arg63[%c0_21, %c0_22, %c0_23], %42 {strides = array<i32>} : memref<2x32x32xf32, #tpu.memory_space<vmem>>, vector<2x32x32xf32>,
    %c0_24 = arith.constant 0 : index
    %c0_25 = arith.constant 0 : index
    %c0_26 = arith.constant 0 : index
    %44 = tpu.strided_load %arg63[%c0_24, %c0_25, %c0_26] {strides = array<i32: 1, 2, 1>} : memref<2x32x32xf32, #tpu.memory_space<vmem>>, vector<2x16x32xf32>
    %c0_27 = arith.constant 0 : index
    %c1 = arith.constant 1 : index
    %c0_28 = arith.constant 0 : index
    %45 = tpu.strided_load %arg63[%c0_27, %c1, %c0_28] {strides = array<i32: 1, 2, 1>} : memref<2x32x32xf32, #tpu.memory_space<vmem>>, vector<2x16x32xf32>
    %46 = arith.maximumf %44, %45 : vector<2x16x32xf32>
    %c0_29 = arith.constant 0 : index
    %c0_30 = arith.constant 0 : index
    %47 = vector.load %arg7[%c0_29, %c0_30] : memref<96x64xbf16, #tpu.memory_space<vmem>>, vector<96x64xbf16>
    %c0_31 = arith.constant 0 : index
    %c0_32 = arith.constant 0 : index
    %48 = vector.load %arg8[%c0_31, %c0_32] : memref<1x64xf32, #tpu.memory_space<vmem>>, vector<1x64xf32>
    %c0_33 = arith.constant 0 : index
    %c0_34 = arith.constant 0 : index
    %49 = vector.load %arg9[%c0_33, %c0_34] : memref<192x64xbf16, #tpu.memory_space<vmem>>, vector<192x64xbf16>
    %c0_35 = arith.constant 0 : index
    %c0_36 = arith.constant 0 : index
    %50 = vector.load %arg10[%c0_35, %c0_36] : memref<1x64xf32, #tpu.memory_space<vmem>>, vector<1x64xf32>
    %c0_37 = arith.constant 0 : index
    %c0_38 = arith.constant 0 : index
    %51 = vector.load %arg11[%c0_37, %c0_38] : memref<32x64xbf16, #tpu.memory_space<vmem>>, vector<32x64xbf16>
    %c0_39 = arith.constant 0 : index
    %c0_40 = arith.constant 0 : index
    %52 = vector.load %arg12[%c0_39, %c0_40] : memref<1x64xf32, #tpu.memory_space<vmem>>, vector<1x64xf32>
    %cst_41 = arith.constant 0.000000e+00 : f32
    %53 = vector.broadcast %cst_41 : f32 to vector<2x1x32xf32>
    %54 = vector.extract_strided_slice %46 {offsets = [0, 0, 0], sizes = [2, 15, 32], strides = [1, 1, 1]} : vector<2x16x32xf32> to vector<2x15x32xf32>
    %55 = tpu.concatenate %53, %54 in 1 : vector<2x1x32xf32>, vector<2x15x32xf32> -> vector<2x16x32xf32>
    %56 = vector.extract_strided_slice %46 {offsets = [0, 1, 0], sizes = [2, 15, 32], strides = [1, 1, 1]} : vector<2x16x32xf32> to vector<2x15x32xf32>
    %57 = tpu.concatenate %56, %53 in 1 : vector<2x15x32xf32>, vector<2x1x32xf32> -> vector<2x16x32xf32>
    %58 = tpu.concatenate %55, %46, %57 in 2 : vector<2x16x32xf32>, vector<2x16x32xf32>, vector<2x16x32xf32> -> vector<2x16x96xf32>
    %59 = vector.shape_cast %58 : vector<2x16x96xf32> to vector<32x96xf32>
    %60 = arith.truncf %59 : vector<32x96xf32> to vector<32x96xbf16>
    %cst_42 = arith.constant dense<0.000000e+00> : vector<32x64xf32>
    %61 = tpu.matmul %60, %47, %cst_42 {dimension_numbers = #tpu.dot_dimension_numbers<[1], [0], [0], [1], [0, 0, 1, 1], [], []>} : vector<32x96xbf16>, vector<96x64xbf16>, vector<32x64xf32> -> vector<32x64xf32>
    %62 = vector.broadcast %48 : vector<1x64xf32> to vector<32x64xf32>
    %63 = arith.addf %61, %62 : vector<32x64xf32>
    %cst_43 = arith.constant 0.000000e+00 : f32
    %64 = vector.broadcast %cst_43 : f32 to vector<32x64xf32>
    %65 = arith.maximumf %63, %64 : vector<32x64xf32>
    %66 = vector.shape_cast %65 : vector<32x64xf32> to vector<2x16x64xf32>
    %cst_44 = arith.constant 0.000000e+00 : f32
    %67 = vector.broadcast %cst_44 : f32 to vector<2x1x64xf32>
    %68 = vector.extract_strided_slice %66 {offsets = [0, 0, 0], sizes = [2, 15, 64], strides = [1, 1, 1]} : vector<2x16x64xf32> to vector<2x15x64xf32>
    %69 = tpu.concatenate %67, %68 in 1 : vector<2x1x64xf32>, vector<2x15x64xf32> -> vector<2x16x64xf32>
    %70 = vector.extract_strided_slice %66 {offsets = [0, 1, 0], sizes = [2, 15, 64], strides = [1, 1, 1]} : vector<2x16x64xf32> to vector<2x15x64xf32>
    %71 = tpu.concatenate %70, %67 in 1 : vector<2x15x64xf32>, vector<2x1x64xf32> -> vector<2x16x64xf32>
    %72 = tpu.concatenate %69, %66, %71 in 2 : vector<2x16x64xf32>, vector<2x16x64xf32>, vector<2x16x64xf32> -> vector<2x16x192xf32>
    %73 = vector.shape_cast %72 : vector<2x16x192xf32> to vector<32x192xf32>
    %74 = arith.truncf %73 : vector<32x192xf32> to vector<32x192xbf16>
    %cst_45 = arith.constant dense<0.000000e+00> : vector<32x64xf32>
    %75 = tpu.matmul %74, %49, %cst_45 {dimension_numbers = #tpu.dot_dimension_numbers<[1], [0], [0], [1], [0, 0, 1, 1], [], []>} : vector<32x192xbf16>, vector<192x64xbf16>, vector<32x64xf32> -> vector<32x64xf32>
    %76 = vector.broadcast %50 : vector<1x64xf32> to vector<32x64xf32>
    %77 = arith.addf %75, %76 : vector<32x64xf32>
    %cst_46 = arith.constant 0.000000e+00 : f32
    %78 = vector.broadcast %cst_46 : f32 to vector<32x64xf32>
    %79 = arith.maximumf %77, %78 : vector<32x64xf32>
    %80 = vector.shape_cast %46 : vector<2x16x32xf32> to vector<32x32xf32>
    %81 = arith.truncf %80 : vector<32x32xf32> to vector<32x32xbf16>
    %cst_47 = arith.constant dense<0.000000e+00> : vector<32x64xf32>
    %82 = tpu.matmul %81, %51, %cst_47 {dimension_numbers = #tpu.dot_dimension_numbers<[1], [0], [0], [1], [0, 0, 1, 1], [], []>} : vector<32x32xbf16>, vector<32x64xbf16>, vector<32x64xf32> -> vector<32x64xf32>
    %83 = vector.broadcast %52 : vector<1x64xf32> to vector<32x64xf32>
    %84 = arith.addf %82, %83 : vector<32x64xf32>
    %85 = arith.addf %79, %84 : vector<32x64xf32>
    %cst_48 = arith.constant 0.000000e+00 : f32
    %86 = vector.broadcast %cst_48 : f32 to vector<32x64xf32>
    %87 = arith.maximumf %85, %86 : vector<32x64xf32>
    %88 = vector.shape_cast %87 : vector<32x64xf32> to vector<2x16x64xf32>
    %c0_49 = arith.constant 0 : index
    %c0_50 = arith.constant 0 : index
    %c0_51 = arith.constant 0 : index
    %89 = vector.load %arg64[%c0_49, %c0_50, %c0_51] : memref<2x16x64xf32, #tpu.memory_space<vmem>>, vector<2x16x64xf32>
    tpu.vector_store %arg64[%c0_49, %c0_50, %c0_51], %88 {strides = array<i32>} : memref<2x16x64xf32, #tpu.memory_space<vmem>>, vector<2x16x64xf32>,
    %c0_52 = arith.constant 0 : index
    %c0_53 = arith.constant 0 : index
    %c0_54 = arith.constant 0 : index
    %90 = tpu.strided_load %arg64[%c0_52, %c0_53, %c0_54] {strides = array<i32: 1, 2, 1>} : memref<2x16x64xf32, #tpu.memory_space<vmem>>, vector<2x8x64xf32>
    %c0_55 = arith.constant 0 : index
    %c1_56 = arith.constant 1 : index
    %c0_57 = arith.constant 0 : index
    %91 = tpu.strided_load %arg64[%c0_55, %c1_56, %c0_57] {strides = array<i32: 1, 2, 1>} : memref<2x16x64xf32, #tpu.memory_space<vmem>>, vector<2x8x64xf32>
    %92 = arith.maximumf %90, %91 : vector<2x8x64xf32>
    %c0_58 = arith.constant 0 : index
    %c0_59 = arith.constant 0 : index
    %93 = vector.load %arg13[%c0_58, %c0_59] : memref<192x128xbf16, #tpu.memory_space<vmem>>, vector<192x128xbf16>
    %c0_60 = arith.constant 0 : index
    %c0_61 = arith.constant 0 : index
    %94 = vector.load %arg14[%c0_60, %c0_61] : memref<1x128xf32, #tpu.memory_space<vmem>>, vector<1x128xf32>
    %c0_62 = arith.constant 0 : index
    %c0_63 = arith.constant 0 : index
    %95 = vector.load %arg15[%c0_62, %c0_63] : memref<384x128xbf16, #tpu.memory_space<vmem>>, vector<384x128xbf16>
    %c0_64 = arith.constant 0 : index
    %c0_65 = arith.constant 0 : index
    %96 = vector.load %arg16[%c0_64, %c0_65] : memref<1x128xf32, #tpu.memory_space<vmem>>, vector<1x128xf32>
    %c0_66 = arith.constant 0 : index
    %c0_67 = arith.constant 0 : index
    %97 = vector.load %arg17[%c0_66, %c0_67] : memref<64x128xbf16, #tpu.memory_space<vmem>>, vector<64x128xbf16>
    %c0_68 = arith.constant 0 : index
    %c0_69 = arith.constant 0 : index
    %98 = vector.load %arg18[%c0_68, %c0_69] : memref<1x128xf32, #tpu.memory_space<vmem>>, vector<1x128xf32>
    %cst_70 = arith.constant 0.000000e+00 : f32
    %99 = vector.broadcast %cst_70 : f32 to vector<2x1x64xf32>
    %100 = vector.extract_strided_slice %92 {offsets = [0, 0, 0], sizes = [2, 7, 64], strides = [1, 1, 1]} : vector<2x8x64xf32> to vector<2x7x64xf32>
    %101 = tpu.concatenate %99, %100 in 1 : vector<2x1x64xf32>, vector<2x7x64xf32> -> vector<2x8x64xf32>
    %102 = vector.extract_strided_slice %92 {offsets = [0, 1, 0], sizes = [2, 7, 64], strides = [1, 1, 1]} : vector<2x8x64xf32> to vector<2x7x64xf32>
    %103 = tpu.concatenate %102, %99 in 1 : vector<2x7x64xf32>, vector<2x1x64xf32> -> vector<2x8x64xf32>
    %104 = tpu.concatenate %101, %92, %103 in 2 : vector<2x8x64xf32>, vector<2x8x64xf32>, vector<2x8x64xf32> -> vector<2x8x192xf32>
    %105 = vector.shape_cast %104 : vector<2x8x192xf32> to vector<16x192xf32>
    %106 = arith.truncf %105 : vector<16x192xf32> to vector<16x192xbf16>
    %cst_71 = arith.constant dense<0.000000e+00> : vector<16x128xf32>
    %107 = tpu.matmul %106, %93, %cst_71 {dimension_numbers = #tpu.dot_dimension_numbers<[1], [0], [0], [1], [0, 0, 1, 1], [], []>} : vector<16x192xbf16>, vector<192x128xbf16>, vector<16x128xf32> -> vector<16x128xf32>
    %108 = vector.broadcast %94 : vector<1x128xf32> to vector<16x128xf32>
    %109 = arith.addf %107, %108 : vector<16x128xf32>
    %cst_72 = arith.constant 0.000000e+00 : f32
    %110 = vector.broadcast %cst_72 : f32 to vector<16x128xf32>
    %111 = arith.maximumf %109, %110 : vector<16x128xf32>
    %112 = vector.shape_cast %111 : vector<16x128xf32> to vector<2x8x128xf32>
    %cst_73 = arith.constant 0.000000e+00 : f32
    %113 = vector.broadcast %cst_73 : f32 to vector<2x1x128xf32>
    %114 = vector.extract_strided_slice %112 {offsets = [0, 0, 0], sizes = [2, 7, 128], strides = [1, 1, 1]} : vector<2x8x128xf32> to vector<2x7x128xf32>
    %115 = tpu.concatenate %113, %114 in 1 : vector<2x1x128xf32>, vector<2x7x128xf32> -> vector<2x8x128xf32>
    %116 = vector.extract_strided_slice %112 {offsets = [0, 1, 0], sizes = [2, 7, 128], strides = [1, 1, 1]} : vector<2x8x128xf32> to vector<2x7x128xf32>
    %117 = tpu.concatenate %116, %113 in 1 : vector<2x7x128xf32>, vector<2x1x128xf32> -> vector<2x8x128xf32>
    %118 = tpu.concatenate %115, %112, %117 in 2 : vector<2x8x128xf32>, vector<2x8x128xf32>, vector<2x8x128xf32> -> vector<2x8x384xf32>
    %119 = vector.shape_cast %118 : vector<2x8x384xf32> to vector<16x384xf32>
    %120 = arith.truncf %119 : vector<16x384xf32> to vector<16x384xbf16>
    %cst_74 = arith.constant dense<0.000000e+00> : vector<16x128xf32>
    %121 = tpu.matmul %120, %95, %cst_74 {dimension_numbers = #tpu.dot_dimension_numbers<[1], [0], [0], [1], [0, 0, 1, 1], [], []>} : vector<16x384xbf16>, vector<384x128xbf16>, vector<16x128xf32> -> vector<16x128xf32>
    %122 = vector.broadcast %96 : vector<1x128xf32> to vector<16x128xf32>
    %123 = arith.addf %121, %122 : vector<16x128xf32>
    %cst_75 = arith.constant 0.000000e+00 : f32
    %124 = vector.broadcast %cst_75 : f32 to vector<16x128xf32>
    %125 = arith.maximumf %123, %124 : vector<16x128xf32>
    %126 = vector.shape_cast %92 : vector<2x8x64xf32> to vector<16x64xf32>
    %127 = arith.truncf %126 : vector<16x64xf32> to vector<16x64xbf16>
    %cst_76 = arith.constant dense<0.000000e+00> : vector<16x128xf32>
    %128 = tpu.matmul %127, %97, %cst_76 {dimension_numbers = #tpu.dot_dimension_numbers<[1], [0], [0], [1], [0, 0, 1, 1], [], []>} : vector<16x64xbf16>, vector<64x128xbf16>, vector<16x128xf32> -> vector<16x128xf32>
    %129 = vector.broadcast %98 : vector<1x128xf32> to vector<16x128xf32>
    %130 = arith.addf %128, %129 : vector<16x128xf32>
    %131 = arith.addf %125, %130 : vector<16x128xf32>
    %cst_77 = arith.constant 0.000000e+00 : f32
    %132 = vector.broadcast %cst_77 : f32 to vector<16x128xf32>
    %133 = arith.maximumf %131, %132 : vector<16x128xf32>
    %134 = vector.shape_cast %133 : vector<16x128xf32> to vector<2x8x128xf32>
    %c0_78 = arith.constant 0 : index
    %c0_79 = arith.constant 0 : index
    %c0_80 = arith.constant 0 : index
    %135 = vector.load %arg65[%c0_78, %c0_79, %c0_80] : memref<2x8x128xf32, #tpu.memory_space<vmem>>, vector<2x8x128xf32>
    tpu.vector_store %arg65[%c0_78, %c0_79, %c0_80], %134 {strides = array<i32>} : memref<2x8x128xf32, #tpu.memory_space<vmem>>, vector<2x8x128xf32>,
    %c0_81 = arith.constant 0 : index
    %c0_82 = arith.constant 0 : index
    %c0_83 = arith.constant 0 : index
    %136 = tpu.strided_load %arg65[%c0_81, %c0_82, %c0_83] {strides = array<i32: 1, 2, 1>} : memref<2x8x128xf32, #tpu.memory_space<vmem>>, vector<2x4x128xf32>
    %c0_84 = arith.constant 0 : index
    %c1_85 = arith.constant 1 : index
    %c0_86 = arith.constant 0 : index
    %137 = tpu.strided_load %arg65[%c0_84, %c1_85, %c0_86] {strides = array<i32: 1, 2, 1>} : memref<2x8x128xf32, #tpu.memory_space<vmem>>, vector<2x4x128xf32>
    %138 = arith.maximumf %136, %137 : vector<2x4x128xf32>
    %c0_87 = arith.constant 0 : index
    %c0_88 = arith.constant 0 : index
    %139 = vector.load %arg19[%c0_87, %c0_88] : memref<384x32xbf16, #tpu.memory_space<vmem>>, vector<384x32xbf16>
    %c0_89 = arith.constant 0 : index
    %c0_90 = arith.constant 0 : index
    %140 = vector.load %arg20[%c0_89, %c0_90] : memref<1x32xf32, #tpu.memory_space<vmem>>, vector<1x32xf32>
    %c0_91 = arith.constant 0 : index
    %c0_92 = arith.constant 0 : index
    %141 = vector.load %arg21[%c0_91, %c0_92] : memref<96x32xbf16, #tpu.memory_space<vmem>>, vector<96x32xbf16>
    %c0_93 = arith.constant 0 : index
    %c0_94 = arith.constant 0 : index
    %142 = vector.load %arg22[%c0_93, %c0_94] : memref<1x32xf32, #tpu.memory_space<vmem>>, vector<1x32xf32>
    %c0_95 = arith.constant 0 : index
    %c0_96 = arith.constant 0 : index
    %143 = vector.load %arg23[%c0_95, %c0_96] : memref<128x32xbf16, #tpu.memory_space<vmem>>, vector<128x32xbf16>
    %c0_97 = arith.constant 0 : index
    %c0_98 = arith.constant 0 : index
    %144 = vector.load %arg24[%c0_97, %c0_98] : memref<1x32xf32, #tpu.memory_space<vmem>>, vector<1x32xf32>
    %cst_99 = arith.constant 0.000000e+00 : f32
    %145 = vector.broadcast %cst_99 : f32 to vector<2x1x128xf32>
    %146 = vector.extract_strided_slice %138 {offsets = [0, 0, 0], sizes = [2, 3, 128], strides = [1, 1, 1]} : vector<2x4x128xf32> to vector<2x3x128xf32>
    %147 = tpu.concatenate %145, %146 in 1 : vector<2x1x128xf32>, vector<2x3x128xf32> -> vector<2x4x128xf32>
    %148 = vector.extract_strided_slice %138 {offsets = [0, 1, 0], sizes = [2, 3, 128], strides = [1, 1, 1]} : vector<2x4x128xf32> to vector<2x3x128xf32>
    %149 = tpu.concatenate %148, %145 in 1 : vector<2x3x128xf32>, vector<2x1x128xf32> -> vector<2x4x128xf32>
    %150 = tpu.concatenate %147, %138, %149 in 2 : vector<2x4x128xf32>, vector<2x4x128xf32>, vector<2x4x128xf32> -> vector<2x4x384xf32>
    %151 = vector.shape_cast %150 : vector<2x4x384xf32> to vector<8x384xf32>
    %152 = arith.truncf %151 : vector<8x384xf32> to vector<8x384xbf16>
    %cst_100 = arith.constant dense<0.000000e+00> : vector<8x32xf32>
    %153 = tpu.matmul %152, %139, %cst_100 {dimension_numbers = #tpu.dot_dimension_numbers<[1], [0], [0], [1], [0, 0, 1, 1], [], []>} : vector<8x384xbf16>, vector<384x32xbf16>, vector<8x32xf32> -> vector<8x32xf32>
    %154 = vector.broadcast %140 : vector<1x32xf32> to vector<8x32xf32>
    %155 = arith.addf %153, %154 : vector<8x32xf32>
    %cst_101 = arith.constant 0.000000e+00 : f32
    %156 = vector.broadcast %cst_101 : f32 to vector<8x32xf32>
    %157 = arith.maximumf %155, %156 : vector<8x32xf32>
    %158 = vector.shape_cast %157 : vector<8x32xf32> to vector<2x4x32xf32>
    %cst_102 = arith.constant 0.000000e+00 : f32
    %159 = vector.broadcast %cst_102 : f32 to vector<2x1x32xf32>
    %160 = vector.extract_strided_slice %158 {offsets = [0, 0, 0], sizes = [2, 3, 32], strides = [1, 1, 1]} : vector<2x4x32xf32> to vector<2x3x32xf32>
    %161 = tpu.concatenate %159, %160 in 1 : vector<2x1x32xf32>, vector<2x3x32xf32> -> vector<2x4x32xf32>
    %162 = vector.extract_strided_slice %158 {offsets = [0, 1, 0], sizes = [2, 3, 32], strides = [1, 1, 1]} : vector<2x4x32xf32> to vector<2x3x32xf32>
    %163 = tpu.concatenate %162, %159 in 1 : vector<2x3x32xf32>, vector<2x1x32xf32> -> vector<2x4x32xf32>
    %164 = tpu.concatenate %161, %158, %163 in 2 : vector<2x4x32xf32>, vector<2x4x32xf32>, vector<2x4x32xf32> -> vector<2x4x96xf32>
    %165 = vector.shape_cast %164 : vector<2x4x96xf32> to vector<8x96xf32>
    %166 = arith.truncf %165 : vector<8x96xf32> to vector<8x96xbf16>
    %cst_103 = arith.constant dense<0.000000e+00> : vector<8x32xf32>
    %167 = tpu.matmul %166, %141, %cst_103 {dimension_numbers = #tpu.dot_dimension_numbers<[1], [0], [0], [1], [0, 0, 1, 1], [], []>} : vector<8x96xbf16>, vector<96x32xbf16>, vector<8x32xf32> -> vector<8x32xf32>
    %168 = vector.broadcast %142 : vector<1x32xf32> to vector<8x32xf32>
    %169 = arith.addf %167, %168 : vector<8x32xf32>
    %cst_104 = arith.constant 0.000000e+00 : f32
    %170 = vector.broadcast %cst_104 : f32 to vector<8x32xf32>
    %171 = arith.maximumf %169, %170 : vector<8x32xf32>
    %172 = vector.shape_cast %138 : vector<2x4x128xf32> to vector<8x128xf32>
    %173 = arith.truncf %172 : vector<8x128xf32> to vector<8x128xbf16>
    %cst_105 = arith.constant dense<0.000000e+00> : vector<8x32xf32>
    %174 = tpu.matmul %173, %143, %cst_105 {dimension_numbers = #tpu.dot_dimension_numbers<[1], [0], [0], [1], [0, 0, 1, 1], [], []>} : vector<8x128xbf16>, vector<128x32xbf16>, vector<8x32xf32> -> vector<8x32xf32>
    %175 = vector.broadcast %144 : vector<1x32xf32> to vector<8x32xf32>
    %176 = arith.addf %174, %175 : vector<8x32xf32>
    %177 = arith.addf %171, %176 : vector<8x32xf32>
    %cst_106 = arith.constant 0.000000e+00 : f32
    %178 = vector.broadcast %cst_106 : f32 to vector<8x32xf32>
    %179 = arith.maximumf %177, %178 : vector<8x32xf32>
    %180 = vector.shape_cast %179 : vector<8x32xf32> to vector<2x4x32xf32>
    %c0_107 = arith.constant 0 : index
    %c0_108 = arith.constant 0 : index
    %181 = vector.load %arg25[%c0_107, %c0_108] : memref<4x32xf32, #tpu.memory_space<vmem>>, vector<4x32xf32>
    %c0_109 = arith.constant 0 : index
    %c0_110 = arith.constant 0 : index
    %182 = vector.load %arg26[%c0_109, %c0_110] : memref<32x96xbf16, #tpu.memory_space<vmem>>, vector<32x96xbf16>
    %c0_111 = arith.constant 0 : index
    %c0_112 = arith.constant 0 : index
    %183 = vector.load %arg27[%c0_111, %c0_112] : memref<1x96xf32, #tpu.memory_space<vmem>>, vector<1x96xf32>
    %c0_113 = arith.constant 0 : index
    %c0_114 = arith.constant 0 : index
    %184 = vector.load %arg28[%c0_113, %c0_114] : memref<32x32xbf16, #tpu.memory_space<vmem>>, vector<32x32xbf16>
    %c0_115 = arith.constant 0 : index
    %c0_116 = arith.constant 0 : index
    %185 = vector.load %arg29[%c0_115, %c0_116] : memref<1x32xf32, #tpu.memory_space<vmem>>, vector<1x32xf32>
    %186 = vector.shape_cast %181 : vector<4x32xf32> to vector<1x4x32xf32>
    %187 = vector.broadcast %186 : vector<1x4x32xf32> to vector<2x4x32xf32>
    %188 = arith.addf %180, %187 : vector<2x4x32xf32>
    %189 = vector.shape_cast %188 : vector<2x4x32xf32> to vector<8x32xf32>
    %190 = arith.truncf %189 : vector<8x32xf32> to vector<8x32xbf16>
    %cst_117 = arith.constant dense<0.000000e+00> : vector<8x96xf32>
    %191 = tpu.matmul %190, %182, %cst_117 {dimension_numbers = #tpu.dot_dimension_numbers<[1], [0], [0], [1], [0, 0, 1, 1], [], []>} : vector<8x32xbf16>, vector<32x96xbf16>, vector<8x96xf32> -> vector<8x96xf32>
    %192 = vector.broadcast %183 : vector<1x96xf32> to vector<8x96xf32>
    %193 = arith.addf %191, %192 : vector<8x96xf32>
    %194 = vector.extract_strided_slice %193 {offsets = [0, 0], sizes = [8, 32], strides = [1, 1]} : vector<8x96xf32> to vector<8x32xf32>
    %cst_118 = arith.constant 0.353553385 : f32
    %195 = vector.broadcast %cst_118 : f32 to vector<8x32xf32>
    %196 = arith.mulf %194, %195 : vector<8x32xf32>
    %197 = vector.shape_cast %196 : vector<8x32xf32> to vector<2x4x32xf32>
    %198 = vector.extract_strided_slice %193 {offsets = [0, 32], sizes = [8, 32], strides = [1, 1]} : vector<8x96xf32> to vector<8x32xf32>
    %199 = vector.shape_cast %198 : vector<8x32xf32> to vector<2x4x32xf32>
    %200 = vector.extract_strided_slice %193 {offsets = [0, 64], sizes = [8, 32], strides = [1, 1]} : vector<8x96xf32> to vector<8x32xf32>
    %201 = vector.shape_cast %200 : vector<8x32xf32> to vector<2x4x32xf32>
    %cst_119 = arith.constant 0.000000e+00 : f32
    %202 = vector.broadcast %cst_119 : f32 to vector<8x32xf32>
    %203 = vector.extract_strided_slice %197 {offsets = [0, 0, 0], sizes = [2, 4, 8], strides = [1, 1, 1]} : vector<2x4x32xf32> to vector<2x4x8xf32>
    %204 = arith.truncf %203 : vector<2x4x8xf32> to vector<2x4x8xbf16>
    %205 = vector.extract_strided_slice %199 {offsets = [0, 0, 0], sizes = [2, 4, 8], strides = [1, 1, 1]} : vector<2x4x32xf32> to vector<2x4x8xf32>
    %206 = arith.truncf %205 : vector<2x4x8xf32> to vector<2x4x8xbf16>
    %207 = vector.extract_strided_slice %201 {offsets = [0, 0, 0], sizes = [2, 4, 8], strides = [1, 1, 1]} : vector<2x4x32xf32> to vector<2x4x8xf32>
    %208 = arith.truncf %207 : vector<2x4x8xf32> to vector<2x4x8xbf16>
    "tpu.trace_start"() <{level = 10 : i32, message = "bqd,bkd->bqk"}> : () -> ()
    %cst_120 = arith.constant dense<0.000000e+00> : vector<2x4x4xf32>
    %209 = tpu.matmul %204, %206, %cst_120 {dimension_numbers = #tpu.dot_dimension_numbers<[2], [2], [1], [1], [0, 0, 0, 1, 1, 1], [0], [0]>} : vector<2x4x8xbf16>, vector<2x4x8xbf16>, vector<2x4x4xf32> -> vector<2x4x4xf32>
    "tpu.trace_stop"() : () -> ()
    %cst_121 = arith.constant dense<0xFF800000> : vector<2x4xf32>
    %210 = vector.multi_reduction <maximumf>, %209, %cst_121 [2] : vector<2x4x4xf32> to vector<2x4xf32>
    %211 = vector.shape_cast %210 : vector<2x4xf32> to vector<2x4x1xf32>
    %212 = vector.broadcast %211 : vector<2x4x1xf32> to vector<2x4x4xf32>
    %213 = arith.subf %209, %212 : vector<2x4x4xf32>
    %214 = math.exp %213 : vector<2x4x4xf32>
    %cst_122 = arith.constant dense<0.000000e+00> : vector<2x4xf32>
    %215 = vector.multi_reduction <add>, %214, %cst_122 [2] : vector<2x4x4xf32> to vector<2x4xf32>
    %216 = vector.shape_cast %215 : vector<2x4xf32> to vector<2x4x1xf32>
    %217 = tpu.reciprocal %216 {approx = true} : vector<2x4x1xf32> -> vector<2x4x1xf32>
    %218 = vector.broadcast %217 : vector<2x4x1xf32> to vector<2x4x4xf32>
    %219 = arith.mulf %214, %218 : vector<2x4x4xf32>
    %220 = arith.truncf %219 : vector<2x4x4xf32> to vector<2x4x4xbf16>
    "tpu.trace_start"() <{level = 10 : i32, message = "bqk,bkd->bqd"}> : () -> ()
    %cst_123 = arith.constant dense<0.000000e+00> : vector<2x4x8xf32>
    %221 = tpu.matmul %220, %208, %cst_123 {dimension_numbers = #tpu.dot_dimension_numbers<[2], [1], [1], [2], [0, 0, 0, 1, 1, 2], [0], [0]>} : vector<2x4x4xbf16>, vector<2x4x8xbf16>, vector<2x4x8xf32> -> vector<2x4x8xf32>
    "tpu.trace_stop"() : () -> ()
    %222 = vector.shape_cast %221 : vector<2x4x8xf32> to vector<8x8xf32>
    %223 = arith.truncf %222 : vector<8x8xf32> to vector<8x8xbf16>
    %224 = vector.extract_strided_slice %184 {offsets = [0, 0], sizes = [8, 32], strides = [1, 1]} : vector<32x32xbf16> to vector<8x32xbf16>
    %cst_124 = arith.constant dense<0.000000e+00> : vector<8x32xf32>
    %225 = tpu.matmul %223, %224, %cst_124 {dimension_numbers = #tpu.dot_dimension_numbers<[1], [0], [0], [1], [0, 0, 1, 1], [], []>} : vector<8x8xbf16>, vector<8x32xbf16>, vector<8x32xf32> -> vector<8x32xf32>
    %226 = arith.addf %202, %225 : vector<8x32xf32>
    %227 = vector.extract_strided_slice %197 {offsets = [0, 0, 8], sizes = [2, 4, 8], strides = [1, 1, 1]} : vector<2x4x32xf32> to vector<2x4x8xf32>
    %228 = arith.truncf %227 : vector<2x4x8xf32> to vector<2x4x8xbf16>
    %229 = vector.extract_strided_slice %199 {offsets = [0, 0, 8], sizes = [2, 4, 8], strides = [1, 1, 1]} : vector<2x4x32xf32> to vector<2x4x8xf32>
    %230 = arith.truncf %229 : vector<2x4x8xf32> to vector<2x4x8xbf16>
    %231 = vector.extract_strided_slice %201 {offsets = [0, 0, 8], sizes = [2, 4, 8], strides = [1, 1, 1]} : vector<2x4x32xf32> to vector<2x4x8xf32>
    %232 = arith.truncf %231 : vector<2x4x8xf32> to vector<2x4x8xbf16>
    "tpu.trace_start"() <{level = 10 : i32, message = "bqd,bkd->bqk"}> : () -> ()
    %cst_125 = arith.constant dense<0.000000e+00> : vector<2x4x4xf32>
    %233 = tpu.matmul %228, %230, %cst_125 {dimension_numbers = #tpu.dot_dimension_numbers<[2], [2], [1], [1], [0, 0, 0, 1, 1, 1], [0], [0]>} : vector<2x4x8xbf16>, vector<2x4x8xbf16>, vector<2x4x4xf32> -> vector<2x4x4xf32>
    "tpu.trace_stop"() : () -> ()
    %cst_126 = arith.constant dense<0xFF800000> : vector<2x4xf32>
    %234 = vector.multi_reduction <maximumf>, %233, %cst_126 [2] : vector<2x4x4xf32> to vector<2x4xf32>
    %235 = vector.shape_cast %234 : vector<2x4xf32> to vector<2x4x1xf32>
    %236 = vector.broadcast %235 : vector<2x4x1xf32> to vector<2x4x4xf32>
    %237 = arith.subf %233, %236 : vector<2x4x4xf32>
    %238 = math.exp %237 : vector<2x4x4xf32>
    %cst_127 = arith.constant dense<0.000000e+00> : vector<2x4xf32>
    %239 = vector.multi_reduction <add>, %238, %cst_127 [2] : vector<2x4x4xf32> to vector<2x4xf32>
    %240 = vector.shape_cast %239 : vector<2x4xf32> to vector<2x4x1xf32>
    %241 = tpu.reciprocal %240 {approx = true} : vector<2x4x1xf32> -> vector<2x4x1xf32>
    %242 = vector.broadcast %241 : vector<2x4x1xf32> to vector<2x4x4xf32>
    %243 = arith.mulf %238, %242 : vector<2x4x4xf32>
    %244 = arith.truncf %243 : vector<2x4x4xf32> to vector<2x4x4xbf16>
    "tpu.trace_start"() <{level = 10 : i32, message = "bqk,bkd->bqd"}> : () -> ()
    %cst_128 = arith.constant dense<0.000000e+00> : vector<2x4x8xf32>
    %245 = tpu.matmul %244, %232, %cst_128 {dimension_numbers = #tpu.dot_dimension_numbers<[2], [1], [1], [2], [0, 0, 0, 1, 1, 2], [0], [0]>} : vector<2x4x4xbf16>, vector<2x4x8xbf16>, vector<2x4x8xf32> -> vector<2x4x8xf32>
    "tpu.trace_stop"() : () -> ()
    %246 = vector.shape_cast %245 : vector<2x4x8xf32> to vector<8x8xf32>
    %247 = arith.truncf %246 : vector<8x8xf32> to vector<8x8xbf16>
    %248 = vector.extract_strided_slice %184 {offsets = [8, 0], sizes = [8, 32], strides = [1, 1]} : vector<32x32xbf16> to vector<8x32xbf16>
    %cst_129 = arith.constant dense<0.000000e+00> : vector<8x32xf32>
    %249 = tpu.matmul %247, %248, %cst_129 {dimension_numbers = #tpu.dot_dimension_numbers<[1], [0], [0], [1], [0, 0, 1, 1], [], []>} : vector<8x8xbf16>, vector<8x32xbf16>, vector<8x32xf32> -> vector<8x32xf32>
    %250 = arith.addf %226, %249 : vector<8x32xf32>
    %251 = vector.extract_strided_slice %197 {offsets = [0, 0, 16], sizes = [2, 4, 8], strides = [1, 1, 1]} : vector<2x4x32xf32> to vector<2x4x8xf32>
    %252 = arith.truncf %251 : vector<2x4x8xf32> to vector<2x4x8xbf16>
    %253 = vector.extract_strided_slice %199 {offsets = [0, 0, 16], sizes = [2, 4, 8], strides = [1, 1, 1]} : vector<2x4x32xf32> to vector<2x4x8xf32>
    %254 = arith.truncf %253 : vector<2x4x8xf32> to vector<2x4x8xbf16>
    %255 = vector.extract_strided_slice %201 {offsets = [0, 0, 16], sizes = [2, 4, 8], strides = [1, 1, 1]} : vector<2x4x32xf32> to vector<2x4x8xf32>
    %256 = arith.truncf %255 : vector<2x4x8xf32> to vector<2x4x8xbf16>
    "tpu.trace_start"() <{level = 10 : i32, message = "bqd,bkd->bqk"}> : () -> ()
    %cst_130 = arith.constant dense<0.000000e+00> : vector<2x4x4xf32>
    %257 = tpu.matmul %252, %254, %cst_130 {dimension_numbers = #tpu.dot_dimension_numbers<[2], [2], [1], [1], [0, 0, 0, 1, 1, 1], [0], [0]>} : vector<2x4x8xbf16>, vector<2x4x8xbf16>, vector<2x4x4xf32> -> vector<2x4x4xf32>
    "tpu.trace_stop"() : () -> ()
    %cst_131 = arith.constant dense<0xFF800000> : vector<2x4xf32>
    %258 = vector.multi_reduction <maximumf>, %257, %cst_131 [2] : vector<2x4x4xf32> to vector<2x4xf32>
    %259 = vector.shape_cast %258 : vector<2x4xf32> to vector<2x4x1xf32>
    %260 = vector.broadcast %259 : vector<2x4x1xf32> to vector<2x4x4xf32>
    %261 = arith.subf %257, %260 : vector<2x4x4xf32>
    %262 = math.exp %261 : vector<2x4x4xf32>
    %cst_132 = arith.constant dense<0.000000e+00> : vector<2x4xf32>
    %263 = vector.multi_reduction <add>, %262, %cst_132 [2] : vector<2x4x4xf32> to vector<2x4xf32>
    %264 = vector.shape_cast %263 : vector<2x4xf32> to vector<2x4x1xf32>
    %265 = tpu.reciprocal %264 {approx = true} : vector<2x4x1xf32> -> vector<2x4x1xf32>
    %266 = vector.broadcast %265 : vector<2x4x1xf32> to vector<2x4x4xf32>
    %267 = arith.mulf %262, %266 : vector<2x4x4xf32>
    %268 = arith.truncf %267 : vector<2x4x4xf32> to vector<2x4x4xbf16>
    "tpu.trace_start"() <{level = 10 : i32, message = "bqk,bkd->bqd"}> : () -> ()
    %cst_133 = arith.constant dense<0.000000e+00> : vector<2x4x8xf32>
    %269 = tpu.matmul %268, %256, %cst_133 {dimension_numbers = #tpu.dot_dimension_numbers<[2], [1], [1], [2], [0, 0, 0, 1, 1, 2], [0], [0]>} : vector<2x4x4xbf16>, vector<2x4x8xbf16>, vector<2x4x8xf32> -> vector<2x4x8xf32>
    "tpu.trace_stop"() : () -> ()
    %270 = vector.shape_cast %269 : vector<2x4x8xf32> to vector<8x8xf32>
    %271 = arith.truncf %270 : vector<8x8xf32> to vector<8x8xbf16>
    %272 = vector.extract_strided_slice %184 {offsets = [16, 0], sizes = [8, 32], strides = [1, 1]} : vector<32x32xbf16> to vector<8x32xbf16>
    %cst_134 = arith.constant dense<0.000000e+00> : vector<8x32xf32>
    %273 = tpu.matmul %271, %272, %cst_134 {dimension_numbers = #tpu.dot_dimension_numbers<[1], [0], [0], [1], [0, 0, 1, 1], [], []>} : vector<8x8xbf16>, vector<8x32xbf16>, vector<8x32xf32> -> vector<8x32xf32>
    %274 = arith.addf %250, %273 : vector<8x32xf32>
    %275 = vector.extract_strided_slice %197 {offsets = [0, 0, 24], sizes = [2, 4, 8], strides = [1, 1, 1]} : vector<2x4x32xf32> to vector<2x4x8xf32>
    %276 = arith.truncf %275 : vector<2x4x8xf32> to vector<2x4x8xbf16>
    %277 = vector.extract_strided_slice %199 {offsets = [0, 0, 24], sizes = [2, 4, 8], strides = [1, 1, 1]} : vector<2x4x32xf32> to vector<2x4x8xf32>
    %278 = arith.truncf %277 : vector<2x4x8xf32> to vector<2x4x8xbf16>
    %279 = vector.extract_strided_slice %201 {offsets = [0, 0, 24], sizes = [2, 4, 8], strides = [1, 1, 1]} : vector<2x4x32xf32> to vector<2x4x8xf32>
    %280 = arith.truncf %279 : vector<2x4x8xf32> to vector<2x4x8xbf16>
    "tpu.trace_start"() <{level = 10 : i32, message = "bqd,bkd->bqk"}> : () -> ()
    %cst_135 = arith.constant dense<0.000000e+00> : vector<2x4x4xf32>
    %281 = tpu.matmul %276, %278, %cst_135 {dimension_numbers = #tpu.dot_dimension_numbers<[2], [2], [1], [1], [0, 0, 0, 1, 1, 1], [0], [0]>} : vector<2x4x8xbf16>, vector<2x4x8xbf16>, vector<2x4x4xf32> -> vector<2x4x4xf32>
    "tpu.trace_stop"() : () -> ()
    %cst_136 = arith.constant dense<0xFF800000> : vector<2x4xf32>
    %282 = vector.multi_reduction <maximumf>, %281, %cst_136 [2] : vector<2x4x4xf32> to vector<2x4xf32>
    %283 = vector.shape_cast %282 : vector<2x4xf32> to vector<2x4x1xf32>
    %284 = vector.broadcast %283 : vector<2x4x1xf32> to vector<2x4x4xf32>
    %285 = arith.subf %281, %284 : vector<2x4x4xf32>
    %286 = math.exp %285 : vector<2x4x4xf32>
    %cst_137 = arith.constant dense<0.000000e+00> : vector<2x4xf32>
    %287 = vector.multi_reduction <add>, %286, %cst_137 [2] : vector<2x4x4xf32> to vector<2x4xf32>
    %288 = vector.shape_cast %287 : vector<2x4xf32> to vector<2x4x1xf32>
    %289 = tpu.reciprocal %288 {approx = true} : vector<2x4x1xf32> -> vector<2x4x1xf32>
    %290 = vector.broadcast %289 : vector<2x4x1xf32> to vector<2x4x4xf32>
    %291 = arith.mulf %286, %290 : vector<2x4x4xf32>
    %292 = arith.truncf %291 : vector<2x4x4xf32> to vector<2x4x4xbf16>
    "tpu.trace_start"() <{level = 10 : i32, message = "bqk,bkd->bqd"}> : () -> ()
    %cst_138 = arith.constant dense<0.000000e+00> : vector<2x4x8xf32>
    %293 = tpu.matmul %292, %280, %cst_138 {dimension_numbers = #tpu.dot_dimension_numbers<[2], [1], [1], [2], [0, 0, 0, 1, 1, 2], [0], [0]>} : vector<2x4x4xbf16>, vector<2x4x8xbf16>, vector<2x4x8xf32> -> vector<2x4x8xf32>
    "tpu.trace_stop"() : () -> ()
    %294 = vector.shape_cast %293 : vector<2x4x8xf32> to vector<8x8xf32>
    %295 = arith.truncf %294 : vector<8x8xf32> to vector<8x8xbf16>
    %296 = vector.extract_strided_slice %184 {offsets = [24, 0], sizes = [8, 32], strides = [1, 1]} : vector<32x32xbf16> to vector<8x32xbf16>
    %cst_139 = arith.constant dense<0.000000e+00> : vector<8x32xf32>
    %297 = tpu.matmul %295, %296, %cst_139 {dimension_numbers = #tpu.dot_dimension_numbers<[1], [0], [0], [1], [0, 0, 1, 1], [], []>} : vector<8x8xbf16>, vector<8x32xbf16>, vector<8x32xf32> -> vector<8x32xf32>
    %298 = arith.addf %274, %297 : vector<8x32xf32>
    %299 = vector.broadcast %185 : vector<1x32xf32> to vector<8x32xf32>
    %300 = arith.addf %298, %299 : vector<8x32xf32>
    %301 = vector.shape_cast %300 : vector<8x32xf32> to vector<2x4x32xf32>
    %c0_140 = arith.constant 0 : index
    %c0_141 = arith.constant 0 : index
    %c0_142 = arith.constant 0 : index
    %302 = vector.load %arg65[%c0_140, %c0_141, %c0_142] : memref<2x8x128xf32, #tpu.memory_space<vmem>>, vector<2x8x128xf32>
    %c0_143 = arith.constant 0 : index
    %c0_144 = arith.constant 0 : index
    %c0_145 = arith.constant 0 : index
    %303 = vector.load %arg30[%c0_143, %c0_144, %c0_145] : memref<2x32x32xbf16, #tpu.memory_space<vmem>>, vector<2x32x32xbf16>
    %c0_146 = arith.constant 0 : index
    %c0_147 = arith.constant 0 : index
    %304 = vector.load %arg31[%c0_146, %c0_147] : memref<1x32xf32, #tpu.memory_space<vmem>>, vector<1x32xf32>
    %c0_148 = arith.constant 0 : index
    %c0_149 = arith.constant 0 : index
    %305 = vector.load %arg32[%c0_148, %c0_149] : memref<96x128xbf16, #tpu.memory_space<vmem>>, vector<96x128xbf16>
    %c0_150 = arith.constant 0 : index
    %c0_151 = arith.constant 0 : index
    %306 = vector.load %arg33[%c0_150, %c0_151] : memref<384x128xbf16, #tpu.memory_space<vmem>>, vector<384x128xbf16>
    %c0_152 = arith.constant 0 : index
    %c0_153 = arith.constant 0 : index
    %307 = vector.load %arg34[%c0_152, %c0_153] : memref<1x128xf32, #tpu.memory_space<vmem>>, vector<1x128xf32>
    %c0_154 = arith.constant 0 : index
    %c0_155 = arith.constant 0 : index
    %308 = vector.load %arg35[%c0_154, %c0_155] : memref<384x128xbf16, #tpu.memory_space<vmem>>, vector<384x128xbf16>
    %c0_156 = arith.constant 0 : index
    %c0_157 = arith.constant 0 : index
    %309 = vector.load %arg36[%c0_156, %c0_157] : memref<1x128xf32, #tpu.memory_space<vmem>>, vector<1x128xf32>
    %c0_158 = arith.constant 0 : index
    %c0_159 = arith.constant 0 : index
    %310 = vector.load %arg37[%c0_158, %c0_159] : memref<32x128xbf16, #tpu.memory_space<vmem>>, vector<32x128xbf16>
    %c0_160 = arith.constant 0 : index
    %c0_161 = arith.constant 0 : index
    %311 = vector.load %arg38[%c0_160, %c0_161] : memref<128x128xbf16, #tpu.memory_space<vmem>>, vector<128x128xbf16>
    %c0_162 = arith.constant 0 : index
    %c0_163 = arith.constant 0 : index
    %312 = vector.load %arg39[%c0_162, %c0_163] : memref<1x128xf32, #tpu.memory_space<vmem>>, vector<1x128xf32>
    %313 = vector.shape_cast %301 : vector<2x4x32xf32> to vector<8x32xf32>
    %314 = arith.truncf %313 : vector<8x32xf32> to vector<8x32xbf16>
    %315 = vector.extract_strided_slice %303 {offsets = [0, 0, 0], sizes = [1, 32, 32], strides = [1, 1, 1]} : vector<2x32x32xbf16> to vector<1x32x32xbf16>
    %316 = vector.shape_cast %315 : vector<1x32x32xbf16> to vector<32x32xbf16>
    %cst_164 = arith.constant dense<0.000000e+00> : vector<8x32xf32>
    %317 = tpu.matmul %314, %316, %cst_164 {dimension_numbers = #tpu.dot_dimension_numbers<[1], [0], [0], [1], [0, 0, 1, 1], [], []>} : vector<8x32xbf16>, vector<32x32xbf16>, vector<8x32xf32> -> vector<8x32xf32>
    %318 = vector.broadcast %304 : vector<1x32xf32> to vector<8x32xf32>
    %319 = arith.addf %317, %318 : vector<8x32xf32>
    %320 = vector.extract_strided_slice %303 {offsets = [1, 0, 0], sizes = [1, 32, 32], strides = [1, 1, 1]} : vector<2x32x32xbf16> to vector<1x32x32xbf16>
    %321 = vector.shape_cast %320 : vector<1x32x32xbf16> to vector<32x32xbf16>
    %cst_165 = arith.constant dense<0.000000e+00> : vector<8x32xf32>
    %322 = tpu.matmul %314, %321, %cst_165 {dimension_numbers = #tpu.dot_dimension_numbers<[1], [0], [0], [1], [0, 0, 1, 1], [], []>} : vector<8x32xbf16>, vector<32x32xbf16>, vector<8x32xf32> -> vector<8x32xf32>
    %323 = vector.broadcast %304 : vector<1x32xf32> to vector<8x32xf32>
    %324 = arith.addf %322, %323 : vector<8x32xf32>
    %325 = vector.shape_cast %319 : vector<8x32xf32> to vector<2x4x32xf32>
    %c0_166 = arith.constant 0 : index
    %c0_167 = arith.constant 0 : index
    %c0_168 = arith.constant 0 : index
    %c0_169 = arith.constant 0 : index
    %326 = vector.load %arg66[%c0_166, %c0_167, %c0_168, %c0_169] : memref<2x4x2x32xf32, #tpu.memory_space<vmem>>, vector<2x4x1x32xf32>
    %327 = vector.shape_cast %326 : vector<2x4x1x32xf32> to vector<2x4x32xf32>
    %328 = vector.shape_cast %325 : vector<2x4x32xf32> to vector<2x4x1x32xf32>
    tpu.vector_store %arg66[%c0_166, %c0_167, %c0_168, %c0_169], %328 {strides = array<i32>} : memref<2x4x2x32xf32, #tpu.memory_space<vmem>>, vector<2x4x1x32xf32>,
    %329 = vector.shape_cast %324 : vector<8x32xf32> to vector<2x4x32xf32>
    %c0_170 = arith.constant 0 : index
    %c0_171 = arith.constant 0 : index
    %c1_172 = arith.constant 1 : index
    %c0_173 = arith.constant 0 : index
    %330 = vector.load %arg66[%c0_170, %c0_171, %c1_172, %c0_173] : memref<2x4x2x32xf32, #tpu.memory_space<vmem>>, vector<2x4x1x32xf32>
    %331 = vector.shape_cast %330 : vector<2x4x1x32xf32> to vector<2x4x32xf32>
    %332 = vector.shape_cast %329 : vector<2x4x32xf32> to vector<2x4x1x32xf32>
    tpu.vector_store %arg66[%c0_170, %c0_171, %c1_172, %c0_173], %332 {strides = array<i32>} : memref<2x4x2x32xf32, #tpu.memory_space<vmem>>, vector<2x4x1x32xf32>,
    %c0_174 = arith.constant 0 : index
    %c0_175 = arith.constant 0 : index
    %c0_176 = arith.constant 0 : index
    %c0_177 = arith.constant 0 : index
    %333 = vector.load %arg66[%c0_174, %c0_175, %c0_176, %c0_177] : memref<2x4x2x32xf32, #tpu.memory_space<vmem>>, vector<2x4x2x32xf32>
    %334 = vector.shape_cast %333 : vector<2x4x2x32xf32> to vector<2x8x32xf32>
    %cst_178 = arith.constant 0.000000e+00 : f32
    %335 = vector.broadcast %cst_178 : f32 to vector<2x1x32xf32>
    %336 = vector.extract_strided_slice %334 {offsets = [0, 0, 0], sizes = [2, 7, 32], strides = [1, 1, 1]} : vector<2x8x32xf32> to vector<2x7x32xf32>
    %337 = tpu.concatenate %335, %336 in 1 : vector<2x1x32xf32>, vector<2x7x32xf32> -> vector<2x8x32xf32>
    %338 = vector.extract_strided_slice %334 {offsets = [0, 1, 0], sizes = [2, 7, 32], strides = [1, 1, 1]} : vector<2x8x32xf32> to vector<2x7x32xf32>
    %339 = tpu.concatenate %338, %335 in 1 : vector<2x7x32xf32>, vector<2x1x32xf32> -> vector<2x8x32xf32>
    %340 = tpu.concatenate %337, %334, %339 in 2 : vector<2x8x32xf32>, vector<2x8x32xf32>, vector<2x8x32xf32> -> vector<2x8x96xf32>
    %341 = vector.shape_cast %340 : vector<2x8x96xf32> to vector<16x96xf32>
    %342 = arith.truncf %341 : vector<16x96xf32> to vector<16x96xbf16>
    %cst_179 = arith.constant dense<0.000000e+00> : vector<16x128xf32>
    %343 = tpu.matmul %342, %305, %cst_179 {dimension_numbers = #tpu.dot_dimension_numbers<[1], [0], [0], [1], [0, 0, 1, 1], [], []>} : vector<16x96xbf16>, vector<96x128xbf16>, vector<16x128xf32> -> vector<16x128xf32>
    %cst_180 = arith.constant 0.000000e+00 : f32
    %344 = vector.broadcast %cst_180 : f32 to vector<2x1x128xf32>
    %345 = vector.extract_strided_slice %302 {offsets = [0, 0, 0], sizes = [2, 7, 128], strides = [1, 1, 1]} : vector<2x8x128xf32> to vector<2x7x128xf32>
    %346 = tpu.concatenate %344, %345 in 1 : vector<2x1x128xf32>, vector<2x7x128xf32> -> vector<2x8x128xf32>
    %347 = vector.extract_strided_slice %302 {offsets = [0, 1, 0], sizes = [2, 7, 128], strides = [1, 1, 1]} : vector<2x8x128xf32> to vector<2x7x128xf32>
    %348 = tpu.concatenate %347, %344 in 1 : vector<2x7x128xf32>, vector<2x1x128xf32> -> vector<2x8x128xf32>
    %349 = tpu.concatenate %346, %302, %348 in 2 : vector<2x8x128xf32>, vector<2x8x128xf32>, vector<2x8x128xf32> -> vector<2x8x384xf32>
    %350 = vector.shape_cast %349 : vector<2x8x384xf32> to vector<16x384xf32>
    %351 = arith.truncf %350 : vector<16x384xf32> to vector<16x384xbf16>
    %cst_181 = arith.constant dense<0.000000e+00> : vector<16x128xf32>
    %352 = tpu.matmul %351, %306, %cst_181 {dimension_numbers = #tpu.dot_dimension_numbers<[1], [0], [0], [1], [0, 0, 1, 1], [], []>} : vector<16x384xbf16>, vector<384x128xbf16>, vector<16x128xf32> -> vector<16x128xf32>
    %353 = arith.addf %343, %352 : vector<16x128xf32>
    %354 = vector.broadcast %307 : vector<1x128xf32> to vector<16x128xf32>
    %355 = arith.addf %353, %354 : vector<16x128xf32>
    %cst_182 = arith.constant 0.000000e+00 : f32
    %356 = vector.broadcast %cst_182 : f32 to vector<16x128xf32>
    %357 = arith.maximumf %355, %356 : vector<16x128xf32>
    %358 = vector.shape_cast %357 : vector<16x128xf32> to vector<2x8x128xf32>
    %cst_183 = arith.constant 0.000000e+00 : f32
    %359 = vector.broadcast %cst_183 : f32 to vector<2x1x128xf32>
    %360 = vector.extract_strided_slice %358 {offsets = [0, 0, 0], sizes = [2, 7, 128], strides = [1, 1, 1]} : vector<2x8x128xf32> to vector<2x7x128xf32>
    %361 = tpu.concatenate %359, %360 in 1 : vector<2x1x128xf32>, vector<2x7x128xf32> -> vector<2x8x128xf32>
    %362 = vector.extract_strided_slice %358 {offsets = [0, 1, 0], sizes = [2, 7, 128], strides = [1, 1, 1]} : vector<2x8x128xf32> to vector<2x7x128xf32>
    %363 = tpu.concatenate %362, %359 in 1 : vector<2x7x128xf32>, vector<2x1x128xf32> -> vector<2x8x128xf32>
    %364 = tpu.concatenate %361, %358, %363 in 2 : vector<2x8x128xf32>, vector<2x8x128xf32>, vector<2x8x128xf32> -> vector<2x8x384xf32>
    %365 = vector.shape_cast %364 : vector<2x8x384xf32> to vector<16x384xf32>
    %366 = arith.truncf %365 : vector<16x384xf32> to vector<16x384xbf16>
    %cst_184 = arith.constant dense<0.000000e+00> : vector<16x128xf32>
    %367 = tpu.matmul %366, %308, %cst_184 {dimension_numbers = #tpu.dot_dimension_numbers<[1], [0], [0], [1], [0, 0, 1, 1], [], []>} : vector<16x384xbf16>, vector<384x128xbf16>, vector<16x128xf32> -> vector<16x128xf32>
    %368 = vector.broadcast %309 : vector<1x128xf32> to vector<16x128xf32>
    %369 = arith.addf %367, %368 : vector<16x128xf32>
    %cst_185 = arith.constant 0.000000e+00 : f32
    %370 = vector.broadcast %cst_185 : f32 to vector<16x128xf32>
    %371 = arith.maximumf %369, %370 : vector<16x128xf32>
    %372 = vector.shape_cast %334 : vector<2x8x32xf32> to vector<16x32xf32>
    %373 = arith.truncf %372 : vector<16x32xf32> to vector<16x32xbf16>
    %cst_186 = arith.constant dense<0.000000e+00> : vector<16x128xf32>
    %374 = tpu.matmul %373, %310, %cst_186 {dimension_numbers = #tpu.dot_dimension_numbers<[1], [0], [0], [1], [0, 0, 1, 1], [], []>} : vector<16x32xbf16>, vector<32x128xbf16>, vector<16x128xf32> -> vector<16x128xf32>
    %375 = vector.shape_cast %302 : vector<2x8x128xf32> to vector<16x128xf32>
    %376 = arith.truncf %375 : vector<16x128xf32> to vector<16x128xbf16>
    %cst_187 = arith.constant dense<0.000000e+00> : vector<16x128xf32>
    %377 = tpu.matmul %376, %311, %cst_187 {dimension_numbers = #tpu.dot_dimension_numbers<[1], [0], [0], [1], [0, 0, 1, 1], [], []>} : vector<16x128xbf16>, vector<128x128xbf16>, vector<16x128xf32> -> vector<16x128xf32>
    %378 = arith.addf %374, %377 : vector<16x128xf32>
    %379 = vector.broadcast %312 : vector<1x128xf32> to vector<16x128xf32>
    %380 = arith.addf %378, %379 : vector<16x128xf32>
    %381 = arith.addf %371, %380 : vector<16x128xf32>
    %cst_188 = arith.constant 0.000000e+00 : f32
    %382 = vector.broadcast %cst_188 : f32 to vector<16x128xf32>
    %383 = arith.maximumf %381, %382 : vector<16x128xf32>
    %384 = vector.shape_cast %383 : vector<16x128xf32> to vector<2x8x128xf32>
    %c0_189 = arith.constant 0 : index
    %c0_190 = arith.constant 0 : index
    %c0_191 = arith.constant 0 : index
    %385 = vector.load %arg64[%c0_189, %c0_190, %c0_191] : memref<2x16x64xf32, #tpu.memory_space<vmem>>, vector<2x16x64xf32>
    %c0_192 = arith.constant 0 : index
    %c0_193 = arith.constant 0 : index
    %c0_194 = arith.constant 0 : index
    %386 = vector.load %arg40[%c0_192, %c0_193, %c0_194] : memref<2x128x128xbf16, #tpu.memory_space<vmem>>, vector<2x128x128xbf16>
    %c0_195 = arith.constant 0 : index
    %c0_196 = arith.constant 0 : index
    %387 = vector.load %arg41[%c0_195, %c0_196] : memref<1x128xf32, #tpu.memory_space<vmem>>, vector<1x128xf32>
    %c0_197 = arith.constant 0 : index
    %c0_198 = arith.constant 0 : index
    %388 = vector.load %arg42[%c0_197, %c0_198] : memref<384x64xbf16, #tpu.memory_space<vmem>>, vector<384x64xbf16>
    %c0_199 = arith.constant 0 : index
    %c0_200 = arith.constant 0 : index
    %389 = vector.load %arg43[%c0_199, %c0_200] : memref<192x64xbf16, #tpu.memory_space<vmem>>, vector<192x64xbf16>
    %c0_201 = arith.constant 0 : index
    %c0_202 = arith.constant 0 : index
    %390 = vector.load %arg44[%c0_201, %c0_202] : memref<1x64xf32, #tpu.memory_space<vmem>>, vector<1x64xf32>
    %c0_203 = arith.constant 0 : index
    %c0_204 = arith.constant 0 : index
    %391 = vector.load %arg45[%c0_203, %c0_204] : memref<192x64xbf16, #tpu.memory_space<vmem>>, vector<192x64xbf16>
    %c0_205 = arith.constant 0 : index
    %c0_206 = arith.constant 0 : index
    %392 = vector.load %arg46[%c0_205, %c0_206] : memref<1x64xf32, #tpu.memory_space<vmem>>, vector<1x64xf32>
    %c0_207 = arith.constant 0 : index
    %c0_208 = arith.constant 0 : index
    %393 = vector.load %arg47[%c0_207, %c0_208] : memref<128x64xbf16, #tpu.memory_space<vmem>>, vector<128x64xbf16>
    %c0_209 = arith.constant 0 : index
    %c0_210 = arith.constant 0 : index
    %394 = vector.load %arg48[%c0_209, %c0_210] : memref<64x64xbf16, #tpu.memory_space<vmem>>, vector<64x64xbf16>
    %c0_211 = arith.constant 0 : index
    %c0_212 = arith.constant 0 : index
    %395 = vector.load %arg49[%c0_211, %c0_212] : memref<1x64xf32, #tpu.memory_space<vmem>>, vector<1x64xf32>
    %396 = vector.shape_cast %384 : vector<2x8x128xf32> to vector<16x128xf32>
    %397 = arith.truncf %396 : vector<16x128xf32> to vector<16x128xbf16>
    %398 = vector.extract_strided_slice %386 {offsets = [0, 0, 0], sizes = [1, 128, 128], strides = [1, 1, 1]} : vector<2x128x128xbf16> to vector<1x128x128xbf16>
    %399 = vector.shape_cast %398 : vector<1x128x128xbf16> to vector<128x128xbf16>
    %cst_213 = arith.constant dense<0.000000e+00> : vector<16x128xf32>
    %400 = tpu.matmul %397, %399, %cst_213 {dimension_numbers = #tpu.dot_dimension_numbers<[1], [0], [0], [1], [0, 0, 1, 1], [], []>} : vector<16x128xbf16>, vector<128x128xbf16>, vector<16x128xf32> -> vector<16x128xf32>
    %401 = vector.broadcast %387 : vector<1x128xf32> to vector<16x128xf32>
    %402 = arith.addf %400, %401 : vector<16x128xf32>
    %403 = vector.extract_strided_slice %386 {offsets = [1, 0, 0], sizes = [1, 128, 128], strides = [1, 1, 1]} : vector<2x128x128xbf16> to vector<1x128x128xbf16>
    %404 = vector.shape_cast %403 : vector<1x128x128xbf16> to vector<128x128xbf16>
    %cst_214 = arith.constant dense<0.000000e+00> : vector<16x128xf32>
    %405 = tpu.matmul %397, %404, %cst_214 {dimension_numbers = #tpu.dot_dimension_numbers<[1], [0], [0], [1], [0, 0, 1, 1], [], []>} : vector<16x128xbf16>, vector<128x128xbf16>, vector<16x128xf32> -> vector<16x128xf32>
    %406 = vector.broadcast %387 : vector<1x128xf32> to vector<16x128xf32>
    %407 = arith.addf %405, %406 : vector<16x128xf32>
    %408 = vector.shape_cast %402 : vector<16x128xf32> to vector<2x8x128xf32>
    %c0_215 = arith.constant 0 : index
    %c0_216 = arith.constant 0 : index
    %c0_217 = arith.constant 0 : index
    %c0_218 = arith.constant 0 : index
    %409 = vector.load %arg67[%c0_215, %c0_216, %c0_217, %c0_218] : memref<2x8x2x128xf32, #tpu.memory_space<vmem>>, vector<2x8x1x128xf32>
    %410 = vector.shape_cast %409 : vector<2x8x1x128xf32> to vector<2x8x128xf32>
    %411 = vector.shape_cast %408 : vector<2x8x128xf32> to vector<2x8x1x128xf32>
    tpu.vector_store %arg67[%c0_215, %c0_216, %c0_217, %c0_218], %411 {strides = array<i32>} : memref<2x8x2x128xf32, #tpu.memory_space<vmem>>, vector<2x8x1x128xf32>,
    %412 = vector.shape_cast %407 : vector<16x128xf32> to vector<2x8x128xf32>
    %c0_219 = arith.constant 0 : index
    %c0_220 = arith.constant 0 : index
    %c1_221 = arith.constant 1 : index
    %c0_222 = arith.constant 0 : index
    %413 = vector.load %arg67[%c0_219, %c0_220, %c1_221, %c0_222] : memref<2x8x2x128xf32, #tpu.memory_space<vmem>>, vector<2x8x1x128xf32>
    %414 = vector.shape_cast %413 : vector<2x8x1x128xf32> to vector<2x8x128xf32>
    %415 = vector.shape_cast %412 : vector<2x8x128xf32> to vector<2x8x1x128xf32>
    tpu.vector_store %arg67[%c0_219, %c0_220, %c1_221, %c0_222], %415 {strides = array<i32>} : memref<2x8x2x128xf32, #tpu.memory_space<vmem>>, vector<2x8x1x128xf32>,
    %c0_223 = arith.constant 0 : index
    %c0_224 = arith.constant 0 : index
    %c0_225 = arith.constant 0 : index
    %c0_226 = arith.constant 0 : index
    %416 = vector.load %arg67[%c0_223, %c0_224, %c0_225, %c0_226] : memref<2x8x2x128xf32, #tpu.memory_space<vmem>>, vector<2x8x2x128xf32>
    %417 = vector.shape_cast %416 : vector<2x8x2x128xf32> to vector<2x16x128xf32>
    %cst_227 = arith.constant 0.000000e+00 : f32
    %418 = vector.broadcast %cst_227 : f32 to vector<2x1x128xf32>
    %419 = vector.extract_strided_slice %417 {offsets = [0, 0, 0], sizes = [2, 15, 128], strides = [1, 1, 1]} : vector<2x16x128xf32> to vector<2x15x128xf32>
    %420 = tpu.concatenate %418, %419 in 1 : vector<2x1x128xf32>, vector<2x15x128xf32> -> vector<2x16x128xf32>
    %421 = vector.extract_strided_slice %417 {offsets = [0, 1, 0], sizes = [2, 15, 128], strides = [1, 1, 1]} : vector<2x16x128xf32> to vector<2x15x128xf32>
    %422 = tpu.concatenate %421, %418 in 1 : vector<2x15x128xf32>, vector<2x1x128xf32> -> vector<2x16x128xf32>
    %423 = tpu.concatenate %420, %417, %422 in 2 : vector<2x16x128xf32>, vector<2x16x128xf32>, vector<2x16x128xf32> -> vector<2x16x384xf32>
    %424 = vector.shape_cast %423 : vector<2x16x384xf32> to vector<32x384xf32>
    %425 = arith.truncf %424 : vector<32x384xf32> to vector<32x384xbf16>
    %cst_228 = arith.constant dense<0.000000e+00> : vector<32x64xf32>
    %426 = tpu.matmul %425, %388, %cst_228 {dimension_numbers = #tpu.dot_dimension_numbers<[1], [0], [0], [1], [0, 0, 1, 1], [], []>} : vector<32x384xbf16>, vector<384x64xbf16>, vector<32x64xf32> -> vector<32x64xf32>
    %cst_229 = arith.constant 0.000000e+00 : f32
    %427 = vector.broadcast %cst_229 : f32 to vector<2x1x64xf32>
    %428 = vector.extract_strided_slice %385 {offsets = [0, 0, 0], sizes = [2, 15, 64], strides = [1, 1, 1]} : vector<2x16x64xf32> to vector<2x15x64xf32>
    %429 = tpu.concatenate %427, %428 in 1 : vector<2x1x64xf32>, vector<2x15x64xf32> -> vector<2x16x64xf32>
    %430 = vector.extract_strided_slice %385 {offsets = [0, 1, 0], sizes = [2, 15, 64], strides = [1, 1, 1]} : vector<2x16x64xf32> to vector<2x15x64xf32>
    %431 = tpu.concatenate %430, %427 in 1 : vector<2x15x64xf32>, vector<2x1x64xf32> -> vector<2x16x64xf32>
    %432 = tpu.concatenate %429, %385, %431 in 2 : vector<2x16x64xf32>, vector<2x16x64xf32>, vector<2x16x64xf32> -> vector<2x16x192xf32>
    %433 = vector.shape_cast %432 : vector<2x16x192xf32> to vector<32x192xf32>
    %434 = arith.truncf %433 : vector<32x192xf32> to vector<32x192xbf16>
    %cst_230 = arith.constant dense<0.000000e+00> : vector<32x64xf32>
    %435 = tpu.matmul %434, %389, %cst_230 {dimension_numbers = #tpu.dot_dimension_numbers<[1], [0], [0], [1], [0, 0, 1, 1], [], []>} : vector<32x192xbf16>, vector<192x64xbf16>, vector<32x64xf32> -> vector<32x64xf32>
    %436 = arith.addf %426, %435 : vector<32x64xf32>
    %437 = vector.broadcast %390 : vector<1x64xf32> to vector<32x64xf32>
    %438 = arith.addf %436, %437 : vector<32x64xf32>
    %cst_231 = arith.constant 0.000000e+00 : f32
    %439 = vector.broadcast %cst_231 : f32 to vector<32x64xf32>
    %440 = arith.maximumf %438, %439 : vector<32x64xf32>
    %441 = vector.shape_cast %440 : vector<32x64xf32> to vector<2x16x64xf32>
    %cst_232 = arith.constant 0.000000e+00 : f32
    %442 = vector.broadcast %cst_232 : f32 to vector<2x1x64xf32>
    %443 = vector.extract_strided_slice %441 {offsets = [0, 0, 0], sizes = [2, 15, 64], strides = [1, 1, 1]} : vector<2x16x64xf32> to vector<2x15x64xf32>
    %444 = tpu.concatenate %442, %443 in 1 : vector<2x1x64xf32>, vector<2x15x64xf32> -> vector<2x16x64xf32>
    %445 = vector.extract_strided_slice %441 {offsets = [0, 1, 0], sizes = [2, 15, 64], strides = [1, 1, 1]} : vector<2x16x64xf32> to vector<2x15x64xf32>
    %446 = tpu.concatenate %445, %442 in 1 : vector<2x15x64xf32>, vector<2x1x64xf32> -> vector<2x16x64xf32>
    %447 = tpu.concatenate %444, %441, %446 in 2 : vector<2x16x64xf32>, vector<2x16x64xf32>, vector<2x16x64xf32> -> vector<2x16x192xf32>
    %448 = vector.shape_cast %447 : vector<2x16x192xf32> to vector<32x192xf32>
    %449 = arith.truncf %448 : vector<32x192xf32> to vector<32x192xbf16>
    %cst_233 = arith.constant dense<0.000000e+00> : vector<32x64xf32>
    %450 = tpu.matmul %449, %391, %cst_233 {dimension_numbers = #tpu.dot_dimension_numbers<[1], [0], [0], [1], [0, 0, 1, 1], [], []>} : vector<32x192xbf16>, vector<192x64xbf16>, vector<32x64xf32> -> vector<32x64xf32>
    %451 = vector.broadcast %392 : vector<1x64xf32> to vector<32x64xf32>
    %452 = arith.addf %450, %451 : vector<32x64xf32>
    %cst_234 = arith.constant 0.000000e+00 : f32
    %453 = vector.broadcast %cst_234 : f32 to vector<32x64xf32>
    %454 = arith.maximumf %452, %453 : vector<32x64xf32>
    %455 = vector.shape_cast %417 : vector<2x16x128xf32> to vector<32x128xf32>
    %456 = arith.truncf %455 : vector<32x128xf32> to vector<32x128xbf16>
    %cst_235 = arith.constant dense<0.000000e+00> : vector<32x64xf32>
    %457 = tpu.matmul %456, %393, %cst_235 {dimension_numbers = #tpu.dot_dimension_numbers<[1], [0], [0], [1], [0, 0, 1, 1], [], []>} : vector<32x128xbf16>, vector<128x64xbf16>, vector<32x64xf32> -> vector<32x64xf32>
    %458 = vector.shape_cast %385 : vector<2x16x64xf32> to vector<32x64xf32>
    %459 = arith.truncf %458 : vector<32x64xf32> to vector<32x64xbf16>
    %cst_236 = arith.constant dense<0.000000e+00> : vector<32x64xf32>
    %460 = tpu.matmul %459, %394, %cst_236 {dimension_numbers = #tpu.dot_dimension_numbers<[1], [0], [0], [1], [0, 0, 1, 1], [], []>} : vector<32x64xbf16>, vector<64x64xbf16>, vector<32x64xf32> -> vector<32x64xf32>
    %461 = arith.addf %457, %460 : vector<32x64xf32>
    %462 = vector.broadcast %395 : vector<1x64xf32> to vector<32x64xf32>
    %463 = arith.addf %461, %462 : vector<32x64xf32>
    %464 = arith.addf %454, %463 : vector<32x64xf32>
    %cst_237 = arith.constant 0.000000e+00 : f32
    %465 = vector.broadcast %cst_237 : f32 to vector<32x64xf32>
    %466 = arith.maximumf %464, %465 : vector<32x64xf32>
    %467 = vector.shape_cast %466 : vector<32x64xf32> to vector<2x16x64xf32>
    %c0_238 = arith.constant 0 : index
    %c0_239 = arith.constant 0 : index
    %c0_240 = arith.constant 0 : index
    %468 = vector.load %arg63[%c0_238, %c0_239, %c0_240] : memref<2x32x32xf32, #tpu.memory_space<vmem>>, vector<2x32x32xf32>
    %c0_241 = arith.constant 0 : index
    %c0_242 = arith.constant 0 : index
    %c0_243 = arith.constant 0 : index
    %469 = vector.load %arg50[%c0_241, %c0_242, %c0_243] : memref<2x64x64xbf16, #tpu.memory_space<vmem>>, vector<2x64x64xbf16>
    %c0_244 = arith.constant 0 : index
    %c0_245 = arith.constant 0 : index
    %470 = vector.load %arg51[%c0_244, %c0_245] : memref<1x64xf32, #tpu.memory_space<vmem>>, vector<1x64xf32>
    %c0_246 = arith.constant 0 : index
    %c0_247 = arith.constant 0 : index
    %471 = vector.load %arg52[%c0_246, %c0_247] : memref<192x32xbf16, #tpu.memory_space<vmem>>, vector<192x32xbf16>
    %c0_248 = arith.constant 0 : index
    %c0_249 = arith.constant 0 : index
    %472 = vector.load %arg53[%c0_248, %c0_249] : memref<96x32xbf16, #tpu.memory_space<vmem>>, vector<96x32xbf16>
    %c0_250 = arith.constant 0 : index
    %c0_251 = arith.constant 0 : index
    %473 = vector.load %arg54[%c0_250, %c0_251] : memref<1x32xf32, #tpu.memory_space<vmem>>, vector<1x32xf32>
    %c0_252 = arith.constant 0 : index
    %c0_253 = arith.constant 0 : index
    %474 = vector.load %arg55[%c0_252, %c0_253] : memref<96x32xbf16, #tpu.memory_space<vmem>>, vector<96x32xbf16>
    %c0_254 = arith.constant 0 : index
    %c0_255 = arith.constant 0 : index
    %475 = vector.load %arg56[%c0_254, %c0_255] : memref<1x32xf32, #tpu.memory_space<vmem>>, vector<1x32xf32>
    %c0_256 = arith.constant 0 : index
    %c0_257 = arith.constant 0 : index
    %476 = vector.load %arg57[%c0_256, %c0_257] : memref<64x32xbf16, #tpu.memory_space<vmem>>, vector<64x32xbf16>
    %c0_258 = arith.constant 0 : index
    %c0_259 = arith.constant 0 : index
    %477 = vector.load %arg58[%c0_258, %c0_259] : memref<32x32xbf16, #tpu.memory_space<vmem>>, vector<32x32xbf16>
    %c0_260 = arith.constant 0 : index
    %c0_261 = arith.constant 0 : index
    %478 = vector.load %arg59[%c0_260, %c0_261] : memref<1x32xf32, #tpu.memory_space<vmem>>, vector<1x32xf32>
    %479 = vector.shape_cast %467 : vector<2x16x64xf32> to vector<32x64xf32>
    %480 = arith.truncf %479 : vector<32x64xf32> to vector<32x64xbf16>
    %481 = vector.extract_strided_slice %469 {offsets = [0, 0, 0], sizes = [1, 64, 64], strides = [1, 1, 1]} : vector<2x64x64xbf16> to vector<1x64x64xbf16>
    %482 = vector.shape_cast %481 : vector<1x64x64xbf16> to vector<64x64xbf16>
    %cst_262 = arith.constant dense<0.000000e+00> : vector<32x64xf32>
    %483 = tpu.matmul %480, %482, %cst_262 {dimension_numbers = #tpu.dot_dimension_numbers<[1], [0], [0], [1], [0, 0, 1, 1], [], []>} : vector<32x64xbf16>, vector<64x64xbf16>, vector<32x64xf32> -> vector<32x64xf32>
    %484 = vector.broadcast %470 : vector<1x64xf32> to vector<32x64xf32>
    %485 = arith.addf %483, %484 : vector<32x64xf32>
    %486 = vector.extract_strided_slice %469 {offsets = [1, 0, 0], sizes = [1, 64, 64], strides = [1, 1, 1]} : vector<2x64x64xbf16> to vector<1x64x64xbf16>
    %487 = vector.shape_cast %486 : vector<1x64x64xbf16> to vector<64x64xbf16>
    %cst_263 = arith.constant dense<0.000000e+00> : vector<32x64xf32>
    %488 = tpu.matmul %480, %487, %cst_263 {dimension_numbers = #tpu.dot_dimension_numbers<[1], [0], [0], [1], [0, 0, 1, 1], [], []>} : vector<32x64xbf16>, vector<64x64xbf16>, vector<32x64xf32> -> vector<32x64xf32>
    %489 = vector.broadcast %470 : vector<1x64xf32> to vector<32x64xf32>
    %490 = arith.addf %488, %489 : vector<32x64xf32>
    %491 = vector.shape_cast %485 : vector<32x64xf32> to vector<2x16x64xf32>
    %c0_264 = arith.constant 0 : index
    %c0_265 = arith.constant 0 : index
    %c0_266 = arith.constant 0 : index
    %c0_267 = arith.constant 0 : index
    %492 = vector.load %arg68[%c0_264, %c0_265, %c0_266, %c0_267] : memref<2x16x2x64xf32, #tpu.memory_space<vmem>>, vector<2x16x1x64xf32>
    %493 = vector.shape_cast %492 : vector<2x16x1x64xf32> to vector<2x16x64xf32>
    %494 = vector.shape_cast %491 : vector<2x16x64xf32> to vector<2x16x1x64xf32>
    tpu.vector_store %arg68[%c0_264, %c0_265, %c0_266, %c0_267], %494 {strides = array<i32>} : memref<2x16x2x64xf32, #tpu.memory_space<vmem>>, vector<2x16x1x64xf32>,
    %495 = vector.shape_cast %490 : vector<32x64xf32> to vector<2x16x64xf32>
    %c0_268 = arith.constant 0 : index
    %c0_269 = arith.constant 0 : index
    %c1_270 = arith.constant 1 : index
    %c0_271 = arith.constant 0 : index
    %496 = vector.load %arg68[%c0_268, %c0_269, %c1_270, %c0_271] : memref<2x16x2x64xf32, #tpu.memory_space<vmem>>, vector<2x16x1x64xf32>
    %497 = vector.shape_cast %496 : vector<2x16x1x64xf32> to vector<2x16x64xf32>
    %498 = vector.shape_cast %495 : vector<2x16x64xf32> to vector<2x16x1x64xf32>
    tpu.vector_store %arg68[%c0_268, %c0_269, %c1_270, %c0_271], %498 {strides = array<i32>} : memref<2x16x2x64xf32, #tpu.memory_space<vmem>>, vector<2x16x1x64xf32>,
    %c0_272 = arith.constant 0 : index
    %c0_273 = arith.constant 0 : index
    %c0_274 = arith.constant 0 : index
    %c0_275 = arith.constant 0 : index
    %499 = vector.load %arg68[%c0_272, %c0_273, %c0_274, %c0_275] : memref<2x16x2x64xf32, #tpu.memory_space<vmem>>, vector<2x16x2x64xf32>
    %500 = vector.shape_cast %499 : vector<2x16x2x64xf32> to vector<2x32x64xf32>
    %cst_276 = arith.constant 0.000000e+00 : f32
    %501 = vector.broadcast %cst_276 : f32 to vector<2x1x64xf32>
    %502 = vector.extract_strided_slice %500 {offsets = [0, 0, 0], sizes = [2, 31, 64], strides = [1, 1, 1]} : vector<2x32x64xf32> to vector<2x31x64xf32>
    %503 = tpu.concatenate %501, %502 in 1 : vector<2x1x64xf32>, vector<2x31x64xf32> -> vector<2x32x64xf32>
    %504 = vector.extract_strided_slice %500 {offsets = [0, 1, 0], sizes = [2, 31, 64], strides = [1, 1, 1]} : vector<2x32x64xf32> to vector<2x31x64xf32>
    %505 = tpu.concatenate %504, %501 in 1 : vector<2x31x64xf32>, vector<2x1x64xf32> -> vector<2x32x64xf32>
    %506 = tpu.concatenate %503, %500, %505 in 2 : vector<2x32x64xf32>, vector<2x32x64xf32>, vector<2x32x64xf32> -> vector<2x32x192xf32>
    %507 = vector.shape_cast %506 : vector<2x32x192xf32> to vector<64x192xf32>
    %508 = arith.truncf %507 : vector<64x192xf32> to vector<64x192xbf16>
    %cst_277 = arith.constant dense<0.000000e+00> : vector<64x32xf32>
    %509 = tpu.matmul %508, %471, %cst_277 {dimension_numbers = #tpu.dot_dimension_numbers<[1], [0], [0], [1], [0, 0, 1, 1], [], []>} : vector<64x192xbf16>, vector<192x32xbf16>, vector<64x32xf32> -> vector<64x32xf32>
    %cst_278 = arith.constant 0.000000e+00 : f32
    %510 = vector.broadcast %cst_278 : f32 to vector<2x1x32xf32>
    %511 = vector.extract_strided_slice %468 {offsets = [0, 0, 0], sizes = [2, 31, 32], strides = [1, 1, 1]} : vector<2x32x32xf32> to vector<2x31x32xf32>
    %512 = tpu.concatenate %510, %511 in 1 : vector<2x1x32xf32>, vector<2x31x32xf32> -> vector<2x32x32xf32>
    %513 = vector.extract_strided_slice %468 {offsets = [0, 1, 0], sizes = [2, 31, 32], strides = [1, 1, 1]} : vector<2x32x32xf32> to vector<2x31x32xf32>
    %514 = tpu.concatenate %513, %510 in 1 : vector<2x31x32xf32>, vector<2x1x32xf32> -> vector<2x32x32xf32>
    %515 = tpu.concatenate %512, %468, %514 in 2 : vector<2x32x32xf32>, vector<2x32x32xf32>, vector<2x32x32xf32> -> vector<2x32x96xf32>
    %516 = vector.shape_cast %515 : vector<2x32x96xf32> to vector<64x96xf32>
    %517 = arith.truncf %516 : vector<64x96xf32> to vector<64x96xbf16>
    %cst_279 = arith.constant dense<0.000000e+00> : vector<64x32xf32>
    %518 = tpu.matmul %517, %472, %cst_279 {dimension_numbers = #tpu.dot_dimension_numbers<[1], [0], [0], [1], [0, 0, 1, 1], [], []>} : vector<64x96xbf16>, vector<96x32xbf16>, vector<64x32xf32> -> vector<64x32xf32>
    %519 = arith.addf %509, %518 : vector<64x32xf32>
    %520 = vector.broadcast %473 : vector<1x32xf32> to vector<64x32xf32>
    %521 = arith.addf %519, %520 : vector<64x32xf32>
    %cst_280 = arith.constant 0.000000e+00 : f32
    %522 = vector.broadcast %cst_280 : f32 to vector<64x32xf32>
    %523 = arith.maximumf %521, %522 : vector<64x32xf32>
    %524 = vector.shape_cast %523 : vector<64x32xf32> to vector<2x32x32xf32>
    %cst_281 = arith.constant 0.000000e+00 : f32
    %525 = vector.broadcast %cst_281 : f32 to vector<2x1x32xf32>
    %526 = vector.extract_strided_slice %524 {offsets = [0, 0, 0], sizes = [2, 31, 32], strides = [1, 1, 1]} : vector<2x32x32xf32> to vector<2x31x32xf32>
    %527 = tpu.concatenate %525, %526 in 1 : vector<2x1x32xf32>, vector<2x31x32xf32> -> vector<2x32x32xf32>
    %528 = vector.extract_strided_slice %524 {offsets = [0, 1, 0], sizes = [2, 31, 32], strides = [1, 1, 1]} : vector<2x32x32xf32> to vector<2x31x32xf32>
    %529 = tpu.concatenate %528, %525 in 1 : vector<2x31x32xf32>, vector<2x1x32xf32> -> vector<2x32x32xf32>
    %530 = tpu.concatenate %527, %524, %529 in 2 : vector<2x32x32xf32>, vector<2x32x32xf32>, vector<2x32x32xf32> -> vector<2x32x96xf32>
    %531 = vector.shape_cast %530 : vector<2x32x96xf32> to vector<64x96xf32>
    %532 = arith.truncf %531 : vector<64x96xf32> to vector<64x96xbf16>
    %cst_282 = arith.constant dense<0.000000e+00> : vector<64x32xf32>
    %533 = tpu.matmul %532, %474, %cst_282 {dimension_numbers = #tpu.dot_dimension_numbers<[1], [0], [0], [1], [0, 0, 1, 1], [], []>} : vector<64x96xbf16>, vector<96x32xbf16>, vector<64x32xf32> -> vector<64x32xf32>
    %534 = vector.broadcast %475 : vector<1x32xf32> to vector<64x32xf32>
    %535 = arith.addf %533, %534 : vector<64x32xf32>
    %cst_283 = arith.constant 0.000000e+00 : f32
    %536 = vector.broadcast %cst_283 : f32 to vector<64x32xf32>
    %537 = arith.maximumf %535, %536 : vector<64x32xf32>
    %538 = vector.shape_cast %500 : vector<2x32x64xf32> to vector<64x64xf32>
    %539 = arith.truncf %538 : vector<64x64xf32> to vector<64x64xbf16>
    %cst_284 = arith.constant dense<0.000000e+00> : vector<64x32xf32>
    %540 = tpu.matmul %539, %476, %cst_284 {dimension_numbers = #tpu.dot_dimension_numbers<[1], [0], [0], [1], [0, 0, 1, 1], [], []>} : vector<64x64xbf16>, vector<64x32xbf16>, vector<64x32xf32> -> vector<64x32xf32>
    %541 = vector.shape_cast %468 : vector<2x32x32xf32> to vector<64x32xf32>
    %542 = arith.truncf %541 : vector<64x32xf32> to vector<64x32xbf16>
    %cst_285 = arith.constant dense<0.000000e+00> : vector<64x32xf32>
    %543 = tpu.matmul %542, %477, %cst_285 {dimension_numbers = #tpu.dot_dimension_numbers<[1], [0], [0], [1], [0, 0, 1, 1], [], []>} : vector<64x32xbf16>, vector<32x32xbf16>, vector<64x32xf32> -> vector<64x32xf32>
    %544 = arith.addf %540, %543 : vector<64x32xf32>
    %545 = vector.broadcast %478 : vector<1x32xf32> to vector<64x32xf32>
    %546 = arith.addf %544, %545 : vector<64x32xf32>
    %547 = arith.addf %537, %546 : vector<64x32xf32>
    %cst_286 = arith.constant 0.000000e+00 : f32
    %548 = vector.broadcast %cst_286 : f32 to vector<64x32xf32>
    %549 = arith.maximumf %547, %548 : vector<64x32xf32>
    %550 = vector.shape_cast %549 : vector<64x32xf32> to vector<2x32x32xf32>
    %551 = vector.shape_cast %550 : vector<2x32x32xf32> to vector<64x32xf32>
    %552 = arith.truncf %551 : vector<64x32xf32> to vector<64x32xbf16>
    %c0_287 = arith.constant 0 : index
    %c0_288 = arith.constant 0 : index
    %553 = vector.load %arg60[%c0_287, %c0_288] : memref<32x4xbf16, #tpu.memory_space<vmem>>, vector<32x4xbf16>
    %cst_289 = arith.constant dense<0.000000e+00> : vector<64x4xf32>
    %554 = tpu.matmul %552, %553, %cst_289 {dimension_numbers = #tpu.dot_dimension_numbers<[1], [0], [0], [1], [0, 0, 1, 1], [], []>} : vector<64x32xbf16>, vector<32x4xbf16>, vector<64x4xf32> -> vector<64x4xf32>
    %c0_290 = arith.constant 0 : index
    %c0_291 = arith.constant 0 : index
    %555 = vector.load %arg61[%c0_290, %c0_291] : memref<1x4xf32, #tpu.memory_space<vmem>>, vector<1x4xf32>
    %556 = vector.broadcast %555 : vector<1x4xf32> to vector<64x4xf32>
    %557 = arith.addf %554, %556 : vector<64x4xf32>
    %558 = vector.shape_cast %557 : vector<64x4xf32> to vector<2x32x4xf32>
    %c0_292 = arith.constant 0 : index
    %c0_293 = arith.constant 0 : index
    %c0_294 = arith.constant 0 : index
    %559 = vector.load %arg62[%c0_292, %c0_293, %c0_294] : memref<2x32x4xf32, #tpu.memory_space<vmem>>, vector<2x32x4xf32>
    tpu.vector_store %arg62[%c0_292, %c0_293, %c0_294], %558 {strides = array<i32>} : memref<2x32x4xf32, #tpu.memory_space<vmem>>, vector<2x32x4xf32>,
    return
  }
}

</mosaic_0001>

<llo_original>
// kernel: ex_forward.1
$region0: #{ex_forward.1}
  #allocation0 [shape = 'u32[]', space=smem, size = 0x4, offset = 0x4, fixed_abs, tag = 'smem constant byte address 0x4 - core index']
  #allocation1 [shape = 'u32[72,128]{1,0:T(1,128)}', space=vmem, size = 0x9000, scoped, tag = 'internal scratch']
  #allocation2 [shape = 'f32[2,32,32]{2,1,0:T(8,128)}', space=vmem, size = 0x8000, scoped, tag = 'scratch operand']
  #allocation3 [shape = 'f32[2,16,64]{2,1,0:T(8,128)}', space=vmem, size = 0x4000, scoped, tag = 'scratch operand']
  #allocation4 [shape = 'f32[2,8,128]{2,1,0:T(8,128)}', space=vmem, size = 0x2000, scoped, tag = 'scratch operand']
  #allocation5 [shape = 'f32[2,4,2,32]{3,2,1,0:T(2,128)}', space=vmem, size = 0x2000, scoped, tag = 'scratch operand']
  #allocation6 [shape = 'f32[2,8,2,128]{3,2,1,0:T(2,128)}', space=vmem, size = 0x4000, scoped, tag = 'scratch operand']
  #allocation7 [shape = 'f32[2,16,2,64]{3,2,1,0:T(2,128)}', space=vmem, size = 0x8000, scoped, tag = 'scratch operand']
  %s0 = inlined_call_operand.smem [shape: u32[63], index: -1, kind: input, shape index: {}]
  %s1 = sld [smem:[%s0]]
  %s2 = scalar_lea.smem %s0, 1
  %s3 = sld [smem:[%s2]]
  %s4 = scalar_lea.smem %s0, 2
  %s5 = sld [smem:[%s4]]
  %s6 = scalar_lea.smem %s0, 3
  %s7 = sld [smem:[%s6]]
  %s8 = scalar_lea.smem %s0, 4
  %s9 = sld [smem:[%s8]]
  %s10 = scalar_lea.smem %s0, 5
  %s11 = sld [smem:[%s10]]
  %s12 = scalar_lea.smem %s0, 6
  %s13 = sld [smem:[%s12]]
  %s14 = scalar_lea.smem %s0, 7
  %s15 = sld [smem:[%s14]]
  %s16 = scalar_lea.smem %s0, 8
  %s17 = sld [smem:[%s16]]
  %s18 = scalar_lea.smem %s0, 9
  %s19 = sld [smem:[%s18]]
  %s20 = scalar_lea.smem %s0, 10
  %s21 = sld [smem:[%s20]]
  %s22 = scalar_lea.smem %s0, 11
  %s23 = sld [smem:[%s22]]
  %s24 = scalar_lea.smem %s0, 12
  %s25 = sld [smem:[%s24]]
  %s26 = scalar_lea.smem %s0, 13
  %s27 = sld [smem:[%s26]]
  %s28 = scalar_lea.smem %s0, 14
  %s29 = sld [smem:[%s28]]
  %s30 = scalar_lea.smem %s0, 15
  %s31 = sld [smem:[%s30]]
  %s32 = scalar_lea.smem %s0, 16
  %s33 = sld [smem:[%s32]]
  %s34 = scalar_lea.smem %s0, 17
  %s35 = sld [smem:[%s34]]
  %s36 = scalar_lea.smem %s0, 18
  %s37 = sld [smem:[%s36]]
  %s38 = scalar_lea.smem %s0, 19
  %s39 = sld [smem:[%s38]]
  %s40 = scalar_lea.smem %s0, 20
  %s41 = sld [smem:[%s40]]
  %s42 = scalar_lea.smem %s0, 21
  %s43 = sld [smem:[%s42]]
  %s44 = scalar_lea.smem %s0, 22
  %s45 = sld [smem:[%s44]]
  %s46 = scalar_lea.smem %s0, 23
  %s47 = sld [smem:[%s46]]
  %s48 = scalar_lea.smem %s0, 24
  %s49 = sld [smem:[%s48]]
  %s50 = scalar_lea.smem %s0, 25
  %s51 = sld [smem:[%s50]]
  %s52 = scalar_lea.smem %s0, 26
  %s53 = sld [smem:[%s52]]
  %s54 = scalar_lea.smem %s0, 27
  %s55 = sld [smem:[%s54]]
  %s56 = scalar_lea.smem %s0, 28
  %s57 = sld [smem:[%s56]]
  %s58 = scalar_lea.smem %s0, 29
  %s59 = sld [smem:[%s58]]
  %s60 = scalar_lea.smem %s0, 30
  %s61 = sld [smem:[%s60]]
  %s62 = scalar_lea.smem %s0, 31
  %s63 = sld [smem:[%s62]]
  %s64 = scalar_lea.smem %s0, 32
  %s65 = sld [smem:[%s64]]
  %s66 = scalar_lea.smem %s0, 33
  %s67 = sld [smem:[%s66]]
  %s68 = scalar_lea.smem %s0, 34
  %s69 = sld [smem:[%s68]]
  %s70 = scalar_lea.smem %s0, 35
  %s71 = sld [smem:[%s70]]
  %s72 = scalar_lea.smem %s0, 36
  %s73 = sld [smem:[%s72]]
  %s74 = scalar_lea.smem %s0, 37
  %s75 = sld [smem:[%s74]]
  %s76 = scalar_lea.smem %s0, 38
  %s77 = sld [smem:[%s76]]
  %s78 = scalar_lea.smem %s0, 39
  %s79 = sld [smem:[%s78]]
  %s80 = scalar_lea.smem %s0, 40
  %s81 = sld [smem:[%s80]]
  %s82 = scalar_lea.smem %s0, 41
  %s83 = sld [smem:[%s82]]
  %s84 = scalar_lea.smem %s0, 42
  %s85 = sld [smem:[%s84]]
  %s86 = scalar_lea.smem %s0, 43
  %s87 = sld [smem:[%s86]]
  %s88 = scalar_lea.smem %s0, 44
  %s89 = sld [smem:[%s88]]
  %s90 = scalar_lea.smem %s0, 45
  %s91 = sld [smem:[%s90]]
  %s92 = scalar_lea.smem %s0, 46
  %s93 = sld [smem:[%s92]]
  %s94 = scalar_lea.smem %s0, 47
  %s95 = sld [smem:[%s94]]
  %s96 = scalar_lea.smem %s0, 48
  %s97 = sld [smem:[%s96]]
  %s98 = scalar_lea.smem %s0, 49
  %s99 = sld [smem:[%s98]]
  %s100 = scalar_lea.smem %s0, 50
  %s101 = sld [smem:[%s100]]
  %s102 = scalar_lea.smem %s0, 51
  %s103 = sld [smem:[%s102]]
  %s104 = scalar_lea.smem %s0, 52
  %s105 = sld [smem:[%s104]]
  %s106 = scalar_lea.smem %s0, 53
  %s107 = sld [smem:[%s106]]
  %s108 = scalar_lea.smem %s0, 54
  %s109 = sld [smem:[%s108]]
  %s110 = scalar_lea.smem %s0, 55
  %s111 = sld [smem:[%s110]]
  %s112 = scalar_lea.smem %s0, 56
  %s113 = sld [smem:[%s112]]
  %s114 = scalar_lea.smem %s0, 57
  %s115 = sld [smem:[%s114]]
  %s116 = scalar_lea.smem %s0, 58
  %s117 = sld [smem:[%s116]]
  %s118 = scalar_lea.smem %s0, 59
  %s119 = sld [smem:[%s118]]
  %s120 = scalar_lea.smem %s0, 60
  %s121 = sld [smem:[%s120]]
  %s122 = scalar_lea.smem %s0, 61
  %s123 = sld [smem:[%s122]]
  %s124 = scalar_lea.smem %s0, 62
  %s125 = sld [smem:[%s124]]
  %s126 = sld [smem:[#allocation0]]
  $region338: #{ex_forward.1} parent=0
    _
  %s128 = ssub.s32 1, %s126
  %s129 = scalar_select 0, %s128, %s126
  $region1: #{ex_forward.1} parent=0
    #allocation8 [shape = 'u8[512]{0}', space=vmem, size = 0x400, scoped, tag = 'input window, operand 16, single buffered']
    #allocation9 [shape = 's32[1]{0}', space=sflag, size = 0x4, scoped, tag = 'scoped memory for ex_forward.1']
    #allocation10 [shape = 'u8[512]{0}', space=vmem, size = 0x400, scoped, tag = 'input window, operand 18, single buffered']
    #allocation11 [shape = 's32[1]{0}', space=sflag, size = 0x4, scoped, tag = 'scoped memory for ex_forward.1']
    #allocation12 [shape = 'u8[512]{0}', space=vmem, size = 0x400, scoped, tag = 'input window, operand 20, single buffered']
    #allocation13 [shape = 'u8[512]{0}', space=vmem, size = 0x400, scoped, tag = 'input window, operand 22, single buffered']
    #allocation14 [shape = 's32[1]{0}', space=sflag, size = 0x4, scoped, tag = 'scoped memory for ex_forward.1']
    #allocation15 [shape = 'u8[512]{0}', space=vmem, size = 0x400, scoped, tag = 'input window, operand 24, single buffered']
    #allocation16 [shape = 'u8[512]{0}', space=vmem, size = 0x400, scoped, tag = 'input window, operand 27, single buffered']
    #allocation17 [shape = 's32[1]{0}', space=sflag, size = 0x4, scoped, tag = 'scoped memory for ex_forward.1']
    #allocation18 [shape = 'u8[512]{0}', space=vmem, size = 0x400, scoped, tag = 'input window, operand 29, single buffered']
    #allocation19 [shape = 'u8[512]{0}', space=vmem, size = 0x400, scoped, tag = 'input window, operand 31, single buffered']
    #allocation20 [shape = 's32[1]{0}', space=sflag, size = 0x4, scoped, tag = 'scoped memory for ex_forward.1']
    #allocation21 [shape = 'u8[512]{0}', space=vmem, size = 0x400, scoped, tag = 'input window, operand 34, single buffered']
    #allocation22 [shape = 'u8[512]{0}', space=vmem, size = 0x400, scoped, tag = 'input window, operand 36, single buffered']
    #allocation23 [shape = 's32[1]{0}', space=sflag, size = 0x4, scoped, tag = 'scoped memory for ex_forward.1']
    #allocation24 [shape = 'u8[512]{0}', space=vmem, size = 0x400, scoped, tag = 'input window, operand 39, single buffered']
    #allocation25 [shape = 'u8[512]{0}', space=vmem, size = 0x400, scoped, tag = 'input window, operand 41, single buffered']
    #allocation26 [shape = 's32[1]{0}', space=sflag, size = 0x4, scoped, tag = 'scoped memory for ex_forward.1']
    #allocation27 [shape = 'u8[512]{0}', space=vmem, size = 0x400, scoped, tag = 'input window, operand 44, single buffered']
    #allocation28 [shape = 'u8[512]{0}', space=vmem, size = 0x400, scoped, tag = 'input window, operand 46, single buffered']
    #allocation29 [shape = 's32[1]{0}', space=sflag, size = 0x4, scoped, tag = 'scoped memory for ex_forward.1']
    #allocation30 [shape = 'u8[512]{0}', space=vmem, size = 0x400, scoped, tag = 'input window, operand 49, single buffered']
    #allocation31 [shape = 'u8[512]{0}', space=vmem, size = 0x400, scoped, tag = 'input window, operand 51, single buffered']
    #allocation32 [shape = 's32[1]{0}', space=sflag, size = 0x4, scoped, tag = 'scoped memory for ex_forward.1']
    #allocation33 [shape = 'u8[512]{0}', space=vmem, size = 0x400, scoped, tag = 'input window, operand 54, single buffered']
    #allocation34 [shape = 'u8[512]{0}', space=vmem, size = 0x400, scoped, tag = 'input window, operand 56, single buffered']
    #allocation35 [shape = 's32[1]{0}', space=sflag, size = 0x4, scoped, tag = 'scoped memory for ex_forward.1']
    #allocation36 [shape = 'u8[512]{0}', space=vmem, size = 0x400, scoped, tag = 'input window, operand 59, single buffered']
    #allocation37 [shape = 'u8[512]{0}', space=vmem, size = 0x400, scoped, tag = 'input window, operand 61, single buffered']
    #allocation38 [shape = 's32[1]{0}', space=sflag, size = 0x4, scoped, tag = 'scoped memory for ex_forward.1']
    %130 = vsyncpa [#allocation9], 0
    %131 = vsyncpa [#allocation11], 0
    %132 = vsyncpa [#allocation14], 0
    %133 = vsyncpa [#allocation17], 0
    %134 = vsyncpa [#allocation20], 0
    %135 = vsyncpa [#allocation23], 0
    %136 = vsyncpa [#allocation26], 0
    %137 = vsyncpa [#allocation29], 0
    %138 = vsyncpa [#allocation32], 0
    %139 = vsyncpa [#allocation35], 0
    %140 = vsyncpa [#allocation38], 0
    // Predicated region
    $region2: #{ex_forward.1} parent=1 // pred_check
      _
    $region3: #{ex_forward.1} parent=1 // pred_check_branch
      %142 = sbr.rel (0) target = $region5
    $region4: #{ex_forward.1} parent=1 // pred_region
      _
    $region5: #{ex_forward.1} parent=1 // pred_fallthru
      _
    // Predicated region
    $region6: #{ex_forward.1} parent=1 // pred_check
      _
    $region7: #{ex_forward.1} parent=1 // pred_check_branch
      %144 = sbr.rel (0) target = $region9
    $region8: #{ex_forward.1} parent=1 // pred_region
      _
    $region9: #{ex_forward.1} parent=1 // pred_fallthru
      _
    // Predicated region
    $region10: #{ex_forward.1} parent=1 // pred_check
      _
    $region11: #{ex_forward.1} parent=1 // pred_check_branch
      %146 = sbr.rel (0) target = $region13
    $region12: #{ex_forward.1} parent=1 // pred_region
      _
    $region13: #{ex_forward.1} parent=1 // pred_fallthru
      _
    // Predicated region
    $region14: #{ex_forward.1} parent=1 // pred_check
      _
    $region15: #{ex_forward.1} parent=1 // pred_check_branch
      %148 = sbr.rel (0) target = $region17
    $region16: #{ex_forward.1} parent=1 // pred_region
      _
    $region17: #{ex_forward.1} parent=1 // pred_fallthru
      _
    // Predicated region
    $region18: #{ex_forward.1} parent=1 // pred_check
      _
    $region19: #{ex_forward.1} parent=1 // pred_check_branch
      %150 = sbr.rel (0) target = $region21
    $region20: #{ex_forward.1} parent=1 // pred_region
      _
    $region21: #{ex_forward.1} parent=1 // pred_fallthru
      _
    // Predicated region
    $region22: #{ex_forward.1} parent=1 // pred_check
      _
    $region23: #{ex_forward.1} parent=1 // pred_check_branch
      %152 = sbr.rel (0) target = $region25
    $region24: #{ex_forward.1} parent=1 // pred_region
      _
    $region25: #{ex_forward.1} parent=1 // pred_fallthru
      _
    // Predicated region
    $region26: #{ex_forward.1} parent=1 // pred_check
      _
    $region27: #{ex_forward.1} parent=1 // pred_check_branch
      %154 = sbr.rel (0) target = $region29
    $region28: #{ex_forward.1} parent=1 // pred_region
      _
    $region29: #{ex_forward.1} parent=1 // pred_fallthru
      _
    // Predicated region
    $region30: #{ex_forward.1} parent=1 // pred_check
      _
    $region31: #{ex_forward.1} parent=1 // pred_check_branch
      %156 = sbr.rel (0) target = $region33
    $region32: #{ex_forward.1} parent=1 // pred_region
      _
    $region33: #{ex_forward.1} parent=1 // pred_fallthru
      _
    // Predicated region
    $region34: #{ex_forward.1} parent=1 // pred_check
      _
    $region35: #{ex_forward.1} parent=1 // pred_check_branch
      %158 = sbr.rel (0) target = $region37
    $region36: #{ex_forward.1} parent=1 // pred_region
      _
    $region37: #{ex_forward.1} parent=1 // pred_fallthru
      _
    // Predicated region
    $region38: #{ex_forward.1} parent=1 // pred_check
      _
    $region39: #{ex_forward.1} parent=1 // pred_check_branch
      %160 = sbr.rel (0) target = $region41
    $region40: #{ex_forward.1} parent=1 // pred_region
      _
    $region41: #{ex_forward.1} parent=1 // pred_fallthru
      _
    // Predicated region
    $region42: #{ex_forward.1} parent=1 // pred_check
      _
    $region43: #{ex_forward.1} parent=1 // pred_check_branch
      %162 = sbr.rel (0) target = $region45
    $region44: #{ex_forward.1} parent=1 // pred_region
      _
    $region45: #{ex_forward.1} parent=1 // pred_fallthru
      _
    // Predicated region
    $region46: #{ex_forward.1} parent=1 // pred_check
      _
    $region47: #{ex_forward.1} parent=1 // pred_check_branch
      %164 = sbr.rel (0) target = $region49
    $region48: #{ex_forward.1} parent=1 // pred_region
      _
    $region49: #{ex_forward.1} parent=1 // pred_fallthru
      _
    // Predicated region
    $region50: #{ex_forward.1} parent=1 // pred_check
      _
    $region51: #{ex_forward.1} parent=1 // pred_check_branch
      %166 = sbr.rel (0) target = $region53
    $region52: #{ex_forward.1} parent=1 // pred_region
      _
    $region53: #{ex_forward.1} parent=1 // pred_fallthru
      _
    // Predicated region
    $region54: #{ex_forward.1} parent=1 // pred_check
      _
    $region55: #{ex_forward.1} parent=1 // pred_check_branch
      %168 = sbr.rel (0) target = $region57
    $region56: #{ex_forward.1} parent=1 // pred_region
      _
    $region57: #{ex_forward.1} parent=1 // pred_fallthru
      _
    // Predicated region
    $region58: #{ex_forward.1} parent=1 // pred_check
      _
    $region59: #{ex_forward.1} parent=1 // pred_check_branch
      %170 = sbr.rel (0) target = $region61
    $region60: #{ex_forward.1} parent=1 // pred_region
      _
    $region61: #{ex_forward.1} parent=1 // pred_fallthru
      _
    // Predicated region
    $region62: #{ex_forward.1} parent=1 // pred_check
      _
    $region63: #{ex_forward.1} parent=1 // pred_check_branch
      %172 = sbr.rel (0) target = $region65
    $region64: #{ex_forward.1} parent=1 // pred_region
      _
    $region65: #{ex_forward.1} parent=1 // pred_fallthru
      _
    // Predicated region
    $region66: #{ex_forward.1} parent=1 // pred_check
      _
    $region67: #{ex_forward.1} parent=1 // pred_check_branch
      %174 = sbr.rel (0) target = $region69
    $region68: #{ex_forward.1} parent=1 // pred_region
      %176 = vsyncadd [#allocation9], 0
      %s178 = sshll.u32 %s33, 4
      %s179 = int_to_ptr.hbm [resolvable:$true] %s178
      %s180 = sshll.u32 [#allocation8], 4
      %s181 = int_to_ptr.vmem [resolvable:$true] %s180
      %183 = dma.hbm_to_vmem [thread:$0]  %s179, 16, %s181, [#allocation9]
    $region69: #{ex_forward.1} parent=1 // pred_fallthru
      _
    // Predicated region
    $region70: #{ex_forward.1} parent=1 // pred_check
      _
    $region71: #{ex_forward.1} parent=1 // pred_check_branch
      %185 = sbr.rel (0) target = $region73
    $region72: #{ex_forward.1} parent=1 // pred_region
      _
    $region73: #{ex_forward.1} parent=1 // pred_fallthru
      _
    // Predicated region
    $region74: #{ex_forward.1} parent=1 // pred_check
      _
    $region75: #{ex_forward.1} parent=1 // pred_check_branch
      %187 = sbr.rel (0) target = $region77
    $region76: #{ex_forward.1} parent=1 // pred_region
      %189 = vsyncadd [#allocation11], 0
      %s191 = sshll.u32 %s37, 4
      %s192 = int_to_ptr.hbm [resolvable:$true] %s191
      %s193 = sshll.u32 [#allocation10], 4
      %s194 = int_to_ptr.vmem [resolvable:$true] %s193
      %196 = dma.hbm_to_vmem [thread:$0]  %s192, 16, %s194, [#allocation11]
    $region77: #{ex_forward.1} parent=1 // pred_fallthru
      _
    // Predicated region
    $region78: #{ex_forward.1} parent=1 // pred_check
      _
    $region79: #{ex_forward.1} parent=1 // pred_check_branch
      %198 = sbr.rel (0) target = $region81
    $region80: #{ex_forward.1} parent=1 // pred_region
      _
    $region81: #{ex_forward.1} parent=1 // pred_fallthru
      _
    // Predicated region
    $region82: #{ex_forward.1} parent=1 // pred_check
      _
    $region83: #{ex_forward.1} parent=1 // pred_check_branch
      %200 = sbr.rel (0) target = $region85
    $region84: #{ex_forward.1} parent=1 // pred_region
      %202 = vsyncadd [#allocation11], 0
      %s204 = sshll.u32 %s41, 4
      %s205 = int_to_ptr.hbm [resolvable:$true] %s204
      %s206 = sshll.u32 [#allocation12], 4
      %s207 = int_to_ptr.vmem [resolvable:$true] %s206
      %209 = dma.hbm_to_vmem [thread:$0]  %s205, 16, %s207, [#allocation11]
    $region85: #{ex_forward.1} parent=1 // pred_fallthru
      _
    // Predicated region
    $region86: #{ex_forward.1} parent=1 // pred_check
      _
    $region87: #{ex_forward.1} parent=1 // pred_check_branch
      %211 = sbr.rel (0) target = $region89
    $region88: #{ex_forward.1} parent=1 // pred_region
      _
    $region89: #{ex_forward.1} parent=1 // pred_fallthru
      _
    // Predicated region
    $region90: #{ex_forward.1} parent=1 // pred_check
      _
    $region91: #{ex_forward.1} parent=1 // pred_check_branch
      %213 = sbr.rel (0) target = $region93
    $region92: #{ex_forward.1} parent=1 // pred_region
      %215 = vsyncadd [#allocation14], 0
      %s217 = sshll.u32 %s45, 4
      %s218 = int_to_ptr.hbm [resolvable:$true] %s217
      %s219 = sshll.u32 [#allocation13], 4
      %s220 = int_to_ptr.vmem [resolvable:$true] %s219
      %222 = dma.hbm_to_vmem [thread:$0]  %s218, 16, %s220, [#allocation14]
    $region93: #{ex_forward.1} parent=1 // pred_fallthru
      _
    // Predicated region
    $region94: #{ex_forward.1} parent=1 // pred_check
      _
    $region95: #{ex_forward.1} parent=1 // pred_check_branch
      %224 = sbr.rel (0) target = $region97
    $region96: #{ex_forward.1} parent=1 // pred_region
      _
    $region97: #{ex_forward.1} parent=1 // pred_fallthru
      _
    // Predicated region
    $region98: #{ex_forward.1} parent=1 // pred_check
      _
    $region99: #{ex_forward.1} parent=1 // pred_check_branch
      %226 = sbr.rel (0) target = $region101
    $region100: #{ex_forward.1} parent=1 // pred_region
      %228 = vsyncadd [#allocation14], 0
      %s230 = sshll.u32 %s49, 4
      %s231 = int_to_ptr.hbm [resolvable:$true] %s230
      %s232 = sshll.u32 [#allocation15], 4
      %s233 = int_to_ptr.vmem [resolvable:$true] %s232
      %235 = dma.hbm_to_vmem [thread:$0]  %s231, 16, %s233, [#allocation14]
    $region101: #{ex_forward.1} parent=1 // pred_fallthru
      _
    // Predicated region
    $region102: #{ex_forward.1} parent=1 // pred_check
      _
    $region103: #{ex_forward.1} parent=1 // pred_check_branch
      %237 = sbr.rel (0) target = $region105
    $region104: #{ex_forward.1} parent=1 // pred_region
      _
    $region105: #{ex_forward.1} parent=1 // pred_fallthru
      _
    // Predicated region
    $region106: #{ex_forward.1} parent=1 // pred_check
      _
    $region107: #{ex_forward.1} parent=1 // pred_check_branch
      %239 = sbr.rel (0) target = $region109
    $region108: #{ex_forward.1} parent=1 // pred_region
      _
    $region109: #{ex_forward.1} parent=1 // pred_fallthru
      _
    // Predicated region
    $region110: #{ex_forward.1} parent=1 // pred_check
      _
    $region111: #{ex_forward.1} parent=1 // pred_check_branch
      %241 = sbr.rel (0) target = $region113
    $region112: #{ex_forward.1} parent=1 // pred_region
      %243 = vsyncadd [#allocation17], 0
      %s245 = sshll.u32 %s55, 4
      %s246 = int_to_ptr.hbm [resolvable:$true] %s245
      %s247 = sshll.u32 [#allocation16], 4
      %s248 = int_to_ptr.vmem [resolvable:$true] %s247
      %250 = dma.hbm_to_vmem [thread:$0]  %s246, 16, %s248, [#allocation17]
    $region113: #{ex_forward.1} parent=1 // pred_fallthru
      _
    // Predicated region
    $region114: #{ex_forward.1} parent=1 // pred_check
      _
    $region115: #{ex_forward.1} parent=1 // pred_check_branch
      %252 = sbr.rel (0) target = $region117
    $region116: #{ex_forward.1} parent=1 // pred_region
      _
    $region117: #{ex_forward.1} parent=1 // pred_fallthru
      _
    // Predicated region
    $region118: #{ex_forward.1} parent=1 // pred_check
      _
    $region119: #{ex_forward.1} parent=1 // pred_check_branch
      %254 = sbr.rel (0) target = $region121
    $region120: #{ex_forward.1} parent=1 // pred_region
      %256 = vsyncadd [#allocation17], 0
      %s258 = sshll.u32 %s59, 4
      %s259 = int_to_ptr.hbm [resolvable:$true] %s258
      %s260 = sshll.u32 [#allocation18], 4
      %s261 = int_to_ptr.vmem [resolvable:$true] %s260
      %263 = dma.hbm_to_vmem [thread:$0]  %s259, 16, %s261, [#allocation17]
    $region121: #{ex_forward.1} parent=1 // pred_fallthru
      _
    // Predicated region
    $region122: #{ex_forward.1} parent=1 // pred_check
      _
    $region123: #{ex_forward.1} parent=1 // pred_check_branch
      %265 = sbr.rel (0) target = $region125
    $region124: #{ex_forward.1} parent=1 // pred_region
      _
    $region125: #{ex_forward.1} parent=1 // pred_fallthru
      _
    // Predicated region
    $region126: #{ex_forward.1} parent=1 // pred_check
      _
    $region127: #{ex_forward.1} parent=1 // pred_check_branch
      %267 = sbr.rel (0) target = $region129
    $region128: #{ex_forward.1} parent=1 // pred_region
      %269 = vsyncadd [#allocation20], 0
      %s271 = sshll.u32 %s63, 4
      %s272 = int_to_ptr.hbm [resolvable:$true] %s271
      %s273 = sshll.u32 [#allocation19], 4
      %s274 = int_to_ptr.vmem [resolvable:$true] %s273
      %276 = dma.hbm_to_vmem [thread:$0]  %s272, 16, %s274, [#allocation20]
    $region129: #{ex_forward.1} parent=1 // pred_fallthru
      _
    // Predicated region
    $region130: #{ex_forward.1} parent=1 // pred_check
      _
    $region131: #{ex_forward.1} parent=1 // pred_check_branch
      %278 = sbr.rel (0) target = $region133
    $region132: #{ex_forward.1} parent=1 // pred_region
      _
    $region133: #{ex_forward.1} parent=1 // pred_fallthru
      _
    // Predicated region
    $region134: #{ex_forward.1} parent=1 // pred_check
      _
    $region135: #{ex_forward.1} parent=1 // pred_check_branch
      %280 = sbr.rel (0) target = $region137
    $region136: #{ex_forward.1} parent=1 // pred_region
      _
    $region137: #{ex_forward.1} parent=1 // pred_fallthru
      _
    // Predicated region
    $region138: #{ex_forward.1} parent=1 // pred_check
      _
    $region139: #{ex_forward.1} parent=1 // pred_check_branch
      %282 = sbr.rel (0) target = $region141
    $region140: #{ex_forward.1} parent=1 // pred_region
      %284 = vsyncadd [#allocation20], 0
      %s286 = sshll.u32 %s69, 4
      %s287 = int_to_ptr.hbm [resolvable:$true] %s286
      %s288 = sshll.u32 [#allocation21], 4
      %s289 = int_to_ptr.vmem [resolvable:$true] %s288
      %291 = dma.hbm_to_vmem [thread:$0]  %s287, 16, %s289, [#allocation20]
    $region141: #{ex_forward.1} parent=1 // pred_fallthru
      _
    // Predicated region
    $region142: #{ex_forward.1} parent=1 // pred_check
      _
    $region143: #{ex_forward.1} parent=1 // pred_check_branch
      %293 = sbr.rel (0) target = $region145
    $region144: #{ex_forward.1} parent=1 // pred_region
      _
    $region145: #{ex_forward.1} parent=1 // pred_fallthru
      _
    // Predicated region
    $region146: #{ex_forward.1} parent=1 // pred_check
      _
    $region147: #{ex_forward.1} parent=1 // pred_check_branch
      %295 = sbr.rel (0) target = $region149
    $region148: #{ex_forward.1} parent=1 // pred_region
      %297 = vsyncadd [#allocation23], 0
      %s299 = sshll.u32 %s73, 4
      %s300 = int_to_ptr.hbm [resolvable:$true] %s299
      %s301 = sshll.u32 [#allocation22], 4
      %s302 = int_to_ptr.vmem [resolvable:$true] %s301
      %304 = dma.hbm_to_vmem [thread:$0]  %s300, 16, %s302, [#allocation23]
    $region149: #{ex_forward.1} parent=1 // pred_fallthru
      _
    // Predicated region
    $region150: #{ex_forward.1} parent=1 // pred_check
      _
    $region151: #{ex_forward.1} parent=1 // pred_check_branch
      %306 = sbr.rel (0) target = $region153
    $region152: #{ex_forward.1} parent=1 // pred_region
      _
    $region153: #{ex_forward.1} parent=1 // pred_fallthru
      _
    // Predicated region
    $region154: #{ex_forward.1} parent=1 // pred_check
      _
    $region155: #{ex_forward.1} parent=1 // pred_check_branch
      %308 = sbr.rel (0) target = $region157
    $region156: #{ex_forward.1} parent=1 // pred_region
      _
    $region157: #{ex_forward.1} parent=1 // pred_fallthru
      _
    // Predicated region
    $region158: #{ex_forward.1} parent=1 // pred_check
      _
    $region159: #{ex_forward.1} parent=1 // pred_check_branch
      %310 = sbr.rel (0) target = $region161
    $region160: #{ex_forward.1} parent=1 // pred_region
      %312 = vsyncadd [#allocation23], 0
      %s314 = sshll.u32 %s79, 4
      %s315 = int_to_ptr.hbm [resolvable:$true] %s314
      %s316 = sshll.u32 [#allocation24], 4
      %s317 = int_to_ptr.vmem [resolvable:$true] %s316
      %319 = dma.hbm_to_vmem [thread:$0]  %s315, 16, %s317, [#allocation23]
    $region161: #{ex_forward.1} parent=1 // pred_fallthru
      _
    // Predicated region
    $region162: #{ex_forward.1} parent=1 // pred_check
      _
    $region163: #{ex_forward.1} parent=1 // pred_check_branch
      %321 = sbr.rel (0) target = $region165
    $region164: #{ex_forward.1} parent=1 // pred_region
      _
    $region165: #{ex_forward.1} parent=1 // pred_fallthru
      _
    // Predicated region
    $region166: #{ex_forward.1} parent=1 // pred_check
      _
    $region167: #{ex_forward.1} parent=1 // pred_check_branch
      %323 = sbr.rel (0) target = $region169
    $region168: #{ex_forward.1} parent=1 // pred_region
      %325 = vsyncadd [#allocation26], 0
      %s327 = sshll.u32 %s83, 4
      %s328 = int_to_ptr.hbm [resolvable:$true] %s327
      %s329 = sshll.u32 [#allocation25], 4
      %s330 = int_to_ptr.vmem [resolvable:$true] %s329
      %332 = dma.hbm_to_vmem [thread:$0]  %s328, 16, %s330, [#allocation26]
    $region169: #{ex_forward.1} parent=1 // pred_fallthru
      _
    // Predicated region
    $region170: #{ex_forward.1} parent=1 // pred_check
      _
    $region171: #{ex_forward.1} parent=1 // pred_check_branch
      %334 = sbr.rel (0) target = $region173
    $region172: #{ex_forward.1} parent=1 // pred_region
      _
    $region173: #{ex_forward.1} parent=1 // pred_fallthru
      _
    // Predicated region
    $region174: #{ex_forward.1} parent=1 // pred_check
      _
    $region175: #{ex_forward.1} parent=1 // pred_check_branch
      %336 = sbr.rel (0) target = $region177
    $region176: #{ex_forward.1} parent=1 // pred_region
      _
    $region177: #{ex_forward.1} parent=1 // pred_fallthru
      _
    // Predicated region
    $region178: #{ex_forward.1} parent=1 // pred_check
      _
    $region179: #{ex_forward.1} parent=1 // pred_check_branch
      %338 = sbr.rel (0) target = $region181
    $region180: #{ex_forward.1} parent=1 // pred_region
      %340 = vsyncadd [#allocation26], 0
      %s342 = sshll.u32 %s89, 4
      %s343 = int_to_ptr.hbm [resolvable:$true] %s342
      %s344 = sshll.u32 [#allocation27], 4
      %s345 = int_to_ptr.vmem [resolvable:$true] %s344
      %347 = dma.hbm_to_vmem [thread:$0]  %s343, 16, %s345, [#allocation26]
    $region181: #{ex_forward.1} parent=1 // pred_fallthru
      _
    // Predicated region
    $region182: #{ex_forward.1} parent=1 // pred_check
      _
    $region183: #{ex_forward.1} parent=1 // pred_check_branch
      %349 = sbr.rel (0) target = $region185
    $region184: #{ex_forward.1} parent=1 // pred_region
      _
    $region185: #{ex_forward.1} parent=1 // pred_fallthru
      _
    // Predicated region
    $region186: #{ex_forward.1} parent=1 // pred_check
      _
    $region187: #{ex_forward.1} parent=1 // pred_check_branch
      %351 = sbr.rel (0) target = $region189
    $region188: #{ex_forward.1} parent=1 // pred_region
      %353 = vsyncadd [#allocation29], 0
      %s355 = sshll.u32 %s93, 4
      %s356 = int_to_ptr.hbm [resolvable:$true] %s355
      %s357 = sshll.u32 [#allocation28], 4
      %s358 = int_to_ptr.vmem [resolvable:$true] %s357
      %360 = dma.hbm_to_vmem [thread:$0]  %s356, 16, %s358, [#allocation29]
    $region189: #{ex_forward.1} parent=1 // pred_fallthru
      _
    // Predicated region
    $region190: #{ex_forward.1} parent=1 // pred_check
      _
    $region191: #{ex_forward.1} parent=1 // pred_check_branch
      %362 = sbr.rel (0) target = $region193
    $region192: #{ex_forward.1} parent=1 // pred_region
      _
    $region193: #{ex_forward.1} parent=1 // pred_fallthru
      _
    // Predicated region
    $region194: #{ex_forward.1} parent=1 // pred_check
      _
    $region195: #{ex_forward.1} parent=1 // pred_check_branch
      %364 = sbr.rel (0) target = $region197
    $region196: #{ex_forward.1} parent=1 // pred_region
      _
    $region197: #{ex_forward.1} parent=1 // pred_fallthru
      _
    // Predicated region
    $region198: #{ex_forward.1} parent=1 // pred_check
      _
    $region199: #{ex_forward.1} parent=1 // pred_check_branch
      %366 = sbr.rel (0) target = $region201
    $region200: #{ex_forward.1} parent=1 // pred_region
      %368 = vsyncadd [#allocation29], 0
      %s370 = sshll.u32 %s99, 4
      %s371 = int_to_ptr.hbm [resolvable:$true] %s370
      %s372 = sshll.u32 [#allocation30], 4
      %s373 = int_to_ptr.vmem [resolvable:$true] %s372
      %375 = dma.hbm_to_vmem [thread:$0]  %s371, 16, %s373, [#allocation29]
    $region201: #{ex_forward.1} parent=1 // pred_fallthru
      _
    // Predicated region
    $region202: #{ex_forward.1} parent=1 // pred_check
      _
    $region203: #{ex_forward.1} parent=1 // pred_check_branch
      %377 = sbr.rel (0) target = $region205
    $region204: #{ex_forward.1} parent=1 // pred_region
      _
    $region205: #{ex_forward.1} parent=1 // pred_fallthru
      _
    // Predicated region
    $region206: #{ex_forward.1} parent=1 // pred_check
      _
    $region207: #{ex_forward.1} parent=1 // pred_check_branch
      %379 = sbr.rel (0) target = $region209
    $region208: #{ex_forward.1} parent=1 // pred_region
      %381 = vsyncadd [#allocation32], 0
      %s383 = sshll.u32 %s103, 4
      %s384 = int_to_ptr.hbm [resolvable:$true] %s383
      %s385 = sshll.u32 [#allocation31], 4
      %s386 = int_to_ptr.vmem [resolvable:$true] %s385
      %388 = dma.hbm_to_vmem [thread:$0]  %s384, 16, %s386, [#allocation32]
    $region209: #{ex_forward.1} parent=1 // pred_fallthru
      _
    // Predicated region
    $region210: #{ex_forward.1} parent=1 // pred_check
      _
    $region211: #{ex_forward.1} parent=1 // pred_check_branch
      %390 = sbr.rel (0) target = $region213
    $region212: #{ex_forward.1} parent=1 // pred_region
      _
    $region213: #{ex_forward.1} parent=1 // pred_fallthru
      _
    // Predicated region
    $region214: #{ex_forward.1} parent=1 // pred_check
      _
    $region215: #{ex_forward.1} parent=1 // pred_check_branch
      %392 = sbr.rel (0) target = $region217
    $region216: #{ex_forward.1} parent=1 // pred_region
      _
    $region217: #{ex_forward.1} parent=1 // pred_fallthru
      _
    // Predicated region
    $region218: #{ex_forward.1} parent=1 // pred_check
      _
    $region219: #{ex_forward.1} parent=1 // pred_check_branch
      %394 = sbr.rel (0) target = $region221
    $region220: #{ex_forward.1} parent=1 // pred_region
      %396 = vsyncadd [#allocation32], 0
      %s398 = sshll.u32 %s109, 4
      %s399 = int_to_ptr.hbm [resolvable:$true] %s398
      %s400 = sshll.u32 [#allocation33], 4
      %s401 = int_to_ptr.vmem [resolvable:$true] %s400
      %403 = dma.hbm_to_vmem [thread:$0]  %s399, 16, %s401, [#allocation32]
    $region221: #{ex_forward.1} parent=1 // pred_fallthru
      _
    // Predicated region
    $region222: #{ex_forward.1} parent=1 // pred_check
      _
    $region223: #{ex_forward.1} parent=1 // pred_check_branch
      %405 = sbr.rel (0) target = $region225
    $region224: #{ex_forward.1} parent=1 // pred_region
      _
    $region225: #{ex_forward.1} parent=1 // pred_fallthru
      _
    // Predicated region
    $region226: #{ex_forward.1} parent=1 // pred_check
      _
    $region227: #{ex_forward.1} parent=1 // pred_check_branch
      %407 = sbr.rel (0) target = $region229
    $region228: #{ex_forward.1} parent=1 // pred_region
      %409 = vsyncadd [#allocation35], 0
      %s411 = sshll.u32 %s113, 4
      %s412 = int_to_ptr.hbm [resolvable:$true] %s411
      %s413 = sshll.u32 [#allocation34], 4
      %s414 = int_to_ptr.vmem [resolvable:$true] %s413
      %416 = dma.hbm_to_vmem [thread:$0]  %s412, 16, %s414, [#allocation35]
    $region229: #{ex_forward.1} parent=1 // pred_fallthru
      _
    // Predicated region
    $region230: #{ex_forward.1} parent=1 // pred_check
      _
    $region231: #{ex_forward.1} parent=1 // pred_check_branch
      %418 = sbr.rel (0) target = $region233
    $region232: #{ex_forward.1} parent=1 // pred_region
      _
    $region233: #{ex_forward.1} parent=1 // pred_fallthru
      _
    // Predicated region
    $region234: #{ex_forward.1} parent=1 // pred_check
      _
    $region235: #{ex_forward.1} parent=1 // pred_check_branch
      %420 = sbr.rel (0) target = $region237
    $region236: #{ex_forward.1} parent=1 // pred_region
      _
    $region237: #{ex_forward.1} parent=1 // pred_fallthru
      _
    // Predicated region
    $region238: #{ex_forward.1} parent=1 // pred_check
      _
    $region239: #{ex_forward.1} parent=1 // pred_check_branch
      %422 = sbr.rel (0) target = $region241
    $region240: #{ex_forward.1} parent=1 // pred_region
      %424 = vsyncadd [#allocation35], 0
      %s426 = sshll.u32 %s119, 4
      %s427 = int_to_ptr.hbm [resolvable:$true] %s426
      %s428 = sshll.u32 [#allocation36], 4
      %s429 = int_to_ptr.vmem [resolvable:$true] %s428
      %431 = dma.hbm_to_vmem [thread:$0]  %s427, 16, %s429, [#allocation35]
    $region241: #{ex_forward.1} parent=1 // pred_fallthru
      _
    // Predicated region
    $region242: #{ex_forward.1} parent=1 // pred_check
      _
    $region243: #{ex_forward.1} parent=1 // pred_check_branch
      %433 = sbr.rel (0) target = $region245
    $region244: #{ex_forward.1} parent=1 // pred_region
      _
    $region245: #{ex_forward.1} parent=1 // pred_fallthru
      _
    // Predicated region
    $region246: #{ex_forward.1} parent=1 // pred_check
      _
    $region247: #{ex_forward.1} parent=1 // pred_check_branch
      %435 = sbr.rel (0) target = $region249
    $region248: #{ex_forward.1} parent=1 // pred_region
      %437 = vsyncadd [#allocation38], 0
      %s439 = sshll.u32 %s123, 4
      %s440 = int_to_ptr.hbm [resolvable:$true] %s439
      %s441 = sshll.u32 [#allocation37], 4
      %s442 = int_to_ptr.vmem [resolvable:$true] %s441
      %444 = dma.hbm_to_vmem [thread:$0]  %s440, 16, %s442, [#allocation38]
    $region249: #{ex_forward.1} parent=1 // pred_fallthru
      _
    // Predicated region
    $region250: #{ex_forward.1} parent=1 // pred_check
      _
    $region251: #{ex_forward.1} parent=1 // pred_check_branch
      %446 = sbr.rel (0) target = $region253
    $region252: #{ex_forward.1} parent=1 // pred_region
      %448 = dma.done [#allocation9], 16
    $region253: #{ex_forward.1} parent=1 // pred_fallthru
      _
    // Predicated region
    $region254: #{ex_forward.1} parent=1 // pred_check
      _
    $region255: #{ex_forward.1} parent=1 // pred_check_branch
      %450 = sbr.rel (0) target = $region257
    $region256: #{ex_forward.1} parent=1 // pred_region
      %452 = dma.done [#allocation11], 16
    $region257: #{ex_forward.1} parent=1 // pred_fallthru
      _
    // Predicated region
    $region258: #{ex_forward.1} parent=1 // pred_check
      _
    $region259: #{ex_forward.1} parent=1 // pred_check_branch
      %454 = sbr.rel (0) target = $region261
    $region260: #{ex_forward.1} parent=1 // pred_region
      %456 = dma.done [#allocation11], 16
    $region261: #{ex_forward.1} parent=1 // pred_fallthru
      _
    // Predicated region
    $region262: #{ex_forward.1} parent=1 // pred_check
      _
    $region263: #{ex_forward.1} parent=1 // pred_check_branch
      %458 = sbr.rel (0) target = $region265
    $region264: #{ex_forward.1} parent=1 // pred_region
      %460 = dma.done [#allocation14], 16
    $region265: #{ex_forward.1} parent=1 // pred_fallthru
      _
    // Predicated region
    $region266: #{ex_forward.1} parent=1 // pred_check
      _
    $region267: #{ex_forward.1} parent=1 // pred_check_branch
      %462 = sbr.rel (0) target = $region269
    $region268: #{ex_forward.1} parent=1 // pred_region
      %464 = dma.done [#allocation14], 16
    $region269: #{ex_forward.1} parent=1 // pred_fallthru
      _
    // Predicated region
    $region270: #{ex_forward.1} parent=1 // pred_check
      _
    $region271: #{ex_forward.1} parent=1 // pred_check_branch
      %466 = sbr.rel (0) target = $region273
    $region272: #{ex_forward.1} parent=1 // pred_region
      %468 = dma.done [#allocation17], 16
    $region273: #{ex_forward.1} parent=1 // pred_fallthru
      _
    // Predicated region
    $region274: #{ex_forward.1} parent=1 // pred_check
      _
    $region275: #{ex_forward.1} parent=1 // pred_check_branch
      %470 = sbr.rel (0) target = $region277
    $region276: #{ex_forward.1} parent=1 // pred_region
      %472 = dma.done [#allocation17], 16
    $region277: #{ex_forward.1} parent=1 // pred_fallthru
      _
    // Predicated region
    $region278: #{ex_forward.1} parent=1 // pred_check
      _
    $region279: #{ex_forward.1} parent=1 // pred_check_branch
      %474 = sbr.rel (0) target = $region281
    $region280: #{ex_forward.1} parent=1 // pred_region
      %476 = dma.done [#allocation20], 16
    $region281: #{ex_forward.1} parent=1 // pred_fallthru
      _
    // Predicated region
    $region282: #{ex_forward.1} parent=1 // pred_check
      _
    $region283: #{ex_forward.1} parent=1 // pred_check_branch
      %478 = sbr.rel (0) target = $region285
    $region284: #{ex_forward.1} parent=1 // pred_region
      %480 = dma.done [#allocation20], 16
    $region285: #{ex_forward.1} parent=1 // pred_fallthru
      _
    // Predicated region
    $region286: #{ex_forward.1} parent=1 // pred_check
      _
    $region287: #{ex_forward.1} parent=1 // pred_check_branch
      %482 = sbr.rel (0) target = $region289
    $region288: #{ex_forward.1} parent=1 // pred_region
      %484 = dma.done [#allocation23], 16
    $region289: #{ex_forward.1} parent=1 // pred_fallthru
      _
    // Predicated region
    $region290: #{ex_forward.1} parent=1 // pred_check
      _
    $region291: #{ex_forward.1} parent=1 // pred_check_branch
      %486 = sbr.rel (0) target = $region293
    $region292: #{ex_forward.1} parent=1 // pred_region
      %488 = dma.done [#allocation23], 16
    $region293: #{ex_forward.1} parent=1 // pred_fallthru
      _
    // Predicated region
    $region294: #{ex_forward.1} parent=1 // pred_check
      _
    $region295: #{ex_forward.1} parent=1 // pred_check_branch
      %490 = sbr.rel (0) target = $region297
    $region296: #{ex_forward.1} parent=1 // pred_region
      %492 = dma.done [#allocation26], 16
    $region297: #{ex_forward.1} parent=1 // pred_fallthru
      _
    // Predicated region
    $region298: #{ex_forward.1} parent=1 // pred_check
      _
    $region299: #{ex_forward.1} parent=1 // pred_check_branch
      %494 = sbr.rel (0) target = $region301
    $region300: #{ex_forward.1} parent=1 // pred_region
      %496 = dma.done [#allocation26], 16
    $region301: #{ex_forward.1} parent=1 // pred_fallthru
      _
    // Predicated region
    $region302: #{ex_forward.1} parent=1 // pred_check
      _
    $region303: #{ex_forward.1} parent=1 // pred_check_branch
      %498 = sbr.rel (0) target = $region305
    $region304: #{ex_forward.1} parent=1 // pred_region
      %500 = dma.done [#allocation29], 16
    $region305: #{ex_forward.1} parent=1 // pred_fallthru
      _
    // Predicated region
    $region306: #{ex_forward.1} parent=1 // pred_check
      _
    $region307: #{ex_forward.1} parent=1 // pred_check_branch
      %502 = sbr.rel (0) target = $region309
    $region308: #{ex_forward.1} parent=1 // pred_region
      %504 = dma.done [#allocation29], 16
    $region309: #{ex_forward.1} parent=1 // pred_fallthru
      _
    // Predicated region
    $region310: #{ex_forward.1} parent=1 // pred_check
      _
    $region311: #{ex_forward.1} parent=1 // pred_check_branch
      %506 = sbr.rel (0) target = $region313
    $region312: #{ex_forward.1} parent=1 // pred_region
      %508 = dma.done [#allocation32], 16
    $region313: #{ex_forward.1} parent=1 // pred_fallthru
      _
    // Predicated region
    $region314: #{ex_forward.1} parent=1 // pred_check
      _
    $region315: #{ex_forward.1} parent=1 // pred_check_branch
      %510 = sbr.rel (0) target = $region317
    $region316: #{ex_forward.1} parent=1 // pred_region
      %512 = dma.done [#allocation32], 16
    $region317: #{ex_forward.1} parent=1 // pred_fallthru
      _
    // Predicated region
    $region318: #{ex_forward.1} parent=1 // pred_check
      _
    $region319: #{ex_forward.1} parent=1 // pred_check_branch
      %514 = sbr.rel (0) target = $region321
    $region320: #{ex_forward.1} parent=1 // pred_region
      %516 = dma.done [#allocation35], 16
    $region321: #{ex_forward.1} parent=1 // pred_fallthru
      _
    // Predicated region
    $region322: #{ex_forward.1} parent=1 // pred_check
      _
    $region323: #{ex_forward.1} parent=1 // pred_check_branch
      %518 = sbr.rel (0) target = $region325
    $region324: #{ex_forward.1} parent=1 // pred_region
      %520 = dma.done [#allocation35], 16
    $region325: #{ex_forward.1} parent=1 // pred_fallthru
      _
    // Predicated region
    $region326: #{ex_forward.1} parent=1 // pred_check
      _
    $region327: #{ex_forward.1} parent=1 // pred_check_branch
      %522 = sbr.rel (0) target = $region329
    $region328: #{ex_forward.1} parent=1 // pred_region
      %524 = dma.done [#allocation38], 16
    $region329: #{ex_forward.1} parent=1 // pred_fallthru
      _
    %v526 = vld [vmem:[%s1] sm:$0xff]
    %v527 = vld [vmem:[%s1 + $0x8] sm:$0xff]
    %v528 = vld [vmem:[%s1 + $0x10] sm:$0xff]
    %v529 = vld [vmem:[%s1 + $0x18] sm:$0xff]
    %v530 = vld [vmem:[%s1 + $0x20] sm:$0xff]
    %v531 = vld [vmem:[%s1 + $0x28] sm:$0xff]
    %v532 = vld [vmem:[%s1 + $0x30] sm:$0xff]
    %v533 = vld [vmem:[%s1 + $0x38] sm:$0xff]
    %v534 = vld [vmem:[%s3] sm:$0xf]
    %v535 = vld [vmem:[%s3 + $0x4] sm:$0x3]
    %v536 = vld [vmem:[%s5] sm:$0x1]
    %v537 = vld [vmem:[%s7] sm:$0xf]
    %v538 = vld [vmem:[%s7 + $0x4] sm:$0xf]
    %v539 = vld [vmem:[%s7 + $0x8] sm:$0xf]
    %v540 = vld [vmem:[%s7 + $0xc] sm:$0xf]
    %v541 = vld [vmem:[%s7 + $0x10] sm:$0xf]
    %v542 = vld [vmem:[%s7 + $0x14] sm:$0xf]
    %v543 = vld [vmem:[%s7 + $0x18] sm:$0xf]
    %v544 = vld [vmem:[%s7 + $0x1c] sm:$0xf]
    %v545 = vld [vmem:[%s7 + $0x20] sm:$0xf]
    %v546 = vld [vmem:[%s7 + $0x24] sm:$0xf]
    %v547 = vld [vmem:[%s7 + $0x28] sm:$0xf]
    %v548 = vld [vmem:[%s7 + $0x2c] sm:$0xf]
    %v549 = vld [vmem:[%s9] sm:$0x1]
    %v550 = vld [vmem:[%s11] sm:$0x3]
    %v551 = vld [vmem:[%s13] sm:$0x1]
    %vm560 = vcmask 1040384
    %v561 = vrot.slane %v526, 7
    %v562 = vrot.slane %v527, 7
    %v563 = vsel %vm560, %v561, %v562
    %v564 = vrot.slane %v528, 7
    %v565 = vsel %vm560, %v562, %v564
    %v566 = vrot.slane %v529, 7
    %v567 = vsel %vm560, %v564, %v566
    %v568 = vrot.slane %v530, 7
    %v569 = vrot.slane %v531, 7
    %v570 = vsel %vm560, %v568, %v569
    %v571 = vrot.slane %v532, 7
    %v572 = vsel %vm560, %v569, %v571
    %v573 = vrot.slane %v533, 7
    %v574 = vsel %vm560, %v571, %v573
    %v583 = vsel %vm560, 0.0, %v561
    %v584 = vsel %vm560, 0.0, %v568
    %vm585 = vcmask 1046528
    %v586 = vrot.slane %v526, 1
    %v587 = vrot.slane %v527, 1
    %v588 = vsel %vm585, %v586, %v587
    %v589 = vrot.slane %v528, 1
    %v590 = vsel %vm585, %v587, %v589
    %v591 = vrot.slane %v529, 1
    %v592 = vsel %vm585, %v589, %v591
    %v593 = vrot.slane %v530, 1
    %v594 = vrot.slane %v531, 1
    %v595 = vsel %vm585, %v593, %v594
    %v596 = vrot.slane %v532, 1
    %v597 = vsel %vm585, %v594, %v596
    %v598 = vrot.slane %v533, 1
    %v599 = vsel %vm585, %v596, %v598
    %v602 = vsel %vm585, %v591, 0.0
    %v603 = vsel %vm585, %v598, 0.0
    %604 = vrot.lane.b32.xlu0 %v526, 4
    %v605 = vpop.permute.xlu0 %604
    %606 = vrot.lane.b32.xlu0 %v527, 4
    %v607 = vpop.permute.xlu0 %606
    %608 = vrot.lane.b32.xlu0 %v528, 4
    %v609 = vpop.permute.xlu0 %608
    %610 = vrot.lane.b32.xlu0 %v529, 4
    %v611 = vpop.permute.xlu0 %610
    %612 = vrot.lane.b32.xlu0 %v530, 4
    %v613 = vpop.permute.xlu0 %612
    %614 = vrot.lane.b32.xlu0 %v531, 4
    %v615 = vpop.permute.xlu0 %614
    %616 = vrot.lane.b32.xlu0 %v532, 4
    %v617 = vpop.permute.xlu0 %616
    %618 = vrot.lane.b32.xlu0 %v533, 4
    %v619 = vpop.permute.xlu0 %618
    %630 = vrot.lane.b32.xlu0 %v588, 8
    %v631 = vpop.permute.xlu0 %630
    %632 = vrot.lane.b32.xlu0 %v590, 8
    %v633 = vpop.permute.xlu0 %632
    %634 = vrot.lane.b32.xlu0 %v592, 8
    %v635 = vpop.permute.xlu0 %634
    %636 = vrot.lane.b32.xlu0 %v602, 8
    %v637 = vpop.permute.xlu0 %636
    %638 = vrot.lane.b32.xlu0 %v595, 8
    %v639 = vpop.permute.xlu0 %638
    %640 = vrot.lane.b32.xlu0 %v597, 8
    %v641 = vpop.permute.xlu0 %640
    %642 = vrot.lane.b32.xlu0 %v599, 8
    %v643 = vpop.permute.xlu0 %642
    %644 = vrot.lane.b32.xlu0 %v603, 8
    %v645 = vpop.permute.xlu0 %644
    %vm654 = vcmask 31744
    %v655 = vsel %vm654, %v583, %v605
    %v656 = vsel %vm654, %v563, %v607
    %v657 = vsel %vm654, %v565, %v609
    %v658 = vsel %vm654, %v567, %v611
    %v659 = vsel %vm654, %v584, %v613
    %v660 = vsel %vm654, %v570, %v615
    %v661 = vsel %vm654, %v572, %v617
    %v662 = vsel %vm654, %v574, %v619
    %vm663 = vcmask 64512
    %v664 = vsel %vm663, %v655, %v631
    %v665 = vsel %vm663, %v656, %v633
    %v666 = vsel %vm663, %v657, %v635
    %v667 = vsel %vm663, %v658, %v637
    %v668 = vsel %vm663, %v659, %v639
    %v669 = vsel %vm663, %v660, %v641
    %v670 = vsel %vm663, %v661, %v643
    %v671 = vsel %vm663, %v662, %v645
    %v672 = vpack.c.bf16 %v665, %v664
    %v673 = vpack.c.bf16 %v667, %v666
    %v674 = vpack.c.bf16 %v669, %v668
    %v675 = vpack.c.bf16 %v671, %v670
    %v677 = vperm.slane %v536, 0
    %v681 = vunpack.c.l.b16 %v534
    %v682 = vunpack.c.l.b16 %v535
    %v683 = vpack.c.b16 %v682, %v681
    %vm684 = vcmask 97280
    %v686 = vsel %vm684, %v672, 0
    %v689 = vsel %vm684, %v673, 0
    %v692 = vsel %vm684, %v674, 0
    %v695 = vsel %vm684, %v675, 0
    %vm697 = vcmask 1045504
    %v699 = vsel %vm697, %v683, 0
    %701 = vmatpush.bf16.msra.mxu0 0
    %702 = vmatpush.bf16.msra.mxu0 0
    %703 = vmatpush.bf16.msra.mxu0 0
    %704 = vmatpush.bf16.msra.mxu0 0
    %705 = vmatpush.bf16.msra.mxu0 0
    %706 = vmatpush.bf16.msra.mxu0 0
    %707 = vmatpush.bf16.msra.mxu0 0
    %708 = vmatpush.bf16.msra.mxu0 %v699
    %709 = vmatmul.bf16.gmra.mxu0 %v686
    %v710 = vpop.f32.mrf.mxu0
    %v711 = vadd.f32 %v677, %v710
    %v712 = vpop.f32.mrf.mxu0
    %v713 = vadd.f32 %v677, %v712
    %714 = vmatmul.bf16.gmra.mxu0 %v689
    %v715 = vpop.f32.mrf.mxu0
    %v716 = vadd.f32 %v677, %v715
    %v717 = vpop.f32.mrf.mxu0
    %v718 = vadd.f32 %v677, %v717
    %719 = vmatmul.bf16.gmra.mxu0 %v692
    %v720 = vpop.f32.mrf.mxu0
    %v721 = vadd.f32 %v677, %v720
    %v722 = vpop.f32.mrf.mxu0
    %v723 = vadd.f32 %v677, %v722
    %724 = vmatmul.bf16.gmra.mxu0 %v695
    %v725 = vpop.f32.mrf.mxu0
    %v726 = vadd.f32 %v677, %v725
    %v727 = vpop.f32.mrf.mxu0
    %v728 = vadd.f32 %v677, %v727
    %729 = vdwg.mxu0
    %v730 = vmax.f32 %v711, 0.0
    %v731 = vmax.f32 %v713, 0.0
    %v732 = vmax.f32 %v716, 0.0
    %v733 = vmax.f32 %v718, 0.0
    %v734 = vmax.f32 %v721, 0.0
    %v735 = vmax.f32 %v723, 0.0
    %v736 = vmax.f32 %v726, 0.0
    %v737 = vmax.f32 %v728, 0.0
    %v746 = vrot.slane %v730, 7
    %v747 = vrot.slane %v731, 7
    %v748 = vsel %vm560, %v746, %v747
    %v749 = vrot.slane %v732, 7
    %v750 = vsel %vm560, %v747, %v749
    %v751 = vrot.slane %v733, 7
    %v752 = vsel %vm560, %v749, %v751
    %v753 = vrot.slane %v734, 7
    %v754 = vrot.slane %v735, 7
    %v755 = vsel %vm560, %v753, %v754
    %v756 = vrot.slane %v736, 7
    %v757 = vsel %vm560, %v754, %v756
    %v758 = vrot.slane %v737, 7
    %v759 = vsel %vm560, %v756, %v758
    %v768 = vsel %vm560, 0.0, %v746
    %v769 = vsel %vm560, 0.0, %v753
    %v770 = vrot.slane %v730, 1
    %v771 = vrot.slane %v731, 1
    %v772 = vsel %vm585, %v770, %v771
    %v773 = vrot.slane %v732, 1
    %v774 = vsel %vm585, %v771, %v773
    %v775 = vrot.slane %v733, 1
    %v776 = vsel %vm585, %v773, %v775
    %v777 = vrot.slane %v734, 1
    %v778 = vrot.slane %v735, 1
    %v779 = vsel %vm585, %v777, %v778
    %v780 = vrot.slane %v736, 1
    %v781 = vsel %vm585, %v778, %v780
    %v782 = vrot.slane %v737, 1
    %v783 = vsel %vm585, %v780, %v782
    %v786 = vsel %vm585, %v775, 0.0
    %v787 = vsel %vm585, %v782, 0.0
    %788 = vrot.lane.b32.xlu0 %v730, 32
    %v789 = vpop.permute.xlu0 %788
    %790 = vrot.lane.b32.xlu0 %v731, 32
    %v791 = vpop.permute.xlu0 %790
    %792 = vrot.lane.b32.xlu0 %v732, 32
    %v793 = vpop.permute.xlu0 %792
    %794 = vrot.lane.b32.xlu0 %v733, 32
    %v795 = vpop.permute.xlu0 %794
    %796 = vrot.lane.b32.xlu0 %v734, 32
    %v797 = vpop.permute.xlu0 %796
    %798 = vrot.lane.b32.xlu0 %v735, 32
    %v799 = vpop.permute.xlu0 %798
    %800 = vrot.lane.b32.xlu0 %v736, 32
    %v801 = vpop.permute.xlu0 %800
    %802 = vrot.lane.b32.xlu0 %v737, 32
    %v803 = vpop.permute.xlu0 %802
    %814 = vrot.lane.b32.xlu0 %v772, 64
    %v815 = vpop.permute.xlu0 %814
    %816 = vrot.lane.b32.xlu0 %v774, 64
    %v817 = vpop.permute.xlu0 %816
    %818 = vrot.lane.b32.xlu0 %v776, 64
    %v819 = vpop.permute.xlu0 %818
    %820 = vrot.lane.b32.xlu0 %v786, 64
    %v821 = vpop.permute.xlu0 %820
    %822 = vrot.lane.b32.xlu0 %v779, 64
    %v823 = vpop.permute.xlu0 %822
    %824 = vrot.lane.b32.xlu0 %v781, 64
    %v825 = vpop.permute.xlu0 %824
    %826 = vrot.lane.b32.xlu0 %v783, 64
    %v827 = vpop.permute.xlu0 %826
    %828 = vrot.lane.b32.xlu0 %v787, 64
    %v829 = vpop.permute.xlu0 %828
    %vm838 = vcmask 261120
    %v839 = vsel %vm838, %v768, %v789
    %v840 = vsel %vm838, %v748, %v791
    %v841 = vsel %vm838, %v750, %v793
    %v842 = vsel %vm838, %v752, %v795
    %v843 = vsel %vm838, %v769, %v797
    %v844 = vsel %vm838, %v755, %v799
    %v845 = vsel %vm838, %v757, %v801
    %v846 = vsel %vm838, %v759, %v803
    %vm847 = vcmask 523264
    %v848 = vsel %vm847, %v839, %v815
    %v849 = vsel %vm847, %v840, %v817
    %v850 = vsel %vm847, %v841, %v819
    %v851 = vsel %vm847, %v842, %v821
    %v852 = vsel %vm847, %v843, %v823
    %v853 = vsel %vm847, %v844, %v825
    %v854 = vsel %vm847, %v845, %v827
    %v855 = vsel %vm847, %v846, %v829
    %v856 = vpack.c.bf16 %v849, %v848
    %v857 = vpack.c.bf16 %v851, %v850
    %v858 = vpack.c.bf16 %v853, %v852
    %v859 = vpack.c.bf16 %v855, %v854
    %v861 = vperm.slane %v549, 0
    %v875 = vunpack.c.l.b16 %v537
    %v876 = vunpack.c.l.b16 %v538
    %v877 = vunpack.c.l.b16 %v539
    %v878 = vunpack.c.l.b16 %v540
    %v879 = vunpack.c.l.b16 %v541
    %v880 = vunpack.c.l.b16 %v542
    %v881 = vunpack.c.l.b16 %v543
    %v882 = vunpack.c.l.b16 %v544
    %v883 = vunpack.c.l.b16 %v545
    %v884 = vunpack.c.l.b16 %v546
    %v885 = vunpack.c.l.b16 %v547
    %v886 = vunpack.c.l.b16 %v548
    %v887 = vpack.c.b16 %v876, %v875
    %v888 = vpack.c.b16 %v878, %v877
    %v889 = vpack.c.b16 %v880, %v879
    %v890 = vpack.c.b16 %v882, %v881
    %v891 = vpack.c.b16 %v884, %v883
    %v892 = vpack.c.b16 %v886, %v885
    %vm899 = vcmask 785408
    %v901 = vsel %vm899, %v856, 0
    %v904 = vsel %vm899, %v857, 0
    %v907 = vsel %vm899, %v858, 0
    %v910 = vsel %vm899, %v859, 0
    %912 = vmatpush.bf16.msra.mxu0 0
    %913 = vmatpush.bf16.msra.mxu0 0
    %914 = vmatpush.bf16.msra.mxu0 %v892
    %915 = vmatpush.bf16.msra.mxu0 %v891
    %916 = vmatpush.bf16.msra.mxu0 %v890
    %917 = vmatpush.bf16.msra.mxu0 %v889
    %918 = vmatpush.bf16.msra.mxu0 %v888
    %919 = vmatpush.bf16.msra.mxu0 %v887
    %920 = vmatmul.bf16.gmra.mxu0 %v901
    %v921 = vpop.f32.mrf.mxu0
    %v922 = vadd.f32 %v861, %v921
    %v923 = vpop.f32.mrf.mxu0
    %v924 = vadd.f32 %v861, %v923
    %925 = vmatmul.bf16.gmra.mxu0 %v904
    %v926 = vpop.f32.mrf.mxu0
    %v927 = vadd.f32 %v861, %v926
    %v928 = vpop.f32.mrf.mxu0
    %v929 = vadd.f32 %v861, %v928
    %930 = vmatmul.bf16.gmra.mxu0 %v907
    %v931 = vpop.f32.mrf.mxu0
    %v932 = vadd.f32 %v861, %v931
    %v933 = vpop.f32.mrf.mxu0
    %v934 = vadd.f32 %v861, %v933
    %935 = vmatmul.bf16.gmra.mxu0 %v910
    %v936 = vpop.f32.mrf.mxu0
    %v937 = vadd.f32 %v861, %v936
    %v938 = vpop.f32.mrf.mxu0
    %v939 = vadd.f32 %v861, %v938
    %940 = vdwg.mxu0
    %v941 = vmax.f32 %v922, 0.0
    %v942 = vmax.f32 %v924, 0.0
    %v943 = vmax.f32 %v927, 0.0
    %v944 = vmax.f32 %v929, 0.0
    %v945 = vmax.f32 %v932, 0.0
    %v946 = vmax.f32 %v934, 0.0
    %v947 = vmax.f32 %v937, 0.0
    %v948 = vmax.f32 %v939, 0.0
    %v949 = vpack.c.bf16 %v527, %v526
    %v950 = vpack.c.bf16 %v529, %v528
    %v951 = vpack.c.bf16 %v531, %v530
    %v952 = vpack.c.bf16 %v533, %v532
    %v954 = vperm.slane %v551, 0
    %v957 = vsel %vm654, %v949, 0
    %v960 = vsel %vm654, %v950, 0
    %v963 = vsel %vm654, %v951, 0
    %v966 = vsel %vm654, %v952, 0
    %vm968 = vcmask 1041408
    %v970 = vsel %vm968, %v550, 0
    %972 = vmatpush.bf16.msra.mxu0 0
    %973 = vmatpush.bf16.msra.mxu0 0
    %974 = vmatpush.bf16.msra.mxu0 0
    %975 = vmatpush.bf16.msra.mxu0 0
    %976 = vmatpush.bf16.msra.mxu0 0
    %977 = vmatpush.bf16.msra.mxu0 0
    %978 = vmatpush.bf16.msra.mxu0 0
    %979 = vmatpush.bf16.msra.mxu0 %v970
    %980 = vmatmul.bf16.gmra.mxu0 %v957
    %v981 = vpop.f32.mrf.mxu0
    %v982 = vadd.f32 %v954, %v981
    %v983 = vpop.f32.mrf.mxu0
    %v984 = vadd.f32 %v954, %v983
    %985 = vmatmul.bf16.gmra.mxu0 %v960
    %v986 = vpop.f32.mrf.mxu0
    %v987 = vadd.f32 %v954, %v986
    %v988 = vpop.f32.mrf.mxu0
    %v989 = vadd.f32 %v954, %v988
    %990 = vmatmul.bf16.gmra.mxu0 %v963
    %v991 = vpop.f32.mrf.mxu0
    %v992 = vadd.f32 %v954, %v991
    %v993 = vpop.f32.mrf.mxu0
    %v994 = vadd.f32 %v954, %v993
    %995 = vmatmul.bf16.gmra.mxu0 %v966
    %v996 = vpop.f32.mrf.mxu0
    %v997 = vadd.f32 %v954, %v996
    %v998 = vpop.f32.mrf.mxu0
    %v999 = vadd.f32 %v954, %v998
    %1000 = vdwg.mxu0
    %v1001 = vadd.f32 %v941, %v982
    %v1002 = vadd.f32 %v942, %v984
    %v1003 = vadd.f32 %v943, %v987
    %v1004 = vadd.f32 %v944, %v989
    %v1005 = vadd.f32 %v945, %v992
    %v1006 = vadd.f32 %v946, %v994
    %v1007 = vadd.f32 %v947, %v997
    %v1008 = vadd.f32 %v948, %v999
    %v1009 = vmax.f32 %v1001, 0.0
    %v1010 = vmax.f32 %v1002, 0.0
    %v1011 = vmax.f32 %v1003, 0.0
    %v1012 = vmax.f32 %v1004, 0.0
    %v1013 = vmax.f32 %v1005, 0.0
    %v1014 = vmax.f32 %v1006, 0.0
    %v1015 = vmax.f32 %v1007, 0.0
    %v1016 = vmax.f32 %v1008, 0.0
    %1017 = vst.msk [vmem:[#allocation2] sm:$0xff] %vm838, %v1009
    %1018 = vst.msk [vmem:[#allocation2 + $0x8] sm:$0xff] %vm838, %v1010
    %1019 = vst.msk [vmem:[#allocation2 + $0x10] sm:$0xff] %vm838, %v1011
    %1020 = vst.msk [vmem:[#allocation2 + $0x18] sm:$0xff] %vm838, %v1012
    %1021 = vst.msk [vmem:[#allocation2 + $0x20] sm:$0xff] %vm838, %v1013
    %1022 = vst.msk [vmem:[#allocation2 + $0x28] sm:$0xff] %vm838, %v1014
    %1023 = vst.msk [vmem:[#allocation2 + $0x30] sm:$0xff] %vm838, %v1015
    %1024 = vst.msk [vmem:[#allocation2 + $0x38] sm:$0xff] %vm838, %v1016
    %v1025 = vld [vmem:[#allocation2] ss:$2 sm:$0xff]
    %s1026 = scalar_lea.vmem [#allocation2], 16
    %v1027 = vld [vmem:[%s1026] ss:$2 sm:$0xff]
    %s1028 = scalar_lea.vmem [#allocation2], 32
    %v1029 = vld [vmem:[%s1028] ss:$2 sm:$0xff]
    %s1030 = scalar_lea.vmem [#allocation2], 48
    %v1031 = vld [vmem:[%s1030] ss:$2 sm:$0xff]
    %s1032 = scalar_lea.vmem [#allocation2], 1
    %v1033 = vld [vmem:[%s1032] ss:$2 sm:$0xff]
    %s1034 = scalar_lea.vmem [#allocation2], 17
    %v1035 = vld [vmem:[%s1034] ss:$2 sm:$0xff]
    %s1036 = scalar_lea.vmem [#allocation2], 33
    %v1037 = vld [vmem:[%s1036] ss:$2 sm:$0xff]
    %s1038 = scalar_lea.vmem [#allocation2], 49
    %v1039 = vld [vmem:[%s1038] ss:$2 sm:$0xff]
    %v1040 = vmax.f32 %v1025, %v1033
    %v1041 = vmax.f32 %v1027, %v1035
    %v1042 = vmax.f32 %v1029, %v1037
    %v1043 = vmax.f32 %v1031, %v1039
    %v1044 = vld [vmem:[%s15] sm:$0xf]
    %v1045 = vld [vmem:[%s15 + $0x4] sm:$0xf]
    %v1046 = vld [vmem:[%s15 + $0x8] sm:$0xf]
    %v1047 = vld [vmem:[%s15 + $0xc] sm:$0xf]
    %v1048 = vld [vmem:[%s15 + $0x10] sm:$0xf]
    %v1049 = vld [vmem:[%s15 + $0x14] sm:$0xf]
    %v1050 = vld [vmem:[%s15 + $0x18] sm:$0xf]
    %v1051 = vld [vmem:[%s15 + $0x1c] sm:$0xf]
    %v1052 = vld [vmem:[%s15 + $0x20] sm:$0xf]
    %v1053 = vld [vmem:[%s15 + $0x24] sm:$0xf]
    %v1054 = vld [vmem:[%s15 + $0x28] sm:$0xf]
    %v1055 = vld [vmem:[%s15 + $0x2c] sm:$0xf]
    %v1056 = vld [vmem:[%s17] sm:$0x1]
    %v1057 = vld [vmem:[%s19] sm:$0xf]
    %v1058 = vld [vmem:[%s19 + $0x4] sm:$0xf]
    %v1059 = vld [vmem:[%s19 + $0x8] sm:$0xf]
    %v1060 = vld [vmem:[%s19 + $0xc] sm:$0xf]
    %v1061 = vld [vmem:[%s19 + $0x10] sm:$0xf]
    %v1062 = vld [vmem:[%s19 + $0x14] sm:$0xf]
    %v1063 = vld [vmem:[%s19 + $0x18] sm:$0xf]
    %v1064 = vld [vmem:[%s19 + $0x1c] sm:$0xf]
    %v1065 = vld [vmem:[%s19 + $0x20] sm:$0xf]
    %v1066 = vld [vmem:[%s19 + $0x24] sm:$0xf]
    %v1067 = vld [vmem:[%s19 + $0x28] sm:$0xf]
    %v1068 = vld [vmem:[%s19 + $0x2c] sm:$0xf]
    %v1069 = vld [vmem:[%s19 + $0x30] sm:$0xf]
    %v1070 = vld [vmem:[%s19 + $0x34] sm:$0xf]
    %v1071 = vld [vmem:[%s19 + $0x38] sm:$0xf]
    %v1072 = vld [vmem:[%s19 + $0x3c] sm:$0xf]
    %v1073 = vld [vmem:[%s19 + $0x40] sm:$0xf]
    %v1074 = vld [vmem:[%s19 + $0x44] sm:$0xf]
    %v1075 = vld [vmem:[%s19 + $0x48] sm:$0xf]
    %v1076 = vld [vmem:[%s19 + $0x4c] sm:$0xf]
    %v1077 = vld [vmem:[%s19 + $0x50] sm:$0xf]
    %v1078 = vld [vmem:[%s19 + $0x54] sm:$0xf]
    %v1079 = vld [vmem:[%s19 + $0x58] sm:$0xf]
    %v1080 = vld [vmem:[%s19 + $0x5c] sm:$0xf]
    %v1081 = vld [vmem:[%s21] sm:$0x1]
    %v1082 = vld [vmem:[%s23] sm:$0xf]
    %v1083 = vld [vmem:[%s23 + $0x4] sm:$0xf]
    %v1084 = vld [vmem:[%s23 + $0x8] sm:$0xf]
    %v1085 = vld [vmem:[%s23 + $0xc] sm:$0xf]
    %v1086 = vld [vmem:[%s25] sm:$0x1]
    %v1091 = vrot.slane %v1040, 7
    %v1092 = vrot.slane %v1041, 7
    %v1093 = vsel %vm560, %v1091, %v1092
    %v1094 = vrot.slane %v1042, 7
    %v1095 = vrot.slane %v1043, 7
    %v1096 = vsel %vm560, %v1094, %v1095
    %v1101 = vsel %vm560, 0.0, %v1091
    %v1102 = vsel %vm560, 0.0, %v1094
    %v1103 = vrot.slane %v1040, 1
    %v1104 = vrot.slane %v1041, 1
    %v1105 = vsel %vm585, %v1103, %v1104
    %v1106 = vrot.slane %v1042, 1
    %v1107 = vrot.slane %v1043, 1
    %v1108 = vsel %vm585, %v1106, %v1107
    %v1111 = vsel %vm585, %v1104, 0.0
    %v1112 = vsel %vm585, %v1107, 0.0
    %1113 = vrot.lane.b32.xlu0 %v1040, 32
    %v1114 = vpop.permute.xlu0 %1113
    %1115 = vrot.lane.b32.xlu0 %v1041, 32
    %v1116 = vpop.permute.xlu0 %1115
    %1117 = vrot.lane.b32.xlu0 %v1042, 32
    %v1118 = vpop.permute.xlu0 %1117
    %1119 = vrot.lane.b32.xlu0 %v1043, 32
    %v1120 = vpop.permute.xlu0 %1119
    %1127 = vrot.lane.b32.xlu0 %v1105, 64
    %v1128 = vpop.permute.xlu0 %1127
    %1129 = vrot.lane.b32.xlu0 %v1111, 64
    %v1130 = vpop.permute.xlu0 %1129
    %1131 = vrot.lane.b32.xlu0 %v1108, 64
    %v1132 = vpop.permute.xlu0 %1131
    %1133 = vrot.lane.b32.xlu0 %v1112, 64
    %v1134 = vpop.permute.xlu0 %1133
    %v1139 = vsel %vm838, %v1101, %v1114
    %v1140 = vsel %vm838, %v1093, %v1116
    %v1141 = vsel %vm838, %v1102, %v1118
    %v1142 = vsel %vm838, %v1096, %v1120
    %v1143 = vsel %vm847, %v1139, %v1128
    %v1144 = vsel %vm847, %v1140, %v1130
    %v1145 = vsel %vm847, %v1141, %v1132
    %v1146 = vsel %vm847, %v1142, %v1134
    %v1147 = vpack.c.bf16 %v1144, %v1143
    %v1148 = vpack.c.bf16 %v1146, %v1145
    %v1150 = vperm.slane %v1056, 0
    %v1164 = vunpack.c.l.b16 %v1044
    %v1165 = vunpack.c.l.b16 %v1045
    %v1166 = vunpack.c.l.b16 %v1046
    %v1167 = vunpack.c.l.b16 %v1047
    %v1168 = vunpack.c.l.b16 %v1048
    %v1169 = vunpack.c.l.b16 %v1049
    %v1170 = vunpack.c.l.b16 %v1050
    %v1171 = vunpack.c.l.b16 %v1051
    %v1172 = vunpack.c.l.b16 %v1052
    %v1173 = vunpack.c.l.b16 %v1053
    %v1174 = vunpack.c.l.b16 %v1054
    %v1175 = vunpack.c.l.b16 %v1055
    %v1176 = vpack.c.b16 %v1165, %v1164
    %v1177 = vpack.c.b16 %v1167, %v1166
    %v1178 = vpack.c.b16 %v1169, %v1168
    %v1179 = vpack.c.b16 %v1171, %v1170
    %v1180 = vpack.c.b16 %v1173, %v1172
    %v1181 = vpack.c.b16 %v1175, %v1174
    %v1189 = vsel %vm899, %v1147, 0
    %v1192 = vsel %vm899, %v1148, 0
    %1194 = vmatpush.bf16.msra.mxu0 0
    %1195 = vmatpush.bf16.msra.mxu0 0
    %1196 = vmatpush.bf16.msra.mxu0 %v1181
    %1197 = vmatpush.bf16.msra.mxu0 %v1180
    %1198 = vmatpush.bf16.msra.mxu0 %v1179
    %1199 = vmatpush.bf16.msra.mxu0 %v1178
    %1200 = vmatpush.bf16.msra.mxu0 %v1177
    %1201 = vmatpush.bf16.msra.mxu0 %v1176
    %1202 = vmatmul.bf16.gmra.mxu0 %v1189
    %v1203 = vpop.f32.mrf.mxu0
    %v1204 = vadd.f32 %v1150, %v1203
    %v1205 = vpop.f32.mrf.mxu0
    %v1206 = vadd.f32 %v1150, %v1205
    %1207 = vmatmul.bf16.gmra.mxu0 %v1192
    %v1208 = vpop.f32.mrf.mxu0
    %v1209 = vadd.f32 %v1150, %v1208
    %v1210 = vpop.f32.mrf.mxu0
    %v1211 = vadd.f32 %v1150, %v1210
    %1212 = vdwg.mxu0
    %v1213 = vmax.f32 %v1204, 0.0
    %v1214 = vmax.f32 %v1206, 0.0
    %v1215 = vmax.f32 %v1209, 0.0
    %v1216 = vmax.f32 %v1211, 0.0
    %v1221 = vrot.slane %v1213, 7
    %v1222 = vrot.slane %v1214, 7
    %v1223 = vsel %vm560, %v1221, %v1222
    %v1224 = vrot.slane %v1215, 7
    %v1225 = vrot.slane %v1216, 7
    %v1226 = vsel %vm560, %v1224, %v1225
    %v1231 = vsel %vm560, 0.0, %v1221
    %v1232 = vsel %vm560, 0.0, %v1224
    %v1233 = vrot.slane %v1213, 1
    %v1234 = vrot.slane %v1214, 1
    %v1235 = vsel %vm585, %v1233, %v1234
    %v1236 = vrot.slane %v1215, 1
    %v1237 = vrot.slane %v1216, 1
    %v1238 = vsel %vm585, %v1236, %v1237
    %v1243 = vsel %vm585, %v1234, 0.0
    %v1244 = vsel %vm585, %v1237, 0.0
    %1245 = vrot.lane.b32.xlu0 %v1213, 64
    %v1246 = vpop.permute.xlu0 %1245
    %1247 = vrot.lane.b32.xlu0 %v1214, 64
    %v1248 = vpop.permute.xlu0 %1247
    %1249 = vrot.lane.b32.xlu0 %v1215, 64
    %v1250 = vpop.permute.xlu0 %1249
    %1251 = vrot.lane.b32.xlu0 %v1216, 64
    %v1252 = vpop.permute.xlu0 %1251
    %v1257 = vsel %vm847, %v1231, %v1246
    %v1258 = vsel %vm847, %v1223, %v1248
    %v1259 = vsel %vm847, %v1232, %v1250
    %v1260 = vsel %vm847, %v1226, %v1252
    %v1261 = vpack.c.bf16 %v1258, %v1257
    %v1262 = vpack.c.bf16 %v1243, %v1235
    %v1263 = vpack.c.bf16 %v1260, %v1259
    %v1264 = vpack.c.bf16 %v1244, %v1238
    %v1266 = vperm.slane %v1081, 0
    %v1292 = vunpack.c.l.b16 %v1057
    %v1293 = vunpack.c.l.b16 %v1058
    %v1294 = vunpack.c.l.b16 %v1059
    %v1295 = vunpack.c.l.b16 %v1060
    %v1296 = vunpack.c.l.b16 %v1061
    %v1297 = vunpack.c.l.b16 %v1062
    %v1298 = vunpack.c.l.b16 %v1063
    %v1299 = vunpack.c.l.b16 %v1064
    %v1300 = vunpack.c.l.b16 %v1065
    %v1301 = vunpack.c.l.b16 %v1066
    %v1302 = vunpack.c.l.b16 %v1067
    %v1303 = vunpack.c.l.b16 %v1068
    %v1304 = vunpack.c.l.b16 %v1069
    %v1305 = vunpack.c.l.b16 %v1070
    %v1306 = vunpack.c.l.b16 %v1071
    %v1307 = vunpack.c.l.b16 %v1072
    %v1308 = vunpack.c.l.b16 %v1073
    %v1309 = vunpack.c.l.b16 %v1074
    %v1310 = vunpack.c.l.b16 %v1075
    %v1311 = vunpack.c.l.b16 %v1076
    %v1312 = vunpack.c.l.b16 %v1077
    %v1313 = vunpack.c.l.b16 %v1078
    %v1314 = vunpack.c.l.b16 %v1079
    %v1315 = vunpack.c.l.b16 %v1080
    %v1316 = vpack.c.b16 %v1293, %v1292
    %v1317 = vpack.c.b16 %v1295, %v1294
    %v1318 = vpack.c.b16 %v1297, %v1296
    %v1319 = vpack.c.b16 %v1299, %v1298
    %v1320 = vpack.c.b16 %v1301, %v1300
    %v1321 = vpack.c.b16 %v1303, %v1302
    %v1322 = vpack.c.b16 %v1305, %v1304
    %v1323 = vpack.c.b16 %v1307, %v1306
    %v1324 = vpack.c.b16 %v1309, %v1308
    %v1325 = vpack.c.b16 %v1311, %v1310
    %v1326 = vpack.c.b16 %v1313, %v1312
    %v1327 = vpack.c.b16 %v1315, %v1314
    %v1341 = vsel %vm847, %v1262, 0
    %v1344 = vsel %vm847, %v1264, 0
    %1346 = vmatpush.bf16.msra.mxu0 %v1323
    %1347 = vmatpush.bf16.msra.mxu0 %v1322
    %1348 = vmatpush.bf16.msra.mxu0 %v1321
    %1349 = vmatpush.bf16.msra.mxu0 %v1320
    %1350 = vmatpush.bf16.msra.mxu0 %v1319
    %1351 = vmatpush.bf16.msra.mxu0 %v1318
    %1352 = vmatpush.bf16.msra.mxu0 %v1317
    %1353 = vmatpush.bf16.msra.mxu0 %v1316
    %1354 = vmatmul.bf16.gmra.mxu0 %v1261
    %v1355 = vpop.f32.mrf.mxu0
    %v1356 = vadd.f32 %v1266, %v1355
    %v1357 = vpop.f32.mrf.mxu0
    %v1358 = vadd.f32 %v1266, %v1357
    %1359 = vmatmul.bf16.gmra.mxu0 %v1263
    %v1360 = vpop.f32.mrf.mxu0
    %v1361 = vadd.f32 %v1266, %v1360
    %v1362 = vpop.f32.mrf.mxu0
    %v1363 = vadd.f32 %v1266, %v1362
    %1364 = vdwg.mxu0
    %1365 = vmatpush.bf16.msra.mxu0 0
    %1366 = vmatpush.bf16.msra.mxu0 0
    %1367 = vmatpush.bf16.msra.mxu0 0
    %1368 = vmatpush.bf16.msra.mxu0 0
    %1369 = vmatpush.bf16.msra.mxu0 %v1327
    %1370 = vmatpush.bf16.msra.mxu0 %v1326
    %1371 = vmatpush.bf16.msra.mxu0 %v1325
    %1372 = vmatpush.bf16.msra.mxu0 %v1324
    %1373 = vmatmul.bf16.gmra.mxu0 %v1341
    %v1374 = vpop.f32.mrf.mxu0
    %v1375 = vadd.f32 %v1356, %v1374
    %v1376 = vpop.f32.mrf.mxu0
    %v1377 = vadd.f32 %v1358, %v1376
    %1378 = vmatmul.bf16.gmra.mxu0 %v1344
    %v1379 = vpop.f32.mrf.mxu0
    %v1380 = vadd.f32 %v1361, %v1379
    %v1381 = vpop.f32.mrf.mxu0
    %v1382 = vadd.f32 %v1363, %v1381
    %1383 = vdwg.mxu0
    %v1384 = vmax.f32 %v1375, 0.0
    %v1385 = vmax.f32 %v1377, 0.0
    %v1386 = vmax.f32 %v1380, 0.0
    %v1387 = vmax.f32 %v1382, 0.0
    %v1388 = vpack.c.bf16 %v1041, %v1040
    %v1389 = vpack.c.bf16 %v1043, %v1042
    %v1391 = vperm.slane %v1086, 0
    %v1397 = vunpack.c.l.b16 %v1082
    %v1398 = vunpack.c.l.b16 %v1083
    %v1399 = vunpack.c.l.b16 %v1084
    %v1400 = vunpack.c.l.b16 %v1085
    %v1401 = vpack.c.b16 %v1398, %v1397
    %v1402 = vpack.c.b16 %v1400, %v1399
    %v1406 = vsel %vm838, %v1388, 0
    %v1409 = vsel %vm838, %v1389, 0
    %1411 = vmatpush.bf16.msra.mxu0 0
    %1412 = vmatpush.bf16.msra.mxu0 0
    %1413 = vmatpush.bf16.msra.mxu0 0
    %1414 = vmatpush.bf16.msra.mxu0 0
    %1415 = vmatpush.bf16.msra.mxu0 0
    %1416 = vmatpush.bf16.msra.mxu0 0
    %1417 = vmatpush.bf16.msra.mxu0 %v1402
    %1418 = vmatpush.bf16.msra.mxu0 %v1401
    %1419 = vmatmul.bf16.gmra.mxu0 %v1406
    %v1420 = vpop.f32.mrf.mxu0
    %v1421 = vadd.f32 %v1391, %v1420
    %v1422 = vpop.f32.mrf.mxu0
    %v1423 = vadd.f32 %v1391, %v1422
    %1424 = vmatmul.bf16.gmra.mxu0 %v1409
    %v1425 = vpop.f32.mrf.mxu0
    %v1426 = vadd.f32 %v1391, %v1425
    %v1427 = vpop.f32.mrf.mxu0
    %v1428 = vadd.f32 %v1391, %v1427
    %1429 = vdwg.mxu0
    %v1430 = vadd.f32 %v1384, %v1421
    %v1431 = vadd.f32 %v1385, %v1423
    %v1432 = vadd.f32 %v1386, %v1426
    %v1433 = vadd.f32 %v1387, %v1428
    %v1434 = vmax.f32 %v1430, 0.0
    %v1435 = vmax.f32 %v1431, 0.0
    %v1436 = vmax.f32 %v1432, 0.0
    %v1437 = vmax.f32 %v1433, 0.0
    %1438 = vst.msk [vmem:[#allocation3] sm:$0xff] %vm847, %v1434
    %1439 = vst.msk [vmem:[#allocation3 + $0x8] sm:$0xff] %vm847, %v1435
    %1440 = vst.msk [vmem:[#allocation3 + $0x10] sm:$0xff] %vm847, %v1436
    %1441 = vst.msk [vmem:[#allocation3 + $0x18] sm:$0xff] %vm847, %v1437
    %v1442 = vld [vmem:[#allocation3] ss:$2 sm:$0xff]
    %s1443 = scalar_lea.vmem [#allocation3], 16
    %v1444 = vld [vmem:[%s1443] ss:$2 sm:$0xff]
    %s1445 = scalar_lea.vmem [#allocation3], 1
    %v1446 = vld [vmem:[%s1445] ss:$2 sm:$0xff]
    %s1447 = scalar_lea.vmem [#allocation3], 17
    %v1448 = vld [vmem:[%s1447] ss:$2 sm:$0xff]
    %v1449 = vmax.f32 %v1442, %v1446
    %v1450 = vmax.f32 %v1444, %v1448
    %v1451 = vld [vmem:[%s27] sm:$0xf]
    %v1452 = vld [vmem:[%s27 + $0x4] sm:$0xf]
    %v1453 = vld [vmem:[%s27 + $0x8] sm:$0xf]
    %v1454 = vld [vmem:[%s27 + $0xc] sm:$0xf]
    %v1455 = vld [vmem:[%s27 + $0x10] sm:$0xf]
    %v1456 = vld [vmem:[%s27 + $0x14] sm:$0xf]
    %v1457 = vld [vmem:[%s27 + $0x18] sm:$0xf]
    %v1458 = vld [vmem:[%s27 + $0x1c] sm:$0xf]
    %v1459 = vld [vmem:[%s27 + $0x20] sm:$0xf]
    %v1460 = vld [vmem:[%s27 + $0x24] sm:$0xf]
    %v1461 = vld [vmem:[%s27 + $0x28] sm:$0xf]
    %v1462 = vld [vmem:[%s27 + $0x2c] sm:$0xf]
    %v1463 = vld [vmem:[%s27 + $0x30] sm:$0xf]
    %v1464 = vld [vmem:[%s27 + $0x34] sm:$0xf]
    %v1465 = vld [vmem:[%s27 + $0x38] sm:$0xf]
    %v1466 = vld [vmem:[%s27 + $0x3c] sm:$0xf]
    %v1467 = vld [vmem:[%s27 + $0x40] sm:$0xf]
    %v1468 = vld [vmem:[%s27 + $0x44] sm:$0xf]
    %v1469 = vld [vmem:[%s27 + $0x48] sm:$0xf]
    %v1470 = vld [vmem:[%s27 + $0x4c] sm:$0xf]
    %v1471 = vld [vmem:[%s27 + $0x50] sm:$0xf]
    %v1472 = vld [vmem:[%s27 + $0x54] sm:$0xf]
    %v1473 = vld [vmem:[%s27 + $0x58] sm:$0xf]
    %v1474 = vld [vmem:[%s27 + $0x5c] sm:$0xf]
    %v1475 = vld [vmem:[%s29] sm:$0x1]
    %v1476 = vld [vmem:[%s31] sm:$0xf]
    %v1477 = vld [vmem:[%s31 + $0x4] sm:$0xf]
    %v1478 = vld [vmem:[%s31 + $0x8] sm:$0xf]
    %v1479 = vld [vmem:[%s31 + $0xc] sm:$0xf]
    %v1480 = vld [vmem:[%s31 + $0x10] sm:$0xf]
    %v1481 = vld [vmem:[%s31 + $0x14] sm:$0xf]
    %v1482 = vld [vmem:[%s31 + $0x18] sm:$0xf]
    %v1483 = vld [vmem:[%s31 + $0x1c] sm:$0xf]
    %v1484 = vld [vmem:[%s31 + $0x20] sm:$0xf]
    %v1485 = vld [vmem:[%s31 + $0x24] sm:$0xf]
    %v1486 = vld [vmem:[%s31 + $0x28] sm:$0xf]
    %v1487 = vld [vmem:[%s31 + $0x2c] sm:$0xf]
    %v1488 = vld [vmem:[%s31 + $0x30] sm:$0xf]
    %v1489 = vld [vmem:[%s31 + $0x34] sm:$0xf]
    %v1490 = vld [vmem:[%s31 + $0x38] sm:$0xf]
    %v1491 = vld [vmem:[%s31 + $0x3c] sm:$0xf]
    %v1492 = vld [vmem:[%s31 + $0x40] sm:$0xf]
    %v1493 = vld [vmem:[%s31 + $0x44] sm:$0xf]
    %v1494 = vld [vmem:[%s31 + $0x48] sm:$0xf]
    %v1495 = vld [vmem:[%s31 + $0x4c] sm:$0xf]
    %v1496 = vld [vmem:[%s31 + $0x50] sm:$0xf]
    %v1497 = vld [vmem:[%s31 + $0x54] sm:$0xf]
    %v1498 = vld [vmem:[%s31 + $0x58] sm:$0xf]
    %v1499 = vld [vmem:[%s31 + $0x5c] sm:$0xf]
    %v1500 = vld [vmem:[%s31 + $0x60] sm:$0xf]
    %v1501 = vld [vmem:[%s31 + $0x64] sm:$0xf]
    %v1502 = vld [vmem:[%s31 + $0x68] sm:$0xf]
    %v1503 = vld [vmem:[%s31 + $0x6c] sm:$0xf]
    %v1504 = vld [vmem:[%s31 + $0x70] sm:$0xf]
    %v1505 = vld [vmem:[%s31 + $0x74] sm:$0xf]
    %v1506 = vld [vmem:[%s31 + $0x78] sm:$0xf]
    %v1507 = vld [vmem:[%s31 + $0x7c] sm:$0xf]
    %v1508 = vld [vmem:[%s31 + $0x80] sm:$0xf]
    %v1509 = vld [vmem:[%s31 + $0x84] sm:$0xf]
    %v1510 = vld [vmem:[%s31 + $0x88] sm:$0xf]
    %v1511 = vld [vmem:[%s31 + $0x8c] sm:$0xf]
    %v1512 = vld [vmem:[%s31 + $0x90] sm:$0xf]
    %v1513 = vld [vmem:[%s31 + $0x94] sm:$0xf]
    %v1514 = vld [vmem:[%s31 + $0x98] sm:$0xf]
    %v1515 = vld [vmem:[%s31 + $0x9c] sm:$0xf]
    %v1516 = vld [vmem:[%s31 + $0xa0] sm:$0xf]
    %v1517 = vld [vmem:[%s31 + $0xa4] sm:$0xf]
    %v1518 = vld [vmem:[%s31 + $0xa8] sm:$0xf]
    %v1519 = vld [vmem:[%s31 + $0xac] sm:$0xf]
    %v1520 = vld [vmem:[%s31 + $0xb0] sm:$0xf]
    %v1521 = vld [vmem:[%s31 + $0xb4] sm:$0xf]
    %v1522 = vld [vmem:[%s31 + $0xb8] sm:$0xf]
    %v1523 = vld [vmem:[%s31 + $0xbc] sm:$0xf]
    %v1524 = vld [vmem:[#allocation8] sm:$0x1]
    %v1525 = vld [vmem:[%s35] sm:$0xf]
    %v1526 = vld [vmem:[%s35 + $0x4] sm:$0xf]
    %v1527 = vld [vmem:[%s35 + $0x8] sm:$0xf]
    %v1528 = vld [vmem:[%s35 + $0xc] sm:$0xf]
    %v1529 = vld [vmem:[%s35 + $0x10] sm:$0xf]
    %v1530 = vld [vmem:[%s35 + $0x14] sm:$0xf]
    %v1531 = vld [vmem:[%s35 + $0x18] sm:$0xf]
    %v1532 = vld [vmem:[%s35 + $0x1c] sm:$0xf]
    %v1533 = vld [vmem:[#allocation10] sm:$0x1]
    %v1536 = vrot.slane %v1449, 7
    %v1537 = vrot.slane %v1450, 7
    %v1540 = vsel %vm560, 0.0, %v1536
    %v1541 = vsel %vm560, 0.0, %v1537
    %v1542 = vrot.slane %v1449, 1
    %v1543 = vrot.slane %v1450, 1
    %v1546 = vsel %vm585, %v1542, 0.0
    %v1547 = vsel %vm585, %v1543, 0.0
    %1548 = vrot.lane.b32.xlu0 %v1449, 64
    %v1549 = vpop.permute.xlu0 %1548
    %1550 = vrot.lane.b32.xlu0 %v1450, 64
    %v1551 = vpop.permute.xlu0 %1550
    %v1554 = vsel %vm847, %v1540, %v1549
    %v1555 = vsel %vm847, %v1541, %v1551
    %v1556 = vpack.c.bf16 %v1555, %v1554
    %v1557 = vpack.c.bf16 %v1547, %v1546
    %v1559 = vperm.slane %v1475, 0
    %v1585 = vunpack.c.l.b16 %v1451
    %v1586 = vunpack.c.l.b16 %v1452
    %v1587 = vunpack.c.l.b16 %v1453
    %v1588 = vunpack.c.l.b16 %v1454
    %v1589 = vunpack.c.l.b16 %v1455
    %v1590 = vunpack.c.l.b16 %v1456
    %v1591 = vunpack.c.l.b16 %v1457
    %v1592 = vunpack.c.l.b16 %v1458
    %v1593 = vunpack.c.l.b16 %v1459
    %v1594 = vunpack.c.l.b16 %v1460
    %v1595 = vunpack.c.l.b16 %v1461
    %v1596 = vunpack.c.l.b16 %v1462
    %v1597 = vunpack.c.l.b16 %v1463
    %v1598 = vunpack.c.l.b16 %v1464
    %v1599 = vunpack.c.l.b16 %v1465
    %v1600 = vunpack.c.l.b16 %v1466
    %v1601 = vunpack.c.l.b16 %v1467
    %v1602 = vunpack.c.l.b16 %v1468
    %v1603 = vunpack.c.l.b16 %v1469
    %v1604 = vunpack.c.l.b16 %v1470
    %v1605 = vunpack.c.l.b16 %v1471
    %v1606 = vunpack.c.l.b16 %v1472
    %v1607 = vunpack.c.l.b16 %v1473
    %v1608 = vunpack.c.l.b16 %v1474
    %v1609 = vpack.c.b16 %v1586, %v1585
    %v1610 = vpack.c.b16 %v1588, %v1587
    %v1611 = vpack.c.b16 %v1590, %v1589
    %v1612 = vpack.c.b16 %v1592, %v1591
    %v1613 = vpack.c.b16 %v1594, %v1593
    %v1614 = vpack.c.b16 %v1596, %v1595
    %v1615 = vpack.c.b16 %v1598, %v1597
    %v1616 = vpack.c.b16 %v1600, %v1599
    %v1617 = vpack.c.b16 %v1602, %v1601
    %v1618 = vpack.c.b16 %v1604, %v1603
    %v1619 = vpack.c.b16 %v1606, %v1605
    %v1620 = vpack.c.b16 %v1608, %v1607
    %v1634 = vsel %vm847, %v1557, 0
    %1636 = vmatpush.bf16.msra.mxu0 %v1616
    %1637 = vmatpush.bf16.msra.mxu0 %v1615
    %1638 = vmatpush.bf16.msra.mxu0 %v1614
    %1639 = vmatpush.bf16.msra.mxu0 %v1613
    %1640 = vmatpush.bf16.msra.mxu0 %v1612
    %1641 = vmatpush.bf16.msra.mxu0 %v1611
    %1642 = vmatpush.bf16.msra.mxu0 %v1610
    %1643 = vmatpush.bf16.msra.mxu0 %v1609
    %1644 = vmatmul.bf16.gmra.mxu0 %v1556
    %v1645 = vpop.f32.mrf.mxu0
    %v1646 = vadd.f32 %v1559, %v1645
    %v1647 = vpop.f32.mrf.mxu0
    %v1648 = vadd.f32 %v1559, %v1647
    %1649 = vdwg.mxu0
    %1650 = vmatpush.bf16.msra.mxu0 0
    %1651 = vmatpush.bf16.msra.mxu0 0
    %1652 = vmatpush.bf16.msra.mxu0 0
    %1653 = vmatpush.bf16.msra.mxu0 0
    %1654 = vmatpush.bf16.msra.mxu0 %v1620
    %1655 = vmatpush.bf16.msra.mxu0 %v1619
    %1656 = vmatpush.bf16.msra.mxu0 %v1618
    %1657 = vmatpush.bf16.msra.mxu0 %v1617
    %1658 = vmatmul.bf16.gmra.mxu0 %v1634
    %v1659 = vpop.f32.mrf.mxu0
    %v1660 = vadd.f32 %v1646, %v1659
    %v1661 = vpop.f32.mrf.mxu0
    %v1662 = vadd.f32 %v1648, %v1661
    %1663 = vdwg.mxu0
    %v1664 = vmax.f32 %v1660, 0.0
    %v1665 = vmax.f32 %v1662, 0.0
    %v1668 = vrot.slane %v1664, 7
    %v1669 = vrot.slane %v1665, 7
    %v1672 = vsel %vm560, 0.0, %v1668
    %v1673 = vsel %vm560, 0.0, %v1669
    %v1674 = vrot.slane %v1664, 1
    %v1675 = vrot.slane %v1665, 1
    %v1678 = vsel %vm585, %v1674, 0.0
    %v1679 = vsel %vm585, %v1675, 0.0
    %v1680 = vpack.c.bf16 %v1673, %v1672
    %v1681 = vpack.c.bf16 %v1665, %v1664
    %v1682 = vpack.c.bf16 %v1679, %v1678
    %v1684 = vperm.slane %v1524, 0
    %v1734 = vunpack.c.l.b16 %v1476
    %v1735 = vunpack.c.l.b16 %v1477
    %v1736 = vunpack.c.l.b16 %v1478
    %v1737 = vunpack.c.l.b16 %v1479
    %v1738 = vunpack.c.l.b16 %v1480
    %v1739 = vunpack.c.l.b16 %v1481
    %v1740 = vunpack.c.l.b16 %v1482
    %v1741 = vunpack.c.l.b16 %v1483
    %v1742 = vunpack.c.l.b16 %v1484
    %v1743 = vunpack.c.l.b16 %v1485
    %v1744 = vunpack.c.l.b16 %v1486
    %v1745 = vunpack.c.l.b16 %v1487
    %v1746 = vunpack.c.l.b16 %v1488
    %v1747 = vunpack.c.l.b16 %v1489
    %v1748 = vunpack.c.l.b16 %v1490
    %v1749 = vunpack.c.l.b16 %v1491
    %v1750 = vunpack.c.l.b16 %v1492
    %v1751 = vunpack.c.l.b16 %v1493
    %v1752 = vunpack.c.l.b16 %v1494
    %v1753 = vunpack.c.l.b16 %v1495
    %v1754 = vunpack.c.l.b16 %v1496
    %v1755 = vunpack.c.l.b16 %v1497
    %v1756 = vunpack.c.l.b16 %v1498
    %v1757 = vunpack.c.l.b16 %v1499
    %v1758 = vunpack.c.l.b16 %v1500
    %v1759 = vunpack.c.l.b16 %v1501
    %v1760 = vunpack.c.l.b16 %v1502
    %v1761 = vunpack.c.l.b16 %v1503
    %v1762 = vunpack.c.l.b16 %v1504
    %v1763 = vunpack.c.l.b16 %v1505
    %v1764 = vunpack.c.l.b16 %v1506
    %v1765 = vunpack.c.l.b16 %v1507
    %v1766 = vunpack.c.l.b16 %v1508
    %v1767 = vunpack.c.l.b16 %v1509
    %v1768 = vunpack.c.l.b16 %v1510
    %v1769 = vunpack.c.l.b16 %v1511
    %v1770 = vunpack.c.l.b16 %v1512
    %v1771 = vunpack.c.l.b16 %v1513
    %v1772 = vunpack.c.l.b16 %v1514
    %v1773 = vunpack.c.l.b16 %v1515
    %v1774 = vunpack.c.l.b16 %v1516
    %v1775 = vunpack.c.l.b16 %v1517
    %v1776 = vunpack.c.l.b16 %v1518
    %v1777 = vunpack.c.l.b16 %v1519
    %v1778 = vunpack.c.l.b16 %v1520
    %v1779 = vunpack.c.l.b16 %v1521
    %v1780 = vunpack.c.l.b16 %v1522
    %v1781 = vunpack.c.l.b16 %v1523
    %v1782 = vpack.c.b16 %v1735, %v1734
    %v1783 = vpack.c.b16 %v1737, %v1736
    %v1784 = vpack.c.b16 %v1739, %v1738
    %v1785 = vpack.c.b16 %v1741, %v1740
    %v1786 = vpack.c.b16 %v1743, %v1742
    %v1787 = vpack.c.b16 %v1745, %v1744
    %v1788 = vpack.c.b16 %v1747, %v1746
    %v1789 = vpack.c.b16 %v1749, %v1748
    %v1790 = vpack.c.b16 %v1751, %v1750
    %v1791 = vpack.c.b16 %v1753, %v1752
    %v1792 = vpack.c.b16 %v1755, %v1754
    %v1793 = vpack.c.b16 %v1757, %v1756
    %v1794 = vpack.c.b16 %v1759, %v1758
    %v1795 = vpack.c.b16 %v1761, %v1760
    %v1796 = vpack.c.b16 %v1763, %v1762
    %v1797 = vpack.c.b16 %v1765, %v1764
    %v1798 = vpack.c.b16 %v1767, %v1766
    %v1799 = vpack.c.b16 %v1769, %v1768
    %v1800 = vpack.c.b16 %v1771, %v1770
    %v1801 = vpack.c.b16 %v1773, %v1772
    %v1802 = vpack.c.b16 %v1775, %v1774
    %v1803 = vpack.c.b16 %v1777, %v1776
    %v1804 = vpack.c.b16 %v1779, %v1778
    %v1805 = vpack.c.b16 %v1781, %v1780
    %1830 = vmatpush.bf16.msra.mxu0 %v1789
    %1831 = vmatpush.bf16.msra.mxu0 %v1788
    %1832 = vmatpush.bf16.msra.mxu0 %v1787
    %1833 = vmatpush.bf16.msra.mxu0 %v1786
    %1834 = vmatpush.bf16.msra.mxu0 %v1785
    %1835 = vmatpush.bf16.msra.mxu0 %v1784
    %1836 = vmatpush.bf16.msra.mxu0 %v1783
    %1837 = vmatpush.bf16.msra.mxu0 %v1782
    %1838 = vmatmul.bf16.gmra.mxu0 %v1680
    %v1839 = vpop.f32.mrf.mxu0
    %v1840 = vadd.f32 %v1684, %v1839
    %v1841 = vpop.f32.mrf.mxu0
    %v1842 = vadd.f32 %v1684, %v1841
    %1843 = vdwg.mxu0
    %1844 = vmatpush.bf16.msra.mxu0 %v1797
    %1845 = vmatpush.bf16.msra.mxu0 %v1796
    %1846 = vmatpush.bf16.msra.mxu0 %v1795
    %1847 = vmatpush.bf16.msra.mxu0 %v1794
    %1848 = vmatpush.bf16.msra.mxu0 %v1793
    %1849 = vmatpush.bf16.msra.mxu0 %v1792
    %1850 = vmatpush.bf16.msra.mxu0 %v1791
    %1851 = vmatpush.bf16.msra.mxu0 %v1790
    %1852 = vmatmul.bf16.gmra.mxu0 %v1681
    %v1853 = vpop.f32.mrf.mxu0
    %v1854 = vadd.f32 %v1840, %v1853
    %v1855 = vpop.f32.mrf.mxu0
    %v1856 = vadd.f32 %v1842, %v1855
    %1857 = vdwg.mxu0
    %1858 = vmatpush.bf16.msra.mxu0 %v1805
    %1859 = vmatpush.bf16.msra.mxu0 %v1804
    %1860 = vmatpush.bf16.msra.mxu0 %v1803
    %1861 = vmatpush.bf16.msra.mxu0 %v1802
    %1862 = vmatpush.bf16.msra.mxu0 %v1801
    %1863 = vmatpush.bf16.msra.mxu0 %v1800
    %1864 = vmatpush.bf16.msra.mxu0 %v1799
    %1865 = vmatpush.bf16.msra.mxu0 %v1798
    %1866 = vmatmul.bf16.gmra.mxu0 %v1682
    %v1867 = vpop.f32.mrf.mxu0
    %v1868 = vadd.f32 %v1854, %v1867
    %v1869 = vpop.f32.mrf.mxu0
    %v1870 = vadd.f32 %v1856, %v1869
    %1871 = vdwg.mxu0
    %v1872 = vmax.f32 %v1868, 0.0
    %v1873 = vmax.f32 %v1870, 0.0
    %v1874 = vpack.c.bf16 %v1450, %v1449
    %v1876 = vperm.slane %v1533, 0
    %v1886 = vunpack.c.l.b16 %v1525
    %v1887 = vunpack.c.l.b16 %v1526
    %v1888 = vunpack.c.l.b16 %v1527
    %v1889 = vunpack.c.l.b16 %v1528
    %v1890 = vunpack.c.l.b16 %v1529
    %v1891 = vunpack.c.l.b16 %v1530
    %v1892 = vunpack.c.l.b16 %v1531
    %v1893 = vunpack.c.l.b16 %v1532
    %v1894 = vpack.c.b16 %v1887, %v1886
    %v1895 = vpack.c.b16 %v1889, %v1888
    %v1896 = vpack.c.b16 %v1891, %v1890
    %v1897 = vpack.c.b16 %v1893, %v1892
    %v1903 = vsel %vm847, %v1874, 0
    %1905 = vmatpush.bf16.msra.mxu0 0
    %1906 = vmatpush.bf16.msra.mxu0 0
    %1907 = vmatpush.bf16.msra.mxu0 0
    %1908 = vmatpush.bf16.msra.mxu0 0
    %1909 = vmatpush.bf16.msra.mxu0 %v1897
    %1910 = vmatpush.bf16.msra.mxu0 %v1896
    %1911 = vmatpush.bf16.msra.mxu0 %v1895
    %1912 = vmatpush.bf16.msra.mxu0 %v1894
    %1913 = vmatmul.bf16.gmra.mxu0 %v1903
    %v1914 = vpop.f32.mrf.mxu0
    %v1915 = vadd.f32 %v1876, %v1914
    %v1916 = vpop.f32.mrf.mxu0
    %v1917 = vadd.f32 %v1876, %v1916
    %1918 = vdwg.mxu0
    %v1919 = vadd.f32 %v1872, %v1915
    %v1920 = vadd.f32 %v1873, %v1917
    %v1921 = vmax.f32 %v1919, 0.0
    %v1922 = vmax.f32 %v1920, 0.0
    %1923 = vst [vmem:[#allocation4] sm:$0xff] %v1921
    %1924 = vst [vmem:[#allocation4 + $0x8] sm:$0xff] %v1922
    %v1925 = vld [vmem:[#allocation4] ss:$2 sm:$0xf]
    %s1926 = scalar_lea.vmem [#allocation4], 8
    %v1927 = vld [vmem:[%s1926] ss:$2 sm:$0xf]
    %s1928 = scalar_lea.vmem [#allocation4], 1
    %v1929 = vld [vmem:[%s1928] ss:$2 sm:$0xf]
    %s1930 = scalar_lea.vmem [#allocation4], 9
    %v1931 = vld [vmem:[%s1930] ss:$2 sm:$0xf]
    %v1932 = vmax.f32 %v1925, %v1929
    %v1933 = vmax.f32 %v1927, %v1931
    %v1934 = vld [vmem:[%s39] sm:$0xf]
    %v1935 = vld [vmem:[%s39 + $0x4] sm:$0xf]
    %v1936 = vld [vmem:[%s39 + $0x8] sm:$0xf]
    %v1937 = vld [vmem:[%s39 + $0xc] sm:$0xf]
    %v1938 = vld [vmem:[%s39 + $0x10] sm:$0xf]
    %v1939 = vld [vmem:[%s39 + $0x14] sm:$0xf]
    %v1940 = vld [vmem:[%s39 + $0x18] sm:$0xf]
    %v1941 = vld [vmem:[%s39 + $0x1c] sm:$0xf]
    %v1942 = vld [vmem:[%s39 + $0x20] sm:$0xf]
    %v1943 = vld [vmem:[%s39 + $0x24] sm:$0xf]
    %v1944 = vld [vmem:[%s39 + $0x28] sm:$0xf]
    %v1945 = vld [vmem:[%s39 + $0x2c] sm:$0xf]
    %v1946 = vld [vmem:[%s39 + $0x30] sm:$0xf]
    %v1947 = vld [vmem:[%s39 + $0x34] sm:$0xf]
    %v1948 = vld [vmem:[%s39 + $0x38] sm:$0xf]
    %v1949 = vld [vmem:[%s39 + $0x3c] sm:$0xf]
    %v1950 = vld [vmem:[%s39 + $0x40] sm:$0xf]
    %v1951 = vld [vmem:[%s39 + $0x44] sm:$0xf]
    %v1952 = vld [vmem:[%s39 + $0x48] sm:$0xf]
    %v1953 = vld [vmem:[%s39 + $0x4c] sm:$0xf]
    %v1954 = vld [vmem:[%s39 + $0x50] sm:$0xf]
    %v1955 = vld [vmem:[%s39 + $0x54] sm:$0xf]
    %v1956 = vld [vmem:[%s39 + $0x58] sm:$0xf]
    %v1957 = vld [vmem:[%s39 + $0x5c] sm:$0xf]
    %v1958 = vld [vmem:[%s39 + $0x60] sm:$0xf]
    %v1959 = vld [vmem:[%s39 + $0x64] sm:$0xf]
    %v1960 = vld [vmem:[%s39 + $0x68] sm:$0xf]
    %v1961 = vld [vmem:[%s39 + $0x6c] sm:$0xf]
    %v1962 = vld [vmem:[%s39 + $0x70] sm:$0xf]
    %v1963 = vld [vmem:[%s39 + $0x74] sm:$0xf]
    %v1964 = vld [vmem:[%s39 + $0x78] sm:$0xf]
    %v1965 = vld [vmem:[%s39 + $0x7c] sm:$0xf]
    %v1966 = vld [vmem:[%s39 + $0x80] sm:$0xf]
    %v1967 = vld [vmem:[%s39 + $0x84] sm:$0xf]
    %v1968 = vld [vmem:[%s39 + $0x88] sm:$0xf]
    %v1969 = vld [vmem:[%s39 + $0x8c] sm:$0xf]
    %v1970 = vld [vmem:[%s39 + $0x90] sm:$0xf]
    %v1971 = vld [vmem:[%s39 + $0x94] sm:$0xf]
    %v1972 = vld [vmem:[%s39 + $0x98] sm:$0xf]
    %v1973 = vld [vmem:[%s39 + $0x9c] sm:$0xf]
    %v1974 = vld [vmem:[%s39 + $0xa0] sm:$0xf]
    %v1975 = vld [vmem:[%s39 + $0xa4] sm:$0xf]
    %v1976 = vld [vmem:[%s39 + $0xa8] sm:$0xf]
    %v1977 = vld [vmem:[%s39 + $0xac] sm:$0xf]
    %v1978 = vld [vmem:[%s39 + $0xb0] sm:$0xf]
    %v1979 = vld [vmem:[%s39 + $0xb4] sm:$0xf]
    %v1980 = vld [vmem:[%s39 + $0xb8] sm:$0xf]
    %v1981 = vld [vmem:[%s39 + $0xbc] sm:$0xf]
    %v1982 = vld [vmem:[#allocation12] sm:$0x1]
    %v1983 = vld [vmem:[%s43] sm:$0xf]
    %v1984 = vld [vmem:[%s43 + $0x4] sm:$0xf]
    %v1985 = vld [vmem:[%s43 + $0x8] sm:$0xf]
    %v1986 = vld [vmem:[%s43 + $0xc] sm:$0xf]
    %v1987 = vld [vmem:[%s43 + $0x10] sm:$0xf]
    %v1988 = vld [vmem:[%s43 + $0x14] sm:$0xf]
    %v1989 = vld [vmem:[%s43 + $0x18] sm:$0xf]
    %v1990 = vld [vmem:[%s43 + $0x1c] sm:$0xf]
    %v1991 = vld [vmem:[%s43 + $0x20] sm:$0xf]
    %v1992 = vld [vmem:[%s43 + $0x24] sm:$0xf]
    %v1993 = vld [vmem:[%s43 + $0x28] sm:$0xf]
    %v1994 = vld [vmem:[%s43 + $0x2c] sm:$0xf]
    %v1995 = vld [vmem:[#allocation13] sm:$0x1]
    %v1996 = vld [vmem:[%s47] sm:$0xf]
    %v1997 = vld [vmem:[%s47 + $0x4] sm:$0xf]
    %v1998 = vld [vmem:[%s47 + $0x8] sm:$0xf]
    %v1999 = vld [vmem:[%s47 + $0xc] sm:$0xf]
    %v2000 = vld [vmem:[%s47 + $0x10] sm:$0xf]
    %v2001 = vld [vmem:[%s47 + $0x14] sm:$0xf]
    %v2002 = vld [vmem:[%s47 + $0x18] sm:$0xf]
    %v2003 = vld [vmem:[%s47 + $0x1c] sm:$0xf]
    %v2004 = vld [vmem:[%s47 + $0x20] sm:$0xf]
    %v2005 = vld [vmem:[%s47 + $0x24] sm:$0xf]
    %v2006 = vld [vmem:[%s47 + $0x28] sm:$0xf]
    %v2007 = vld [vmem:[%s47 + $0x2c] sm:$0xf]
    %v2008 = vld [vmem:[%s47 + $0x30] sm:$0xf]
    %v2009 = vld [vmem:[%s47 + $0x34] sm:$0xf]
    %v2010 = vld [vmem:[%s47 + $0x38] sm:$0xf]
    %v2011 = vld [vmem:[%s47 + $0x3c] sm:$0xf]
    %v2012 = vld [vmem:[#allocation15] sm:$0x1]
    %v2015 = vrot.slane %v1932, 7
    %v2016 = vrot.slane %v1933, 7
    %v2019 = vsel %vm560, 0.0, %v2015
    %v2020 = vsel %vm560, 0.0, %v2016
    %v2021 = vrot.slane %v1932, 1
    %v2022 = vrot.slane %v1933, 1
    %vm2025 = vcmask 1042432
    %v2026 = vsel %vm2025, %v2021, 0.0
    %v2027 = vsel %vm2025, %v2022, 0.0
    %v2032 = vrot.slane %v1932, 4
    %v2033 = vrot.slane %v1933, 4
    %vm2034 = vcmask 1043456
    %v2035 = vsel %vm2034, %v2019, %v2032
    %v2036 = vsel %vm2034, %v2020, %v2033
    %2037 = vst [vmem:[#allocation1] ss:$2 sm:$0xff] %v2035
    %s2038 = scalar_lea.vmem [#allocation1], 1
    %2039 = vst [vmem:[%s2038] ss:$2 sm:$0xff] %v2036
    %s2040 = scalar_lea.vmem [#allocation1], 16
    %2041 = vst [vmem:[%s2040] ss:$2 sm:$0xff] %v2026
    %s2042 = scalar_lea.vmem [#allocation1], 17
    %2043 = vst [vmem:[%s2042] ss:$2 sm:$0xff] %v2027
    %v2044 = vld.sshfl [vmem:[#allocation1] sm:$0xff pattern:$0x75316420]
    %v2045 = vld.sshfl [vmem:[#allocation1 + $0x8] sm:$0xff pattern:$0x75316420]
    %v2046 = vld.sshfl [vmem:[#allocation1 + $0x10] sm:$0xff pattern:$0x75316420]
    %v2050 = vpack.c.bf16 %v2044, %v2044
    %v2051 = vpack.c.bf16 %v2045, %v2045
    %v2052 = vpack.c.bf16 %v2046, %v2046
    %v2054 = vperm.slane %v1982, 0
    %v2104 = vunpack.c.l.b16 %v1934
    %v2105 = vunpack.c.l.b16 %v1935
    %v2106 = vunpack.c.l.b16 %v1936
    %v2107 = vunpack.c.l.b16 %v1937
    %v2108 = vunpack.c.l.b16 %v1938
    %v2109 = vunpack.c.l.b16 %v1939
    %v2110 = vunpack.c.l.b16 %v1940
    %v2111 = vunpack.c.l.b16 %v1941
    %v2112 = vunpack.c.l.b16 %v1942
    %v2113 = vunpack.c.l.b16 %v1943
    %v2114 = vunpack.c.l.b16 %v1944
    %v2115 = vunpack.c.l.b16 %v1945
    %v2116 = vunpack.c.l.b16 %v1946
    %v2117 = vunpack.c.l.b16 %v1947
    %v2118 = vunpack.c.l.b16 %v1948
    %v2119 = vunpack.c.l.b16 %v1949
    %v2120 = vunpack.c.l.b16 %v1950
    %v2121 = vunpack.c.l.b16 %v1951
    %v2122 = vunpack.c.l.b16 %v1952
    %v2123 = vunpack.c.l.b16 %v1953
    %v2124 = vunpack.c.l.b16 %v1954
    %v2125 = vunpack.c.l.b16 %v1955
    %v2126 = vunpack.c.l.b16 %v1956
    %v2127 = vunpack.c.l.b16 %v1957
    %v2128 = vunpack.c.l.b16 %v1958
    %v2129 = vunpack.c.l.b16 %v1959
    %v2130 = vunpack.c.l.b16 %v1960
    %v2131 = vunpack.c.l.b16 %v1961
    %v2132 = vunpack.c.l.b16 %v1962
    %v2133 = vunpack.c.l.b16 %v1963
    %v2134 = vunpack.c.l.b16 %v1964
    %v2135 = vunpack.c.l.b16 %v1965
    %v2136 = vunpack.c.l.b16 %v1966
    %v2137 = vunpack.c.l.b16 %v1967
    %v2138 = vunpack.c.l.b16 %v1968
    %v2139 = vunpack.c.l.b16 %v1969
    %v2140 = vunpack.c.l.b16 %v1970
    %v2141 = vunpack.c.l.b16 %v1971
    %v2142 = vunpack.c.l.b16 %v1972
    %v2143 = vunpack.c.l.b16 %v1973
    %v2144 = vunpack.c.l.b16 %v1974
    %v2145 = vunpack.c.l.b16 %v1975
    %v2146 = vunpack.c.l.b16 %v1976
    %v2147 = vunpack.c.l.b16 %v1977
    %v2148 = vunpack.c.l.b16 %v1978
    %v2149 = vunpack.c.l.b16 %v1979
    %v2150 = vunpack.c.l.b16 %v1980
    %v2151 = vunpack.c.l.b16 %v1981
    %v2152 = vpack.c.b16 %v2105, %v2104
    %v2153 = vpack.c.b16 %v2107, %v2106
    %v2154 = vpack.c.b16 %v2109, %v2108
    %v2155 = vpack.c.b16 %v2111, %v2110
    %v2156 = vpack.c.b16 %v2113, %v2112
    %v2157 = vpack.c.b16 %v2115, %v2114
    %v2158 = vpack.c.b16 %v2117, %v2116
    %v2159 = vpack.c.b16 %v2119, %v2118
    %v2160 = vpack.c.b16 %v2121, %v2120
    %v2161 = vpack.c.b16 %v2123, %v2122
    %v2162 = vpack.c.b16 %v2125, %v2124
    %v2163 = vpack.c.b16 %v2127, %v2126
    %v2164 = vpack.c.b16 %v2129, %v2128
    %v2165 = vpack.c.b16 %v2131, %v2130
    %v2166 = vpack.c.b16 %v2133, %v2132
    %v2167 = vpack.c.b16 %v2135, %v2134
    %v2168 = vpack.c.b16 %v2137, %v2136
    %v2169 = vpack.c.b16 %v2139, %v2138
    %v2170 = vpack.c.b16 %v2141, %v2140
    %v2171 = vpack.c.b16 %v2143, %v2142
    %v2172 = vpack.c.b16 %v2145, %v2144
    %v2173 = vpack.c.b16 %v2147, %v2146
    %v2174 = vpack.c.b16 %v2149, %v2148
    %v2175 = vpack.c.b16 %v2151, %v2150
    %2200 = vmatpush.bf16.msra.mxu0 %v2159
    %2201 = vmatpush.bf16.msra.mxu0 %v2158
    %2202 = vmatpush.bf16.msra.mxu0 %v2157
    %2203 = vmatpush.bf16.msra.mxu0 %v2156
    %2204 = vmatpush.bf16.msra.mxu0 %v2155
    %2205 = vmatpush.bf16.msra.mxu0 %v2154
    %2206 = vmatpush.bf16.msra.mxu0 %v2153
    %2207 = vmatpush.bf16.msra.mxu0 %v2152
    %2208 = vmatmul.bf16.gmra.mxu0 %v2050
    %v2209 = vpop.f32.mrf.mxu0
    %v2210 = vadd.f32 %v2054, %v2209
    %v2211 = vpop.f32.mrf.mxu0
    %2212 = vdwg.mxu0
    %2213 = vmatpush.bf16.msra.mxu0 %v2167
    %2214 = vmatpush.bf16.msra.mxu0 %v2166
    %2215 = vmatpush.bf16.msra.mxu0 %v2165
    %2216 = vmatpush.bf16.msra.mxu0 %v2164
    %2217 = vmatpush.bf16.msra.mxu0 %v2163
    %2218 = vmatpush.bf16.msra.mxu0 %v2162
    %2219 = vmatpush.bf16.msra.mxu0 %v2161
    %2220 = vmatpush.bf16.msra.mxu0 %v2160
    %2221 = vmatmul.bf16.gmra.mxu0 %v2051
    %v2222 = vpop.f32.mrf.mxu0
    %v2223 = vadd.f32 %v2210, %v2222
    %v2224 = vpop.f32.mrf.mxu0
    %2225 = vdwg.mxu0
    %2226 = vmatpush.bf16.msra.mxu0 %v2175
    %2227 = vmatpush.bf16.msra.mxu0 %v2174
    %2228 = vmatpush.bf16.msra.mxu0 %v2173
    %2229 = vmatpush.bf16.msra.mxu0 %v2172
    %2230 = vmatpush.bf16.msra.mxu0 %v2171
    %2231 = vmatpush.bf16.msra.mxu0 %v2170
    %2232 = vmatpush.bf16.msra.mxu0 %v2169
    %2233 = vmatpush.bf16.msra.mxu0 %v2168
    %2234 = vmatmul.bf16.gmra.mxu0 %v2052
    %v2235 = vpop.f32.mrf.mxu0
    %v2236 = vadd.f32 %v2223, %v2235
    %v2237 = vpop.f32.mrf.mxu0
    %2238 = vdwg.mxu0
    %v2239 = vmax.f32 %v2236, 0.0
    %v2241 = vrot.slane %v2239, 4
    %2242 = vst [vmem:[#allocation1] ss:$2 sm:$0xff] %v2239
    %v2243 = vld.sshfl [vmem:[#allocation1] sm:$0xff pattern:$0x75316420]
    %s2244 = scalar_lea.vmem [#allocation1], 16
    %2245 = vst [vmem:[%s2244] ss:$2 sm:$0xff] %v2241
    %v2246 = vld.sshfl [vmem:[#allocation1 + $0x10] sm:$0xff pattern:$0x75316420]
    %v2247 = vrot.slane %v2243, 7
    %v2248 = vrot.slane %v2246, 7
    %v2251 = vsel %vm560, 0.0, %v2247
    %v2252 = vsel %vm560, 0.0, %v2248
    %2253 = vst [vmem:[#allocation1] ss:$2 sm:$0xff] %v2239
    %v2254 = vld.sshfl [vmem:[#allocation1] sm:$0xff pattern:$0x75316420]
    %s2255 = scalar_lea.vmem [#allocation1], 16
    %2256 = vst [vmem:[%s2255] ss:$2 sm:$0xff] %v2241
    %v2257 = vld.sshfl [vmem:[#allocation1 + $0x10] sm:$0xff pattern:$0x75316420]
    %v2258 = vrot.slane %v2254, 1
    %v2259 = vrot.slane %v2257, 1
    %v2262 = vsel %vm2025, %v2258, 0.0
    %v2263 = vsel %vm2025, %v2259, 0.0
    %2264 = vst [vmem:[#allocation1] ss:$2 sm:$0xff] %v2239
    %v2265 = vld.sshfl [vmem:[#allocation1] sm:$0xff pattern:$0x75316420]
    %s2266 = scalar_lea.vmem [#allocation1], 16
    %2267 = vst [vmem:[%s2266] ss:$2 sm:$0xff] %v2241
    %v2268 = vld.sshfl [vmem:[#allocation1 + $0x10] sm:$0xff pattern:$0x75316420]
    %2269 = vrot.lane.b32.xlu0 %v2265, 32
    %v2270 = vpop.permute.xlu0 %2269
    %2271 = vrot.lane.b32.xlu0 %v2268, 32
    %v2272 = vpop.permute.xlu0 %2271
    %2277 = vrot.lane.b32.xlu0 %v2262, 64
    %v2278 = vpop.permute.xlu0 %2277
    %2279 = vrot.lane.b32.xlu0 %v2263, 64
    %v2280 = vpop.permute.xlu0 %2279
    %v2283 = vsel %vm838, %v2251, %v2270
    %v2284 = vsel %vm838, %v2252, %v2272
    %v2285 = vsel %vm847, %v2283, %v2278
    %v2286 = vsel %vm847, %v2284, %v2280
    %2289 = vst [vmem:[#allocation1] ss:$2 sm:$0xff] %v2285
    %s2290 = scalar_lea.vmem [#allocation1], 1
    %2291 = vst [vmem:[%s2290] ss:$2 sm:$0xff] %v2286
    %v2292 = vld.sshfl [vmem:[#allocation1] sm:$0xff pattern:$0x75316420]
    %v2294 = vpack.c.bf16 %v2292, %v2292
    %v2296 = vperm.slane %v1995, 0
    %v2310 = vunpack.c.l.b16 %v1983
    %v2311 = vunpack.c.l.b16 %v1984
    %v2312 = vunpack.c.l.b16 %v1985
    %v2313 = vunpack.c.l.b16 %v1986
    %v2314 = vunpack.c.l.b16 %v1987
    %v2315 = vunpack.c.l.b16 %v1988
    %v2316 = vunpack.c.l.b16 %v1989
    %v2317 = vunpack.c.l.b16 %v1990
    %v2318 = vunpack.c.l.b16 %v1991
    %v2319 = vunpack.c.l.b16 %v1992
    %v2320 = vunpack.c.l.b16 %v1993
    %v2321 = vunpack.c.l.b16 %v1994
    %v2322 = vpack.c.b16 %v2311, %v2310
    %v2323 = vpack.c.b16 %v2313, %v2312
    %v2324 = vpack.c.b16 %v2315, %v2314
    %v2325 = vpack.c.b16 %v2317, %v2316
    %v2326 = vpack.c.b16 %v2319, %v2318
    %v2327 = vpack.c.b16 %v2321, %v2320
    %v2335 = vsel %vm899, %v2294, 0
    %2337 = vmatpush.bf16.msra.mxu0 0
    %2338 = vmatpush.bf16.msra.mxu0 0
    %2339 = vmatpush.bf16.msra.mxu0 %v2327
    %2340 = vmatpush.bf16.msra.mxu0 %v2326
    %2341 = vmatpush.bf16.msra.mxu0 %v2325
    %2342 = vmatpush.bf16.msra.mxu0 %v2324
    %2343 = vmatpush.bf16.msra.mxu0 %v2323
    %2344 = vmatpush.bf16.msra.mxu0 %v2322
    %2345 = vmatmul.bf16.gmra.mxu0 %v2335
    %v2346 = vpop.f32.mrf.mxu0
    %v2347 = vadd.f32 %v2296, %v2346
    %v2348 = vpop.f32.mrf.mxu0
    %2349 = vdwg.mxu0
    %v2350 = vmax.f32 %v2347, 0.0
    %2351 = vst [vmem:[#allocation1] ss:$2 sm:$0xff] %v1932
    %s2352 = scalar_lea.vmem [#allocation1], 1
    %2353 = vst [vmem:[%s2352] ss:$2 sm:$0xff] %v1933
    %v2354 = vld.sshfl [vmem:[#allocation1] sm:$0xff pattern:$0x75316420]
    %v2356 = vpack.c.bf16 %v2354, %v2354
    %v2358 = vperm.slane %v2012, 0
    %v2376 = vunpack.c.l.b16 %v1996
    %v2377 = vunpack.c.l.b16 %v1997
    %v2378 = vunpack.c.l.b16 %v1998
    %v2379 = vunpack.c.l.b16 %v1999
    %v2380 = vunpack.c.l.b16 %v2000
    %v2381 = vunpack.c.l.b16 %v2001
    %v2382 = vunpack.c.l.b16 %v2002
    %v2383 = vunpack.c.l.b16 %v2003
    %v2384 = vunpack.c.l.b16 %v2004
    %v2385 = vunpack.c.l.b16 %v2005
    %v2386 = vunpack.c.l.b16 %v2006
    %v2387 = vunpack.c.l.b16 %v2007
    %v2388 = vunpack.c.l.b16 %v2008
    %v2389 = vunpack.c.l.b16 %v2009
    %v2390 = vunpack.c.l.b16 %v2010
    %v2391 = vunpack.c.l.b16 %v2011
    %v2392 = vpack.c.b16 %v2377, %v2376
    %v2393 = vpack.c.b16 %v2379, %v2378
    %v2394 = vpack.c.b16 %v2381, %v2380
    %v2395 = vpack.c.b16 %v2383, %v2382
    %v2396 = vpack.c.b16 %v2385, %v2384
    %v2397 = vpack.c.b16 %v2387, %v2386
    %v2398 = vpack.c.b16 %v2389, %v2388
    %v2399 = vpack.c.b16 %v2391, %v2390
    %2408 = vmatpush.bf16.msra.mxu0 %v2399
    %2409 = vmatpush.bf16.msra.mxu0 %v2398
    %2410 = vmatpush.bf16.msra.mxu0 %v2397
    %2411 = vmatpush.bf16.msra.mxu0 %v2396
    %2412 = vmatpush.bf16.msra.mxu0 %v2395
    %2413 = vmatpush.bf16.msra.mxu0 %v2394
    %2414 = vmatpush.bf16.msra.mxu0 %v2393
    %2415 = vmatpush.bf16.msra.mxu0 %v2392
    %2416 = vmatmul.bf16.gmra.mxu0 %v2356
    %v2417 = vpop.f32.mrf.mxu0
    %v2418 = vadd.f32 %v2358, %v2417
    %v2419 = vpop.f32.mrf.mxu0
    %2420 = vdwg.mxu0
    %v2421 = vadd.f32 %v2350, %v2418
    %v2422 = vmax.f32 %v2421, 0.0
    %v2424 = vrot.slane %v2422, 4
    %v2426 = vld [vmem:[%s51] sm:$0xf]
    %v2427 = vld [vmem:[%s53] sm:$0xf]
    %v2428 = vld [vmem:[%s53 + $0x4] sm:$0xf]
    %v2429 = vld [vmem:[%s53 + $0x8] sm:$0xf]
    %v2430 = vld [vmem:[%s53 + $0xc] sm:$0xf]
    %v2431 = vld [vmem:[#allocation16] sm:$0x1]
    %v2432 = vld [vmem:[%s57] sm:$0xf]
    %v2433 = vld [vmem:[%s57 + $0x4] sm:$0xf]
    %v2434 = vld [vmem:[%s57 + $0x8] sm:$0xf]
    %v2435 = vld [vmem:[%s57 + $0xc] sm:$0xf]
    %v2436 = vld [vmem:[#allocation18] sm:$0x1]
    %v2437 = vadd.f32 %v2422, %v2426
    %v2438 = vadd.f32 %v2424, %v2426
    %2441 = vst [vmem:[#allocation1] ss:$2 sm:$0xff] %v2437
    %s2442 = scalar_lea.vmem [#allocation1], 1
    %2443 = vst [vmem:[%s2442] ss:$2 sm:$0xff] %v2438
    %v2444 = vld.sshfl [vmem:[#allocation1] sm:$0xff pattern:$0x75316420]
    %v2446 = vpack.c.bf16 %v2444, %v2444
    %v2448 = vperm.slane %v2431, 0
    %v2454 = vunpack.c.l.b16 %v2427
    %v2455 = vunpack.c.l.b16 %v2428
    %v2456 = vunpack.c.l.b16 %v2429
    %v2457 = vunpack.c.l.b16 %v2430
    %v2458 = vpack.c.b16 %v2455, %v2454
    %v2459 = vpack.c.b16 %v2457, %v2456
    %v2463 = vsel %vm838, %v2446, 0
    %2465 = vmatpush.bf16.msra.mxu0 0
    %2466 = vmatpush.bf16.msra.mxu0 0
    %2467 = vmatpush.bf16.msra.mxu0 0
    %2468 = vmatpush.bf16.msra.mxu0 0
    %2469 = vmatpush.bf16.msra.mxu0 0
    %2470 = vmatpush.bf16.msra.mxu0 0
    %2471 = vmatpush.bf16.msra.mxu0 %v2459
    %2472 = vmatpush.bf16.msra.mxu0 %v2458
    %2473 = vmatmul.bf16.gmra.mxu0 %v2463
    %v2474 = vpop.f32.mrf.mxu0
    %v2475 = vadd.f32 %v2448, %v2474
    %v2476 = vpop.f32.mrf.mxu0
    %2477 = vdwg.mxu0
    %v2478 = vmul.f32 %v2475, 0.35355338
    %v2480 = vrot.slane %v2478, 4
    %v2483 = vrot.slane %v2475, 4
    %v2485 = vpack.c.bf16 %v2478, %v2478
    %v2486 = vpack.c.bf16 %v2480, %v2480
    %v2487 = vpack.c.bf16 %v2475, %v2475
    %v2488 = vpack.c.bf16 %v2483, %v2483
    %v2490 = vunpack.c.l.b16 %v2487
    %v2491 = vpack.c.b16 %v2490, %v2490
    %2492 = vrot.lane.b32.xlu0 %v2491, 96
    %v2493 = vpop.permute.xlu0 %2492
    %v2495 = vsel %vm663, %v2485, 0
    %v2498 = vsel %vm663, %v2493, 0
    %2500 = vmatpush.bf16.xpose.msra.mxu0 0
    %2501 = vmatpush.bf16.xpose.msra.mxu0 0
    %2502 = vmatpush.bf16.xpose.msra.mxu0 0
    %2503 = vmatpush.bf16.xpose.msra.mxu0 0
    %2504 = vmatpush.bf16.xpose.msra.mxu0 0
    %2505 = vmatpush.bf16.xpose.msra.mxu0 0
    %2506 = vmatpush.bf16.xpose.msra.mxu0 0
    %2507 = vmatpush.bf16.xpose.msra.mxu0 %v2498
    %2508 = vmatmul.bf16.gmra.mxu0 %v2495
    %v2509 = vpop.f32.mrf.mxu0
    %v2510 = vadd.f32 0.0, %v2509
    %v2511 = vpop.f32.mrf.mxu0
    %2512 = vdwg.mxu0
    %v2514 = vunpack.c.l.b16 %v2488
    %v2515 = vpack.c.b16 %v2514, %v2514
    %2516 = vrot.lane.b32.xlu0 %v2515, 96
    %v2517 = vpop.permute.xlu0 %2516
    %v2519 = vsel %vm663, %v2486, 0
    %v2522 = vsel %vm663, %v2517, 0
    %2524 = vmatpush.bf16.xpose.msra.mxu0 0
    %2525 = vmatpush.bf16.xpose.msra.mxu0 0
    %2526 = vmatpush.bf16.xpose.msra.mxu0 0
    %2527 = vmatpush.bf16.xpose.msra.mxu0 0
    %2528 = vmatpush.bf16.xpose.msra.mxu0 0
    %2529 = vmatpush.bf16.xpose.msra.mxu0 0
    %2530 = vmatpush.bf16.xpose.msra.mxu0 0
    %2531 = vmatpush.bf16.xpose.msra.mxu0 %v2522
    %2532 = vmatmul.bf16.gmra.mxu0 %v2519
    %v2533 = vpop.f32.mrf.mxu0
    %v2534 = vadd.f32 0.0, %v2533
    %v2535 = vpop.f32.mrf.mxu0
    %2536 = vdwg.mxu0
    %vm2537 = vcmask 27648
    %v2538 = vsel %vm2537, %v2510, -inf
    %2539 = vmax.xlane.f32.xlu0 %v2538
    %v2540 = vpop.xlane.xlu0 %2539
    %v2541 = vsel %vm2537, %v2534, -inf
    %2542 = vmax.xlane.f32.xlu0 %v2541
    %v2543 = vpop.xlane.xlu0 %2542
    %v2544 = vsub.f32 %v2510, %v2540
    %v2545 = vsub.f32 %v2534, %v2543
    %v2546 = vmul.f32 %v2544, 1.442695
    %v2547 = vpow.pop %v2546
    %v2548 = vmul.f32 %v2545, 1.442695
    %v2549 = vpow.pop %v2548
    %v2550 = vsel %vm2537, %v2547, 0.0
    %2551 = vadd.xlane.f32.xlu0 %v2550
    %v2552 = vpop.xlane.xlu0 %2551
    %v2553 = vsel %vm2537, %v2549, 0.0
    %2554 = vadd.xlane.f32.xlu0 %v2553
    %v2555 = vpop.xlane.xlu0 %2554
    %v2556 = vrcp.pop %v2552
    %v2557 = vrcp.pop %v2555
    %v2558 = vmul.f32 %v2547, %v2556
    %v2559 = vmul.f32 %v2549, %v2557
    %v2560 = vpack.c.bf16 %v2558, %v2558
    %v2561 = vpack.c.bf16 %v2559, %v2559
    %2562 = vrot.lane.b32.xlu0 %v2491, 64
    %v2563 = vpop.permute.xlu0 %2562
    %v2565 = vsel %vm654, %v2560, 0
    %v2568 = vsel %vm968, %v2563, 0
    %2570 = vmatpush.bf16.msra.mxu0 0
    %2571 = vmatpush.bf16.msra.mxu0 0
    %2572 = vmatpush.bf16.msra.mxu0 0
    %2573 = vmatpush.bf16.msra.mxu0 0
    %2574 = vmatpush.bf16.msra.mxu0 0
    %2575 = vmatpush.bf16.msra.mxu0 0
    %2576 = vmatpush.bf16.msra.mxu0 0
    %2577 = vmatpush.bf16.msra.mxu0 %v2568
    %2578 = vmatmul.bf16.gmra.mxu0 %v2565
    %v2579 = vpop.f32.mrf.mxu0
    %v2580 = vadd.f32 0.0, %v2579
    %v2581 = vpop.f32.mrf.mxu0
    %2582 = vdwg.mxu0
    %2583 = vrot.lane.b32.xlu0 %v2515, 64
    %v2584 = vpop.permute.xlu0 %2583
    %v2586 = vsel %vm654, %v2561, 0
    %v2589 = vsel %vm968, %v2584, 0
    %2591 = vmatpush.bf16.msra.mxu0 0
    %2592 = vmatpush.bf16.msra.mxu0 0
    %2593 = vmatpush.bf16.msra.mxu0 0
    %2594 = vmatpush.bf16.msra.mxu0 0
    %2595 = vmatpush.bf16.msra.mxu0 0
    %2596 = vmatpush.bf16.msra.mxu0 0
    %2597 = vmatpush.bf16.msra.mxu0 0
    %2598 = vmatpush.bf16.msra.mxu0 %v2589
    %2599 = vmatmul.bf16.gmra.mxu0 %v2586
    %v2600 = vpop.f32.mrf.mxu0
    %v2601 = vadd.f32 0.0, %v2600
    %v2602 = vpop.f32.mrf.mxu0
    %2603 = vdwg.mxu0
    %2606 = vst [vmem:[#allocation1] ss:$2 sm:$0xff] %v2580
    %s2607 = scalar_lea.vmem [#allocation1], 1
    %2608 = vst [vmem:[%s2607] ss:$2 sm:$0xff] %v2601
    %v2609 = vld.sshfl [vmem:[#allocation1] sm:$0xff pattern:$0x75316420]
    %v2611 = vpack.c.bf16 %v2609, %v2609
    %v2613 = vunpack.c.l.b16 %v2485
    %v2614 = vpack.c.b16 %v2613, %v2613
    %2615 = vrot.lane.b32.xlu0 %v2614, 120
    %v2616 = vpop.permute.xlu0 %2615
    %2617 = vrot.lane.b32.xlu0 %v2491, 88
    %v2618 = vpop.permute.xlu0 %2617
    %v2620 = vsel %vm663, %v2616, 0
    %v2623 = vsel %vm663, %v2618, 0
    %2625 = vmatpush.bf16.xpose.msra.mxu0 0
    %2626 = vmatpush.bf16.xpose.msra.mxu0 0
    %2627 = vmatpush.bf16.xpose.msra.mxu0 0
    %2628 = vmatpush.bf16.xpose.msra.mxu0 0
    %2629 = vmatpush.bf16.xpose.msra.mxu0 0
    %2630 = vmatpush.bf16.xpose.msra.mxu0 0
    %2631 = vmatpush.bf16.xpose.msra.mxu0 0
    %2632 = vmatpush.bf16.xpose.msra.mxu0 %v2623
    %2633 = vmatmul.bf16.gmra.mxu0 %v2620
    %v2634 = vpop.f32.mrf.mxu0
    %v2635 = vadd.f32 0.0, %v2634
    %v2636 = vpop.f32.mrf.mxu0
    %2637 = vdwg.mxu0
    %v2639 = vunpack.c.l.b16 %v2486
    %v2640 = vpack.c.b16 %v2639, %v2639
    %2641 = vrot.lane.b32.xlu0 %v2640, 120
    %v2642 = vpop.permute.xlu0 %2641
    %2643 = vrot.lane.b32.xlu0 %v2515, 88
    %v2644 = vpop.permute.xlu0 %2643
    %v2646 = vsel %vm663, %v2642, 0
    %v2649 = vsel %vm663, %v2644, 0
    %2651 = vmatpush.bf16.xpose.msra.mxu0 0
    %2652 = vmatpush.bf16.xpose.msra.mxu0 0
    %2653 = vmatpush.bf16.xpose.msra.mxu0 0
    %2654 = vmatpush.bf16.xpose.msra.mxu0 0
    %2655 = vmatpush.bf16.xpose.msra.mxu0 0
    %2656 = vmatpush.bf16.xpose.msra.mxu0 0
    %2657 = vmatpush.bf16.xpose.msra.mxu0 0
    %2658 = vmatpush.bf16.xpose.msra.mxu0 %v2649
    %2659 = vmatmul.bf16.gmra.mxu0 %v2646
    %v2660 = vpop.f32.mrf.mxu0
    %v2661 = vadd.f32 0.0, %v2660
    %v2662 = vpop.f32.mrf.mxu0
    %2663 = vdwg.mxu0
    %v2664 = vsel %vm2537, %v2635, -inf
    %2665 = vmax.xlane.f32.xlu0 %v2664
    %v2666 = vpop.xlane.xlu0 %2665
    %v2667 = vsel %vm2537, %v2661, -inf
    %2668 = vmax.xlane.f32.xlu0 %v2667
    %v2669 = vpop.xlane.xlu0 %2668
    %v2670 = vsub.f32 %v2635, %v2666
    %v2671 = vsub.f32 %v2661, %v2669
    %v2672 = vmul.f32 %v2670, 1.442695
    %v2673 = vpow.pop %v2672
    %v2674 = vmul.f32 %v2671, 1.442695
    %v2675 = vpow.pop %v2674
    %v2676 = vsel %vm2537, %v2673, 0.0
    %2677 = vadd.xlane.f32.xlu0 %v2676
    %v2678 = vpop.xlane.xlu0 %2677
    %v2679 = vsel %vm2537, %v2675, 0.0
    %2680 = vadd.xlane.f32.xlu0 %v2679
    %v2681 = vpop.xlane.xlu0 %2680
    %v2682 = vrcp.pop %v2678
    %v2683 = vrcp.pop %v2681
    %v2684 = vmul.f32 %v2673, %v2682
    %v2685 = vmul.f32 %v2675, %v2683
    %v2686 = vpack.c.bf16 %v2684, %v2684
    %v2687 = vpack.c.bf16 %v2685, %v2685
    %2688 = vrot.lane.b32.xlu0 %v2491, 56
    %v2689 = vpop.permute.xlu0 %2688
    %v2691 = vsel %vm654, %v2686, 0
    %v2694 = vsel %vm968, %v2689, 0
    %2696 = vmatpush.bf16.msra.mxu0 0
    %2697 = vmatpush.bf16.msra.mxu0 0
    %2698 = vmatpush.bf16.msra.mxu0 0
    %2699 = vmatpush.bf16.msra.mxu0 0
    %2700 = vmatpush.bf16.msra.mxu0 0
    %2701 = vmatpush.bf16.msra.mxu0 0
    %2702 = vmatpush.bf16.msra.mxu0 0
    %2703 = vmatpush.bf16.msra.mxu0 %v2694
    %2704 = vmatmul.bf16.gmra.mxu0 %v2691
    %v2705 = vpop.f32.mrf.mxu0
    %v2706 = vadd.f32 0.0, %v2705
    %v2707 = vpop.f32.mrf.mxu0
    %2708 = vdwg.mxu0
    %2709 = vrot.lane.b32.xlu0 %v2515, 56
    %v2710 = vpop.permute.xlu0 %2709
    %v2712 = vsel %vm654, %v2687, 0
    %v2715 = vsel %vm968, %v2710, 0
    %2717 = vmatpush.bf16.msra.mxu0 0
    %2718 = vmatpush.bf16.msra.mxu0 0
    %2719 = vmatpush.bf16.msra.mxu0 0
    %2720 = vmatpush.bf16.msra.mxu0 0
    %2721 = vmatpush.bf16.msra.mxu0 0
    %2722 = vmatpush.bf16.msra.mxu0 0
    %2723 = vmatpush.bf16.msra.mxu0 0
    %2724 = vmatpush.bf16.msra.mxu0 %v2715
    %2725 = vmatmul.bf16.gmra.mxu0 %v2712
    %v2726 = vpop.f32.mrf.mxu0
    %v2727 = vadd.f32 0.0, %v2726
    %v2728 = vpop.f32.mrf.mxu0
    %2729 = vdwg.mxu0
    %2732 = vst [vmem:[#allocation1] ss:$2 sm:$0xff] %v2706
    %s2733 = scalar_lea.vmem [#allocation1], 1
    %2734 = vst [vmem:[%s2733] ss:$2 sm:$0xff] %v2727
    %v2735 = vld.sshfl [vmem:[#allocation1] sm:$0xff pattern:$0x75316420]
    %v2737 = vpack.c.bf16 %v2735, %v2735
    %v2739 = vsel %vm663, %v2737, 0
    %v2742 = vsel %vm2034, %v2433, 0
    %2744 = vmatpush.bf16.msra.mxu0 0
    %2745 = vmatpush.bf16.msra.mxu0 0
    %2746 = vmatpush.bf16.msra.mxu0 0
    %2747 = vmatpush.bf16.msra.mxu0 0
    %2748 = vmatpush.bf16.msra.mxu0 0
    %2749 = vmatpush.bf16.msra.mxu0 0
    %2750 = vmatpush.bf16.msra.mxu0 0
    %2751 = vmatpush.bf16.msra.mxu0 %v2742
    %2752 = vmatmul.bf16.gmra.mxu0 %v2739
    %v2753 = vpop.f32.mrf.mxu0
    %v2754 = vadd.f32 0.0, %v2753
    %v2755 = vpop.f32.mrf.mxu0
    %2756 = vdwg.mxu0
    %v2758 = vsel %vm663, %v2611, 0
    %v2761 = vsel %vm2034, %v2432, 0
    %2763 = vmatpush.bf16.msra.mxu0 0
    %2764 = vmatpush.bf16.msra.mxu0 0
    %2765 = vmatpush.bf16.msra.mxu0 0
    %2766 = vmatpush.bf16.msra.mxu0 0
    %2767 = vmatpush.bf16.msra.mxu0 0
    %2768 = vmatpush.bf16.msra.mxu0 0
    %2769 = vmatpush.bf16.msra.mxu0 0
    %2770 = vmatpush.bf16.msra.mxu0 %v2761
    %2771 = vmatmul.bf16.gmra.mxu0 %v2758
    %v2772 = vpop.f32.mrf.mxu0
    %v2773 = vadd.f32 %v2754, %v2772
    %v2774 = vpop.f32.mrf.mxu0
    %2775 = vdwg.mxu0
    %2776 = vrot.lane.b32.xlu0 %v2614, 112
    %v2777 = vpop.permute.xlu0 %2776
    %2778 = vrot.lane.b32.xlu0 %v2491, 80
    %v2779 = vpop.permute.xlu0 %2778
    %v2781 = vsel %vm663, %v2777, 0
    %v2784 = vsel %vm663, %v2779, 0
    %2786 = vmatpush.bf16.xpose.msra.mxu0 0
    %2787 = vmatpush.bf16.xpose.msra.mxu0 0
    %2788 = vmatpush.bf16.xpose.msra.mxu0 0
    %2789 = vmatpush.bf16.xpose.msra.mxu0 0
    %2790 = vmatpush.bf16.xpose.msra.mxu0 0
    %2791 = vmatpush.bf16.xpose.msra.mxu0 0
    %2792 = vmatpush.bf16.xpose.msra.mxu0 0
    %2793 = vmatpush.bf16.xpose.msra.mxu0 %v2784
    %2794 = vmatmul.bf16.gmra.mxu0 %v2781
    %v2795 = vpop.f32.mrf.mxu0
    %v2796 = vadd.f32 0.0, %v2795
    %v2797 = vpop.f32.mrf.mxu0
    %2798 = vdwg.mxu0
    %2799 = vrot.lane.b32.xlu0 %v2640, 112
    %v2800 = vpop.permute.xlu0 %2799
    %2801 = vrot.lane.b32.xlu0 %v2515, 80
    %v2802 = vpop.permute.xlu0 %2801
    %v2804 = vsel %vm663, %v2800, 0
    %v2807 = vsel %vm663, %v2802, 0
    %2809 = vmatpush.bf16.xpose.msra.mxu0 0
    %2810 = vmatpush.bf16.xpose.msra.mxu0 0
    %2811 = vmatpush.bf16.xpose.msra.mxu0 0
    %2812 = vmatpush.bf16.xpose.msra.mxu0 0
    %2813 = vmatpush.bf16.xpose.msra.mxu0 0
    %2814 = vmatpush.bf16.xpose.msra.mxu0 0
    %2815 = vmatpush.bf16.xpose.msra.mxu0 0
    %2816 = vmatpush.bf16.xpose.msra.mxu0 %v2807
    %2817 = vmatmul.bf16.gmra.mxu0 %v2804
    %v2818 = vpop.f32.mrf.mxu0
    %v2819 = vadd.f32 0.0, %v2818
    %v2820 = vpop.f32.mrf.mxu0
    %2821 = vdwg.mxu0
    %v2822 = vsel %vm2537, %v2796, -inf
    %2823 = vmax.xlane.f32.xlu0 %v2822
    %v2824 = vpop.xlane.xlu0 %2823
    %v2825 = vsel %vm2537, %v2819, -inf
    %2826 = vmax.xlane.f32.xlu0 %v2825
    %v2827 = vpop.xlane.xlu0 %2826
    %v2828 = vsub.f32 %v2796, %v2824
    %v2829 = vsub.f32 %v2819, %v2827
    %v2830 = vmul.f32 %v2828, 1.442695
    %v2831 = vpow.pop %v2830
    %v2832 = vmul.f32 %v2829, 1.442695
    %v2833 = vpow.pop %v2832
    %v2834 = vsel %vm2537, %v2831, 0.0
    %2835 = vadd.xlane.f32.xlu0 %v2834
    %v2836 = vpop.xlane.xlu0 %2835
    %v2837 = vsel %vm2537, %v2833, 0.0
    %2838 = vadd.xlane.f32.xlu0 %v2837
    %v2839 = vpop.xlane.xlu0 %2838
    %v2840 = vrcp.pop %v2836
    %v2841 = vrcp.pop %v2839
    %v2842 = vmul.f32 %v2831, %v2840
    %v2843 = vmul.f32 %v2833, %v2841
    %v2844 = vpack.c.bf16 %v2842, %v2842
    %v2845 = vpack.c.bf16 %v2843, %v2843
    %2846 = vrot.lane.b32.xlu0 %v2491, 48
    %v2847 = vpop.permute.xlu0 %2846
    %v2849 = vsel %vm654, %v2844, 0
    %v2852 = vsel %vm968, %v2847, 0
    %2854 = vmatpush.bf16.msra.mxu0 0
    %2855 = vmatpush.bf16.msra.mxu0 0
    %2856 = vmatpush.bf16.msra.mxu0 0
    %2857 = vmatpush.bf16.msra.mxu0 0
    %2858 = vmatpush.bf16.msra.mxu0 0
    %2859 = vmatpush.bf16.msra.mxu0 0
    %2860 = vmatpush.bf16.msra.mxu0 0
    %2861 = vmatpush.bf16.msra.mxu0 %v2852
    %2862 = vmatmul.bf16.gmra.mxu0 %v2849
    %v2863 = vpop.f32.mrf.mxu0
    %v2864 = vadd.f32 0.0, %v2863
    %v2865 = vpop.f32.mrf.mxu0
    %2866 = vdwg.mxu0
    %2867 = vrot.lane.b32.xlu0 %v2515, 48
    %v2868 = vpop.permute.xlu0 %2867
    %v2870 = vsel %vm654, %v2845, 0
    %v2873 = vsel %vm968, %v2868, 0
    %2875 = vmatpush.bf16.msra.mxu0 0
    %2876 = vmatpush.bf16.msra.mxu0 0
    %2877 = vmatpush.bf16.msra.mxu0 0
    %2878 = vmatpush.bf16.msra.mxu0 0
    %2879 = vmatpush.bf16.msra.mxu0 0
    %2880 = vmatpush.bf16.msra.mxu0 0
    %2881 = vmatpush.bf16.msra.mxu0 0
    %2882 = vmatpush.bf16.msra.mxu0 %v2873
    %2883 = vmatmul.bf16.gmra.mxu0 %v2870
    %v2884 = vpop.f32.mrf.mxu0
    %v2885 = vadd.f32 0.0, %v2884
    %v2886 = vpop.f32.mrf.mxu0
    %2887 = vdwg.mxu0
    %2890 = vst [vmem:[#allocation1] ss:$2 sm:$0xff] %v2864
    %s2891 = scalar_lea.vmem [#allocation1], 1
    %2892 = vst [vmem:[%s2891] ss:$2 sm:$0xff] %v2885
    %v2893 = vld.sshfl [vmem:[#allocation1] sm:$0xff pattern:$0x75316420]
    %v2895 = vpack.c.bf16 %v2893, %v2893
    %v2897 = vsel %vm663, %v2895, 0
    %v2900 = vsel %vm2034, %v2434, 0
    %2902 = vmatpush.bf16.msra.mxu0 0
    %2903 = vmatpush.bf16.msra.mxu0 0
    %2904 = vmatpush.bf16.msra.mxu0 0
    %2905 = vmatpush.bf16.msra.mxu0 0
    %2906 = vmatpush.bf16.msra.mxu0 0
    %2907 = vmatpush.bf16.msra.mxu0 0
    %2908 = vmatpush.bf16.msra.mxu0 0
    %2909 = vmatpush.bf16.msra.mxu0 %v2900
    %2910 = vmatmul.bf16.gmra.mxu0 %v2897
    %v2911 = vpop.f32.mrf.mxu0
    %v2912 = vadd.f32 0.0, %v2911
    %v2913 = vpop.f32.mrf.mxu0
    %2914 = vdwg.mxu0
    %v2915 = vadd.f32 %v2773, %v2912
    %2916 = vrot.lane.b32.xlu0 %v2614, 104
    %v2917 = vpop.permute.xlu0 %2916
    %2918 = vrot.lane.b32.xlu0 %v2491, 72
    %v2919 = vpop.permute.xlu0 %2918
    %v2921 = vsel %vm663, %v2917, 0
    %v2924 = vsel %vm663, %v2919, 0
    %2926 = vmatpush.bf16.xpose.msra.mxu0 0
    %2927 = vmatpush.bf16.xpose.msra.mxu0 0
    %2928 = vmatpush.bf16.xpose.msra.mxu0 0
    %2929 = vmatpush.bf16.xpose.msra.mxu0 0
    %2930 = vmatpush.bf16.xpose.msra.mxu0 0
    %2931 = vmatpush.bf16.xpose.msra.mxu0 0
    %2932 = vmatpush.bf16.xpose.msra.mxu0 0
    %2933 = vmatpush.bf16.xpose.msra.mxu0 %v2924
    %2934 = vmatmul.bf16.gmra.mxu0 %v2921
    %v2935 = vpop.f32.mrf.mxu0
    %v2936 = vadd.f32 0.0, %v2935
    %v2937 = vpop.f32.mrf.mxu0
    %2938 = vdwg.mxu0
    %2939 = vrot.lane.b32.xlu0 %v2640, 104
    %v2940 = vpop.permute.xlu0 %2939
    %2941 = vrot.lane.b32.xlu0 %v2515, 72
    %v2942 = vpop.permute.xlu0 %2941
    %v2944 = vsel %vm663, %v2940, 0
    %v2947 = vsel %vm663, %v2942, 0
    %2949 = vmatpush.bf16.xpose.msra.mxu0 0
    %2950 = vmatpush.bf16.xpose.msra.mxu0 0
    %2951 = vmatpush.bf16.xpose.msra.mxu0 0
    %2952 = vmatpush.bf16.xpose.msra.mxu0 0
    %2953 = vmatpush.bf16.xpose.msra.mxu0 0
    %2954 = vmatpush.bf16.xpose.msra.mxu0 0
    %2955 = vmatpush.bf16.xpose.msra.mxu0 0
    %2956 = vmatpush.bf16.xpose.msra.mxu0 %v2947
    %2957 = vmatmul.bf16.gmra.mxu0 %v2944
    %v2958 = vpop.f32.mrf.mxu0
    %v2959 = vadd.f32 0.0, %v2958
    %v2960 = vpop.f32.mrf.mxu0
    %2961 = vdwg.mxu0
    %v2962 = vsel %vm2537, %v2936, -inf
    %2963 = vmax.xlane.f32.xlu0 %v2962
    %v2964 = vpop.xlane.xlu0 %2963
    %v2965 = vsel %vm2537, %v2959, -inf
    %2966 = vmax.xlane.f32.xlu0 %v2965
    %v2967 = vpop.xlane.xlu0 %2966
    %v2968 = vsub.f32 %v2936, %v2964
    %v2969 = vsub.f32 %v2959, %v2967
    %v2970 = vmul.f32 %v2968, 1.442695
    %v2971 = vpow.pop %v2970
    %v2972 = vmul.f32 %v2969, 1.442695
    %v2973 = vpow.pop %v2972
    %v2974 = vsel %vm2537, %v2971, 0.0
    %2975 = vadd.xlane.f32.xlu0 %v2974
    %v2976 = vpop.xlane.xlu0 %2975
    %v2977 = vsel %vm2537, %v2973, 0.0
    %2978 = vadd.xlane.f32.xlu0 %v2977
    %v2979 = vpop.xlane.xlu0 %2978
    %v2980 = vrcp.pop %v2976
    %v2981 = vrcp.pop %v2979
    %v2982 = vmul.f32 %v2971, %v2980
    %v2983 = vmul.f32 %v2973, %v2981
    %v2984 = vpack.c.bf16 %v2982, %v2982
    %v2985 = vpack.c.bf16 %v2983, %v2983
    %2986 = vrot.lane.b32.xlu0 %v2491, 40
    %v2987 = vpop.permute.xlu0 %2986
    %v2989 = vsel %vm654, %v2984, 0
    %v2992 = vsel %vm968, %v2987, 0
    %2994 = vmatpush.bf16.msra.mxu0 0
    %2995 = vmatpush.bf16.msra.mxu0 0
    %2996 = vmatpush.bf16.msra.mxu0 0
    %2997 = vmatpush.bf16.msra.mxu0 0
    %2998 = vmatpush.bf16.msra.mxu0 0
    %2999 = vmatpush.bf16.msra.mxu0 0
    %3000 = vmatpush.bf16.msra.mxu0 0
    %3001 = vmatpush.bf16.msra.mxu0 %v2992
    %3002 = vmatmul.bf16.gmra.mxu0 %v2989
    %v3003 = vpop.f32.mrf.mxu0
    %v3004 = vadd.f32 0.0, %v3003
    %v3005 = vpop.f32.mrf.mxu0
    %3006 = vdwg.mxu0
    %3007 = vrot.lane.b32.xlu0 %v2515, 40
    %v3008 = vpop.permute.xlu0 %3007
    %v3010 = vsel %vm654, %v2985, 0
    %v3013 = vsel %vm968, %v3008, 0
    %3015 = vmatpush.bf16.msra.mxu0 0
    %3016 = vmatpush.bf16.msra.mxu0 0
    %3017 = vmatpush.bf16.msra.mxu0 0
    %3018 = vmatpush.bf16.msra.mxu0 0
    %3019 = vmatpush.bf16.msra.mxu0 0
    %3020 = vmatpush.bf16.msra.mxu0 0
    %3021 = vmatpush.bf16.msra.mxu0 0
    %3022 = vmatpush.bf16.msra.mxu0 %v3013
    %3023 = vmatmul.bf16.gmra.mxu0 %v3010
    %v3024 = vpop.f32.mrf.mxu0
    %v3025 = vadd.f32 0.0, %v3024
    %v3026 = vpop.f32.mrf.mxu0
    %3027 = vdwg.mxu0
    %3030 = vst [vmem:[#allocation1] ss:$2 sm:$0xff] %v3004
    %s3031 = scalar_lea.vmem [#allocation1], 1
    %3032 = vst [vmem:[%s3031] ss:$2 sm:$0xff] %v3025
    %v3033 = vld.sshfl [vmem:[#allocation1] sm:$0xff pattern:$0x75316420]
    %v3035 = vpack.c.bf16 %v3033, %v3033
    %v3037 = vsel %vm663, %v3035, 0
    %v3040 = vsel %vm2034, %v2435, 0
    %3042 = vmatpush.bf16.msra.mxu0 0
    %3043 = vmatpush.bf16.msra.mxu0 0
    %3044 = vmatpush.bf16.msra.mxu0 0
    %3045 = vmatpush.bf16.msra.mxu0 0
    %3046 = vmatpush.bf16.msra.mxu0 0
    %3047 = vmatpush.bf16.msra.mxu0 0
    %3048 = vmatpush.bf16.msra.mxu0 0
    %3049 = vmatpush.bf16.msra.mxu0 %v3040
    %3050 = vmatmul.bf16.gmra.mxu0 %v3037
    %v3051 = vpop.f32.mrf.mxu0
    %v3052 = vadd.f32 0.0, %v3051
    %v3053 = vpop.f32.mrf.mxu0
    %3054 = vdwg.mxu0
    %v3055 = vadd.f32 %v2915, %v3052
    %v3057 = vperm.slane %v2436, 0
    %v3059 = vadd.f32 %v3055, %v3057
    %v3060 = vld [vmem:[#allocation4] sm:$0xff]
    %v3061 = vld [vmem:[#allocation4 + $0x8] sm:$0xff]
    %v3062 = vld [vmem:[%s61] sm:$0xf]
    %v3063 = vld [vmem:[%s61 + $0x4] sm:$0xf]
    %v3064 = vld [vmem:[%s61 + $0x8] sm:$0xf]
    %v3065 = vld [vmem:[%s61 + $0xc] sm:$0xf]
    %v3066 = vld [vmem:[%s61 + $0x10] sm:$0xf]
    %v3067 = vld [vmem:[%s61 + $0x14] sm:$0xf]
    %v3068 = vld [vmem:[%s61 + $0x18] sm:$0xf]
    %v3069 = vld [vmem:[%s61 + $0x1c] sm:$0xf]
    %v3070 = vld [vmem:[#allocation19] sm:$0x1]
    %v3071 = vld [vmem:[%s65] sm:$0xf]
    %v3072 = vld [vmem:[%s65 + $0x4] sm:$0xf]
    %v3073 = vld [vmem:[%s65 + $0x8] sm:$0xf]
    %v3074 = vld [vmem:[%s65 + $0xc] sm:$0xf]
    %v3075 = vld [vmem:[%s65 + $0x10] sm:$0xf]
    %v3076 = vld [vmem:[%s65 + $0x14] sm:$0xf]
    %v3077 = vld [vmem:[%s65 + $0x18] sm:$0xf]
    %v3078 = vld [vmem:[%s65 + $0x1c] sm:$0xf]
    %v3079 = vld [vmem:[%s65 + $0x20] sm:$0xf]
    %v3080 = vld [vmem:[%s65 + $0x24] sm:$0xf]
    %v3081 = vld [vmem:[%s65 + $0x28] sm:$0xf]
    %v3082 = vld [vmem:[%s65 + $0x2c] sm:$0xf]
    %v3083 = vld [vmem:[%s67] sm:$0xf]
    %v3084 = vld [vmem:[%s67 + $0x4] sm:$0xf]
    %v3085 = vld [vmem:[%s67 + $0x8] sm:$0xf]
    %v3086 = vld [vmem:[%s67 + $0xc] sm:$0xf]
    %v3087 = vld [vmem:[%s67 + $0x10] sm:$0xf]
    %v3088 = vld [vmem:[%s67 + $0x14] sm:$0xf]
    %v3089 = vld [vmem:[%s67 + $0x18] sm:$0xf]
    %v3090 = vld [vmem:[%s67 + $0x1c] sm:$0xf]
    %v3091 = vld [vmem:[%s67 + $0x20] sm:$0xf]
    %v3092 = vld [vmem:[%s67 + $0x24] sm:$0xf]
    %v3093 = vld [vmem:[%s67 + $0x28] sm:$0xf]
    %v3094 = vld [vmem:[%s67 + $0x2c] sm:$0xf]
    %v3095 = vld [vmem:[%s67 + $0x30] sm:$0xf]
    %v3096 = vld [vmem:[%s67 + $0x34] sm:$0xf]
    %v3097 = vld [vmem:[%s67 + $0x38] sm:$0xf]
    %v3098 = vld [vmem:[%s67 + $0x3c] sm:$0xf]
    %v3099 = vld [vmem:[%s67 + $0x40] sm:$0xf]
    %v3100 = vld [vmem:[%s67 + $0x44] sm:$0xf]
    %v3101 = vld [vmem:[%s67 + $0x48] sm:$0xf]
    %v3102 = vld [vmem:[%s67 + $0x4c] sm:$0xf]
    %v3103 = vld [vmem:[%s67 + $0x50] sm:$0xf]
    %v3104 = vld [vmem:[%s67 + $0x54] sm:$0xf]
    %v3105 = vld [vmem:[%s67 + $0x58] sm:$0xf]
    %v3106 = vld [vmem:[%s67 + $0x5c] sm:$0xf]
    %v3107 = vld [vmem:[%s67 + $0x60] sm:$0xf]
    %v3108 = vld [vmem:[%s67 + $0x64] sm:$0xf]
    %v3109 = vld [vmem:[%s67 + $0x68] sm:$0xf]
    %v3110 = vld [vmem:[%s67 + $0x6c] sm:$0xf]
    %v3111 = vld [vmem:[%s67 + $0x70] sm:$0xf]
    %v3112 = vld [vmem:[%s67 + $0x74] sm:$0xf]
    %v3113 = vld [vmem:[%s67 + $0x78] sm:$0xf]
    %v3114 = vld [vmem:[%s67 + $0x7c] sm:$0xf]
    %v3115 = vld [vmem:[%s67 + $0x80] sm:$0xf]
    %v3116 = vld [vmem:[%s67 + $0x84] sm:$0xf]
    %v3117 = vld [vmem:[%s67 + $0x88] sm:$0xf]
    %v3118 = vld [vmem:[%s67 + $0x8c] sm:$0xf]
    %v3119 = vld [vmem:[%s67 + $0x90] sm:$0xf]
    %v3120 = vld [vmem:[%s67 + $0x94] sm:$0xf]
    %v3121 = vld [vmem:[%s67 + $0x98] sm:$0xf]
    %v3122 = vld [vmem:[%s67 + $0x9c] sm:$0xf]
    %v3123 = vld [vmem:[%s67 + $0xa0] sm:$0xf]
    %v3124 = vld [vmem:[%s67 + $0xa4] sm:$0xf]
    %v3125 = vld [vmem:[%s67 + $0xa8] sm:$0xf]
    %v3126 = vld [vmem:[%s67 + $0xac] sm:$0xf]
    %v3127 = vld [vmem:[%s67 + $0xb0] sm:$0xf]
    %v3128 = vld [vmem:[%s67 + $0xb4] sm:$0xf]
    %v3129 = vld [vmem:[%s67 + $0xb8] sm:$0xf]
    %v3130 = vld [vmem:[%s67 + $0xbc] sm:$0xf]
    %v3131 = vld [vmem:[#allocation21] sm:$0x1]
    %v3132 = vld [vmem:[%s71] sm:$0xf]
    %v3133 = vld [vmem:[%s71 + $0x4] sm:$0xf]
    %v3134 = vld [vmem:[%s71 + $0x8] sm:$0xf]
    %v3135 = vld [vmem:[%s71 + $0xc] sm:$0xf]
    %v3136 = vld [vmem:[%s71 + $0x10] sm:$0xf]
    %v3137 = vld [vmem:[%s71 + $0x14] sm:$0xf]
    %v3138 = vld [vmem:[%s71 + $0x18] sm:$0xf]
    %v3139 = vld [vmem:[%s71 + $0x1c] sm:$0xf]
    %v3140 = vld [vmem:[%s71 + $0x20] sm:$0xf]
    %v3141 = vld [vmem:[%s71 + $0x24] sm:$0xf]
    %v3142 = vld [vmem:[%s71 + $0x28] sm:$0xf]
    %v3143 = vld [vmem:[%s71 + $0x2c] sm:$0xf]
    %v3144 = vld [vmem:[%s71 + $0x30] sm:$0xf]
    %v3145 = vld [vmem:[%s71 + $0x34] sm:$0xf]
    %v3146 = vld [vmem:[%s71 + $0x38] sm:$0xf]
    %v3147 = vld [vmem:[%s71 + $0x3c] sm:$0xf]
    %v3148 = vld [vmem:[%s71 + $0x40] sm:$0xf]
    %v3149 = vld [vmem:[%s71 + $0x44] sm:$0xf]
    %v3150 = vld [vmem:[%s71 + $0x48] sm:$0xf]
    %v3151 = vld [vmem:[%s71 + $0x4c] sm:$0xf]
    %v3152 = vld [vmem:[%s71 + $0x50] sm:$0xf]
    %v3153 = vld [vmem:[%s71 + $0x54] sm:$0xf]
    %v3154 = vld [vmem:[%s71 + $0x58] sm:$0xf]
    %v3155 = vld [vmem:[%s71 + $0x5c] sm:$0xf]
    %v3156 = vld [vmem:[%s71 + $0x60] sm:$0xf]
    %v3157 = vld [vmem:[%s71 + $0x64] sm:$0xf]
    %v3158 = vld [vmem:[%s71 + $0x68] sm:$0xf]
    %v3159 = vld [vmem:[%s71 + $0x6c] sm:$0xf]
    %v3160 = vld [vmem:[%s71 + $0x70] sm:$0xf]
    %v3161 = vld [vmem:[%s71 + $0x74] sm:$0xf]
    %v3162 = vld [vmem:[%s71 + $0x78] sm:$0xf]
    %v3163 = vld [vmem:[%s71 + $0x7c] sm:$0xf]
    %v3164 = vld [vmem:[%s71 + $0x80] sm:$0xf]
    %v3165 = vld [vmem:[%s71 + $0x84] sm:$0xf]
    %v3166 = vld [vmem:[%s71 + $0x88] sm:$0xf]
    %v3167 = vld [vmem:[%s71 + $0x8c] sm:$0xf]
    %v3168 = vld [vmem:[%s71 + $0x90] sm:$0xf]
    %v3169 = vld [vmem:[%s71 + $0x94] sm:$0xf]
    %v3170 = vld [vmem:[%s71 + $0x98] sm:$0xf]
    %v3171 = vld [vmem:[%s71 + $0x9c] sm:$0xf]
    %v3172 = vld [vmem:[%s71 + $0xa0] sm:$0xf]
    %v3173 = vld [vmem:[%s71 + $0xa4] sm:$0xf]
    %v3174 = vld [vmem:[%s71 + $0xa8] sm:$0xf]
    %v3175 = vld [vmem:[%s71 + $0xac] sm:$0xf]
    %v3176 = vld [vmem:[%s71 + $0xb0] sm:$0xf]
    %v3177 = vld [vmem:[%s71 + $0xb4] sm:$0xf]
    %v3178 = vld [vmem:[%s71 + $0xb8] sm:$0xf]
    %v3179 = vld [vmem:[%s71 + $0xbc] sm:$0xf]
    %v3180 = vld [vmem:[#allocation22] sm:$0x1]
    %v3181 = vld [vmem:[%s75] sm:$0xf]
    %v3182 = vld [vmem:[%s75 + $0x4] sm:$0xf]
    %v3183 = vld [vmem:[%s75 + $0x8] sm:$0xf]
    %v3184 = vld [vmem:[%s75 + $0xc] sm:$0xf]
    %v3185 = vld [vmem:[%s77] sm:$0xf]
    %v3186 = vld [vmem:[%s77 + $0x4] sm:$0xf]
    %v3187 = vld [vmem:[%s77 + $0x8] sm:$0xf]
    %v3188 = vld [vmem:[%s77 + $0xc] sm:$0xf]
    %v3189 = vld [vmem:[%s77 + $0x10] sm:$0xf]
    %v3190 = vld [vmem:[%s77 + $0x14] sm:$0xf]
    %v3191 = vld [vmem:[%s77 + $0x18] sm:$0xf]
    %v3192 = vld [vmem:[%s77 + $0x1c] sm:$0xf]
    %v3193 = vld [vmem:[%s77 + $0x20] sm:$0xf]
    %v3194 = vld [vmem:[%s77 + $0x24] sm:$0xf]
    %v3195 = vld [vmem:[%s77 + $0x28] sm:$0xf]
    %v3196 = vld [vmem:[%s77 + $0x2c] sm:$0xf]
    %v3197 = vld [vmem:[%s77 + $0x30] sm:$0xf]
    %v3198 = vld [vmem:[%s77 + $0x34] sm:$0xf]
    %v3199 = vld [vmem:[%s77 + $0x38] sm:$0xf]
    %v3200 = vld [vmem:[%s77 + $0x3c] sm:$0xf]
    %v3201 = vld [vmem:[#allocation24] sm:$0x1]
    %v3202 = vpack.c.bf16 %v3059, %v3059
    %v3204 = vperm.slane %v3070, 0
    %v3210 = vunpack.c.l.b16 %v3062
    %v3211 = vunpack.c.l.b16 %v3063
    %v3212 = vunpack.c.l.b16 %v3064
    %v3213 = vunpack.c.l.b16 %v3065
    %v3214 = vpack.c.b16 %v3211, %v3210
    %v3215 = vpack.c.b16 %v3213, %v3212
    %v3219 = vsel %vm838, %v3202, 0
    %3221 = vmatpush.bf16.msra.mxu0 0
    %3222 = vmatpush.bf16.msra.mxu0 0
    %3223 = vmatpush.bf16.msra.mxu0 0
    %3224 = vmatpush.bf16.msra.mxu0 0
    %3225 = vmatpush.bf16.msra.mxu0 0
    %3226 = vmatpush.bf16.msra.mxu0 0
    %3227 = vmatpush.bf16.msra.mxu0 %v3215
    %3228 = vmatpush.bf16.msra.mxu0 %v3214
    %3229 = vmatmul.bf16.gmra.mxu0 %v3219
    %v3230 = vpop.f32.mrf.mxu0
    %v3231 = vadd.f32 %v3204, %v3230
    %v3232 = vpop.f32.mrf.mxu0
    %3233 = vdwg.mxu0
    %v3238 = vunpack.c.l.b16 %v3066
    %v3239 = vunpack.c.l.b16 %v3067
    %v3240 = vunpack.c.l.b16 %v3068
    %v3241 = vunpack.c.l.b16 %v3069
    %v3242 = vpack.c.b16 %v3239, %v3238
    %v3243 = vpack.c.b16 %v3241, %v3240
    %3246 = vmatpush.bf16.msra.mxu0 0
    %3247 = vmatpush.bf16.msra.mxu0 0
    %3248 = vmatpush.bf16.msra.mxu0 0
    %3249 = vmatpush.bf16.msra.mxu0 0
    %3250 = vmatpush.bf16.msra.mxu0 0
    %3251 = vmatpush.bf16.msra.mxu0 0
    %3252 = vmatpush.bf16.msra.mxu0 %v3243
    %3253 = vmatpush.bf16.msra.mxu0 %v3242
    %3254 = vmatmul.bf16.gmra.mxu0 %v3219
    %v3255 = vpop.f32.mrf.mxu0
    %v3256 = vadd.f32 %v3204, %v3255
    %v3257 = vpop.f32.mrf.mxu0
    %3258 = vdwg.mxu0
    %v3260 = vrot.slane %v3231, 1
    %v3261 = vrot.slane %v3231, 2
    %v3262 = vrot.slane %v3231, 3
    %v3263 = vrot.slane %v3231, 4
    %v3264 = vrot.slane %v3231, 5
    %v3265 = vrot.slane %v3231, 6
    %v3266 = vrot.slane %v3231, 7
    %vm3274 = vcmask 253952
    %3275 = vst.msk [vmem:[#allocation5] sm:$0x1] %vm3274, %v3231
    %3276 = vst.msk [vmem:[#allocation5 + $0x2] sm:$0x1] %vm3274, %v3260
    %3277 = vst.msk [vmem:[#allocation5 + $0x4] sm:$0x1] %vm3274, %v3261
    %3278 = vst.msk [vmem:[#allocation5 + $0x6] sm:$0x1] %vm3274, %v3262
    %3279 = vst.msk [vmem:[#allocation5 + $0x8] sm:$0x1] %vm3274, %v3263
    %3280 = vst.msk [vmem:[#allocation5 + $0xa] sm:$0x1] %vm3274, %v3264
    %3281 = vst.msk [vmem:[#allocation5 + $0xc] sm:$0x1] %vm3274, %v3265
    %3282 = vst.msk [vmem:[#allocation5 + $0xe] sm:$0x1] %vm3274, %v3266
    %v3284 = vrot.slane %v3256, 1
    %v3285 = vrot.slane %v3256, 2
    %v3286 = vrot.slane %v3256, 3
    %v3287 = vrot.slane %v3256, 4
    %v3288 = vrot.slane %v3256, 5
    %v3289 = vrot.slane %v3256, 6
    %v3290 = vrot.slane %v3256, 7
    %3298 = vst.msk [vmem:[#allocation5 + $0x1] sm:$0x1] %vm3274, %v3256
    %3299 = vst.msk [vmem:[#allocation5 + $0x3] sm:$0x1] %vm3274, %v3284
    %3300 = vst.msk [vmem:[#allocation5 + $0x5] sm:$0x1] %vm3274, %v3285
    %3301 = vst.msk [vmem:[#allocation5 + $0x7] sm:$0x1] %vm3274, %v3286
    %3302 = vst.msk [vmem:[#allocation5 + $0x9] sm:$0x1] %vm3274, %v3287
    %3303 = vst.msk [vmem:[#allocation5 + $0xb] sm:$0x1] %vm3274, %v3288
    %3304 = vst.msk [vmem:[#allocation5 + $0xd] sm:$0x1] %vm3274, %v3289
    %3305 = vst.msk [vmem:[#allocation5 + $0xf] sm:$0x1] %vm3274, %v3290
    %v3306 = vld [vmem:[#allocation5] sm:$0x3]
    %v3307 = vld [vmem:[#allocation5 + $0x2] sm:$0x3]
    %v3308 = vld [vmem:[#allocation5 + $0x4] sm:$0x3]
    %v3309 = vld [vmem:[#allocation5 + $0x6] sm:$0x3]
    %v3310 = vld [vmem:[#allocation5 + $0x8] sm:$0x3]
    %v3311 = vld [vmem:[#allocation5 + $0xa] sm:$0x3]
    %v3312 = vld [vmem:[#allocation5 + $0xc] sm:$0x3]
    %v3313 = vld [vmem:[#allocation5 + $0xe] sm:$0x3]
    %3322 = vst [vmem:[#allocation1] ss:$4 sm:$0xff] %v3306
    %s3323 = scalar_lea.vmem [#allocation1], 1
    %3324 = vst [vmem:[%s3323] ss:$4 sm:$0xff] %v3307
    %s3325 = scalar_lea.vmem [#allocation1], 2
    %3326 = vst [vmem:[%s3325] ss:$4 sm:$0xff] %v3308
    %s3327 = scalar_lea.vmem [#allocation1], 3
    %3328 = vst [vmem:[%s3327] ss:$4 sm:$0xff] %v3309
    %v3329 = vld.sshfl [vmem:[#allocation1] sm:$0xff pattern:$0x73625140]
    %s3330 = scalar_lea.vmem [#allocation1], 32
    %3331 = vst [vmem:[%s3330] ss:$4 sm:$0xff] %v3310
    %s3332 = scalar_lea.vmem [#allocation1], 33
    %3333 = vst [vmem:[%s3332] ss:$4 sm:$0xff] %v3311
    %s3334 = scalar_lea.vmem [#allocation1], 34
    %3335 = vst [vmem:[%s3334] ss:$4 sm:$0xff] %v3312
    %s3336 = scalar_lea.vmem [#allocation1], 35
    %3337 = vst [vmem:[%s3336] ss:$4 sm:$0xff] %v3313
    %v3338 = vld.sshfl [vmem:[#allocation1 + $0x20] sm:$0xff pattern:$0x73625140]
    %v3339 = vrot.slane %v3329, 7
    %v3340 = vrot.slane %v3338, 7
    %v3343 = vsel %vm560, 0.0, %v3339
    %v3344 = vsel %vm560, 0.0, %v3340
    %3345 = vst [vmem:[#allocation1] ss:$4 sm:$0xff] %v3306
    %s3346 = scalar_lea.vmem [#allocation1], 1
    %3347 = vst [vmem:[%s3346] ss:$4 sm:$0xff] %v3307
    %s3348 = scalar_lea.vmem [#allocation1], 2
    %3349 = vst [vmem:[%s3348] ss:$4 sm:$0xff] %v3308
    %s3350 = scalar_lea.vmem [#allocation1], 3
    %3351 = vst [vmem:[%s3350] ss:$4 sm:$0xff] %v3309
    %v3352 = vld.sshfl [vmem:[#allocation1] sm:$0xff pattern:$0x73625140]
    %s3353 = scalar_lea.vmem [#allocation1], 32
    %3354 = vst [vmem:[%s3353] ss:$4 sm:$0xff] %v3310
    %s3355 = scalar_lea.vmem [#allocation1], 33
    %3356 = vst [vmem:[%s3355] ss:$4 sm:$0xff] %v3311
    %s3357 = scalar_lea.vmem [#allocation1], 34
    %3358 = vst [vmem:[%s3357] ss:$4 sm:$0xff] %v3312
    %s3359 = scalar_lea.vmem [#allocation1], 35
    %3360 = vst [vmem:[%s3359] ss:$4 sm:$0xff] %v3313
    %v3361 = vld.sshfl [vmem:[#allocation1 + $0x20] sm:$0xff pattern:$0x73625140]
    %v3362 = vrot.slane %v3352, 1
    %v3363 = vrot.slane %v3361, 1
    %v3366 = vsel %vm585, %v3362, 0.0
    %v3367 = vsel %vm585, %v3363, 0.0
    %3368 = vst [vmem:[#allocation1] ss:$4 sm:$0xff] %v3306
    %s3369 = scalar_lea.vmem [#allocation1], 1
    %3370 = vst [vmem:[%s3369] ss:$4 sm:$0xff] %v3307
    %s3371 = scalar_lea.vmem [#allocation1], 2
    %3372 = vst [vmem:[%s3371] ss:$4 sm:$0xff] %v3308
    %s3373 = scalar_lea.vmem [#allocation1], 3
    %3374 = vst [vmem:[%s3373] ss:$4 sm:$0xff] %v3309
    %v3375 = vld.sshfl [vmem:[#allocation1] sm:$0xff pattern:$0x73625140]
    %s3376 = scalar_lea.vmem [#allocation1], 32
    %3377 = vst [vmem:[%s3376] ss:$4 sm:$0xff] %v3310
    %s3378 = scalar_lea.vmem [#allocation1], 33
    %3379 = vst [vmem:[%s3378] ss:$4 sm:$0xff] %v3311
    %s3380 = scalar_lea.vmem [#allocation1], 34
    %3381 = vst [vmem:[%s3380] ss:$4 sm:$0xff] %v3312
    %s3382 = scalar_lea.vmem [#allocation1], 35
    %3383 = vst [vmem:[%s3382] ss:$4 sm:$0xff] %v3313
    %v3384 = vld.sshfl [vmem:[#allocation1 + $0x20] sm:$0xff pattern:$0x73625140]
    %3385 = vrot.lane.b32.xlu0 %v3375, 32
    %v3386 = vpop.permute.xlu0 %3385
    %3387 = vrot.lane.b32.xlu0 %v3384, 32
    %v3388 = vpop.permute.xlu0 %3387
    %3393 = vrot.lane.b32.xlu0 %v3366, 64
    %v3394 = vpop.permute.xlu0 %3393
    %3395 = vrot.lane.b32.xlu0 %v3367, 64
    %v3396 = vpop.permute.xlu0 %3395
    %v3399 = vsel %vm838, %v3343, %v3386
    %v3400 = vsel %vm838, %v3344, %v3388
    %v3401 = vsel %vm847, %v3399, %v3394
    %v3402 = vsel %vm847, %v3400, %v3396
    %v3403 = vpack.c.bf16 %v3402, %v3401
    %v3406 = vrot.slane %v3060, 7
    %v3407 = vrot.slane %v3061, 7
    %v3410 = vsel %vm560, 0.0, %v3406
    %v3411 = vsel %vm560, 0.0, %v3407
    %v3412 = vrot.slane %v3060, 1
    %v3413 = vrot.slane %v3061, 1
    %v3416 = vsel %vm585, %v3412, 0.0
    %v3417 = vsel %vm585, %v3413, 0.0
    %v3418 = vpack.c.bf16 %v3411, %v3410
    %v3419 = vpack.c.bf16 %v3061, %v3060
    %v3420 = vpack.c.bf16 %v3417, %v3416
    %v3469 = vunpack.c.l.b16 %v3083
    %v3470 = vunpack.c.l.b16 %v3084
    %v3471 = vunpack.c.l.b16 %v3085
    %v3472 = vunpack.c.l.b16 %v3086
    %v3473 = vunpack.c.l.b16 %v3087
    %v3474 = vunpack.c.l.b16 %v3088
    %v3475 = vunpack.c.l.b16 %v3089
    %v3476 = vunpack.c.l.b16 %v3090
    %v3477 = vunpack.c.l.b16 %v3091
    %v3478 = vunpack.c.l.b16 %v3092
    %v3479 = vunpack.c.l.b16 %v3093
    %v3480 = vunpack.c.l.b16 %v3094
    %v3481 = vunpack.c.l.b16 %v3095
    %v3482 = vunpack.c.l.b16 %v3096
    %v3483 = vunpack.c.l.b16 %v3097
    %v3484 = vunpack.c.l.b16 %v3098
    %v3485 = vunpack.c.l.b16 %v3099
    %v3486 = vunpack.c.l.b16 %v3100
    %v3487 = vunpack.c.l.b16 %v3101
    %v3488 = vunpack.c.l.b16 %v3102
    %v3489 = vunpack.c.l.b16 %v3103
    %v3490 = vunpack.c.l.b16 %v3104
    %v3491 = vunpack.c.l.b16 %v3105
    %v3492 = vunpack.c.l.b16 %v3106
    %v3493 = vunpack.c.l.b16 %v3107
    %v3494 = vunpack.c.l.b16 %v3108
    %v3495 = vunpack.c.l.b16 %v3109
    %v3496 = vunpack.c.l.b16 %v3110
    %v3497 = vunpack.c.l.b16 %v3111
    %v3498 = vunpack.c.l.b16 %v3112
    %v3499 = vunpack.c.l.b16 %v3113
    %v3500 = vunpack.c.l.b16 %v3114
    %v3501 = vunpack.c.l.b16 %v3115
    %v3502 = vunpack.c.l.b16 %v3116
    %v3503 = vunpack.c.l.b16 %v3117
    %v3504 = vunpack.c.l.b16 %v3118
    %v3505 = vunpack.c.l.b16 %v3119
    %v3506 = vunpack.c.l.b16 %v3120
    %v3507 = vunpack.c.l.b16 %v3121
    %v3508 = vunpack.c.l.b16 %v3122
    %v3509 = vunpack.c.l.b16 %v3123
    %v3510 = vunpack.c.l.b16 %v3124
    %v3511 = vunpack.c.l.b16 %v3125
    %v3512 = vunpack.c.l.b16 %v3126
    %v3513 = vunpack.c.l.b16 %v3127
    %v3514 = vunpack.c.l.b16 %v3128
    %v3515 = vunpack.c.l.b16 %v3129
    %v3516 = vunpack.c.l.b16 %v3130
    %v3517 = vpack.c.b16 %v3470, %v3469
    %v3518 = vpack.c.b16 %v3472, %v3471
    %v3519 = vpack.c.b16 %v3474, %v3473
    %v3520 = vpack.c.b16 %v3476, %v3475
    %v3521 = vpack.c.b16 %v3478, %v3477
    %v3522 = vpack.c.b16 %v3480, %v3479
    %v3523 = vpack.c.b16 %v3482, %v3481
    %v3524 = vpack.c.b16 %v3484, %v3483
    %v3525 = vpack.c.b16 %v3486, %v3485
    %v3526 = vpack.c.b16 %v3488, %v3487
    %v3527 = vpack.c.b16 %v3490, %v3489
    %v3528 = vpack.c.b16 %v3492, %v3491
    %v3529 = vpack.c.b16 %v3494, %v3493
    %v3530 = vpack.c.b16 %v3496, %v3495
    %v3531 = vpack.c.b16 %v3498, %v3497
    %v3532 = vpack.c.b16 %v3500, %v3499
    %v3533 = vpack.c.b16 %v3502, %v3501
    %v3534 = vpack.c.b16 %v3504, %v3503
    %v3535 = vpack.c.b16 %v3506, %v3505
    %v3536 = vpack.c.b16 %v3508, %v3507
    %v3537 = vpack.c.b16 %v3510, %v3509
    %v3538 = vpack.c.b16 %v3512, %v3511
    %v3539 = vpack.c.b16 %v3514, %v3513
    %v3540 = vpack.c.b16 %v3516, %v3515
    %3565 = vmatpush.bf16.msra.mxu0 %v3524
    %3566 = vmatpush.bf16.msra.mxu0 %v3523
    %3567 = vmatpush.bf16.msra.mxu0 %v3522
    %3568 = vmatpush.bf16.msra.mxu0 %v3521
    %3569 = vmatpush.bf16.msra.mxu0 %v3520
    %3570 = vmatpush.bf16.msra.mxu0 %v3519
    %3571 = vmatpush.bf16.msra.mxu0 %v3518
    %3572 = vmatpush.bf16.msra.mxu0 %v3517
    %3573 = vmatmul.bf16.gmra.mxu0 %v3418
    %v3574 = vpop.f32.mrf.mxu0
    %v3575 = vadd.f32 0.0, %v3574
    %v3576 = vpop.f32.mrf.mxu0
    %v3577 = vadd.f32 0.0, %v3576
    %3578 = vdwg.mxu0
    %3579 = vmatpush.bf16.msra.mxu0 %v3532
    %3580 = vmatpush.bf16.msra.mxu0 %v3531
    %3581 = vmatpush.bf16.msra.mxu0 %v3530
    %3582 = vmatpush.bf16.msra.mxu0 %v3529
    %3583 = vmatpush.bf16.msra.mxu0 %v3528
    %3584 = vmatpush.bf16.msra.mxu0 %v3527
    %3585 = vmatpush.bf16.msra.mxu0 %v3526
    %3586 = vmatpush.bf16.msra.mxu0 %v3525
    %3587 = vmatmul.bf16.gmra.mxu0 %v3419
    %v3588 = vpop.f32.mrf.mxu0
    %v3589 = vadd.f32 %v3575, %v3588
    %v3590 = vpop.f32.mrf.mxu0
    %v3591 = vadd.f32 %v3577, %v3590
    %3592 = vdwg.mxu0
    %3593 = vmatpush.bf16.msra.mxu0 %v3540
    %3594 = vmatpush.bf16.msra.mxu0 %v3539
    %3595 = vmatpush.bf16.msra.mxu0 %v3538
    %3596 = vmatpush.bf16.msra.mxu0 %v3537
    %3597 = vmatpush.bf16.msra.mxu0 %v3536
    %3598 = vmatpush.bf16.msra.mxu0 %v3535
    %3599 = vmatpush.bf16.msra.mxu0 %v3534
    %3600 = vmatpush.bf16.msra.mxu0 %v3533
    %3601 = vmatmul.bf16.gmra.mxu0 %v3420
    %v3602 = vpop.f32.mrf.mxu0
    %v3603 = vadd.f32 %v3589, %v3602
    %v3604 = vpop.f32.mrf.mxu0
    %v3605 = vadd.f32 %v3591, %v3604
    %3606 = vdwg.mxu0
    %v3619 = vunpack.c.l.b16 %v3071
    %v3620 = vunpack.c.l.b16 %v3072
    %v3621 = vunpack.c.l.b16 %v3073
    %v3622 = vunpack.c.l.b16 %v3074
    %v3623 = vunpack.c.l.b16 %v3075
    %v3624 = vunpack.c.l.b16 %v3076
    %v3625 = vunpack.c.l.b16 %v3077
    %v3626 = vunpack.c.l.b16 %v3078
    %v3627 = vunpack.c.l.b16 %v3079
    %v3628 = vunpack.c.l.b16 %v3080
    %v3629 = vunpack.c.l.b16 %v3081
    %v3630 = vunpack.c.l.b16 %v3082
    %v3631 = vpack.c.b16 %v3620, %v3619
    %v3632 = vpack.c.b16 %v3622, %v3621
    %v3633 = vpack.c.b16 %v3624, %v3623
    %v3634 = vpack.c.b16 %v3626, %v3625
    %v3635 = vpack.c.b16 %v3628, %v3627
    %v3636 = vpack.c.b16 %v3630, %v3629
    %v3644 = vsel %vm899, %v3403, 0
    %3646 = vmatpush.bf16.msra.mxu0 0
    %3647 = vmatpush.bf16.msra.mxu0 0
    %3648 = vmatpush.bf16.msra.mxu0 %v3636
    %3649 = vmatpush.bf16.msra.mxu0 %v3635
    %3650 = vmatpush.bf16.msra.mxu0 %v3634
    %3651 = vmatpush.bf16.msra.mxu0 %v3633
    %3652 = vmatpush.bf16.msra.mxu0 %v3632
    %3653 = vmatpush.bf16.msra.mxu0 %v3631
    %3654 = vmatmul.bf16.gmra.mxu0 %v3644
    %v3655 = vpop.f32.mrf.mxu0
    %v3656 = vadd.f32 %v3603, %v3655
    %v3657 = vpop.f32.mrf.mxu0
    %v3658 = vadd.f32 %v3605, %v3657
    %3659 = vdwg.mxu0
    %v3661 = vperm.slane %v3131, 0
    %v3663 = vadd.f32 %v3656, %v3661
    %v3664 = vadd.f32 %v3658, %v3661
    %v3665 = vmax.f32 %v3663, 0.0
    %v3666 = vmax.f32 %v3664, 0.0
    %v3669 = vrot.slane %v3665, 7
    %v3670 = vrot.slane %v3666, 7
    %v3673 = vsel %vm560, 0.0, %v3669
    %v3674 = vsel %vm560, 0.0, %v3670
    %v3675 = vrot.slane %v3665, 1
    %v3676 = vrot.slane %v3666, 1
    %v3679 = vsel %vm585, %v3675, 0.0
    %v3680 = vsel %vm585, %v3676, 0.0
    %v3681 = vpack.c.bf16 %v3674, %v3673
    %v3682 = vpack.c.bf16 %v3666, %v3665
    %v3683 = vpack.c.bf16 %v3680, %v3679
    %v3685 = vperm.slane %v3180, 0
    %v3735 = vunpack.c.l.b16 %v3132
    %v3736 = vunpack.c.l.b16 %v3133
    %v3737 = vunpack.c.l.b16 %v3134
    %v3738 = vunpack.c.l.b16 %v3135
    %v3739 = vunpack.c.l.b16 %v3136
    %v3740 = vunpack.c.l.b16 %v3137
    %v3741 = vunpack.c.l.b16 %v3138
    %v3742 = vunpack.c.l.b16 %v3139
    %v3743 = vunpack.c.l.b16 %v3140
    %v3744 = vunpack.c.l.b16 %v3141
    %v3745 = vunpack.c.l.b16 %v3142
    %v3746 = vunpack.c.l.b16 %v3143
    %v3747 = vunpack.c.l.b16 %v3144
    %v3748 = vunpack.c.l.b16 %v3145
    %v3749 = vunpack.c.l.b16 %v3146
    %v3750 = vunpack.c.l.b16 %v3147
    %v3751 = vunpack.c.l.b16 %v3148
    %v3752 = vunpack.c.l.b16 %v3149
    %v3753 = vunpack.c.l.b16 %v3150
    %v3754 = vunpack.c.l.b16 %v3151
    %v3755 = vunpack.c.l.b16 %v3152
    %v3756 = vunpack.c.l.b16 %v3153
    %v3757 = vunpack.c.l.b16 %v3154
    %v3758 = vunpack.c.l.b16 %v3155
    %v3759 = vunpack.c.l.b16 %v3156
    %v3760 = vunpack.c.l.b16 %v3157
    %v3761 = vunpack.c.l.b16 %v3158
    %v3762 = vunpack.c.l.b16 %v3159
    %v3763 = vunpack.c.l.b16 %v3160
    %v3764 = vunpack.c.l.b16 %v3161
    %v3765 = vunpack.c.l.b16 %v3162
    %v3766 = vunpack.c.l.b16 %v3163
    %v3767 = vunpack.c.l.b16 %v3164
    %v3768 = vunpack.c.l.b16 %v3165
    %v3769 = vunpack.c.l.b16 %v3166
    %v3770 = vunpack.c.l.b16 %v3167
    %v3771 = vunpack.c.l.b16 %v3168
    %v3772 = vunpack.c.l.b16 %v3169
    %v3773 = vunpack.c.l.b16 %v3170
    %v3774 = vunpack.c.l.b16 %v3171
    %v3775 = vunpack.c.l.b16 %v3172
    %v3776 = vunpack.c.l.b16 %v3173
    %v3777 = vunpack.c.l.b16 %v3174
    %v3778 = vunpack.c.l.b16 %v3175
    %v3779 = vunpack.c.l.b16 %v3176
    %v3780 = vunpack.c.l.b16 %v3177
    %v3781 = vunpack.c.l.b16 %v3178
    %v3782 = vunpack.c.l.b16 %v3179
    %v3783 = vpack.c.b16 %v3736, %v3735
    %v3784 = vpack.c.b16 %v3738, %v3737
    %v3785 = vpack.c.b16 %v3740, %v3739
    %v3786 = vpack.c.b16 %v3742, %v3741
    %v3787 = vpack.c.b16 %v3744, %v3743
    %v3788 = vpack.c.b16 %v3746, %v3745
    %v3789 = vpack.c.b16 %v3748, %v3747
    %v3790 = vpack.c.b16 %v3750, %v3749
    %v3791 = vpack.c.b16 %v3752, %v3751
    %v3792 = vpack.c.b16 %v3754, %v3753
    %v3793 = vpack.c.b16 %v3756, %v3755
    %v3794 = vpack.c.b16 %v3758, %v3757
    %v3795 = vpack.c.b16 %v3760, %v3759
    %v3796 = vpack.c.b16 %v3762, %v3761
    %v3797 = vpack.c.b16 %v3764, %v3763
    %v3798 = vpack.c.b16 %v3766, %v3765
    %v3799 = vpack.c.b16 %v3768, %v3767
    %v3800 = vpack.c.b16 %v3770, %v3769
    %v3801 = vpack.c.b16 %v3772, %v3771
    %v3802 = vpack.c.b16 %v3774, %v3773
    %v3803 = vpack.c.b16 %v3776, %v3775
    %v3804 = vpack.c.b16 %v3778, %v3777
    %v3805 = vpack.c.b16 %v3780, %v3779
    %v3806 = vpack.c.b16 %v3782, %v3781
    %3831 = vmatpush.bf16.msra.mxu0 %v3790
    %3832 = vmatpush.bf16.msra.mxu0 %v3789
    %3833 = vmatpush.bf16.msra.mxu0 %v3788
    %3834 = vmatpush.bf16.msra.mxu0 %v3787
    %3835 = vmatpush.bf16.msra.mxu0 %v3786
    %3836 = vmatpush.bf16.msra.mxu0 %v3785
    %3837 = vmatpush.bf16.msra.mxu0 %v3784
    %3838 = vmatpush.bf16.msra.mxu0 %v3783
    %3839 = vmatmul.bf16.gmra.mxu0 %v3681
    %v3840 = vpop.f32.mrf.mxu0
    %v3841 = vadd.f32 %v3685, %v3840
    %v3842 = vpop.f32.mrf.mxu0
    %v3843 = vadd.f32 %v3685, %v3842
    %3844 = vdwg.mxu0
    %3845 = vmatpush.bf16.msra.mxu0 %v3798
    %3846 = vmatpush.bf16.msra.mxu0 %v3797
    %3847 = vmatpush.bf16.msra.mxu0 %v3796
    %3848 = vmatpush.bf16.msra.mxu0 %v3795
    %3849 = vmatpush.bf16.msra.mxu0 %v3794
    %3850 = vmatpush.bf16.msra.mxu0 %v3793
    %3851 = vmatpush.bf16.msra.mxu0 %v3792
    %3852 = vmatpush.bf16.msra.mxu0 %v3791
    %3853 = vmatmul.bf16.gmra.mxu0 %v3682
    %v3854 = vpop.f32.mrf.mxu0
    %v3855 = vadd.f32 %v3841, %v3854
    %v3856 = vpop.f32.mrf.mxu0
    %v3857 = vadd.f32 %v3843, %v3856
    %3858 = vdwg.mxu0
    %3859 = vmatpush.bf16.msra.mxu0 %v3806
    %3860 = vmatpush.bf16.msra.mxu0 %v3805
    %3861 = vmatpush.bf16.msra.mxu0 %v3804
    %3862 = vmatpush.bf16.msra.mxu0 %v3803
    %3863 = vmatpush.bf16.msra.mxu0 %v3802
    %3864 = vmatpush.bf16.msra.mxu0 %v3801
    %3865 = vmatpush.bf16.msra.mxu0 %v3800
    %3866 = vmatpush.bf16.msra.mxu0 %v3799
    %3867 = vmatmul.bf16.gmra.mxu0 %v3683
    %v3868 = vpop.f32.mrf.mxu0
    %v3869 = vadd.f32 %v3855, %v3868
    %v3870 = vpop.f32.mrf.mxu0
    %v3871 = vadd.f32 %v3857, %v3870
    %3872 = vdwg.mxu0
    %v3873 = vmax.f32 %v3869, 0.0
    %v3874 = vmax.f32 %v3871, 0.0
    %3875 = vst [vmem:[#allocation1] ss:$4 sm:$0xff] %v3306
    %s3876 = scalar_lea.vmem [#allocation1], 1
    %3877 = vst [vmem:[%s3876] ss:$4 sm:$0xff] %v3307
    %s3878 = scalar_lea.vmem [#allocation1], 2
    %3879 = vst [vmem:[%s3878] ss:$4 sm:$0xff] %v3308
    %s3880 = scalar_lea.vmem [#allocation1], 3
    %3881 = vst [vmem:[%s3880] ss:$4 sm:$0xff] %v3309
    %s3882 = scalar_lea.vmem [#allocation1], 32
    %3883 = vst [vmem:[%s3882] ss:$4 sm:$0xff] %v3310
    %s3884 = scalar_lea.vmem [#allocation1], 33
    %3885 = vst [vmem:[%s3884] ss:$4 sm:$0xff] %v3311
    %s3886 = scalar_lea.vmem [#allocation1], 34
    %3887 = vst [vmem:[%s3886] ss:$4 sm:$0xff] %v3312
    %s3888 = scalar_lea.vmem [#allocation1], 35
    %3889 = vst [vmem:[%s3888] ss:$4 sm:$0xff] %v3313
    %v3890 = vld.sshfl [vmem:[#allocation1] sm:$0xff pattern:$0x73625140]
    %v3891 = vld.sshfl [vmem:[#allocation1 + $0x20] sm:$0xff pattern:$0x73625140]
    %v3894 = vpack.c.bf16 %v3891, %v3890
    %v3911 = vunpack.c.l.b16 %v3185
    %v3912 = vunpack.c.l.b16 %v3186
    %v3913 = vunpack.c.l.b16 %v3187
    %v3914 = vunpack.c.l.b16 %v3188
    %v3915 = vunpack.c.l.b16 %v3189
    %v3916 = vunpack.c.l.b16 %v3190
    %v3917 = vunpack.c.l.b16 %v3191
    %v3918 = vunpack.c.l.b16 %v3192
    %v3919 = vunpack.c.l.b16 %v3193
    %v3920 = vunpack.c.l.b16 %v3194
    %v3921 = vunpack.c.l.b16 %v3195
    %v3922 = vunpack.c.l.b16 %v3196
    %v3923 = vunpack.c.l.b16 %v3197
    %v3924 = vunpack.c.l.b16 %v3198
    %v3925 = vunpack.c.l.b16 %v3199
    %v3926 = vunpack.c.l.b16 %v3200
    %v3927 = vpack.c.b16 %v3912, %v3911
    %v3928 = vpack.c.b16 %v3914, %v3913
    %v3929 = vpack.c.b16 %v3916, %v3915
    %v3930 = vpack.c.b16 %v3918, %v3917
    %v3931 = vpack.c.b16 %v3920, %v3919
    %v3932 = vpack.c.b16 %v3922, %v3921
    %v3933 = vpack.c.b16 %v3924, %v3923
    %v3934 = vpack.c.b16 %v3926, %v3925
    %3943 = vmatpush.bf16.msra.mxu0 %v3934
    %3944 = vmatpush.bf16.msra.mxu0 %v3933
    %3945 = vmatpush.bf16.msra.mxu0 %v3932
    %3946 = vmatpush.bf16.msra.mxu0 %v3931
    %3947 = vmatpush.bf16.msra.mxu0 %v3930
    %3948 = vmatpush.bf16.msra.mxu0 %v3929
    %3949 = vmatpush.bf16.msra.mxu0 %v3928
    %3950 = vmatpush.bf16.msra.mxu0 %v3927
    %3951 = vmatmul.bf16.gmra.mxu0 %v3419
    %v3952 = vpop.f32.mrf.mxu0
    %v3953 = vadd.f32 0.0, %v3952
    %v3954 = vpop.f32.mrf.mxu0
    %v3955 = vadd.f32 0.0, %v3954
    %3956 = vdwg.mxu0
    %v3961 = vunpack.c.l.b16 %v3181
    %v3962 = vunpack.c.l.b16 %v3182
    %v3963 = vunpack.c.l.b16 %v3183
    %v3964 = vunpack.c.l.b16 %v3184
    %v3965 = vpack.c.b16 %v3962, %v3961
    %v3966 = vpack.c.b16 %v3964, %v3963
    %v3970 = vsel %vm838, %v3894, 0
    %3972 = vmatpush.bf16.msra.mxu0 0
    %3973 = vmatpush.bf16.msra.mxu0 0
    %3974 = vmatpush.bf16.msra.mxu0 0
    %3975 = vmatpush.bf16.msra.mxu0 0
    %3976 = vmatpush.bf16.msra.mxu0 0
    %3977 = vmatpush.bf16.msra.mxu0 0
    %3978 = vmatpush.bf16.msra.mxu0 %v3966
    %3979 = vmatpush.bf16.msra.mxu0 %v3965
    %3980 = vmatmul.bf16.gmra.mxu0 %v3970
    %v3981 = vpop.f32.mrf.mxu0
    %v3982 = vadd.f32 %v3953, %v3981
    %v3983 = vpop.f32.mrf.mxu0
    %v3984 = vadd.f32 %v3955, %v3983
    %3985 = vdwg.mxu0
    %v3987 = vperm.slane %v3201, 0
    %v3989 = vadd.f32 %v3982, %v3987
    %v3990 = vadd.f32 %v3984, %v3987
    %v3991 = vadd.f32 %v3873, %v3989
    %v3992 = vadd.f32 %v3874, %v3990
    %v3993 = vmax.f32 %v3991, 0.0
    %v3994 = vmax.f32 %v3992, 0.0
    %v3995 = vld [vmem:[#allocation3] sm:$0xff]
    %v3996 = vld [vmem:[#allocation3 + $0x8] sm:$0xff]
    %v3997 = vld [vmem:[#allocation3 + $0x10] sm:$0xff]
    %v3998 = vld [vmem:[#allocation3 + $0x18] sm:$0xff]
    %v3999 = vld [vmem:[%s81] sm:$0xf]
    %v4000 = vld [vmem:[%s81 + $0x4] sm:$0xf]
    %v4001 = vld [vmem:[%s81 + $0x8] sm:$0xf]
    %v4002 = vld [vmem:[%s81 + $0xc] sm:$0xf]
    %v4003 = vld [vmem:[%s81 + $0x10] sm:$0xf]
    %v4004 = vld [vmem:[%s81 + $0x14] sm:$0xf]
    %v4005 = vld [vmem:[%s81 + $0x18] sm:$0xf]
    %v4006 = vld [vmem:[%s81 + $0x1c] sm:$0xf]
    %v4007 = vld [vmem:[%s81 + $0x20] sm:$0xf]
    %v4008 = vld [vmem:[%s81 + $0x24] sm:$0xf]
    %v4009 = vld [vmem:[%s81 + $0x28] sm:$0xf]
    %v4010 = vld [vmem:[%s81 + $0x2c] sm:$0xf]
    %v4011 = vld [vmem:[%s81 + $0x30] sm:$0xf]
    %v4012 = vld [vmem:[%s81 + $0x34] sm:$0xf]
    %v4013 = vld [vmem:[%s81 + $0x38] sm:$0xf]
    %v4014 = vld [vmem:[%s81 + $0x3c] sm:$0xf]
    %v4015 = vld [vmem:[%s81 + $0x40] sm:$0xf]
    %v4016 = vld [vmem:[%s81 + $0x44] sm:$0xf]
    %v4017 = vld [vmem:[%s81 + $0x48] sm:$0xf]
    %v4018 = vld [vmem:[%s81 + $0x4c] sm:$0xf]
    %v4019 = vld [vmem:[%s81 + $0x50] sm:$0xf]
    %v4020 = vld [vmem:[%s81 + $0x54] sm:$0xf]
    %v4021 = vld [vmem:[%s81 + $0x58] sm:$0xf]
    %v4022 = vld [vmem:[%s81 + $0x5c] sm:$0xf]
    %v4023 = vld [vmem:[%s81 + $0x60] sm:$0xf]
    %v4024 = vld [vmem:[%s81 + $0x64] sm:$0xf]
    %v4025 = vld [vmem:[%s81 + $0x68] sm:$0xf]
    %v4026 = vld [vmem:[%s81 + $0x6c] sm:$0xf]
    %v4027 = vld [vmem:[%s81 + $0x70] sm:$0xf]
    %v4028 = vld [vmem:[%s81 + $0x74] sm:$0xf]
    %v4029 = vld [vmem:[%s81 + $0x78] sm:$0xf]
    %v4030 = vld [vmem:[%s81 + $0x7c] sm:$0xf]
    %v4031 = vld [vmem:[#allocation25] sm:$0x1]
    %v4032 = vld [vmem:[%s85] sm:$0xf]
    %v4033 = vld [vmem:[%s85 + $0x4] sm:$0xf]
    %v4034 = vld [vmem:[%s85 + $0x8] sm:$0xf]
    %v4035 = vld [vmem:[%s85 + $0xc] sm:$0xf]
    %v4036 = vld [vmem:[%s85 + $0x10] sm:$0xf]
    %v4037 = vld [vmem:[%s85 + $0x14] sm:$0xf]
    %v4038 = vld [vmem:[%s85 + $0x18] sm:$0xf]
    %v4039 = vld [vmem:[%s85 + $0x1c] sm:$0xf]
    %v4040 = vld [vmem:[%s85 + $0x20] sm:$0xf]
    %v4041 = vld [vmem:[%s85 + $0x24] sm:$0xf]
    %v4042 = vld [vmem:[%s85 + $0x28] sm:$0xf]
    %v4043 = vld [vmem:[%s85 + $0x2c] sm:$0xf]
    %v4044 = vld [vmem:[%s85 + $0x30] sm:$0xf]
    %v4045 = vld [vmem:[%s85 + $0x34] sm:$0xf]
    %v4046 = vld [vmem:[%s85 + $0x38] sm:$0xf]
    %v4047 = vld [vmem:[%s85 + $0x3c] sm:$0xf]
    %v4048 = vld [vmem:[%s85 + $0x40] sm:$0xf]
    %v4049 = vld [vmem:[%s85 + $0x44] sm:$0xf]
    %v4050 = vld [vmem:[%s85 + $0x48] sm:$0xf]
    %v4051 = vld [vmem:[%s85 + $0x4c] sm:$0xf]
    %v4052 = vld [vmem:[%s85 + $0x50] sm:$0xf]
    %v4053 = vld [vmem:[%s85 + $0x54] sm:$0xf]
    %v4054 = vld [vmem:[%s85 + $0x58] sm:$0xf]
    %v4055 = vld [vmem:[%s85 + $0x5c] sm:$0xf]
    %v4056 = vld [vmem:[%s85 + $0x60] sm:$0xf]
    %v4057 = vld [vmem:[%s85 + $0x64] sm:$0xf]
    %v4058 = vld [vmem:[%s85 + $0x68] sm:$0xf]
    %v4059 = vld [vmem:[%s85 + $0x6c] sm:$0xf]
    %v4060 = vld [vmem:[%s85 + $0x70] sm:$0xf]
    %v4061 = vld [vmem:[%s85 + $0x74] sm:$0xf]
    %v4062 = vld [vmem:[%s85 + $0x78] sm:$0xf]
    %v4063 = vld [vmem:[%s85 + $0x7c] sm:$0xf]
    %v4064 = vld [vmem:[%s85 + $0x80] sm:$0xf]
    %v4065 = vld [vmem:[%s85 + $0x84] sm:$0xf]
    %v4066 = vld [vmem:[%s85 + $0x88] sm:$0xf]
    %v4067 = vld [vmem:[%s85 + $0x8c] sm:$0xf]
    %v4068 = vld [vmem:[%s85 + $0x90] sm:$0xf]
    %v4069 = vld [vmem:[%s85 + $0x94] sm:$0xf]
    %v4070 = vld [vmem:[%s85 + $0x98] sm:$0xf]
    %v4071 = vld [vmem:[%s85 + $0x9c] sm:$0xf]
    %v4072 = vld [vmem:[%s85 + $0xa0] sm:$0xf]
    %v4073 = vld [vmem:[%s85 + $0xa4] sm:$0xf]
    %v4074 = vld [vmem:[%s85 + $0xa8] sm:$0xf]
    %v4075 = vld [vmem:[%s85 + $0xac] sm:$0xf]
    %v4076 = vld [vmem:[%s85 + $0xb0] sm:$0xf]
    %v4077 = vld [vmem:[%s85 + $0xb4] sm:$0xf]
    %v4078 = vld [vmem:[%s85 + $0xb8] sm:$0xf]
    %v4079 = vld [vmem:[%s85 + $0xbc] sm:$0xf]
    %v4080 = vld [vmem:[%s87] sm:$0xf]
    %v4081 = vld [vmem:[%s87 + $0x4] sm:$0xf]
    %v4082 = vld [vmem:[%s87 + $0x8] sm:$0xf]
    %v4083 = vld [vmem:[%s87 + $0xc] sm:$0xf]
    %v4084 = vld [vmem:[%s87 + $0x10] sm:$0xf]
    %v4085 = vld [vmem:[%s87 + $0x14] sm:$0xf]
    %v4086 = vld [vmem:[%s87 + $0x18] sm:$0xf]
    %v4087 = vld [vmem:[%s87 + $0x1c] sm:$0xf]
    %v4088 = vld [vmem:[%s87 + $0x20] sm:$0xf]
    %v4089 = vld [vmem:[%s87 + $0x24] sm:$0xf]
    %v4090 = vld [vmem:[%s87 + $0x28] sm:$0xf]
    %v4091 = vld [vmem:[%s87 + $0x2c] sm:$0xf]
    %v4092 = vld [vmem:[%s87 + $0x30] sm:$0xf]
    %v4093 = vld [vmem:[%s87 + $0x34] sm:$0xf]
    %v4094 = vld [vmem:[%s87 + $0x38] sm:$0xf]
    %v4095 = vld [vmem:[%s87 + $0x3c] sm:$0xf]
    %v4096 = vld [vmem:[%s87 + $0x40] sm:$0xf]
    %v4097 = vld [vmem:[%s87 + $0x44] sm:$0xf]
    %v4098 = vld [vmem:[%s87 + $0x48] sm:$0xf]
    %v4099 = vld [vmem:[%s87 + $0x4c] sm:$0xf]
    %v4100 = vld [vmem:[%s87 + $0x50] sm:$0xf]
    %v4101 = vld [vmem:[%s87 + $0x54] sm:$0xf]
    %v4102 = vld [vmem:[%s87 + $0x58] sm:$0xf]
    %v4103 = vld [vmem:[%s87 + $0x5c] sm:$0xf]
    %v4104 = vld [vmem:[#allocation27] sm:$0x1]
    %v4105 = vld [vmem:[%s91] sm:$0xf]
    %v4106 = vld [vmem:[%s91 + $0x4] sm:$0xf]
    %v4107 = vld [vmem:[%s91 + $0x8] sm:$0xf]
    %v4108 = vld [vmem:[%s91 + $0xc] sm:$0xf]
    %v4109 = vld [vmem:[%s91 + $0x10] sm:$0xf]
    %v4110 = vld [vmem:[%s91 + $0x14] sm:$0xf]
    %v4111 = vld [vmem:[%s91 + $0x18] sm:$0xf]
    %v4112 = vld [vmem:[%s91 + $0x1c] sm:$0xf]
    %v4113 = vld [vmem:[%s91 + $0x20] sm:$0xf]
    %v4114 = vld [vmem:[%s91 + $0x24] sm:$0xf]
    %v4115 = vld [vmem:[%s91 + $0x28] sm:$0xf]
    %v4116 = vld [vmem:[%s91 + $0x2c] sm:$0xf]
    %v4117 = vld [vmem:[%s91 + $0x30] sm:$0xf]
    %v4118 = vld [vmem:[%s91 + $0x34] sm:$0xf]
    %v4119 = vld [vmem:[%s91 + $0x38] sm:$0xf]
    %v4120 = vld [vmem:[%s91 + $0x3c] sm:$0xf]
    %v4121 = vld [vmem:[%s91 + $0x40] sm:$0xf]
    %v4122 = vld [vmem:[%s91 + $0x44] sm:$0xf]
    %v4123 = vld [vmem:[%s91 + $0x48] sm:$0xf]
    %v4124 = vld [vmem:[%s91 + $0x4c] sm:$0xf]
    %v4125 = vld [vmem:[%s91 + $0x50] sm:$0xf]
    %v4126 = vld [vmem:[%s91 + $0x54] sm:$0xf]
    %v4127 = vld [vmem:[%s91 + $0x58] sm:$0xf]
    %v4128 = vld [vmem:[%s91 + $0x5c] sm:$0xf]
    %v4129 = vld [vmem:[#allocation28] sm:$0x1]
    %v4130 = vld [vmem:[%s95] sm:$0xf]
    %v4131 = vld [vmem:[%s95 + $0x4] sm:$0xf]
    %v4132 = vld [vmem:[%s95 + $0x8] sm:$0xf]
    %v4133 = vld [vmem:[%s95 + $0xc] sm:$0xf]
    %v4134 = vld [vmem:[%s95 + $0x10] sm:$0xf]
    %v4135 = vld [vmem:[%s95 + $0x14] sm:$0xf]
    %v4136 = vld [vmem:[%s95 + $0x18] sm:$0xf]
    %v4137 = vld [vmem:[%s95 + $0x1c] sm:$0xf]
    %v4138 = vld [vmem:[%s95 + $0x20] sm:$0xf]
    %v4139 = vld [vmem:[%s95 + $0x24] sm:$0xf]
    %v4140 = vld [vmem:[%s95 + $0x28] sm:$0xf]
    %v4141 = vld [vmem:[%s95 + $0x2c] sm:$0xf]
    %v4142 = vld [vmem:[%s95 + $0x30] sm:$0xf]
    %v4143 = vld [vmem:[%s95 + $0x34] sm:$0xf]
    %v4144 = vld [vmem:[%s95 + $0x38] sm:$0xf]
    %v4145 = vld [vmem:[%s95 + $0x3c] sm:$0xf]
    %v4146 = vld [vmem:[%s97] sm:$0xf]
    %v4147 = vld [vmem:[%s97 + $0x4] sm:$0xf]
    %v4148 = vld [vmem:[%s97 + $0x8] sm:$0xf]
    %v4149 = vld [vmem:[%s97 + $0xc] sm:$0xf]
    %v4150 = vld [vmem:[%s97 + $0x10] sm:$0xf]
    %v4151 = vld [vmem:[%s97 + $0x14] sm:$0xf]
    %v4152 = vld [vmem:[%s97 + $0x18] sm:$0xf]
    %v4153 = vld [vmem:[%s97 + $0x1c] sm:$0xf]
    %v4154 = vld [vmem:[#allocation30] sm:$0x1]
    %v4155 = vpack.c.bf16 %v3994, %v3993
    %v4157 = vperm.slane %v4031, 0
    %v4175 = vunpack.c.l.b16 %v3999
    %v4176 = vunpack.c.l.b16 %v4000
    %v4177 = vunpack.c.l.b16 %v4001
    %v4178 = vunpack.c.l.b16 %v4002
    %v4179 = vunpack.c.l.b16 %v4003
    %v4180 = vunpack.c.l.b16 %v4004
    %v4181 = vunpack.c.l.b16 %v4005
    %v4182 = vunpack.c.l.b16 %v4006
    %v4183 = vunpack.c.l.b16 %v4007
    %v4184 = vunpack.c.l.b16 %v4008
    %v4185 = vunpack.c.l.b16 %v4009
    %v4186 = vunpack.c.l.b16 %v4010
    %v4187 = vunpack.c.l.b16 %v4011
    %v4188 = vunpack.c.l.b16 %v4012
    %v4189 = vunpack.c.l.b16 %v4013
    %v4190 = vunpack.c.l.b16 %v4014
    %v4191 = vpack.c.b16 %v4176, %v4175
    %v4192 = vpack.c.b16 %v4178, %v4177
    %v4193 = vpack.c.b16 %v4180, %v4179
    %v4194 = vpack.c.b16 %v4182, %v4181
    %v4195 = vpack.c.b16 %v4184, %v4183
    %v4196 = vpack.c.b16 %v4186, %v4185
    %v4197 = vpack.c.b16 %v4188, %v4187
    %v4198 = vpack.c.b16 %v4190, %v4189
    %4207 = vmatpush.bf16.msra.mxu0 %v4198
    %4208 = vmatpush.bf16.msra.mxu0 %v4197
    %4209 = vmatpush.bf16.msra.mxu0 %v4196
    %4210 = vmatpush.bf16.msra.mxu0 %v4195
    %4211 = vmatpush.bf16.msra.mxu0 %v4194
    %4212 = vmatpush.bf16.msra.mxu0 %v4193
    %4213 = vmatpush.bf16.msra.mxu0 %v4192
    %4214 = vmatpush.bf16.msra.mxu0 %v4191
    %4215 = vmatmul.bf16.gmra.mxu0 %v4155
    %v4216 = vpop.f32.mrf.mxu0
    %v4217 = vadd.f32 %v4157, %v4216
    %v4218 = vpop.f32.mrf.mxu0
    %v4219 = vadd.f32 %v4157, %v4218
    %4220 = vdwg.mxu0
    %v4237 = vunpack.c.l.b16 %v4015
    %v4238 = vunpack.c.l.b16 %v4016
    %v4239 = vunpack.c.l.b16 %v4017
    %v4240 = vunpack.c.l.b16 %v4018
    %v4241 = vunpack.c.l.b16 %v4019
    %v4242 = vunpack.c.l.b16 %v4020
    %v4243 = vunpack.c.l.b16 %v4021
    %v4244 = vunpack.c.l.b16 %v4022
    %v4245 = vunpack.c.l.b16 %v4023
    %v4246 = vunpack.c.l.b16 %v4024
    %v4247 = vunpack.c.l.b16 %v4025
    %v4248 = vunpack.c.l.b16 %v4026
    %v4249 = vunpack.c.l.b16 %v4027
    %v4250 = vunpack.c.l.b16 %v4028
    %v4251 = vunpack.c.l.b16 %v4029
    %v4252 = vunpack.c.l.b16 %v4030
    %v4253 = vpack.c.b16 %v4238, %v4237
    %v4254 = vpack.c.b16 %v4240, %v4239
    %v4255 = vpack.c.b16 %v4242, %v4241
    %v4256 = vpack.c.b16 %v4244, %v4243
    %v4257 = vpack.c.b16 %v4246, %v4245
    %v4258 = vpack.c.b16 %v4248, %v4247
    %v4259 = vpack.c.b16 %v4250, %v4249
    %v4260 = vpack.c.b16 %v4252, %v4251
    %4269 = vmatpush.bf16.msra.mxu0 %v4260
    %4270 = vmatpush.bf16.msra.mxu0 %v4259
    %4271 = vmatpush.bf16.msra.mxu0 %v4258
    %4272 = vmatpush.bf16.msra.mxu0 %v4257
    %4273 = vmatpush.bf16.msra.mxu0 %v4256
    %4274 = vmatpush.bf16.msra.mxu0 %v4255
    %4275 = vmatpush.bf16.msra.mxu0 %v4254
    %4276 = vmatpush.bf16.msra.mxu0 %v4253
    %4277 = vmatmul.bf16.gmra.mxu0 %v4155
    %v4278 = vpop.f32.mrf.mxu0
    %v4279 = vadd.f32 %v4157, %v4278
    %v4280 = vpop.f32.mrf.mxu0
    %v4281 = vadd.f32 %v4157, %v4280
    %4282 = vdwg.mxu0
    %v4285 = vrot.slane %v4217, 1
    %v4286 = vrot.slane %v4217, 2
    %v4287 = vrot.slane %v4217, 3
    %v4288 = vrot.slane %v4217, 4
    %v4289 = vrot.slane %v4217, 5
    %v4290 = vrot.slane %v4217, 6
    %v4291 = vrot.slane %v4217, 7
    %v4292 = vrot.slane %v4219, 1
    %v4293 = vrot.slane %v4219, 2
    %v4294 = vrot.slane %v4219, 3
    %v4295 = vrot.slane %v4219, 4
    %v4296 = vrot.slane %v4219, 5
    %v4297 = vrot.slane %v4219, 6
    %v4298 = vrot.slane %v4219, 7
    %4313 = vst [vmem:[#allocation6] sm:$0x1] %v4217
    %4314 = vst [vmem:[#allocation6 + $0x2] sm:$0x1] %v4285
    %4315 = vst [vmem:[#allocation6 + $0x4] sm:$0x1] %v4286
    %4316 = vst [vmem:[#allocation6 + $0x6] sm:$0x1] %v4287
    %4317 = vst [vmem:[#allocation6 + $0x8] sm:$0x1] %v4288
    %4318 = vst [vmem:[#allocation6 + $0xa] sm:$0x1] %v4289
    %4319 = vst [vmem:[#allocation6 + $0xc] sm:$0x1] %v4290
    %4320 = vst [vmem:[#allocation6 + $0xe] sm:$0x1] %v4291
    %4321 = vst [vmem:[#allocation6 + $0x10] sm:$0x1] %v4219
    %4322 = vst [vmem:[#allocation6 + $0x12] sm:$0x1] %v4292
    %4323 = vst [vmem:[#allocation6 + $0x14] sm:$0x1] %v4293
    %4324 = vst [vmem:[#allocation6 + $0x16] sm:$0x1] %v4294
    %4325 = vst [vmem:[#allocation6 + $0x18] sm:$0x1] %v4295
    %4326 = vst [vmem:[#allocation6 + $0x1a] sm:$0x1] %v4296
    %4327 = vst [vmem:[#allocation6 + $0x1c] sm:$0x1] %v4297
    %4328 = vst [vmem:[#allocation6 + $0x1e] sm:$0x1] %v4298
    %v4331 = vrot.slane %v4279, 1
    %v4332 = vrot.slane %v4279, 2
    %v4333 = vrot.slane %v4279, 3
    %v4334 = vrot.slane %v4279, 4
    %v4335 = vrot.slane %v4279, 5
    %v4336 = vrot.slane %v4279, 6
    %v4337 = vrot.slane %v4279, 7
    %v4338 = vrot.slane %v4281, 1
    %v4339 = vrot.slane %v4281, 2
    %v4340 = vrot.slane %v4281, 3
    %v4341 = vrot.slane %v4281, 4
    %v4342 = vrot.slane %v4281, 5
    %v4343 = vrot.slane %v4281, 6
    %v4344 = vrot.slane %v4281, 7
    %4359 = vst [vmem:[#allocation6 + $0x1] sm:$0x1] %v4279
    %4360 = vst [vmem:[#allocation6 + $0x3] sm:$0x1] %v4331
    %4361 = vst [vmem:[#allocation6 + $0x5] sm:$0x1] %v4332
    %4362 = vst [vmem:[#allocation6 + $0x7] sm:$0x1] %v4333
    %4363 = vst [vmem:[#allocation6 + $0x9] sm:$0x1] %v4334
    %4364 = vst [vmem:[#allocation6 + $0xb] sm:$0x1] %v4335
    %4365 = vst [vmem:[#allocation6 + $0xd] sm:$0x1] %v4336
    %4366 = vst [vmem:[#allocation6 + $0xf] sm:$0x1] %v4337
    %4367 = vst [vmem:[#allocation6 + $0x11] sm:$0x1] %v4281
    %4368 = vst [vmem:[#allocation6 + $0x13] sm:$0x1] %v4338
    %4369 = vst [vmem:[#allocation6 + $0x15] sm:$0x1] %v4339
    %4370 = vst [vmem:[#allocation6 + $0x17] sm:$0x1] %v4340
    %4371 = vst [vmem:[#allocation6 + $0x19] sm:$0x1] %v4341
    %4372 = vst [vmem:[#allocation6 + $0x1b] sm:$0x1] %v4342
    %4373 = vst [vmem:[#allocation6 + $0x1d] sm:$0x1] %v4343
    %4374 = vst [vmem:[#allocation6 + $0x1f] sm:$0x1] %v4344
    %v4375 = vld [vmem:[#allocation6] sm:$0x3]
    %v4376 = vld [vmem:[#allocation6 + $0x2] sm:$0x3]
    %v4377 = vld [vmem:[#allocation6 + $0x4] sm:$0x3]
    %v4378 = vld [vmem:[#allocation6 + $0x6] sm:$0x3]
    %v4379 = vld [vmem:[#allocation6 + $0x8] sm:$0x3]
    %v4380 = vld [vmem:[#allocation6 + $0xa] sm:$0x3]
    %v4381 = vld [vmem:[#allocation6 + $0xc] sm:$0x3]
    %v4382 = vld [vmem:[#allocation6 + $0xe] sm:$0x3]
    %v4383 = vld [vmem:[#allocation6 + $0x10] sm:$0x3]
    %v4384 = vld [vmem:[#allocation6 + $0x12] sm:$0x3]
    %v4385 = vld [vmem:[#allocation6 + $0x14] sm:$0x3]
    %v4386 = vld [vmem:[#allocation6 + $0x16] sm:$0x3]
    %v4387 = vld [vmem:[#allocation6 + $0x18] sm:$0x3]
    %v4388 = vld [vmem:[#allocation6 + $0x1a] sm:$0x3]
    %v4389 = vld [vmem:[#allocation6 + $0x1c] sm:$0x3]
    %v4390 = vld [vmem:[#allocation6 + $0x1e] sm:$0x3]
    %4407 = vst [vmem:[#allocation1] ss:$4 sm:$0xff] %v4375
    %s4408 = scalar_lea.vmem [#allocation1], 1
    %4409 = vst [vmem:[%s4408] ss:$4 sm:$0xff] %v4376
    %s4410 = scalar_lea.vmem [#allocation1], 2
    %4411 = vst [vmem:[%s4410] ss:$4 sm:$0xff] %v4377
    %s4412 = scalar_lea.vmem [#allocation1], 3
    %4413 = vst [vmem:[%s4412] ss:$4 sm:$0xff] %v4378
    %s4414 = scalar_lea.vmem [#allocation1], 32
    %4415 = vst [vmem:[%s4414] ss:$4 sm:$0xff] %v4379
    %s4416 = scalar_lea.vmem [#allocation1], 33
    %4417 = vst [vmem:[%s4416] ss:$4 sm:$0xff] %v4380
    %s4418 = scalar_lea.vmem [#allocation1], 34
    %4419 = vst [vmem:[%s4418] ss:$4 sm:$0xff] %v4381
    %s4420 = scalar_lea.vmem [#allocation1], 35
    %4421 = vst [vmem:[%s4420] ss:$4 sm:$0xff] %v4382
    %v4422 = vld.sshfl [vmem:[#allocation1] sm:$0xff pattern:$0x73625140]
    %v4423 = vld.sshfl [vmem:[#allocation1 + $0x20] sm:$0xff pattern:$0x73625140]
    %4424 = vst [vmem:[#allocation1] ss:$4 sm:$0xff] %v4383
    %4425 = vst [vmem:[%s4408] ss:$4 sm:$0xff] %v4384
    %4426 = vst [vmem:[%s4410] ss:$4 sm:$0xff] %v4385
    %4427 = vst [vmem:[%s4412] ss:$4 sm:$0xff] %v4386
    %4428 = vst [vmem:[%s4414] ss:$4 sm:$0xff] %v4387
    %4429 = vst [vmem:[%s4416] ss:$4 sm:$0xff] %v4388
    %4430 = vst [vmem:[%s4418] ss:$4 sm:$0xff] %v4389
    %4431 = vst [vmem:[%s4420] ss:$4 sm:$0xff] %v4390
    %v4432 = vld.sshfl [vmem:[#allocation1] sm:$0xff pattern:$0x73625140]
    %v4433 = vld.sshfl [vmem:[#allocation1 + $0x20] sm:$0xff pattern:$0x73625140]
    %v4434 = vrot.slane %v4422, 7
    %v4435 = vrot.slane %v4423, 7
    %v4436 = vsel %vm560, %v4434, %v4435
    %v4437 = vrot.slane %v4432, 7
    %v4438 = vrot.slane %v4433, 7
    %v4439 = vsel %vm560, %v4437, %v4438
    %v4444 = vsel %vm560, 0.0, %v4434
    %v4445 = vsel %vm560, 0.0, %v4437
    %4446 = vst [vmem:[#allocation1] ss:$4 sm:$0xff] %v4375
    %s4447 = scalar_lea.vmem [#allocation1], 1
    %4448 = vst [vmem:[%s4447] ss:$4 sm:$0xff] %v4376
    %s4449 = scalar_lea.vmem [#allocation1], 2
    %4450 = vst [vmem:[%s4449] ss:$4 sm:$0xff] %v4377
    %s4451 = scalar_lea.vmem [#allocation1], 3
    %4452 = vst [vmem:[%s4451] ss:$4 sm:$0xff] %v4378
    %s4453 = scalar_lea.vmem [#allocation1], 32
    %4454 = vst [vmem:[%s4453] ss:$4 sm:$0xff] %v4379
    %s4455 = scalar_lea.vmem [#allocation1], 33
    %4456 = vst [vmem:[%s4455] ss:$4 sm:$0xff] %v4380
    %s4457 = scalar_lea.vmem [#allocation1], 34
    %4458 = vst [vmem:[%s4457] ss:$4 sm:$0xff] %v4381
    %s4459 = scalar_lea.vmem [#allocation1], 35
    %4460 = vst [vmem:[%s4459] ss:$4 sm:$0xff] %v4382
    %v4461 = vld.sshfl [vmem:[#allocation1] sm:$0xff pattern:$0x73625140]
    %v4462 = vld.sshfl [vmem:[#allocation1 + $0x20] sm:$0xff pattern:$0x73625140]
    %4463 = vst [vmem:[#allocation1] ss:$4 sm:$0xff] %v4383
    %4464 = vst [vmem:[%s4447] ss:$4 sm:$0xff] %v4384
    %4465 = vst [vmem:[%s4449] ss:$4 sm:$0xff] %v4385
    %4466 = vst [vmem:[%s4451] ss:$4 sm:$0xff] %v4386
    %4467 = vst [vmem:[%s4453] ss:$4 sm:$0xff] %v4387
    %4468 = vst [vmem:[%s4455] ss:$4 sm:$0xff] %v4388
    %4469 = vst [vmem:[%s4457] ss:$4 sm:$0xff] %v4389
    %4470 = vst [vmem:[%s4459] ss:$4 sm:$0xff] %v4390
    %v4471 = vld.sshfl [vmem:[#allocation1] sm:$0xff pattern:$0x73625140]
    %v4472 = vld.sshfl [vmem:[#allocation1 + $0x20] sm:$0xff pattern:$0x73625140]
    %v4473 = vrot.slane %v4461, 1
    %v4474 = vrot.slane %v4462, 1
    %v4475 = vsel %vm585, %v4473, %v4474
    %v4476 = vrot.slane %v4471, 1
    %v4477 = vrot.slane %v4472, 1
    %v4478 = vsel %vm585, %v4476, %v4477
    %v4483 = vsel %vm585, %v4474, 0.0
    %v4484 = vsel %vm585, %v4477, 0.0
    %4485 = vst [vmem:[#allocation1] ss:$4 sm:$0xff] %v4375
    %s4486 = scalar_lea.vmem [#allocation1], 1
    %4487 = vst [vmem:[%s4486] ss:$4 sm:$0xff] %v4376
    %s4488 = scalar_lea.vmem [#allocation1], 2
    %4489 = vst [vmem:[%s4488] ss:$4 sm:$0xff] %v4377
    %s4490 = scalar_lea.vmem [#allocation1], 3
    %4491 = vst [vmem:[%s4490] ss:$4 sm:$0xff] %v4378
    %s4492 = scalar_lea.vmem [#allocation1], 32
    %4493 = vst [vmem:[%s4492] ss:$4 sm:$0xff] %v4379
    %s4494 = scalar_lea.vmem [#allocation1], 33
    %4495 = vst [vmem:[%s4494] ss:$4 sm:$0xff] %v4380
    %s4496 = scalar_lea.vmem [#allocation1], 34
    %4497 = vst [vmem:[%s4496] ss:$4 sm:$0xff] %v4381
    %s4498 = scalar_lea.vmem [#allocation1], 35
    %4499 = vst [vmem:[%s4498] ss:$4 sm:$0xff] %v4382
    %v4500 = vld.sshfl [vmem:[#allocation1] sm:$0xff pattern:$0x73625140]
    %v4501 = vld.sshfl [vmem:[#allocation1 + $0x20] sm:$0xff pattern:$0x73625140]
    %4502 = vst [vmem:[#allocation1] ss:$4 sm:$0xff] %v4383
    %4503 = vst [vmem:[%s4486] ss:$4 sm:$0xff] %v4384
    %4504 = vst [vmem:[%s4488] ss:$4 sm:$0xff] %v4385
    %4505 = vst [vmem:[%s4490] ss:$4 sm:$0xff] %v4386
    %4506 = vst [vmem:[%s4492] ss:$4 sm:$0xff] %v4387
    %4507 = vst [vmem:[%s4494] ss:$4 sm:$0xff] %v4388
    %4508 = vst [vmem:[%s4496] ss:$4 sm:$0xff] %v4389
    %4509 = vst [vmem:[%s4498] ss:$4 sm:$0xff] %v4390
    %v4510 = vld.sshfl [vmem:[#allocation1] sm:$0xff pattern:$0x73625140]
    %v4511 = vld.sshfl [vmem:[#allocation1 + $0x20] sm:$0xff pattern:$0x73625140]
    %v4516 = vpack.c.bf16 %v4436, %v4444
    %v4517 = vpack.c.bf16 %v4501, %v4500
    %v4518 = vpack.c.bf16 %v4483, %v4475
    %v4519 = vpack.c.bf16 %v4439, %v4445
    %v4520 = vpack.c.bf16 %v4511, %v4510
    %v4521 = vpack.c.bf16 %v4484, %v4478
    %v4526 = vrot.slane %v3995, 7
    %v4527 = vrot.slane %v3996, 7
    %v4528 = vsel %vm560, %v4526, %v4527
    %v4529 = vrot.slane %v3997, 7
    %v4530 = vrot.slane %v3998, 7
    %v4531 = vsel %vm560, %v4529, %v4530
    %v4536 = vsel %vm560, 0.0, %v4526
    %v4537 = vsel %vm560, 0.0, %v4529
    %v4538 = vrot.slane %v3995, 1
    %v4539 = vrot.slane %v3996, 1
    %v4540 = vsel %vm585, %v4538, %v4539
    %v4541 = vrot.slane %v3997, 1
    %v4542 = vrot.slane %v3998, 1
    %v4543 = vsel %vm585, %v4541, %v4542
    %v4548 = vsel %vm585, %v4539, 0.0
    %v4549 = vsel %vm585, %v4542, 0.0
    %4550 = vrot.lane.b32.xlu0 %v3995, 64
    %v4551 = vpop.permute.xlu0 %4550
    %4552 = vrot.lane.b32.xlu0 %v3996, 64
    %v4553 = vpop.permute.xlu0 %4552
    %4554 = vrot.lane.b32.xlu0 %v3997, 64
    %v4555 = vpop.permute.xlu0 %4554
    %4556 = vrot.lane.b32.xlu0 %v3998, 64
    %v4557 = vpop.permute.xlu0 %4556
    %v4562 = vsel %vm847, %v4536, %v4551
    %v4563 = vsel %vm847, %v4528, %v4553
    %v4564 = vsel %vm847, %v4537, %v4555
    %v4565 = vsel %vm847, %v4531, %v4557
    %v4566 = vpack.c.bf16 %v4563, %v4562
    %v4567 = vpack.c.bf16 %v4548, %v4540
    %v4568 = vpack.c.bf16 %v4565, %v4564
    %v4569 = vpack.c.bf16 %v4549, %v4543
    %v4594 = vunpack.c.l.b16 %v4080
    %v4595 = vunpack.c.l.b16 %v4081
    %v4596 = vunpack.c.l.b16 %v4082
    %v4597 = vunpack.c.l.b16 %v4083
    %v4598 = vunpack.c.l.b16 %v4084
    %v4599 = vunpack.c.l.b16 %v4085
    %v4600 = vunpack.c.l.b16 %v4086
    %v4601 = vunpack.c.l.b16 %v4087
    %v4602 = vunpack.c.l.b16 %v4088
    %v4603 = vunpack.c.l.b16 %v4089
    %v4604 = vunpack.c.l.b16 %v4090
    %v4605 = vunpack.c.l.b16 %v4091
    %v4606 = vunpack.c.l.b16 %v4092
    %v4607 = vunpack.c.l.b16 %v4093
    %v4608 = vunpack.c.l.b16 %v4094
    %v4609 = vunpack.c.l.b16 %v4095
    %v4610 = vunpack.c.l.b16 %v4096
    %v4611 = vunpack.c.l.b16 %v4097
    %v4612 = vunpack.c.l.b16 %v4098
    %v4613 = vunpack.c.l.b16 %v4099
    %v4614 = vunpack.c.l.b16 %v4100
    %v4615 = vunpack.c.l.b16 %v4101
    %v4616 = vunpack.c.l.b16 %v4102
    %v4617 = vunpack.c.l.b16 %v4103
    %v4618 = vpack.c.b16 %v4595, %v4594
    %v4619 = vpack.c.b16 %v4597, %v4596
    %v4620 = vpack.c.b16 %v4599, %v4598
    %v4621 = vpack.c.b16 %v4601, %v4600
    %v4622 = vpack.c.b16 %v4603, %v4602
    %v4623 = vpack.c.b16 %v4605, %v4604
    %v4624 = vpack.c.b16 %v4607, %v4606
    %v4625 = vpack.c.b16 %v4609, %v4608
    %v4626 = vpack.c.b16 %v4611, %v4610
    %v4627 = vpack.c.b16 %v4613, %v4612
    %v4628 = vpack.c.b16 %v4615, %v4614
    %v4629 = vpack.c.b16 %v4617, %v4616
    %v4643 = vsel %vm847, %v4567, 0
    %v4646 = vsel %vm847, %v4569, 0
    %4648 = vmatpush.bf16.msra.mxu0 %v4625
    %4649 = vmatpush.bf16.msra.mxu0 %v4624
    %4650 = vmatpush.bf16.msra.mxu0 %v4623
    %4651 = vmatpush.bf16.msra.mxu0 %v4622
    %4652 = vmatpush.bf16.msra.mxu0 %v4621
    %4653 = vmatpush.bf16.msra.mxu0 %v4620
    %4654 = vmatpush.bf16.msra.mxu0 %v4619
    %4655 = vmatpush.bf16.msra.mxu0 %v4618
    %4656 = vmatmul.bf16.gmra.mxu0 %v4566
    %v4657 = vpop.f32.mrf.mxu0
    %v4658 = vadd.f32 0.0, %v4657
    %v4659 = vpop.f32.mrf.mxu0
    %v4660 = vadd.f32 0.0, %v4659
    %4661 = vmatmul.bf16.gmra.mxu0 %v4568
    %v4662 = vpop.f32.mrf.mxu0
    %v4663 = vadd.f32 0.0, %v4662
    %v4664 = vpop.f32.mrf.mxu0
    %v4665 = vadd.f32 0.0, %v4664
    %4666 = vdwg.mxu0
    %4667 = vmatpush.bf16.msra.mxu0 0
    %4668 = vmatpush.bf16.msra.mxu0 0
    %4669 = vmatpush.bf16.msra.mxu0 0
    %4670 = vmatpush.bf16.msra.mxu0 0
    %4671 = vmatpush.bf16.msra.mxu0 %v4629
    %4672 = vmatpush.bf16.msra.mxu0 %v4628
    %4673 = vmatpush.bf16.msra.mxu0 %v4627
    %4674 = vmatpush.bf16.msra.mxu0 %v4626
    %4675 = vmatmul.bf16.gmra.mxu0 %v4643
    %v4676 = vpop.f32.mrf.mxu0
    %v4677 = vadd.f32 %v4658, %v4676
    %v4678 = vpop.f32.mrf.mxu0
    %v4679 = vadd.f32 %v4660, %v4678
    %4680 = vmatmul.bf16.gmra.mxu0 %v4646
    %v4681 = vpop.f32.mrf.mxu0
    %v4682 = vadd.f32 %v4663, %v4681
    %v4683 = vpop.f32.mrf.mxu0
    %v4684 = vadd.f32 %v4665, %v4683
    %4685 = vdwg.mxu0
    %v4734 = vunpack.c.l.b16 %v4032
    %v4735 = vunpack.c.l.b16 %v4033
    %v4736 = vunpack.c.l.b16 %v4034
    %v4737 = vunpack.c.l.b16 %v4035
    %v4738 = vunpack.c.l.b16 %v4036
    %v4739 = vunpack.c.l.b16 %v4037
    %v4740 = vunpack.c.l.b16 %v4038
    %v4741 = vunpack.c.l.b16 %v4039
    %v4742 = vunpack.c.l.b16 %v4040
    %v4743 = vunpack.c.l.b16 %v4041
    %v4744 = vunpack.c.l.b16 %v4042
    %v4745 = vunpack.c.l.b16 %v4043
    %v4746 = vunpack.c.l.b16 %v4044
    %v4747 = vunpack.c.l.b16 %v4045
    %v4748 = vunpack.c.l.b16 %v4046
    %v4749 = vunpack.c.l.b16 %v4047
    %v4750 = vunpack.c.l.b16 %v4048
    %v4751 = vunpack.c.l.b16 %v4049
    %v4752 = vunpack.c.l.b16 %v4050
    %v4753 = vunpack.c.l.b16 %v4051
    %v4754 = vunpack.c.l.b16 %v4052
    %v4755 = vunpack.c.l.b16 %v4053
    %v4756 = vunpack.c.l.b16 %v4054
    %v4757 = vunpack.c.l.b16 %v4055
    %v4758 = vunpack.c.l.b16 %v4056
    %v4759 = vunpack.c.l.b16 %v4057
    %v4760 = vunpack.c.l.b16 %v4058
    %v4761 = vunpack.c.l.b16 %v4059
    %v4762 = vunpack.c.l.b16 %v4060
    %v4763 = vunpack.c.l.b16 %v4061
    %v4764 = vunpack.c.l.b16 %v4062
    %v4765 = vunpack.c.l.b16 %v4063
    %v4766 = vunpack.c.l.b16 %v4064
    %v4767 = vunpack.c.l.b16 %v4065
    %v4768 = vunpack.c.l.b16 %v4066
    %v4769 = vunpack.c.l.b16 %v4067
    %v4770 = vunpack.c.l.b16 %v4068
    %v4771 = vunpack.c.l.b16 %v4069
    %v4772 = vunpack.c.l.b16 %v4070
    %v4773 = vunpack.c.l.b16 %v4071
    %v4774 = vunpack.c.l.b16 %v4072
    %v4775 = vunpack.c.l.b16 %v4073
    %v4776 = vunpack.c.l.b16 %v4074
    %v4777 = vunpack.c.l.b16 %v4075
    %v4778 = vunpack.c.l.b16 %v4076
    %v4779 = vunpack.c.l.b16 %v4077
    %v4780 = vunpack.c.l.b16 %v4078
    %v4781 = vunpack.c.l.b16 %v4079
    %v4782 = vpack.c.b16 %v4735, %v4734
    %v4783 = vpack.c.b16 %v4737, %v4736
    %v4784 = vpack.c.b16 %v4739, %v4738
    %v4785 = vpack.c.b16 %v4741, %v4740
    %v4786 = vpack.c.b16 %v4743, %v4742
    %v4787 = vpack.c.b16 %v4745, %v4744
    %v4788 = vpack.c.b16 %v4747, %v4746
    %v4789 = vpack.c.b16 %v4749, %v4748
    %v4790 = vpack.c.b16 %v4751, %v4750
    %v4791 = vpack.c.b16 %v4753, %v4752
    %v4792 = vpack.c.b16 %v4755, %v4754
    %v4793 = vpack.c.b16 %v4757, %v4756
    %v4794 = vpack.c.b16 %v4759, %v4758
    %v4795 = vpack.c.b16 %v4761, %v4760
    %v4796 = vpack.c.b16 %v4763, %v4762
    %v4797 = vpack.c.b16 %v4765, %v4764
    %v4798 = vpack.c.b16 %v4767, %v4766
    %v4799 = vpack.c.b16 %v4769, %v4768
    %v4800 = vpack.c.b16 %v4771, %v4770
    %v4801 = vpack.c.b16 %v4773, %v4772
    %v4802 = vpack.c.b16 %v4775, %v4774
    %v4803 = vpack.c.b16 %v4777, %v4776
    %v4804 = vpack.c.b16 %v4779, %v4778
    %v4805 = vpack.c.b16 %v4781, %v4780
    %4830 = vmatpush.bf16.msra.mxu0 %v4789
    %4831 = vmatpush.bf16.msra.mxu0 %v4788
    %4832 = vmatpush.bf16.msra.mxu0 %v4787
    %4833 = vmatpush.bf16.msra.mxu0 %v4786
    %4834 = vmatpush.bf16.msra.mxu0 %v4785
    %4835 = vmatpush.bf16.msra.mxu0 %v4784
    %4836 = vmatpush.bf16.msra.mxu0 %v4783
    %4837 = vmatpush.bf16.msra.mxu0 %v4782
    %4838 = vmatmul.bf16.gmra.mxu0 %v4516
    %v4839 = vpop.f32.mrf.mxu0
    %v4840 = vadd.f32 %v4677, %v4839
    %v4841 = vpop.f32.mrf.mxu0
    %v4842 = vadd.f32 %v4679, %v4841
    %4843 = vmatmul.bf16.gmra.mxu0 %v4519
    %v4844 = vpop.f32.mrf.mxu0
    %v4845 = vadd.f32 %v4682, %v4844
    %v4846 = vpop.f32.mrf.mxu0
    %v4847 = vadd.f32 %v4684, %v4846
    %4848 = vdwg.mxu0
    %4849 = vmatpush.bf16.msra.mxu0 %v4797
    %4850 = vmatpush.bf16.msra.mxu0 %v4796
    %4851 = vmatpush.bf16.msra.mxu0 %v4795
    %4852 = vmatpush.bf16.msra.mxu0 %v4794
    %4853 = vmatpush.bf16.msra.mxu0 %v4793
    %4854 = vmatpush.bf16.msra.mxu0 %v4792
    %4855 = vmatpush.bf16.msra.mxu0 %v4791
    %4856 = vmatpush.bf16.msra.mxu0 %v4790
    %4857 = vmatmul.bf16.gmra.mxu0 %v4517
    %v4858 = vpop.f32.mrf.mxu0
    %v4859 = vadd.f32 %v4840, %v4858
    %v4860 = vpop.f32.mrf.mxu0
    %v4861 = vadd.f32 %v4842, %v4860
    %4862 = vmatmul.bf16.gmra.mxu0 %v4520
    %v4863 = vpop.f32.mrf.mxu0
    %v4864 = vadd.f32 %v4845, %v4863
    %v4865 = vpop.f32.mrf.mxu0
    %v4866 = vadd.f32 %v4847, %v4865
    %4867 = vdwg.mxu0
    %4868 = vmatpush.bf16.msra.mxu0 %v4805
    %4869 = vmatpush.bf16.msra.mxu0 %v4804
    %4870 = vmatpush.bf16.msra.mxu0 %v4803
    %4871 = vmatpush.bf16.msra.mxu0 %v4802
    %4872 = vmatpush.bf16.msra.mxu0 %v4801
    %4873 = vmatpush.bf16.msra.mxu0 %v4800
    %4874 = vmatpush.bf16.msra.mxu0 %v4799
    %4875 = vmatpush.bf16.msra.mxu0 %v4798
    %4876 = vmatmul.bf16.gmra.mxu0 %v4518
    %v4877 = vpop.f32.mrf.mxu0
    %v4878 = vadd.f32 %v4859, %v4877
    %v4879 = vpop.f32.mrf.mxu0
    %v4880 = vadd.f32 %v4861, %v4879
    %4881 = vmatmul.bf16.gmra.mxu0 %v4521
    %v4882 = vpop.f32.mrf.mxu0
    %v4883 = vadd.f32 %v4864, %v4882
    %v4884 = vpop.f32.mrf.mxu0
    %v4885 = vadd.f32 %v4866, %v4884
    %4886 = vdwg.mxu0
    %v4888 = vperm.slane %v4104, 0
    %v4890 = vadd.f32 %v4878, %v4888
    %v4891 = vadd.f32 %v4880, %v4888
    %v4892 = vadd.f32 %v4883, %v4888
    %v4893 = vadd.f32 %v4885, %v4888
    %v4894 = vmax.f32 %v4890, 0.0
    %v4895 = vmax.f32 %v4891, 0.0
    %v4896 = vmax.f32 %v4892, 0.0
    %v4897 = vmax.f32 %v4893, 0.0
    %v4902 = vrot.slane %v4894, 7
    %v4903 = vrot.slane %v4895, 7
    %v4904 = vsel %vm560, %v4902, %v4903
    %v4905 = vrot.slane %v4896, 7
    %v4906 = vrot.slane %v4897, 7
    %v4907 = vsel %vm560, %v4905, %v4906
    %v4912 = vsel %vm560, 0.0, %v4902
    %v4913 = vsel %vm560, 0.0, %v4905
    %v4914 = vrot.slane %v4894, 1
    %v4915 = vrot.slane %v4895, 1
    %v4916 = vsel %vm585, %v4914, %v4915
    %v4917 = vrot.slane %v4896, 1
    %v4918 = vrot.slane %v4897, 1
    %v4919 = vsel %vm585, %v4917, %v4918
    %v4924 = vsel %vm585, %v4915, 0.0
    %v4925 = vsel %vm585, %v4918, 0.0
    %4926 = vrot.lane.b32.xlu0 %v4894, 64
    %v4927 = vpop.permute.xlu0 %4926
    %4928 = vrot.lane.b32.xlu0 %v4895, 64
    %v4929 = vpop.permute.xlu0 %4928
    %4930 = vrot.lane.b32.xlu0 %v4896, 64
    %v4931 = vpop.permute.xlu0 %4930
    %4932 = vrot.lane.b32.xlu0 %v4897, 64
    %v4933 = vpop.permute.xlu0 %4932
    %v4938 = vsel %vm847, %v4912, %v4927
    %v4939 = vsel %vm847, %v4904, %v4929
    %v4940 = vsel %vm847, %v4913, %v4931
    %v4941 = vsel %vm847, %v4907, %v4933
    %v4942 = vpack.c.bf16 %v4939, %v4938
    %v4943 = vpack.c.bf16 %v4924, %v4916
    %v4944 = vpack.c.bf16 %v4941, %v4940
    %v4945 = vpack.c.bf16 %v4925, %v4919
    %v4947 = vperm.slane %v4129, 0
    %v4973 = vunpack.c.l.b16 %v4105
    %v4974 = vunpack.c.l.b16 %v4106
    %v4975 = vunpack.c.l.b16 %v4107
    %v4976 = vunpack.c.l.b16 %v4108
    %v4977 = vunpack.c.l.b16 %v4109
    %v4978 = vunpack.c.l.b16 %v4110
    %v4979 = vunpack.c.l.b16 %v4111
    %v4980 = vunpack.c.l.b16 %v4112
    %v4981 = vunpack.c.l.b16 %v4113
    %v4982 = vunpack.c.l.b16 %v4114
    %v4983 = vunpack.c.l.b16 %v4115
    %v4984 = vunpack.c.l.b16 %v4116
    %v4985 = vunpack.c.l.b16 %v4117
    %v4986 = vunpack.c.l.b16 %v4118
    %v4987 = vunpack.c.l.b16 %v4119
    %v4988 = vunpack.c.l.b16 %v4120
    %v4989 = vunpack.c.l.b16 %v4121
    %v4990 = vunpack.c.l.b16 %v4122
    %v4991 = vunpack.c.l.b16 %v4123
    %v4992 = vunpack.c.l.b16 %v4124
    %v4993 = vunpack.c.l.b16 %v4125
    %v4994 = vunpack.c.l.b16 %v4126
    %v4995 = vunpack.c.l.b16 %v4127
    %v4996 = vunpack.c.l.b16 %v4128
    %v4997 = vpack.c.b16 %v4974, %v4973
    %v4998 = vpack.c.b16 %v4976, %v4975
    %v4999 = vpack.c.b16 %v4978, %v4977
    %v5000 = vpack.c.b16 %v4980, %v4979
    %v5001 = vpack.c.b16 %v4982, %v4981
    %v5002 = vpack.c.b16 %v4984, %v4983
    %v5003 = vpack.c.b16 %v4986, %v4985
    %v5004 = vpack.c.b16 %v4988, %v4987
    %v5005 = vpack.c.b16 %v4990, %v4989
    %v5006 = vpack.c.b16 %v4992, %v4991
    %v5007 = vpack.c.b16 %v4994, %v4993
    %v5008 = vpack.c.b16 %v4996, %v4995
    %v5022 = vsel %vm847, %v4943, 0
    %v5025 = vsel %vm847, %v4945, 0
    %5027 = vmatpush.bf16.msra.mxu0 %v5004
    %5028 = vmatpush.bf16.msra.mxu0 %v5003
    %5029 = vmatpush.bf16.msra.mxu0 %v5002
    %5030 = vmatpush.bf16.msra.mxu0 %v5001
    %5031 = vmatpush.bf16.msra.mxu0 %v5000
    %5032 = vmatpush.bf16.msra.mxu0 %v4999
    %5033 = vmatpush.bf16.msra.mxu0 %v4998
    %5034 = vmatpush.bf16.msra.mxu0 %v4997
    %5035 = vmatmul.bf16.gmra.mxu0 %v4942
    %v5036 = vpop.f32.mrf.mxu0
    %v5037 = vadd.f32 %v4947, %v5036
    %v5038 = vpop.f32.mrf.mxu0
    %v5039 = vadd.f32 %v4947, %v5038
    %5040 = vmatmul.bf16.gmra.mxu0 %v4944
    %v5041 = vpop.f32.mrf.mxu0
    %v5042 = vadd.f32 %v4947, %v5041
    %v5043 = vpop.f32.mrf.mxu0
    %v5044 = vadd.f32 %v4947, %v5043
    %5045 = vdwg.mxu0
    %5046 = vmatpush.bf16.msra.mxu0 0
    %5047 = vmatpush.bf16.msra.mxu0 0
    %5048 = vmatpush.bf16.msra.mxu0 0
    %5049 = vmatpush.bf16.msra.mxu0 0
    %5050 = vmatpush.bf16.msra.mxu0 %v5008
    %5051 = vmatpush.bf16.msra.mxu0 %v5007
    %5052 = vmatpush.bf16.msra.mxu0 %v5006
    %5053 = vmatpush.bf16.msra.mxu0 %v5005
    %5054 = vmatmul.bf16.gmra.mxu0 %v5022
    %v5055 = vpop.f32.mrf.mxu0
    %v5056 = vadd.f32 %v5037, %v5055
    %v5057 = vpop.f32.mrf.mxu0
    %v5058 = vadd.f32 %v5039, %v5057
    %5059 = vmatmul.bf16.gmra.mxu0 %v5025
    %v5060 = vpop.f32.mrf.mxu0
    %v5061 = vadd.f32 %v5042, %v5060
    %v5062 = vpop.f32.mrf.mxu0
    %v5063 = vadd.f32 %v5044, %v5062
    %5064 = vdwg.mxu0
    %v5065 = vmax.f32 %v5056, 0.0
    %v5066 = vmax.f32 %v5058, 0.0
    %v5067 = vmax.f32 %v5061, 0.0
    %v5068 = vmax.f32 %v5063, 0.0
    %5069 = vst [vmem:[#allocation1] ss:$4 sm:$0xff] %v4375
    %s5070 = scalar_lea.vmem [#allocation1], 1
    %5071 = vst [vmem:[%s5070] ss:$4 sm:$0xff] %v4376
    %s5072 = scalar_lea.vmem [#allocation1], 2
    %5073 = vst [vmem:[%s5072] ss:$4 sm:$0xff] %v4377
    %s5074 = scalar_lea.vmem [#allocation1], 3
    %5075 = vst [vmem:[%s5074] ss:$4 sm:$0xff] %v4378
    %s5076 = scalar_lea.vmem [#allocation1], 32
    %5077 = vst [vmem:[%s5076] ss:$4 sm:$0xff] %v4379
    %s5078 = scalar_lea.vmem [#allocation1], 33
    %5079 = vst [vmem:[%s5078] ss:$4 sm:$0xff] %v4380
    %s5080 = scalar_lea.vmem [#allocation1], 34
    %5081 = vst [vmem:[%s5080] ss:$4 sm:$0xff] %v4381
    %s5082 = scalar_lea.vmem [#allocation1], 35
    %5083 = vst [vmem:[%s5082] ss:$4 sm:$0xff] %v4382
    %v5084 = vld.sshfl [vmem:[#allocation1] sm:$0xff pattern:$0x73625140]
    %v5085 = vld.sshfl [vmem:[#allocation1 + $0x20] sm:$0xff pattern:$0x73625140]
    %5086 = vst [vmem:[#allocation1] ss:$4 sm:$0xff] %v4383
    %5087 = vst [vmem:[%s5070] ss:$4 sm:$0xff] %v4384
    %5088 = vst [vmem:[%s5072] ss:$4 sm:$0xff] %v4385
    %5089 = vst [vmem:[%s5074] ss:$4 sm:$0xff] %v4386
    %5090 = vst [vmem:[%s5076] ss:$4 sm:$0xff] %v4387
    %5091 = vst [vmem:[%s5078] ss:$4 sm:$0xff] %v4388
    %5092 = vst [vmem:[%s5080] ss:$4 sm:$0xff] %v4389
    %5093 = vst [vmem:[%s5082] ss:$4 sm:$0xff] %v4390
    %v5094 = vld.sshfl [vmem:[#allocation1] sm:$0xff pattern:$0x73625140]
    %v5095 = vld.sshfl [vmem:[#allocation1 + $0x20] sm:$0xff pattern:$0x73625140]
    %v5100 = vpack.c.bf16 %v5085, %v5084
    %v5101 = vpack.c.bf16 %v5095, %v5094
    %v5102 = vpack.c.bf16 %v3996, %v3995
    %v5103 = vpack.c.bf16 %v3998, %v3997
    %v5112 = vunpack.c.l.b16 %v4146
    %v5113 = vunpack.c.l.b16 %v4147
    %v5114 = vunpack.c.l.b16 %v4148
    %v5115 = vunpack.c.l.b16 %v4149
    %v5116 = vunpack.c.l.b16 %v4150
    %v5117 = vunpack.c.l.b16 %v4151
    %v5118 = vunpack.c.l.b16 %v4152
    %v5119 = vunpack.c.l.b16 %v4153
    %v5120 = vpack.c.b16 %v5113, %v5112
    %v5121 = vpack.c.b16 %v5115, %v5114
    %v5122 = vpack.c.b16 %v5117, %v5116
    %v5123 = vpack.c.b16 %v5119, %v5118
    %v5129 = vsel %vm847, %v5102, 0
    %v5132 = vsel %vm847, %v5103, 0
    %5134 = vmatpush.bf16.msra.mxu0 0
    %5135 = vmatpush.bf16.msra.mxu0 0
    %5136 = vmatpush.bf16.msra.mxu0 0
    %5137 = vmatpush.bf16.msra.mxu0 0
    %5138 = vmatpush.bf16.msra.mxu0 %v5123
    %5139 = vmatpush.bf16.msra.mxu0 %v5122
    %5140 = vmatpush.bf16.msra.mxu0 %v5121
    %5141 = vmatpush.bf16.msra.mxu0 %v5120
    %5142 = vmatmul.bf16.gmra.mxu0 %v5129
    %v5143 = vpop.f32.mrf.mxu0
    %v5144 = vadd.f32 0.0, %v5143
    %v5145 = vpop.f32.mrf.mxu0
    %v5146 = vadd.f32 0.0, %v5145
    %5147 = vmatmul.bf16.gmra.mxu0 %v5132
    %v5148 = vpop.f32.mrf.mxu0
    %v5149 = vadd.f32 0.0, %v5148
    %v5150 = vpop.f32.mrf.mxu0
    %v5151 = vadd.f32 0.0, %v5150
    %5152 = vdwg.mxu0
    %v5169 = vunpack.c.l.b16 %v4130
    %v5170 = vunpack.c.l.b16 %v4131
    %v5171 = vunpack.c.l.b16 %v4132
    %v5172 = vunpack.c.l.b16 %v4133
    %v5173 = vunpack.c.l.b16 %v4134
    %v5174 = vunpack.c.l.b16 %v4135
    %v5175 = vunpack.c.l.b16 %v4136
    %v5176 = vunpack.c.l.b16 %v4137
    %v5177 = vunpack.c.l.b16 %v4138
    %v5178 = vunpack.c.l.b16 %v4139
    %v5179 = vunpack.c.l.b16 %v4140
    %v5180 = vunpack.c.l.b16 %v4141
    %v5181 = vunpack.c.l.b16 %v4142
    %v5182 = vunpack.c.l.b16 %v4143
    %v5183 = vunpack.c.l.b16 %v4144
    %v5184 = vunpack.c.l.b16 %v4145
    %v5185 = vpack.c.b16 %v5170, %v5169
    %v5186 = vpack.c.b16 %v5172, %v5171
    %v5187 = vpack.c.b16 %v5174, %v5173
    %v5188 = vpack.c.b16 %v5176, %v5175
    %v5189 = vpack.c.b16 %v5178, %v5177
    %v5190 = vpack.c.b16 %v5180, %v5179
    %v5191 = vpack.c.b16 %v5182, %v5181
    %v5192 = vpack.c.b16 %v5184, %v5183
    %5201 = vmatpush.bf16.msra.mxu0 %v5192
    %5202 = vmatpush.bf16.msra.mxu0 %v5191
    %5203 = vmatpush.bf16.msra.mxu0 %v5190
    %5204 = vmatpush.bf16.msra.mxu0 %v5189
    %5205 = vmatpush.bf16.msra.mxu0 %v5188
    %5206 = vmatpush.bf16.msra.mxu0 %v5187
    %5207 = vmatpush.bf16.msra.mxu0 %v5186
    %5208 = vmatpush.bf16.msra.mxu0 %v5185
    %5209 = vmatmul.bf16.gmra.mxu0 %v5100
    %v5210 = vpop.f32.mrf.mxu0
    %v5211 = vadd.f32 %v5144, %v5210
    %v5212 = vpop.f32.mrf.mxu0
    %v5213 = vadd.f32 %v5146, %v5212
    %5214 = vmatmul.bf16.gmra.mxu0 %v5101
    %v5215 = vpop.f32.mrf.mxu0
    %v5216 = vadd.f32 %v5149, %v5215
    %v5217 = vpop.f32.mrf.mxu0
    %v5218 = vadd.f32 %v5151, %v5217
    %5219 = vdwg.mxu0
    %v5221 = vperm.slane %v4154, 0
    %v5223 = vadd.f32 %v5211, %v5221
    %v5224 = vadd.f32 %v5213, %v5221
    %v5225 = vadd.f32 %v5216, %v5221
    %v5226 = vadd.f32 %v5218, %v5221
    %v5227 = vadd.f32 %v5065, %v5223
    %v5228 = vadd.f32 %v5066, %v5224
    %v5229 = vadd.f32 %v5067, %v5225
    %v5230 = vadd.f32 %v5068, %v5226
    %v5231 = vmax.f32 %v5227, 0.0
    %v5232 = vmax.f32 %v5228, 0.0
    %v5233 = vmax.f32 %v5229, 0.0
    %v5234 = vmax.f32 %v5230, 0.0
    %v5235 = vld [vmem:[#allocation2] sm:$0xff]
    %v5236 = vld [vmem:[#allocation2 + $0x8] sm:$0xff]
    %v5237 = vld [vmem:[#allocation2 + $0x10] sm:$0xff]
    %v5238 = vld [vmem:[#allocation2 + $0x18] sm:$0xff]
    %v5239 = vld [vmem:[#allocation2 + $0x20] sm:$0xff]
    %v5240 = vld [vmem:[#allocation2 + $0x28] sm:$0xff]
    %v5241 = vld [vmem:[#allocation2 + $0x30] sm:$0xff]
    %v5242 = vld [vmem:[#allocation2 + $0x38] sm:$0xff]
    %v5243 = vld [vmem:[%s101] sm:$0xf]
    %v5244 = vld [vmem:[%s101 + $0x4] sm:$0xf]
    %v5245 = vld [vmem:[%s101 + $0x8] sm:$0xf]
    %v5246 = vld [vmem:[%s101 + $0xc] sm:$0xf]
    %v5247 = vld [vmem:[%s101 + $0x10] sm:$0xf]
    %v5248 = vld [vmem:[%s101 + $0x14] sm:$0xf]
    %v5249 = vld [vmem:[%s101 + $0x18] sm:$0xf]
    %v5250 = vld [vmem:[%s101 + $0x1c] sm:$0xf]
    %v5251 = vld [vmem:[%s101 + $0x20] sm:$0xf]
    %v5252 = vld [vmem:[%s101 + $0x24] sm:$0xf]
    %v5253 = vld [vmem:[%s101 + $0x28] sm:$0xf]
    %v5254 = vld [vmem:[%s101 + $0x2c] sm:$0xf]
    %v5255 = vld [vmem:[%s101 + $0x30] sm:$0xf]
    %v5256 = vld [vmem:[%s101 + $0x34] sm:$0xf]
    %v5257 = vld [vmem:[%s101 + $0x38] sm:$0xf]
    %v5258 = vld [vmem:[%s101 + $0x3c] sm:$0xf]
    %v5259 = vld [vmem:[#allocation31] sm:$0x1]
    %v5260 = vld [vmem:[%s105] sm:$0xf]
    %v5261 = vld [vmem:[%s105 + $0x4] sm:$0xf]
    %v5262 = vld [vmem:[%s105 + $0x8] sm:$0xf]
    %v5263 = vld [vmem:[%s105 + $0xc] sm:$0xf]
    %v5264 = vld [vmem:[%s105 + $0x10] sm:$0xf]
    %v5265 = vld [vmem:[%s105 + $0x14] sm:$0xf]
    %v5266 = vld [vmem:[%s105 + $0x18] sm:$0xf]
    %v5267 = vld [vmem:[%s105 + $0x1c] sm:$0xf]
    %v5268 = vld [vmem:[%s105 + $0x20] sm:$0xf]
    %v5269 = vld [vmem:[%s105 + $0x24] sm:$0xf]
    %v5270 = vld [vmem:[%s105 + $0x28] sm:$0xf]
    %v5271 = vld [vmem:[%s105 + $0x2c] sm:$0xf]
    %v5272 = vld [vmem:[%s105 + $0x30] sm:$0xf]
    %v5273 = vld [vmem:[%s105 + $0x34] sm:$0xf]
    %v5274 = vld [vmem:[%s105 + $0x38] sm:$0xf]
    %v5275 = vld [vmem:[%s105 + $0x3c] sm:$0xf]
    %v5276 = vld [vmem:[%s105 + $0x40] sm:$0xf]
    %v5277 = vld [vmem:[%s105 + $0x44] sm:$0xf]
    %v5278 = vld [vmem:[%s105 + $0x48] sm:$0xf]
    %v5279 = vld [vmem:[%s105 + $0x4c] sm:$0xf]
    %v5280 = vld [vmem:[%s105 + $0x50] sm:$0xf]
    %v5281 = vld [vmem:[%s105 + $0x54] sm:$0xf]
    %v5282 = vld [vmem:[%s105 + $0x58] sm:$0xf]
    %v5283 = vld [vmem:[%s105 + $0x5c] sm:$0xf]
    %v5284 = vld [vmem:[%s107] sm:$0xf]
    %v5285 = vld [vmem:[%s107 + $0x4] sm:$0xf]
    %v5286 = vld [vmem:[%s107 + $0x8] sm:$0xf]
    %v5287 = vld [vmem:[%s107 + $0xc] sm:$0xf]
    %v5288 = vld [vmem:[%s107 + $0x10] sm:$0xf]
    %v5289 = vld [vmem:[%s107 + $0x14] sm:$0xf]
    %v5290 = vld [vmem:[%s107 + $0x18] sm:$0xf]
    %v5291 = vld [vmem:[%s107 + $0x1c] sm:$0xf]
    %v5292 = vld [vmem:[%s107 + $0x20] sm:$0xf]
    %v5293 = vld [vmem:[%s107 + $0x24] sm:$0xf]
    %v5294 = vld [vmem:[%s107 + $0x28] sm:$0xf]
    %v5295 = vld [vmem:[%s107 + $0x2c] sm:$0xf]
    %v5296 = vld [vmem:[#allocation33] sm:$0x1]
    %v5297 = vld [vmem:[%s111] sm:$0xf]
    %v5298 = vld [vmem:[%s111 + $0x4] sm:$0xf]
    %v5299 = vld [vmem:[%s111 + $0x8] sm:$0xf]
    %v5300 = vld [vmem:[%s111 + $0xc] sm:$0xf]
    %v5301 = vld [vmem:[%s111 + $0x10] sm:$0xf]
    %v5302 = vld [vmem:[%s111 + $0x14] sm:$0xf]
    %v5303 = vld [vmem:[%s111 + $0x18] sm:$0xf]
    %v5304 = vld [vmem:[%s111 + $0x1c] sm:$0xf]
    %v5305 = vld [vmem:[%s111 + $0x20] sm:$0xf]
    %v5306 = vld [vmem:[%s111 + $0x24] sm:$0xf]
    %v5307 = vld [vmem:[%s111 + $0x28] sm:$0xf]
    %v5308 = vld [vmem:[%s111 + $0x2c] sm:$0xf]
    %v5309 = vld [vmem:[#allocation34] sm:$0x1]
    %v5310 = vld [vmem:[%s115] sm:$0xf]
    %v5311 = vld [vmem:[%s115 + $0x4] sm:$0xf]
    %v5312 = vld [vmem:[%s115 + $0x8] sm:$0xf]
    %v5313 = vld [vmem:[%s115 + $0xc] sm:$0xf]
    %v5314 = vld [vmem:[%s115 + $0x10] sm:$0xf]
    %v5315 = vld [vmem:[%s115 + $0x14] sm:$0xf]
    %v5316 = vld [vmem:[%s115 + $0x18] sm:$0xf]
    %v5317 = vld [vmem:[%s115 + $0x1c] sm:$0xf]
    %v5318 = vld [vmem:[%s117] sm:$0xf]
    %v5319 = vld [vmem:[%s117 + $0x4] sm:$0xf]
    %v5320 = vld [vmem:[%s117 + $0x8] sm:$0xf]
    %v5321 = vld [vmem:[%s117 + $0xc] sm:$0xf]
    %v5322 = vld [vmem:[#allocation36] sm:$0x1]
    %v5323 = vpack.c.bf16 %v5232, %v5231
    %v5324 = vpack.c.bf16 %v5234, %v5233
    %v5326 = vperm.slane %v5259, 0
    %v5336 = vunpack.c.l.b16 %v5243
    %v5337 = vunpack.c.l.b16 %v5244
    %v5338 = vunpack.c.l.b16 %v5245
    %v5339 = vunpack.c.l.b16 %v5246
    %v5340 = vunpack.c.l.b16 %v5247
    %v5341 = vunpack.c.l.b16 %v5248
    %v5342 = vunpack.c.l.b16 %v5249
    %v5343 = vunpack.c.l.b16 %v5250
    %v5344 = vpack.c.b16 %v5337, %v5336
    %v5345 = vpack.c.b16 %v5339, %v5338
    %v5346 = vpack.c.b16 %v5341, %v5340
    %v5347 = vpack.c.b16 %v5343, %v5342
    %v5353 = vsel %vm847, %v5323, 0
    %v5356 = vsel %vm847, %v5324, 0
    %5358 = vmatpush.bf16.msra.mxu0 0
    %5359 = vmatpush.bf16.msra.mxu0 0
    %5360 = vmatpush.bf16.msra.mxu0 0
    %5361 = vmatpush.bf16.msra.mxu0 0
    %5362 = vmatpush.bf16.msra.mxu0 %v5347
    %5363 = vmatpush.bf16.msra.mxu0 %v5346
    %5364 = vmatpush.bf16.msra.mxu0 %v5345
    %5365 = vmatpush.bf16.msra.mxu0 %v5344
    %5366 = vmatmul.bf16.gmra.mxu0 %v5353
    %v5367 = vpop.f32.mrf.mxu0
    %v5368 = vadd.f32 %v5326, %v5367
    %v5369 = vpop.f32.mrf.mxu0
    %v5370 = vadd.f32 %v5326, %v5369
    %5371 = vmatmul.bf16.gmra.mxu0 %v5356
    %v5372 = vpop.f32.mrf.mxu0
    %v5373 = vadd.f32 %v5326, %v5372
    %v5374 = vpop.f32.mrf.mxu0
    %v5375 = vadd.f32 %v5326, %v5374
    %5376 = vdwg.mxu0
    %v5385 = vunpack.c.l.b16 %v5251
    %v5386 = vunpack.c.l.b16 %v5252
    %v5387 = vunpack.c.l.b16 %v5253
    %v5388 = vunpack.c.l.b16 %v5254
    %v5389 = vunpack.c.l.b16 %v5255
    %v5390 = vunpack.c.l.b16 %v5256
    %v5391 = vunpack.c.l.b16 %v5257
    %v5392 = vunpack.c.l.b16 %v5258
    %v5393 = vpack.c.b16 %v5386, %v5385
    %v5394 = vpack.c.b16 %v5388, %v5387
    %v5395 = vpack.c.b16 %v5390, %v5389
    %v5396 = vpack.c.b16 %v5392, %v5391
    %5401 = vmatpush.bf16.msra.mxu0 0
    %5402 = vmatpush.bf16.msra.mxu0 0
    %5403 = vmatpush.bf16.msra.mxu0 0
    %5404 = vmatpush.bf16.msra.mxu0 0
    %5405 = vmatpush.bf16.msra.mxu0 %v5396
    %5406 = vmatpush.bf16.msra.mxu0 %v5395
    %5407 = vmatpush.bf16.msra.mxu0 %v5394
    %5408 = vmatpush.bf16.msra.mxu0 %v5393
    %5409 = vmatmul.bf16.gmra.mxu0 %v5353
    %v5410 = vpop.f32.mrf.mxu0
    %v5411 = vadd.f32 %v5326, %v5410
    %v5412 = vpop.f32.mrf.mxu0
    %v5413 = vadd.f32 %v5326, %v5412
    %5414 = vmatmul.bf16.gmra.mxu0 %v5356
    %v5415 = vpop.f32.mrf.mxu0
    %v5416 = vadd.f32 %v5326, %v5415
    %v5417 = vpop.f32.mrf.mxu0
    %v5418 = vadd.f32 %v5326, %v5417
    %5419 = vdwg.mxu0
    %v5424 = vrot.slane %v5368, 1
    %v5425 = vrot.slane %v5368, 2
    %v5426 = vrot.slane %v5368, 3
    %v5427 = vrot.slane %v5368, 4
    %v5428 = vrot.slane %v5368, 5
    %v5429 = vrot.slane %v5368, 6
    %v5430 = vrot.slane %v5368, 7
    %v5431 = vrot.slane %v5370, 1
    %v5432 = vrot.slane %v5370, 2
    %v5433 = vrot.slane %v5370, 3
    %v5434 = vrot.slane %v5370, 4
    %v5435 = vrot.slane %v5370, 5
    %v5436 = vrot.slane %v5370, 6
    %v5437 = vrot.slane %v5370, 7
    %v5438 = vrot.slane %v5373, 1
    %v5439 = vrot.slane %v5373, 2
    %v5440 = vrot.slane %v5373, 3
    %v5441 = vrot.slane %v5373, 4
    %v5442 = vrot.slane %v5373, 5
    %v5443 = vrot.slane %v5373, 6
    %v5444 = vrot.slane %v5373, 7
    %v5445 = vrot.slane %v5375, 1
    %v5446 = vrot.slane %v5375, 2
    %v5447 = vrot.slane %v5375, 3
    %v5448 = vrot.slane %v5375, 4
    %v5449 = vrot.slane %v5375, 5
    %v5450 = vrot.slane %v5375, 6
    %v5451 = vrot.slane %v5375, 7
    %vm5480 = vcmask 516096
    %5481 = vst.msk [vmem:[#allocation7] sm:$0x1] %vm5480, %v5368
    %5482 = vst.msk [vmem:[#allocation7 + $0x2] sm:$0x1] %vm5480, %v5424
    %5483 = vst.msk [vmem:[#allocation7 + $0x4] sm:$0x1] %vm5480, %v5425
    %5484 = vst.msk [vmem:[#allocation7 + $0x6] sm:$0x1] %vm5480, %v5426
    %5485 = vst.msk [vmem:[#allocation7 + $0x8] sm:$0x1] %vm5480, %v5427
    %5486 = vst.msk [vmem:[#allocation7 + $0xa] sm:$0x1] %vm5480, %v5428
    %5487 = vst.msk [vmem:[#allocation7 + $0xc] sm:$0x1] %vm5480, %v5429
    %5488 = vst.msk [vmem:[#allocation7 + $0xe] sm:$0x1] %vm5480, %v5430
    %5489 = vst.msk [vmem:[#allocation7 + $0x10] sm:$0x1] %vm5480, %v5370
    %5490 = vst.msk [vmem:[#allocation7 + $0x12] sm:$0x1] %vm5480, %v5431
    %5491 = vst.msk [vmem:[#allocation7 + $0x14] sm:$0x1] %vm5480, %v5432
    %5492 = vst.msk [vmem:[#allocation7 + $0x16] sm:$0x1] %vm5480, %v5433
    %5493 = vst.msk [vmem:[#allocation7 + $0x18] sm:$0x1] %vm5480, %v5434
    %5494 = vst.msk [vmem:[#allocation7 + $0x1a] sm:$0x1] %vm5480, %v5435
    %5495 = vst.msk [vmem:[#allocation7 + $0x1c] sm:$0x1] %vm5480, %v5436
    %5496 = vst.msk [vmem:[#allocation7 + $0x1e] sm:$0x1] %vm5480, %v5437
    %5497 = vst.msk [vmem:[#allocation7 + $0x20] sm:$0x1] %vm5480, %v5373
    %5498 = vst.msk [vmem:[#allocation7 + $0x22] sm:$0x1] %vm5480, %v5438
    %5499 = vst.msk [vmem:[#allocation7 + $0x24] sm:$0x1] %vm5480, %v5439
    %5500 = vst.msk [vmem:[#allocation7 + $0x26] sm:$0x1] %vm5480, %v5440
    %5501 = vst.msk [vmem:[#allocation7 + $0x28] sm:$0x1] %vm5480, %v5441
    %5502 = vst.msk [vmem:[#allocation7 + $0x2a] sm:$0x1] %vm5480, %v5442
    %5503 = vst.msk [vmem:[#allocation7 + $0x2c] sm:$0x1] %vm5480, %v5443
    %5504 = vst.msk [vmem:[#allocation7 + $0x2e] sm:$0x1] %vm5480, %v5444
    %5505 = vst.msk [vmem:[#allocation7 + $0x30] sm:$0x1] %vm5480, %v5375
    %5506 = vst.msk [vmem:[#allocation7 + $0x32] sm:$0x1] %vm5480, %v5445
    %5507 = vst.msk [vmem:[#allocation7 + $0x34] sm:$0x1] %vm5480, %v5446
    %5508 = vst.msk [vmem:[#allocation7 + $0x36] sm:$0x1] %vm5480, %v5447
    %5509 = vst.msk [vmem:[#allocation7 + $0x38] sm:$0x1] %vm5480, %v5448
    %5510 = vst.msk [vmem:[#allocation7 + $0x3a] sm:$0x1] %vm5480, %v5449
    %5511 = vst.msk [vmem:[#allocation7 + $0x3c] sm:$0x1] %vm5480, %v5450
    %5512 = vst.msk [vmem:[#allocation7 + $0x3e] sm:$0x1] %vm5480, %v5451
    %v5517 = vrot.slane %v5411, 1
    %v5518 = vrot.slane %v5411, 2
    %v5519 = vrot.slane %v5411, 3
    %v5520 = vrot.slane %v5411, 4
    %v5521 = vrot.slane %v5411, 5
    %v5522 = vrot.slane %v5411, 6
    %v5523 = vrot.slane %v5411, 7
    %v5524 = vrot.slane %v5413, 1
    %v5525 = vrot.slane %v5413, 2
    %v5526 = vrot.slane %v5413, 3
    %v5527 = vrot.slane %v5413, 4
    %v5528 = vrot.slane %v5413, 5
    %v5529 = vrot.slane %v5413, 6
    %v5530 = vrot.slane %v5413, 7
    %v5531 = vrot.slane %v5416, 1
    %v5532 = vrot.slane %v5416, 2
    %v5533 = vrot.slane %v5416, 3
    %v5534 = vrot.slane %v5416, 4
    %v5535 = vrot.slane %v5416, 5
    %v5536 = vrot.slane %v5416, 6
    %v5537 = vrot.slane %v5416, 7
    %v5538 = vrot.slane %v5418, 1
    %v5539 = vrot.slane %v5418, 2
    %v5540 = vrot.slane %v5418, 3
    %v5541 = vrot.slane %v5418, 4
    %v5542 = vrot.slane %v5418, 5
    %v5543 = vrot.slane %v5418, 6
    %v5544 = vrot.slane %v5418, 7
    %5573 = vst.msk [vmem:[#allocation7 + $0x1] sm:$0x1] %vm5480, %v5411
    %5574 = vst.msk [vmem:[#allocation7 + $0x3] sm:$0x1] %vm5480, %v5517
    %5575 = vst.msk [vmem:[#allocation7 + $0x5] sm:$0x1] %vm5480, %v5518
    %5576 = vst.msk [vmem:[#allocation7 + $0x7] sm:$0x1] %vm5480, %v5519
    %5577 = vst.msk [vmem:[#allocation7 + $0x9] sm:$0x1] %vm5480, %v5520
    %5578 = vst.msk [vmem:[#allocation7 + $0xb] sm:$0x1] %vm5480, %v5521
    %5579 = vst.msk [vmem:[#allocation7 + $0xd] sm:$0x1] %vm5480, %v5522
    %5580 = vst.msk [vmem:[#allocation7 + $0xf] sm:$0x1] %vm5480, %v5523
    %5581 = vst.msk [vmem:[#allocation7 + $0x11] sm:$0x1] %vm5480, %v5413
    %5582 = vst.msk [vmem:[#allocation7 + $0x13] sm:$0x1] %vm5480, %v5524
    %5583 = vst.msk [vmem:[#allocation7 + $0x15] sm:$0x1] %vm5480, %v5525
    %5584 = vst.msk [vmem:[#allocation7 + $0x17] sm:$0x1] %vm5480, %v5526
    %5585 = vst.msk [vmem:[#allocation7 + $0x19] sm:$0x1] %vm5480, %v5527
    %5586 = vst.msk [vmem:[#allocation7 + $0x1b] sm:$0x1] %vm5480, %v5528
    %5587 = vst.msk [vmem:[#allocation7 + $0x1d] sm:$0x1] %vm5480, %v5529
    %5588 = vst.msk [vmem:[#allocation7 + $0x1f] sm:$0x1] %vm5480, %v5530
    %5589 = vst.msk [vmem:[#allocation7 + $0x21] sm:$0x1] %vm5480, %v5416
    %5590 = vst.msk [vmem:[#allocation7 + $0x23] sm:$0x1] %vm5480, %v5531
    %5591 = vst.msk [vmem:[#allocation7 + $0x25] sm:$0x1] %vm5480, %v5532
    %5592 = vst.msk [vmem:[#allocation7 + $0x27] sm:$0x1] %vm5480, %v5533
    %5593 = vst.msk [vmem:[#allocation7 + $0x29] sm:$0x1] %vm5480, %v5534
    %5594 = vst.msk [vmem:[#allocation7 + $0x2b] sm:$0x1] %vm5480, %v5535
    %5595 = vst.msk [vmem:[#allocation7 + $0x2d] sm:$0x1] %vm5480, %v5536
    %5596 = vst.msk [vmem:[#allocation7 + $0x2f] sm:$0x1] %vm5480, %v5537
    %5597 = vst.msk [vmem:[#allocation7 + $0x31] sm:$0x1] %vm5480, %v5418
    %5598 = vst.msk [vmem:[#allocation7 + $0x33] sm:$0x1] %vm5480, %v5538
    %5599 = vst.msk [vmem:[#allocation7 + $0x35] sm:$0x1] %vm5480, %v5539
    %5600 = vst.msk [vmem:[#allocation7 + $0x37] sm:$0x1] %vm5480, %v5540
    %5601 = vst.msk [vmem:[#allocation7 + $0x39] sm:$0x1] %vm5480, %v5541
    %5602 = vst.msk [vmem:[#allocation7 + $0x3b] sm:$0x1] %vm5480, %v5542
    %5603 = vst.msk [vmem:[#allocation7 + $0x3d] sm:$0x1] %vm5480, %v5543
    %5604 = vst.msk [vmem:[#allocation7 + $0x3f] sm:$0x1] %vm5480, %v5544
    %v5605 = vld [vmem:[#allocation7] sm:$0x3]
    %v5606 = vld [vmem:[#allocation7 + $0x2] sm:$0x3]
    %v5607 = vld [vmem:[#allocation7 + $0x4] sm:$0x3]
    %v5608 = vld [vmem:[#allocation7 + $0x6] sm:$0x3]
    %v5609 = vld [vmem:[#allocation7 + $0x8] sm:$0x3]
    %v5610 = vld [vmem:[#allocation7 + $0xa] sm:$0x3]
    %v5611 = vld [vmem:[#allocation7 + $0xc] sm:$0x3]
    %v5612 = vld [vmem:[#allocation7 + $0xe] sm:$0x3]
    %v5613 = vld [vmem:[#allocation7 + $0x10] sm:$0x3]
    %v5614 = vld [vmem:[#allocation7 + $0x12] sm:$0x3]
    %v5615 = vld [vmem:[#allocation7 + $0x14] sm:$0x3]
    %v5616 = vld [vmem:[#allocation7 + $0x16] sm:$0x3]
    %v5617 = vld [vmem:[#allocation7 + $0x18] sm:$0x3]
    %v5618 = vld [vmem:[#allocation7 + $0x1a] sm:$0x3]
    %v5619 = vld [vmem:[#allocation7 + $0x1c] sm:$0x3]
    %v5620 = vld [vmem:[#allocation7 + $0x1e] sm:$0x3]
    %v5621 = vld [vmem:[#allocation7 + $0x20] sm:$0x3]
    %v5622 = vld [vmem:[#allocation7 + $0x22] sm:$0x3]
    %v5623 = vld [vmem:[#allocation7 + $0x24] sm:$0x3]
    %v5624 = vld [vmem:[#allocation7 + $0x26] sm:$0x3]
    %v5625 = vld [vmem:[#allocation7 + $0x28] sm:$0x3]
    %v5626 = vld [vmem:[#allocation7 + $0x2a] sm:$0x3]
    %v5627 = vld [vmem:[#allocation7 + $0x2c] sm:$0x3]
    %v5628 = vld [vmem:[#allocation7 + $0x2e] sm:$0x3]
    %v5629 = vld [vmem:[#allocation7 + $0x30] sm:$0x3]
    %v5630 = vld [vmem:[#allocation7 + $0x32] sm:$0x3]
    %v5631 = vld [vmem:[#allocation7 + $0x34] sm:$0x3]
    %v5632 = vld [vmem:[#allocation7 + $0x36] sm:$0x3]
    %v5633 = vld [vmem:[#allocation7 + $0x38] sm:$0x3]
    %v5634 = vld [vmem:[#allocation7 + $0x3a] sm:$0x3]
    %v5635 = vld [vmem:[#allocation7 + $0x3c] sm:$0x3]
    %v5636 = vld [vmem:[#allocation7 + $0x3e] sm:$0x3]
    %5669 = vst [vmem:[#allocation1] ss:$4 sm:$0xff] %v5605
    %s5670 = scalar_lea.vmem [#allocation1], 1
    %5671 = vst [vmem:[%s5670] ss:$4 sm:$0xff] %v5606
    %s5672 = scalar_lea.vmem [#allocation1], 2
    %5673 = vst [vmem:[%s5672] ss:$4 sm:$0xff] %v5607
    %s5674 = scalar_lea.vmem [#allocation1], 3
    %5675 = vst [vmem:[%s5674] ss:$4 sm:$0xff] %v5608
    %s5676 = scalar_lea.vmem [#allocation1], 32
    %5677 = vst [vmem:[%s5676] ss:$4 sm:$0xff] %v5609
    %s5678 = scalar_lea.vmem [#allocation1], 33
    %5679 = vst [vmem:[%s5678] ss:$4 sm:$0xff] %v5610
    %s5680 = scalar_lea.vmem [#allocation1], 34
    %5681 = vst [vmem:[%s5680] ss:$4 sm:$0xff] %v5611
    %s5682 = scalar_lea.vmem [#allocation1], 35
    %5683 = vst [vmem:[%s5682] ss:$4 sm:$0xff] %v5612
    %v5684 = vld.sshfl [vmem:[#allocation1] sm:$0xff pattern:$0x73625140]
    %v5685 = vld.sshfl [vmem:[#allocation1 + $0x20] sm:$0xff pattern:$0x73625140]
    %5686 = vst [vmem:[#allocation1] ss:$4 sm:$0xff] %v5613
    %5687 = vst [vmem:[%s5670] ss:$4 sm:$0xff] %v5614
    %5688 = vst [vmem:[%s5672] ss:$4 sm:$0xff] %v5615
    %5689 = vst [vmem:[%s5674] ss:$4 sm:$0xff] %v5616
    %5690 = vst [vmem:[%s5676] ss:$4 sm:$0xff] %v5617
    %5691 = vst [vmem:[%s5678] ss:$4 sm:$0xff] %v5618
    %5692 = vst [vmem:[%s5680] ss:$4 sm:$0xff] %v5619
    %5693 = vst [vmem:[%s5682] ss:$4 sm:$0xff] %v5620
    %v5694 = vld.sshfl [vmem:[#allocation1] sm:$0xff pattern:$0x73625140]
    %v5695 = vld.sshfl [vmem:[#allocation1 + $0x20] sm:$0xff pattern:$0x73625140]
    %5696 = vst [vmem:[#allocation1] ss:$4 sm:$0xff] %v5621
    %5697 = vst [vmem:[%s5670] ss:$4 sm:$0xff] %v5622
    %5698 = vst [vmem:[%s5672] ss:$4 sm:$0xff] %v5623
    %5699 = vst [vmem:[%s5674] ss:$4 sm:$0xff] %v5624
    %5700 = vst [vmem:[%s5676] ss:$4 sm:$0xff] %v5625
    %5701 = vst [vmem:[%s5678] ss:$4 sm:$0xff] %v5626
    %5702 = vst [vmem:[%s5680] ss:$4 sm:$0xff] %v5627
    %5703 = vst [vmem:[%s5682] ss:$4 sm:$0xff] %v5628
    %v5704 = vld.sshfl [vmem:[#allocation1] sm:$0xff pattern:$0x73625140]
    %v5705 = vld.sshfl [vmem:[#allocation1 + $0x20] sm:$0xff pattern:$0x73625140]
    %5706 = vst [vmem:[#allocation1] ss:$4 sm:$0xff] %v5629
    %5707 = vst [vmem:[%s5670] ss:$4 sm:$0xff] %v5630
    %5708 = vst [vmem:[%s5672] ss:$4 sm:$0xff] %v5631
    %5709 = vst [vmem:[%s5674] ss:$4 sm:$0xff] %v5632
    %5710 = vst [vmem:[%s5676] ss:$4 sm:$0xff] %v5633
    %5711 = vst [vmem:[%s5678] ss:$4 sm:$0xff] %v5634
    %5712 = vst [vmem:[%s5680] ss:$4 sm:$0xff] %v5635
    %5713 = vst [vmem:[%s5682] ss:$4 sm:$0xff] %v5636
    %v5714 = vld.sshfl [vmem:[#allocation1] sm:$0xff pattern:$0x73625140]
    %v5715 = vld.sshfl [vmem:[#allocation1 + $0x20] sm:$0xff pattern:$0x73625140]
    %v5716 = vrot.slane %v5684, 7
    %v5717 = vrot.slane %v5685, 7
    %v5718 = vsel %vm560, %v5716, %v5717
    %v5719 = vrot.slane %v5694, 7
    %v5720 = vsel %vm560, %v5717, %v5719
    %v5721 = vrot.slane %v5695, 7
    %v5722 = vsel %vm560, %v5719, %v5721
    %v5723 = vrot.slane %v5704, 7
    %v5724 = vrot.slane %v5705, 7
    %v5725 = vsel %vm560, %v5723, %v5724
    %v5726 = vrot.slane %v5714, 7
    %v5727 = vsel %vm560, %v5724, %v5726
    %v5728 = vrot.slane %v5715, 7
    %v5729 = vsel %vm560, %v5726, %v5728
    %v5738 = vsel %vm560, 0.0, %v5716
    %v5739 = vsel %vm560, 0.0, %v5723
    %5740 = vst [vmem:[#allocation1] ss:$4 sm:$0xff] %v5605
    %s5741 = scalar_lea.vmem [#allocation1], 1
    %5742 = vst [vmem:[%s5741] ss:$4 sm:$0xff] %v5606
    %s5743 = scalar_lea.vmem [#allocation1], 2
    %5744 = vst [vmem:[%s5743] ss:$4 sm:$0xff] %v5607
    %s5745 = scalar_lea.vmem [#allocation1], 3
    %5746 = vst [vmem:[%s5745] ss:$4 sm:$0xff] %v5608
    %s5747 = scalar_lea.vmem [#allocation1], 32
    %5748 = vst [vmem:[%s5747] ss:$4 sm:$0xff] %v5609
    %s5749 = scalar_lea.vmem [#allocation1], 33
    %5750 = vst [vmem:[%s5749] ss:$4 sm:$0xff] %v5610
    %s5751 = scalar_lea.vmem [#allocation1], 34
    %5752 = vst [vmem:[%s5751] ss:$4 sm:$0xff] %v5611
    %s5753 = scalar_lea.vmem [#allocation1], 35
    %5754 = vst [vmem:[%s5753] ss:$4 sm:$0xff] %v5612
    %v5755 = vld.sshfl [vmem:[#allocation1] sm:$0xff pattern:$0x73625140]
    %v5756 = vld.sshfl [vmem:[#allocation1 + $0x20] sm:$0xff pattern:$0x73625140]
    %5757 = vst [vmem:[#allocation1] ss:$4 sm:$0xff] %v5613
    %5758 = vst [vmem:[%s5741] ss:$4 sm:$0xff] %v5614
    %5759 = vst [vmem:[%s5743] ss:$4 sm:$0xff] %v5615
    %5760 = vst [vmem:[%s5745] ss:$4 sm:$0xff] %v5616
    %5761 = vst [vmem:[%s5747] ss:$4 sm:$0xff] %v5617
    %5762 = vst [vmem:[%s5749] ss:$4 sm:$0xff] %v5618
    %5763 = vst [vmem:[%s5751] ss:$4 sm:$0xff] %v5619
    %5764 = vst [vmem:[%s5753] ss:$4 sm:$0xff] %v5620
    %v5765 = vld.sshfl [vmem:[#allocation1] sm:$0xff pattern:$0x73625140]
    %v5766 = vld.sshfl [vmem:[#allocation1 + $0x20] sm:$0xff pattern:$0x73625140]
    %5767 = vst [vmem:[#allocation1] ss:$4 sm:$0xff] %v5621
    %5768 = vst [vmem:[%s5741] ss:$4 sm:$0xff] %v5622
    %5769 = vst [vmem:[%s5743] ss:$4 sm:$0xff] %v5623
    %5770 = vst [vmem:[%s5745] ss:$4 sm:$0xff] %v5624
    %5771 = vst [vmem:[%s5747] ss:$4 sm:$0xff] %v5625
    %5772 = vst [vmem:[%s5749] ss:$4 sm:$0xff] %v5626
    %5773 = vst [vmem:[%s5751] ss:$4 sm:$0xff] %v5627
    %5774 = vst [vmem:[%s5753] ss:$4 sm:$0xff] %v5628
    %v5775 = vld.sshfl [vmem:[#allocation1] sm:$0xff pattern:$0x73625140]
    %v5776 = vld.sshfl [vmem:[#allocation1 + $0x20] sm:$0xff pattern:$0x73625140]
    %5777 = vst [vmem:[#allocation1] ss:$4 sm:$0xff] %v5629
    %5778 = vst [vmem:[%s5741] ss:$4 sm:$0xff] %v5630
    %5779 = vst [vmem:[%s5743] ss:$4 sm:$0xff] %v5631
    %5780 = vst [vmem:[%s5745] ss:$4 sm:$0xff] %v5632
    %5781 = vst [vmem:[%s5747] ss:$4 sm:$0xff] %v5633
    %5782 = vst [vmem:[%s5749] ss:$4 sm:$0xff] %v5634
    %5783 = vst [vmem:[%s5751] ss:$4 sm:$0xff] %v5635
    %5784 = vst [vmem:[%s5753] ss:$4 sm:$0xff] %v5636
    %v5785 = vld.sshfl [vmem:[#allocation1] sm:$0xff pattern:$0x73625140]
    %v5786 = vld.sshfl [vmem:[#allocation1 + $0x20] sm:$0xff pattern:$0x73625140]
    %v5787 = vrot.slane %v5755, 1
    %v5788 = vrot.slane %v5756, 1
    %v5789 = vsel %vm585, %v5787, %v5788
    %v5790 = vrot.slane %v5765, 1
    %v5791 = vsel %vm585, %v5788, %v5790
    %v5792 = vrot.slane %v5766, 1
    %v5793 = vsel %vm585, %v5790, %v5792
    %v5794 = vrot.slane %v5775, 1
    %v5795 = vrot.slane %v5776, 1
    %v5796 = vsel %vm585, %v5794, %v5795
    %v5797 = vrot.slane %v5785, 1
    %v5798 = vsel %vm585, %v5795, %v5797
    %v5799 = vrot.slane %v5786, 1
    %v5800 = vsel %vm585, %v5797, %v5799
    %v5809 = vsel %vm585, %v5792, 0.0
    %v5810 = vsel %vm585, %v5799, 0.0
    %5811 = vst [vmem:[#allocation1] ss:$4 sm:$0xff] %v5605
    %s5812 = scalar_lea.vmem [#allocation1], 1
    %5813 = vst [vmem:[%s5812] ss:$4 sm:$0xff] %v5606
    %s5814 = scalar_lea.vmem [#allocation1], 2
    %5815 = vst [vmem:[%s5814] ss:$4 sm:$0xff] %v5607
    %s5816 = scalar_lea.vmem [#allocation1], 3
    %5817 = vst [vmem:[%s5816] ss:$4 sm:$0xff] %v5608
    %s5818 = scalar_lea.vmem [#allocation1], 32
    %5819 = vst [vmem:[%s5818] ss:$4 sm:$0xff] %v5609
    %s5820 = scalar_lea.vmem [#allocation1], 33
    %5821 = vst [vmem:[%s5820] ss:$4 sm:$0xff] %v5610
    %s5822 = scalar_lea.vmem [#allocation1], 34
    %5823 = vst [vmem:[%s5822] ss:$4 sm:$0xff] %v5611
    %s5824 = scalar_lea.vmem [#allocation1], 35
    %5825 = vst [vmem:[%s5824] ss:$4 sm:$0xff] %v5612
    %v5826 = vld.sshfl [vmem:[#allocation1] sm:$0xff pattern:$0x73625140]
    %v5827 = vld.sshfl [vmem:[#allocation1 + $0x20] sm:$0xff pattern:$0x73625140]
    %5828 = vst [vmem:[#allocation1] ss:$4 sm:$0xff] %v5613
    %5829 = vst [vmem:[%s5812] ss:$4 sm:$0xff] %v5614
    %5830 = vst [vmem:[%s5814] ss:$4 sm:$0xff] %v5615
    %5831 = vst [vmem:[%s5816] ss:$4 sm:$0xff] %v5616
    %5832 = vst [vmem:[%s5818] ss:$4 sm:$0xff] %v5617
    %5833 = vst [vmem:[%s5820] ss:$4 sm:$0xff] %v5618
    %5834 = vst [vmem:[%s5822] ss:$4 sm:$0xff] %v5619
    %5835 = vst [vmem:[%s5824] ss:$4 sm:$0xff] %v5620
    %v5836 = vld.sshfl [vmem:[#allocation1] sm:$0xff pattern:$0x73625140]
    %v5837 = vld.sshfl [vmem:[#allocation1 + $0x20] sm:$0xff pattern:$0x73625140]
    %5838 = vst [vmem:[#allocation1] ss:$4 sm:$0xff] %v5621
    %5839 = vst [vmem:[%s5812] ss:$4 sm:$0xff] %v5622
    %5840 = vst [vmem:[%s5814] ss:$4 sm:$0xff] %v5623
    %5841 = vst [vmem:[%s5816] ss:$4 sm:$0xff] %v5624
    %5842 = vst [vmem:[%s5818] ss:$4 sm:$0xff] %v5625
    %5843 = vst [vmem:[%s5820] ss:$4 sm:$0xff] %v5626
    %5844 = vst [vmem:[%s5822] ss:$4 sm:$0xff] %v5627
    %5845 = vst [vmem:[%s5824] ss:$4 sm:$0xff] %v5628
    %v5846 = vld.sshfl [vmem:[#allocation1] sm:$0xff pattern:$0x73625140]
    %v5847 = vld.sshfl [vmem:[#allocation1 + $0x20] sm:$0xff pattern:$0x73625140]
    %5848 = vst [vmem:[#allocation1] ss:$4 sm:$0xff] %v5629
    %5849 = vst [vmem:[%s5812] ss:$4 sm:$0xff] %v5630
    %5850 = vst [vmem:[%s5814] ss:$4 sm:$0xff] %v5631
    %5851 = vst [vmem:[%s5816] ss:$4 sm:$0xff] %v5632
    %5852 = vst [vmem:[%s5818] ss:$4 sm:$0xff] %v5633
    %5853 = vst [vmem:[%s5820] ss:$4 sm:$0xff] %v5634
    %5854 = vst [vmem:[%s5822] ss:$4 sm:$0xff] %v5635
    %5855 = vst [vmem:[%s5824] ss:$4 sm:$0xff] %v5636
    %v5856 = vld.sshfl [vmem:[#allocation1] sm:$0xff pattern:$0x73625140]
    %v5857 = vld.sshfl [vmem:[#allocation1 + $0x20] sm:$0xff pattern:$0x73625140]
    %5858 = vrot.lane.b32.xlu0 %v5826, 64
    %v5859 = vpop.permute.xlu0 %5858
    %5860 = vrot.lane.b32.xlu0 %v5827, 64
    %v5861 = vpop.permute.xlu0 %5860
    %5862 = vrot.lane.b32.xlu0 %v5836, 64
    %v5863 = vpop.permute.xlu0 %5862
    %5864 = vrot.lane.b32.xlu0 %v5837, 64
    %v5865 = vpop.permute.xlu0 %5864
    %5866 = vrot.lane.b32.xlu0 %v5846, 64
    %v5867 = vpop.permute.xlu0 %5866
    %5868 = vrot.lane.b32.xlu0 %v5847, 64
    %v5869 = vpop.permute.xlu0 %5868
    %5870 = vrot.lane.b32.xlu0 %v5856, 64
    %v5871 = vpop.permute.xlu0 %5870
    %5872 = vrot.lane.b32.xlu0 %v5857, 64
    %v5873 = vpop.permute.xlu0 %5872
    %v5882 = vsel %vm847, %v5738, %v5859
    %v5883 = vsel %vm847, %v5718, %v5861
    %v5884 = vsel %vm847, %v5720, %v5863
    %v5885 = vsel %vm847, %v5722, %v5865
    %v5886 = vsel %vm847, %v5739, %v5867
    %v5887 = vsel %vm847, %v5725, %v5869
    %v5888 = vsel %vm847, %v5727, %v5871
    %v5889 = vsel %vm847, %v5729, %v5873
    %v5890 = vpack.c.bf16 %v5883, %v5882
    %v5891 = vpack.c.bf16 %v5791, %v5789
    %v5892 = vpack.c.bf16 %v5885, %v5884
    %v5893 = vpack.c.bf16 %v5809, %v5793
    %v5894 = vpack.c.bf16 %v5887, %v5886
    %v5895 = vpack.c.bf16 %v5798, %v5796
    %v5896 = vpack.c.bf16 %v5889, %v5888
    %v5897 = vpack.c.bf16 %v5810, %v5800
    %v5906 = vrot.slane %v5235, 7
    %v5907 = vrot.slane %v5236, 7
    %v5908 = vsel %vm560, %v5906, %v5907
    %v5909 = vrot.slane %v5237, 7
    %v5910 = vsel %vm560, %v5907, %v5909
    %v5911 = vrot.slane %v5238, 7
    %v5912 = vsel %vm560, %v5909, %v5911
    %v5913 = vrot.slane %v5239, 7
    %v5914 = vrot.slane %v5240, 7
    %v5915 = vsel %vm560, %v5913, %v5914
    %v5916 = vrot.slane %v5241, 7
    %v5917 = vsel %vm560, %v5914, %v5916
    %v5918 = vrot.slane %v5242, 7
    %v5919 = vsel %vm560, %v5916, %v5918
    %v5928 = vsel %vm560, 0.0, %v5906
    %v5929 = vsel %vm560, 0.0, %v5913
    %v5930 = vrot.slane %v5235, 1
    %v5931 = vrot.slane %v5236, 1
    %v5932 = vsel %vm585, %v5930, %v5931
    %v5933 = vrot.slane %v5237, 1
    %v5934 = vsel %vm585, %v5931, %v5933
    %v5935 = vrot.slane %v5238, 1
    %v5936 = vsel %vm585, %v5933, %v5935
    %v5937 = vrot.slane %v5239, 1
    %v5938 = vrot.slane %v5240, 1
    %v5939 = vsel %vm585, %v5937, %v5938
    %v5940 = vrot.slane %v5241, 1
    %v5941 = vsel %vm585, %v5938, %v5940
    %v5942 = vrot.slane %v5242, 1
    %v5943 = vsel %vm585, %v5940, %v5942
    %v5946 = vsel %vm585, %v5935, 0.0
    %v5947 = vsel %vm585, %v5942, 0.0
    %5948 = vrot.lane.b32.xlu0 %v5235, 32
    %v5949 = vpop.permute.xlu0 %5948
    %5950 = vrot.lane.b32.xlu0 %v5236, 32
    %v5951 = vpop.permute.xlu0 %5950
    %5952 = vrot.lane.b32.xlu0 %v5237, 32
    %v5953 = vpop.permute.xlu0 %5952
    %5954 = vrot.lane.b32.xlu0 %v5238, 32
    %v5955 = vpop.permute.xlu0 %5954
    %5956 = vrot.lane.b32.xlu0 %v5239, 32
    %v5957 = vpop.permute.xlu0 %5956
    %5958 = vrot.lane.b32.xlu0 %v5240, 32
    %v5959 = vpop.permute.xlu0 %5958
    %5960 = vrot.lane.b32.xlu0 %v5241, 32
    %v5961 = vpop.permute.xlu0 %5960
    %5962 = vrot.lane.b32.xlu0 %v5242, 32
    %v5963 = vpop.permute.xlu0 %5962
    %5974 = vrot.lane.b32.xlu0 %v5932, 64
    %v5975 = vpop.permute.xlu0 %5974
    %5976 = vrot.lane.b32.xlu0 %v5934, 64
    %v5977 = vpop.permute.xlu0 %5976
    %5978 = vrot.lane.b32.xlu0 %v5936, 64
    %v5979 = vpop.permute.xlu0 %5978
    %5980 = vrot.lane.b32.xlu0 %v5946, 64
    %v5981 = vpop.permute.xlu0 %5980
    %5982 = vrot.lane.b32.xlu0 %v5939, 64
    %v5983 = vpop.permute.xlu0 %5982
    %5984 = vrot.lane.b32.xlu0 %v5941, 64
    %v5985 = vpop.permute.xlu0 %5984
    %5986 = vrot.lane.b32.xlu0 %v5943, 64
    %v5987 = vpop.permute.xlu0 %5986
    %5988 = vrot.lane.b32.xlu0 %v5947, 64
    %v5989 = vpop.permute.xlu0 %5988
    %v5998 = vsel %vm838, %v5928, %v5949
    %v5999 = vsel %vm838, %v5908, %v5951
    %v6000 = vsel %vm838, %v5910, %v5953
    %v6001 = vsel %vm838, %v5912, %v5955
    %v6002 = vsel %vm838, %v5929, %v5957
    %v6003 = vsel %vm838, %v5915, %v5959
    %v6004 = vsel %vm838, %v5917, %v5961
    %v6005 = vsel %vm838, %v5919, %v5963
    %v6006 = vsel %vm847, %v5998, %v5975
    %v6007 = vsel %vm847, %v5999, %v5977
    %v6008 = vsel %vm847, %v6000, %v5979
    %v6009 = vsel %vm847, %v6001, %v5981
    %v6010 = vsel %vm847, %v6002, %v5983
    %v6011 = vsel %vm847, %v6003, %v5985
    %v6012 = vsel %vm847, %v6004, %v5987
    %v6013 = vsel %vm847, %v6005, %v5989
    %v6014 = vpack.c.bf16 %v6007, %v6006
    %v6015 = vpack.c.bf16 %v6009, %v6008
    %v6016 = vpack.c.bf16 %v6011, %v6010
    %v6017 = vpack.c.bf16 %v6013, %v6012
    %v6030 = vunpack.c.l.b16 %v5284
    %v6031 = vunpack.c.l.b16 %v5285
    %v6032 = vunpack.c.l.b16 %v5286
    %v6033 = vunpack.c.l.b16 %v5287
    %v6034 = vunpack.c.l.b16 %v5288
    %v6035 = vunpack.c.l.b16 %v5289
    %v6036 = vunpack.c.l.b16 %v5290
    %v6037 = vunpack.c.l.b16 %v5291
    %v6038 = vunpack.c.l.b16 %v5292
    %v6039 = vunpack.c.l.b16 %v5293
    %v6040 = vunpack.c.l.b16 %v5294
    %v6041 = vunpack.c.l.b16 %v5295
    %v6042 = vpack.c.b16 %v6031, %v6030
    %v6043 = vpack.c.b16 %v6033, %v6032
    %v6044 = vpack.c.b16 %v6035, %v6034
    %v6045 = vpack.c.b16 %v6037, %v6036
    %v6046 = vpack.c.b16 %v6039, %v6038
    %v6047 = vpack.c.b16 %v6041, %v6040
    %v6055 = vsel %vm899, %v6014, 0
    %v6058 = vsel %vm899, %v6015, 0
    %v6061 = vsel %vm899, %v6016, 0
    %v6064 = vsel %vm899, %v6017, 0
    %6066 = vmatpush.bf16.msra.mxu0 0
    %6067 = vmatpush.bf16.msra.mxu0 0
    %6068 = vmatpush.bf16.msra.mxu0 %v6047
    %6069 = vmatpush.bf16.msra.mxu0 %v6046
    %6070 = vmatpush.bf16.msra.mxu0 %v6045
    %6071 = vmatpush.bf16.msra.mxu0 %v6044
    %6072 = vmatpush.bf16.msra.mxu0 %v6043
    %6073 = vmatpush.bf16.msra.mxu0 %v6042
    %6074 = vmatmul.bf16.gmra.mxu0 %v6055
    %v6075 = vpop.f32.mrf.mxu0
    %v6076 = vadd.f32 0.0, %v6075
    %v6077 = vpop.f32.mrf.mxu0
    %v6078 = vadd.f32 0.0, %v6077
    %6079 = vmatmul.bf16.gmra.mxu0 %v6058
    %v6080 = vpop.f32.mrf.mxu0
    %v6081 = vadd.f32 0.0, %v6080
    %v6082 = vpop.f32.mrf.mxu0
    %v6083 = vadd.f32 0.0, %v6082
    %6084 = vmatmul.bf16.gmra.mxu0 %v6061
    %v6085 = vpop.f32.mrf.mxu0
    %v6086 = vadd.f32 0.0, %v6085
    %v6087 = vpop.f32.mrf.mxu0
    %v6088 = vadd.f32 0.0, %v6087
    %6089 = vmatmul.bf16.gmra.mxu0 %v6064
    %v6090 = vpop.f32.mrf.mxu0
    %v6091 = vadd.f32 0.0, %v6090
    %v6092 = vpop.f32.mrf.mxu0
    %v6093 = vadd.f32 0.0, %v6092
    %6094 = vdwg.mxu0
    %v6119 = vunpack.c.l.b16 %v5260
    %v6120 = vunpack.c.l.b16 %v5261
    %v6121 = vunpack.c.l.b16 %v5262
    %v6122 = vunpack.c.l.b16 %v5263
    %v6123 = vunpack.c.l.b16 %v5264
    %v6124 = vunpack.c.l.b16 %v5265
    %v6125 = vunpack.c.l.b16 %v5266
    %v6126 = vunpack.c.l.b16 %v5267
    %v6127 = vunpack.c.l.b16 %v5268
    %v6128 = vunpack.c.l.b16 %v5269
    %v6129 = vunpack.c.l.b16 %v5270
    %v6130 = vunpack.c.l.b16 %v5271
    %v6131 = vunpack.c.l.b16 %v5272
    %v6132 = vunpack.c.l.b16 %v5273
    %v6133 = vunpack.c.l.b16 %v5274
    %v6134 = vunpack.c.l.b16 %v5275
    %v6135 = vunpack.c.l.b16 %v5276
    %v6136 = vunpack.c.l.b16 %v5277
    %v6137 = vunpack.c.l.b16 %v5278
    %v6138 = vunpack.c.l.b16 %v5279
    %v6139 = vunpack.c.l.b16 %v5280
    %v6140 = vunpack.c.l.b16 %v5281
    %v6141 = vunpack.c.l.b16 %v5282
    %v6142 = vunpack.c.l.b16 %v5283
    %v6143 = vpack.c.b16 %v6120, %v6119
    %v6144 = vpack.c.b16 %v6122, %v6121
    %v6145 = vpack.c.b16 %v6124, %v6123
    %v6146 = vpack.c.b16 %v6126, %v6125
    %v6147 = vpack.c.b16 %v6128, %v6127
    %v6148 = vpack.c.b16 %v6130, %v6129
    %v6149 = vpack.c.b16 %v6132, %v6131
    %v6150 = vpack.c.b16 %v6134, %v6133
    %v6151 = vpack.c.b16 %v6136, %v6135
    %v6152 = vpack.c.b16 %v6138, %v6137
    %v6153 = vpack.c.b16 %v6140, %v6139
    %v6154 = vpack.c.b16 %v6142, %v6141
    %v6168 = vsel %vm847, %v5891, 0
    %v6171 = vsel %vm847, %v5893, 0
    %v6174 = vsel %vm847, %v5895, 0
    %v6177 = vsel %vm847, %v5897, 0
    %6179 = vmatpush.bf16.msra.mxu0 %v6150
    %6180 = vmatpush.bf16.msra.mxu0 %v6149
    %6181 = vmatpush.bf16.msra.mxu0 %v6148
    %6182 = vmatpush.bf16.msra.mxu0 %v6147
    %6183 = vmatpush.bf16.msra.mxu0 %v6146
    %6184 = vmatpush.bf16.msra.mxu0 %v6145
    %6185 = vmatpush.bf16.msra.mxu0 %v6144
    %6186 = vmatpush.bf16.msra.mxu0 %v6143
    %6187 = vmatmul.bf16.gmra.mxu0 %v5890
    %v6188 = vpop.f32.mrf.mxu0
    %v6189 = vadd.f32 %v6076, %v6188
    %v6190 = vpop.f32.mrf.mxu0
    %v6191 = vadd.f32 %v6078, %v6190
    %6192 = vmatmul.bf16.gmra.mxu0 %v5892
    %v6193 = vpop.f32.mrf.mxu0
    %v6194 = vadd.f32 %v6081, %v6193
    %v6195 = vpop.f32.mrf.mxu0
    %v6196 = vadd.f32 %v6083, %v6195
    %6197 = vmatmul.bf16.gmra.mxu0 %v5894
    %v6198 = vpop.f32.mrf.mxu0
    %v6199 = vadd.f32 %v6086, %v6198
    %v6200 = vpop.f32.mrf.mxu0
    %v6201 = vadd.f32 %v6088, %v6200
    %6202 = vmatmul.bf16.gmra.mxu0 %v5896
    %v6203 = vpop.f32.mrf.mxu0
    %v6204 = vadd.f32 %v6091, %v6203
    %v6205 = vpop.f32.mrf.mxu0
    %v6206 = vadd.f32 %v6093, %v6205
    %6207 = vdwg.mxu0
    %6208 = vmatpush.bf16.msra.mxu0 0
    %6209 = vmatpush.bf16.msra.mxu0 0
    %6210 = vmatpush.bf16.msra.mxu0 0
    %6211 = vmatpush.bf16.msra.mxu0 0
    %6212 = vmatpush.bf16.msra.mxu0 %v6154
    %6213 = vmatpush.bf16.msra.mxu0 %v6153
    %6214 = vmatpush.bf16.msra.mxu0 %v6152
    %6215 = vmatpush.bf16.msra.mxu0 %v6151
    %6216 = vmatmul.bf16.gmra.mxu0 %v6168
    %v6217 = vpop.f32.mrf.mxu0
    %v6218 = vadd.f32 %v6189, %v6217
    %v6219 = vpop.f32.mrf.mxu0
    %v6220 = vadd.f32 %v6191, %v6219
    %6221 = vmatmul.bf16.gmra.mxu0 %v6171
    %v6222 = vpop.f32.mrf.mxu0
    %v6223 = vadd.f32 %v6194, %v6222
    %v6224 = vpop.f32.mrf.mxu0
    %v6225 = vadd.f32 %v6196, %v6224
    %6226 = vmatmul.bf16.gmra.mxu0 %v6174
    %v6227 = vpop.f32.mrf.mxu0
    %v6228 = vadd.f32 %v6199, %v6227
    %v6229 = vpop.f32.mrf.mxu0
    %v6230 = vadd.f32 %v6201, %v6229
    %6231 = vmatmul.bf16.gmra.mxu0 %v6177
    %v6232 = vpop.f32.mrf.mxu0
    %v6233 = vadd.f32 %v6204, %v6232
    %v6234 = vpop.f32.mrf.mxu0
    %v6235 = vadd.f32 %v6206, %v6234
    %6236 = vdwg.mxu0
    %v6238 = vperm.slane %v5296, 0
    %v6240 = vadd.f32 %v6218, %v6238
    %v6241 = vadd.f32 %v6220, %v6238
    %v6242 = vadd.f32 %v6223, %v6238
    %v6243 = vadd.f32 %v6225, %v6238
    %v6244 = vadd.f32 %v6228, %v6238
    %v6245 = vadd.f32 %v6230, %v6238
    %v6246 = vadd.f32 %v6233, %v6238
    %v6247 = vadd.f32 %v6235, %v6238
    %v6248 = vmax.f32 %v6240, 0.0
    %v6249 = vmax.f32 %v6241, 0.0
    %v6250 = vmax.f32 %v6242, 0.0
    %v6251 = vmax.f32 %v6243, 0.0
    %v6252 = vmax.f32 %v6244, 0.0
    %v6253 = vmax.f32 %v6245, 0.0
    %v6254 = vmax.f32 %v6246, 0.0
    %v6255 = vmax.f32 %v6247, 0.0
    %v6264 = vrot.slane %v6248, 7
    %v6265 = vrot.slane %v6249, 7
    %v6266 = vsel %vm560, %v6264, %v6265
    %v6267 = vrot.slane %v6250, 7
    %v6268 = vsel %vm560, %v6265, %v6267
    %v6269 = vrot.slane %v6251, 7
    %v6270 = vsel %vm560, %v6267, %v6269
    %v6271 = vrot.slane %v6252, 7
    %v6272 = vrot.slane %v6253, 7
    %v6273 = vsel %vm560, %v6271, %v6272
    %v6274 = vrot.slane %v6254, 7
    %v6275 = vsel %vm560, %v6272, %v6274
    %v6276 = vrot.slane %v6255, 7
    %v6277 = vsel %vm560, %v6274, %v6276
    %v6286 = vsel %vm560, 0.0, %v6264
    %v6287 = vsel %vm560, 0.0, %v6271
    %v6288 = vrot.slane %v6248, 1
    %v6289 = vrot.slane %v6249, 1
    %v6290 = vsel %vm585, %v6288, %v6289
    %v6291 = vrot.slane %v6250, 1
    %v6292 = vsel %vm585, %v6289, %v6291
    %v6293 = vrot.slane %v6251, 1
    %v6294 = vsel %vm585, %v6291, %v6293
    %v6295 = vrot.slane %v6252, 1
    %v6296 = vrot.slane %v6253, 1
    %v6297 = vsel %vm585, %v6295, %v6296
    %v6298 = vrot.slane %v6254, 1
    %v6299 = vsel %vm585, %v6296, %v6298
    %v6300 = vrot.slane %v6255, 1
    %v6301 = vsel %vm585, %v6298, %v6300
    %v6304 = vsel %vm585, %v6293, 0.0
    %v6305 = vsel %vm585, %v6300, 0.0
    %6306 = vrot.lane.b32.xlu0 %v6248, 32
    %v6307 = vpop.permute.xlu0 %6306
    %6308 = vrot.lane.b32.xlu0 %v6249, 32
    %v6309 = vpop.permute.xlu0 %6308
    %6310 = vrot.lane.b32.xlu0 %v6250, 32
    %v6311 = vpop.permute.xlu0 %6310
    %6312 = vrot.lane.b32.xlu0 %v6251, 32
    %v6313 = vpop.permute.xlu0 %6312
    %6314 = vrot.lane.b32.xlu0 %v6252, 32
    %v6315 = vpop.permute.xlu0 %6314
    %6316 = vrot.lane.b32.xlu0 %v6253, 32
    %v6317 = vpop.permute.xlu0 %6316
    %6318 = vrot.lane.b32.xlu0 %v6254, 32
    %v6319 = vpop.permute.xlu0 %6318
    %6320 = vrot.lane.b32.xlu0 %v6255, 32
    %v6321 = vpop.permute.xlu0 %6320
    %6332 = vrot.lane.b32.xlu0 %v6290, 64
    %v6333 = vpop.permute.xlu0 %6332
    %6334 = vrot.lane.b32.xlu0 %v6292, 64
    %v6335 = vpop.permute.xlu0 %6334
    %6336 = vrot.lane.b32.xlu0 %v6294, 64
    %v6337 = vpop.permute.xlu0 %6336
    %6338 = vrot.lane.b32.xlu0 %v6304, 64
    %v6339 = vpop.permute.xlu0 %6338
    %6340 = vrot.lane.b32.xlu0 %v6297, 64
    %v6341 = vpop.permute.xlu0 %6340
    %6342 = vrot.lane.b32.xlu0 %v6299, 64
    %v6343 = vpop.permute.xlu0 %6342
    %6344 = vrot.lane.b32.xlu0 %v6301, 64
    %v6345 = vpop.permute.xlu0 %6344
    %6346 = vrot.lane.b32.xlu0 %v6305, 64
    %v6347 = vpop.permute.xlu0 %6346
    %v6356 = vsel %vm838, %v6286, %v6307
    %v6357 = vsel %vm838, %v6266, %v6309
    %v6358 = vsel %vm838, %v6268, %v6311
    %v6359 = vsel %vm838, %v6270, %v6313
    %v6360 = vsel %vm838, %v6287, %v6315
    %v6361 = vsel %vm838, %v6273, %v6317
    %v6362 = vsel %vm838, %v6275, %v6319
    %v6363 = vsel %vm838, %v6277, %v6321
    %v6364 = vsel %vm847, %v6356, %v6333
    %v6365 = vsel %vm847, %v6357, %v6335
    %v6366 = vsel %vm847, %v6358, %v6337
    %v6367 = vsel %vm847, %v6359, %v6339
    %v6368 = vsel %vm847, %v6360, %v6341
    %v6369 = vsel %vm847, %v6361, %v6343
    %v6370 = vsel %vm847, %v6362, %v6345
    %v6371 = vsel %vm847, %v6363, %v6347
    %v6372 = vpack.c.bf16 %v6365, %v6364
    %v6373 = vpack.c.bf16 %v6367, %v6366
    %v6374 = vpack.c.bf16 %v6369, %v6368
    %v6375 = vpack.c.bf16 %v6371, %v6370
    %v6377 = vperm.slane %v5309, 0
    %v6391 = vunpack.c.l.b16 %v5297
    %v6392 = vunpack.c.l.b16 %v5298
    %v6393 = vunpack.c.l.b16 %v5299
    %v6394 = vunpack.c.l.b16 %v5300
    %v6395 = vunpack.c.l.b16 %v5301
    %v6396 = vunpack.c.l.b16 %v5302
    %v6397 = vunpack.c.l.b16 %v5303
    %v6398 = vunpack.c.l.b16 %v5304
    %v6399 = vunpack.c.l.b16 %v5305
    %v6400 = vunpack.c.l.b16 %v5306
    %v6401 = vunpack.c.l.b16 %v5307
    %v6402 = vunpack.c.l.b16 %v5308
    %v6403 = vpack.c.b16 %v6392, %v6391
    %v6404 = vpack.c.b16 %v6394, %v6393
    %v6405 = vpack.c.b16 %v6396, %v6395
    %v6406 = vpack.c.b16 %v6398, %v6397
    %v6407 = vpack.c.b16 %v6400, %v6399
    %v6408 = vpack.c.b16 %v6402, %v6401
    %v6416 = vsel %vm899, %v6372, 0
    %v6419 = vsel %vm899, %v6373, 0
    %v6422 = vsel %vm899, %v6374, 0
    %v6425 = vsel %vm899, %v6375, 0
    %6427 = vmatpush.bf16.msra.mxu0 0
    %6428 = vmatpush.bf16.msra.mxu0 0
    %6429 = vmatpush.bf16.msra.mxu0 %v6408
    %6430 = vmatpush.bf16.msra.mxu0 %v6407
    %6431 = vmatpush.bf16.msra.mxu0 %v6406
    %6432 = vmatpush.bf16.msra.mxu0 %v6405
    %6433 = vmatpush.bf16.msra.mxu0 %v6404
    %6434 = vmatpush.bf16.msra.mxu0 %v6403
    %6435 = vmatmul.bf16.gmra.mxu0 %v6416
    %v6436 = vpop.f32.mrf.mxu0
    %v6437 = vadd.f32 %v6377, %v6436
    %v6438 = vpop.f32.mrf.mxu0
    %v6439 = vadd.f32 %v6377, %v6438
    %6440 = vmatmul.bf16.gmra.mxu0 %v6419
    %v6441 = vpop.f32.mrf.mxu0
    %v6442 = vadd.f32 %v6377, %v6441
    %v6443 = vpop.f32.mrf.mxu0
    %v6444 = vadd.f32 %v6377, %v6443
    %6445 = vmatmul.bf16.gmra.mxu0 %v6422
    %v6446 = vpop.f32.mrf.mxu0
    %v6447 = vadd.f32 %v6377, %v6446
    %v6448 = vpop.f32.mrf.mxu0
    %v6449 = vadd.f32 %v6377, %v6448
    %6450 = vmatmul.bf16.gmra.mxu0 %v6425
    %v6451 = vpop.f32.mrf.mxu0
    %v6452 = vadd.f32 %v6377, %v6451
    %v6453 = vpop.f32.mrf.mxu0
    %v6454 = vadd.f32 %v6377, %v6453
    %6455 = vdwg.mxu0
    %v6456 = vmax.f32 %v6437, 0.0
    %v6457 = vmax.f32 %v6439, 0.0
    %v6458 = vmax.f32 %v6442, 0.0
    %v6459 = vmax.f32 %v6444, 0.0
    %v6460 = vmax.f32 %v6447, 0.0
    %v6461 = vmax.f32 %v6449, 0.0
    %v6462 = vmax.f32 %v6452, 0.0
    %v6463 = vmax.f32 %v6454, 0.0
    %6464 = vst [vmem:[#allocation1] ss:$4 sm:$0xff] %v5605
    %s6465 = scalar_lea.vmem [#allocation1], 1
    %6466 = vst [vmem:[%s6465] ss:$4 sm:$0xff] %v5606
    %s6467 = scalar_lea.vmem [#allocation1], 2
    %6468 = vst [vmem:[%s6467] ss:$4 sm:$0xff] %v5607
    %s6469 = scalar_lea.vmem [#allocation1], 3
    %6470 = vst [vmem:[%s6469] ss:$4 sm:$0xff] %v5608
    %s6471 = scalar_lea.vmem [#allocation1], 32
    %6472 = vst [vmem:[%s6471] ss:$4 sm:$0xff] %v5609
    %s6473 = scalar_lea.vmem [#allocation1], 33
    %6474 = vst [vmem:[%s6473] ss:$4 sm:$0xff] %v5610
    %s6475 = scalar_lea.vmem [#allocation1], 34
    %6476 = vst [vmem:[%s6475] ss:$4 sm:$0xff] %v5611
    %s6477 = scalar_lea.vmem [#allocation1], 35
    %6478 = vst [vmem:[%s6477] ss:$4 sm:$0xff] %v5612
    %v6479 = vld.sshfl [vmem:[#allocation1] sm:$0xff pattern:$0x73625140]
    %v6480 = vld.sshfl [vmem:[#allocation1 + $0x20] sm:$0xff pattern:$0x73625140]
    %6481 = vst [vmem:[#allocation1] ss:$4 sm:$0xff] %v5613
    %6482 = vst [vmem:[%s6465] ss:$4 sm:$0xff] %v5614
    %6483 = vst [vmem:[%s6467] ss:$4 sm:$0xff] %v5615
    %6484 = vst [vmem:[%s6469] ss:$4 sm:$0xff] %v5616
    %6485 = vst [vmem:[%s6471] ss:$4 sm:$0xff] %v5617
    %6486 = vst [vmem:[%s6473] ss:$4 sm:$0xff] %v5618
    %6487 = vst [vmem:[%s6475] ss:$4 sm:$0xff] %v5619
    %6488 = vst [vmem:[%s6477] ss:$4 sm:$0xff] %v5620
    %v6489 = vld.sshfl [vmem:[#allocation1] sm:$0xff pattern:$0x73625140]
    %v6490 = vld.sshfl [vmem:[#allocation1 + $0x20] sm:$0xff pattern:$0x73625140]
    %6491 = vst [vmem:[#allocation1] ss:$4 sm:$0xff] %v5621
    %6492 = vst [vmem:[%s6465] ss:$4 sm:$0xff] %v5622
    %6493 = vst [vmem:[%s6467] ss:$4 sm:$0xff] %v5623
    %6494 = vst [vmem:[%s6469] ss:$4 sm:$0xff] %v5624
    %6495 = vst [vmem:[%s6471] ss:$4 sm:$0xff] %v5625
    %6496 = vst [vmem:[%s6473] ss:$4 sm:$0xff] %v5626
    %6497 = vst [vmem:[%s6475] ss:$4 sm:$0xff] %v5627
    %6498 = vst [vmem:[%s6477] ss:$4 sm:$0xff] %v5628
    %v6499 = vld.sshfl [vmem:[#allocation1] sm:$0xff pattern:$0x73625140]
    %v6500 = vld.sshfl [vmem:[#allocation1 + $0x20] sm:$0xff pattern:$0x73625140]
    %6501 = vst [vmem:[#allocation1] ss:$4 sm:$0xff] %v5629
    %6502 = vst [vmem:[%s6465] ss:$4 sm:$0xff] %v5630
    %6503 = vst [vmem:[%s6467] ss:$4 sm:$0xff] %v5631
    %6504 = vst [vmem:[%s6469] ss:$4 sm:$0xff] %v5632
    %6505 = vst [vmem:[%s6471] ss:$4 sm:$0xff] %v5633
    %6506 = vst [vmem:[%s6473] ss:$4 sm:$0xff] %v5634
    %6507 = vst [vmem:[%s6475] ss:$4 sm:$0xff] %v5635
    %6508 = vst [vmem:[%s6477] ss:$4 sm:$0xff] %v5636
    %v6509 = vld.sshfl [vmem:[#allocation1] sm:$0xff pattern:$0x73625140]
    %v6510 = vld.sshfl [vmem:[#allocation1 + $0x20] sm:$0xff pattern:$0x73625140]
    %v6519 = vpack.c.bf16 %v6480, %v6479
    %v6520 = vpack.c.bf16 %v6490, %v6489
    %v6521 = vpack.c.bf16 %v6500, %v6499
    %v6522 = vpack.c.bf16 %v6510, %v6509
    %v6523 = vpack.c.bf16 %v5236, %v5235
    %v6524 = vpack.c.bf16 %v5238, %v5237
    %v6525 = vpack.c.bf16 %v5240, %v5239
    %v6526 = vpack.c.bf16 %v5242, %v5241
    %v6531 = vunpack.c.l.b16 %v5318
    %v6532 = vunpack.c.l.b16 %v5319
    %v6533 = vunpack.c.l.b16 %v5320
    %v6534 = vunpack.c.l.b16 %v5321
    %v6535 = vpack.c.b16 %v6532, %v6531
    %v6536 = vpack.c.b16 %v6534, %v6533
    %v6540 = vsel %vm838, %v6523, 0
    %v6543 = vsel %vm838, %v6524, 0
    %v6546 = vsel %vm838, %v6525, 0
    %v6549 = vsel %vm838, %v6526, 0
    %6551 = vmatpush.bf16.msra.mxu0 0
    %6552 = vmatpush.bf16.msra.mxu0 0
    %6553 = vmatpush.bf16.msra.mxu0 0
    %6554 = vmatpush.bf16.msra.mxu0 0
    %6555 = vmatpush.bf16.msra.mxu0 0
    %6556 = vmatpush.bf16.msra.mxu0 0
    %6557 = vmatpush.bf16.msra.mxu0 %v6536
    %6558 = vmatpush.bf16.msra.mxu0 %v6535
    %6559 = vmatmul.bf16.gmra.mxu0 %v6540
    %v6560 = vpop.f32.mrf.mxu0
    %v6561 = vadd.f32 0.0, %v6560
    %v6562 = vpop.f32.mrf.mxu0
    %v6563 = vadd.f32 0.0, %v6562
    %6564 = vmatmul.bf16.gmra.mxu0 %v6543
    %v6565 = vpop.f32.mrf.mxu0
    %v6566 = vadd.f32 0.0, %v6565
    %v6567 = vpop.f32.mrf.mxu0
    %v6568 = vadd.f32 0.0, %v6567
    %6569 = vmatmul.bf16.gmra.mxu0 %v6546
    %v6570 = vpop.f32.mrf.mxu0
    %v6571 = vadd.f32 0.0, %v6570
    %v6572 = vpop.f32.mrf.mxu0
    %v6573 = vadd.f32 0.0, %v6572
    %6574 = vmatmul.bf16.gmra.mxu0 %v6549
    %v6575 = vpop.f32.mrf.mxu0
    %v6576 = vadd.f32 0.0, %v6575
    %v6577 = vpop.f32.mrf.mxu0
    %v6578 = vadd.f32 0.0, %v6577
    %6579 = vdwg.mxu0
    %v6588 = vunpack.c.l.b16 %v5310
    %v6589 = vunpack.c.l.b16 %v5311
    %v6590 = vunpack.c.l.b16 %v5312
    %v6591 = vunpack.c.l.b16 %v5313
    %v6592 = vunpack.c.l.b16 %v5314
    %v6593 = vunpack.c.l.b16 %v5315
    %v6594 = vunpack.c.l.b16 %v5316
    %v6595 = vunpack.c.l.b16 %v5317
    %v6596 = vpack.c.b16 %v6589, %v6588
    %v6597 = vpack.c.b16 %v6591, %v6590
    %v6598 = vpack.c.b16 %v6593, %v6592
    %v6599 = vpack.c.b16 %v6595, %v6594
    %v6605 = vsel %vm847, %v6519, 0
    %v6608 = vsel %vm847, %v6520, 0
    %v6611 = vsel %vm847, %v6521, 0
    %v6614 = vsel %vm847, %v6522, 0
    %6616 = vmatpush.bf16.msra.mxu0 0
    %6617 = vmatpush.bf16.msra.mxu0 0
    %6618 = vmatpush.bf16.msra.mxu0 0
    %6619 = vmatpush.bf16.msra.mxu0 0
    %6620 = vmatpush.bf16.msra.mxu0 %v6599
    %6621 = vmatpush.bf16.msra.mxu0 %v6598
    %6622 = vmatpush.bf16.msra.mxu0 %v6597
    %6623 = vmatpush.bf16.msra.mxu0 %v6596
    %6624 = vmatmul.bf16.gmra.mxu0 %v6605
    %v6625 = vpop.f32.mrf.mxu0
    %v6626 = vadd.f32 %v6561, %v6625
    %v6627 = vpop.f32.mrf.mxu0
    %v6628 = vadd.f32 %v6563, %v6627
    %6629 = vmatmul.bf16.gmra.mxu0 %v6608
    %v6630 = vpop.f32.mrf.mxu0
    %v6631 = vadd.f32 %v6566, %v6630
    %v6632 = vpop.f32.mrf.mxu0
    %v6633 = vadd.f32 %v6568, %v6632
    %6634 = vmatmul.bf16.gmra.mxu0 %v6611
    %v6635 = vpop.f32.mrf.mxu0
    %v6636 = vadd.f32 %v6571, %v6635
    %v6637 = vpop.f32.mrf.mxu0
    %v6638 = vadd.f32 %v6573, %v6637
    %6639 = vmatmul.bf16.gmra.mxu0 %v6614
    %v6640 = vpop.f32.mrf.mxu0
    %v6641 = vadd.f32 %v6576, %v6640
    %v6642 = vpop.f32.mrf.mxu0
    %v6643 = vadd.f32 %v6578, %v6642
    %6644 = vdwg.mxu0
    %v6646 = vperm.slane %v5322, 0
    %v6648 = vadd.f32 %v6626, %v6646
    %v6649 = vadd.f32 %v6628, %v6646
    %v6650 = vadd.f32 %v6631, %v6646
    %v6651 = vadd.f32 %v6633, %v6646
    %v6652 = vadd.f32 %v6636, %v6646
    %v6653 = vadd.f32 %v6638, %v6646
    %v6654 = vadd.f32 %v6641, %v6646
    %v6655 = vadd.f32 %v6643, %v6646
    %v6656 = vadd.f32 %v6456, %v6648
    %v6657 = vadd.f32 %v6457, %v6649
    %v6658 = vadd.f32 %v6458, %v6650
    %v6659 = vadd.f32 %v6459, %v6651
    %v6660 = vadd.f32 %v6460, %v6652
    %v6661 = vadd.f32 %v6461, %v6653
    %v6662 = vadd.f32 %v6462, %v6654
    %v6663 = vadd.f32 %v6463, %v6655
    %v6664 = vmax.f32 %v6656, 0.0
    %v6665 = vmax.f32 %v6657, 0.0
    %v6666 = vmax.f32 %v6658, 0.0
    %v6667 = vmax.f32 %v6659, 0.0
    %v6668 = vmax.f32 %v6660, 0.0
    %v6669 = vmax.f32 %v6661, 0.0
    %v6670 = vmax.f32 %v6662, 0.0
    %v6671 = vmax.f32 %v6663, 0.0
    %v6672 = vpack.c.bf16 %v6665, %v6664
    %v6673 = vpack.c.bf16 %v6667, %v6666
    %v6674 = vpack.c.bf16 %v6669, %v6668
    %v6675 = vpack.c.bf16 %v6671, %v6670
    %v6676 = vld [vmem:[%s121] sm:$0xf]
    %v6677 = vld [vmem:[%s121 + $0x4] sm:$0xf]
    %v6678 = vld [vmem:[%s121 + $0x8] sm:$0xf]
    %v6679 = vld [vmem:[%s121 + $0xc] sm:$0xf]
    %v6680 = vld [vmem:[#allocation37] sm:$0x1]
    %v6682 = vperm.slane %v6680, 0
    %v6688 = vunpack.c.l.b16 %v6676
    %v6689 = vunpack.c.l.b16 %v6677
    %v6690 = vunpack.c.l.b16 %v6678
    %v6691 = vunpack.c.l.b16 %v6679
    %v6692 = vpack.c.b16 %v6689, %v6688
    %v6693 = vpack.c.b16 %v6691, %v6690
    %v6697 = vsel %vm838, %v6672, 0
    %v6700 = vsel %vm838, %v6673, 0
    %v6703 = vsel %vm838, %v6674, 0
    %v6706 = vsel %vm838, %v6675, 0
    %6708 = vmatpush.bf16.msra.mxu0 0
    %6709 = vmatpush.bf16.msra.mxu0 0
    %6710 = vmatpush.bf16.msra.mxu0 0
    %6711 = vmatpush.bf16.msra.mxu0 0
    %6712 = vmatpush.bf16.msra.mxu0 0
    %6713 = vmatpush.bf16.msra.mxu0 0
    %6714 = vmatpush.bf16.msra.mxu0 %v6693
    %6715 = vmatpush.bf16.msra.mxu0 %v6692
    %6716 = vmatmul.bf16.gmra.mxu0 %v6697
    %v6717 = vpop.f32.mrf.mxu0
    %v6718 = vadd.f32 %v6682, %v6717
    %v6719 = vpop.f32.mrf.mxu0
    %v6720 = vadd.f32 %v6682, %v6719
    %6721 = vmatmul.bf16.gmra.mxu0 %v6700
    %v6722 = vpop.f32.mrf.mxu0
    %v6723 = vadd.f32 %v6682, %v6722
    %v6724 = vpop.f32.mrf.mxu0
    %v6725 = vadd.f32 %v6682, %v6724
    %6726 = vmatmul.bf16.gmra.mxu0 %v6703
    %v6727 = vpop.f32.mrf.mxu0
    %v6728 = vadd.f32 %v6682, %v6727
    %v6729 = vpop.f32.mrf.mxu0
    %v6730 = vadd.f32 %v6682, %v6729
    %6731 = vmatmul.bf16.gmra.mxu0 %v6706
    %v6732 = vpop.f32.mrf.mxu0
    %v6733 = vadd.f32 %v6682, %v6732
    %v6734 = vpop.f32.mrf.mxu0
    %v6735 = vadd.f32 %v6682, %v6734
    %6736 = vdwg.mxu0
    %6737 = vst.msk [vmem:[%s125] sm:$0xff] %vm654, %v6718
    %6738 = vst.msk [vmem:[%s125 + $0x8] sm:$0xff] %vm654, %v6720
    %6739 = vst.msk [vmem:[%s125 + $0x10] sm:$0xff] %vm654, %v6723
    %6740 = vst.msk [vmem:[%s125 + $0x18] sm:$0xff] %vm654, %v6725
    %6741 = vst.msk [vmem:[%s125 + $0x20] sm:$0xff] %vm654, %v6728
    %6742 = vst.msk [vmem:[%s125 + $0x28] sm:$0xff] %vm654, %v6730
    %6743 = vst.msk [vmem:[%s125 + $0x30] sm:$0xff] %vm654, %v6733
    %6744 = vst.msk [vmem:[%s125 + $0x38] sm:$0xff] %vm654, %v6735
    // Predicated region
    $region330: #{ex_forward.1} parent=1 // pred_check
      _
    $region331: #{ex_forward.1} parent=1 // pred_check_branch
      %6746 = sbr.rel (0) target = $region333
    $region332: #{ex_forward.1} parent=1 // pred_region
      _
    $region333: #{ex_forward.1} parent=1 // pred_fallthru
      _
    // Predicated region
    $region334: #{ex_forward.1} parent=1 // pred_check
      _
    $region335: #{ex_forward.1} parent=1 // pred_check_branch
      %6748 = sbr.rel (0) target = $region337
    $region336: #{ex_forward.1} parent=1 // pred_region
      _
    $region337: #{ex_forward.1} parent=1 // pred_fallthru
      _
    %6749 = vsyncpa [#allocation9], 1
    %6750 = vsyncpa [#allocation11], 1
    %6751 = vsyncpa [#allocation14], 1
    %6752 = vsyncpa [#allocation17], 1
    %6753 = vsyncpa [#allocation20], 1
    %6754 = vsyncpa [#allocation23], 1
    %6755 = vsyncpa [#allocation26], 1
    %6756 = vsyncpa [#allocation29], 1
    %6757 = vsyncpa [#allocation32], 1
    %6758 = vsyncpa [#allocation35], 1
    %6759 = vsyncpa [#allocation38], 1

</llo_original>
